<compile_context>
chip_gen: v7x
topology: tpu7x:2x2x1
jax: 0.10.0
libtpu: 0.0.40
codegen_flags: <defaults>
</compile_context>

<pallas_src>
import functools

import jax
import jax.numpy as jnp
from jax.experimental import pallas as pl
from jax.experimental.pallas import tpu as pltpu

EPS = 1e-5
_MXU_DTYPE = jnp.bfloat16   # MXU operand dtype (f32 accumulation everywhere)


def _round_up(x, m):
    return (x + m - 1) // m * m


def _default_vmem_limit():
    # ~75% of physical VMEM: ~96 MiB on v5e/v6e (128 MiB), ~48 MiB on v7x (64 MiB).
    try:
        cap = int(pltpu.get_tpu_info().vmem_capacity_bytes)
    except Exception:
        cap = 64 * 1024 * 1024
    return int(max(32 * 1024 * 1024, min(3 * cap // 4, 100 * 1024 * 1024)))


_VMEM_LIMIT = _default_vmem_limit()

# ---------------------------------------------------------------------------
# Canonical activation layout (per batch element), flattened:
#   shape (R, Cp), R = (H + 4) * Wp, Wp = round_up(W + 2, 8), Cp = round_up(C, 128)
#   flat row r = p * Wp + q holds act[p - 2, q - 1] for p in [2, H+2), q in [1, W],
#   exact zeros everywhere else (spatial + channel padding).
# A column shift by +-1 is a flat-row shift by +-1; an image-row shift by +-1 is a
# flat-row shift by +-Wp (always a multiple of 8 -> aligned sublane slices).
# ---------------------------------------------------------------------------


def _conv_bn_stats_kernel(mask_ref, x_ref, scale_ref, shift_ref, w_ref,
                          y_ref, sum_ref, sumsq_ref, xcat_ref,
                          *, H, Wp, fuse_bn, full_frame_out):
    L = H * Wp
    R = (H + 4) * Wp
    win = (H + 2) * Wp                        # rows of the staging window
    cin_p = x_ref.shape[-1]
    cout_p = y_ref.shape[-1]

    x = x_ref[0]                              # (R, Cin_p) f32
    if fuse_bn:
        # Previous stage's BatchNorm + ReLU, fused in VMEM; re-zero the padding frame
        # so the conv halo stays exact (ReLU(shift) != 0 when beta > 0).
        a = jnp.maximum(x * scale_ref[...] + shift_ref[...], 0.0)
        x = jnp.where(mask_ref[...] > 0.0, a, 0.0)

    # Column-shifted copies (flat layout: column shift == flat-row shift by +-1).
    # The wrapped rows never intersect the [Wp, Wp + win) window consumed below.
    x_l = pltpu.roll(x, shift=1, axis=0)      # x_l[r] = x[r-1]  (kw = 0 tap)
    x_r = pltpu.roll(x, shift=R - 1, axis=0)  # x_r[r] = x[r+1]  (kw = 2 tap)

    # Stage the three column shifts side-by-side along the contraction dim (bf16),
    # so the conv becomes 3 matmuls with K = 3*Cin_p instead of 9 with K = Cin_p.
    xcat_ref[:, 0:cin_p] = x_l[Wp:Wp + win, :].astype(_MXU_DTYPE)
    xcat_ref[:, cin_p:2 * cin_p] = x[Wp:Wp + win, :].astype(_MXU_DTYPE)
    xcat_ref[:, 2 * cin_p:3 * cin_p] = x_r[Wp:Wp + win, :].astype(_MXU_DTYPE)

    # Accumulate the three row taps directly into the output block (f32, no scratch).
    off = 2 * Wp if full_frame_out else 0
    for kh in range(3):
        blk = xcat_ref[kh * Wp:kh * Wp + L, :]                 # (L, 3*Cin_p) bf16
        contrib = jnp.dot(blk, w_ref[kh], preferred_element_type=jnp.float32)
        if kh == 0:
            y_ref[0, off:off + L, :] = contrib
        else:
            y_ref[0, off:off + L, :] += contrib

    if full_frame_out:
        edge = jnp.zeros((2 * Wp, cout_p), jnp.float32)
        y_ref[0, 0:2 * Wp, :] = edge
        y_ref[0, off + L:R, :] = edge

    # Per-batch partial sufficient statistics over valid spatial positions only.
    m = mask_ref[2 * Wp:2 * Wp + L, :]                         # (L, 1)
    acc = y_ref[0, off:off + L, :]                             # (L, Cout_p) f32
    yv = jnp.where(m > 0.0, acc, 0.0)
    sum_ref[0] = jnp.sum(yv, axis=0, keepdims=True)
    sumsq_ref[0] = jnp.sum(yv * yv, axis=0, keepdims=True)


def _conv_stage(x_can, w_cat, mask, scale_in, shift_in, *, N, H, Wp,
                cin_p, cout_p, fuse_bn, full_frame_out):
    """Conv3x3 (no bias) [+ fused previous-stage BN/ReLU] + per-batch partial stats."""
    R = (H + 4) * Wp
    L = H * Wp
    win = (H + 2) * Wp
    out_rows = R if full_frame_out else L
    kernel = functools.partial(_conv_bn_stats_kernel, H=H, Wp=Wp,
                               fuse_bn=fuse_bn, full_frame_out=full_frame_out)
    return pl.pallas_call(
        kernel,
        grid=(N,),
        in_specs=[
            pl.BlockSpec((R, 1), lambda b: (0, 0)),                     # validity mask
            pl.BlockSpec((1, R, cin_p), lambda b: (b, 0, 0)),           # activation
            pl.BlockSpec((1, cin_p), lambda b: (0, 0)),                 # fused BN scale
            pl.BlockSpec((1, cin_p), lambda b: (0, 0)),                 # fused BN shift
            pl.BlockSpec((3, 3 * cin_p, cout_p), lambda b: (0, 0, 0)),  # conv weights
        ],
        out_specs=[
            pl.BlockSpec((1, out_rows, cout_p), lambda b: (b, 0, 0)),   # raw conv out
            pl.BlockSpec((1, 1, cout_p), lambda b: (b, 0, 0)),          # partial sum
            pl.BlockSpec((1, 1, cout_p), lambda b: (b, 0, 0)),          # partial sumsq
        ],
        out_shape=[
            jax.ShapeDtypeStruct((N, out_rows, cout_p), jnp.float32),
            jax.ShapeDtypeStruct((N, 1, cout_p), jnp.float32),
            jax.ShapeDtypeStruct((N, 1, cout_p), jnp.float32),
        ],
        scratch_shapes=[pltpu.VMEM((win, 3 * cin_p), _MXU_DTYPE)],
        compiler_params=pltpu.CompilerParams(
            dimension_semantics=("parallel",),   # per-batch blocks -> megacore on v7x
            vmem_limit_bytes=_VMEM_LIMIT),
    )(mask, x_can, scale_in, shift_in, w_cat)


def _bn_relu_kernel(y_ref, scale_ref, shift_ref, o_ref):
    o_ref[0] = jnp.maximum(y_ref[0] * scale_ref[...] + shift_ref[...], 0.0)


def _bn_relu_stage(y_raw, scale, shift, *, N, L, cout_p):
    """Final BatchNorm + ReLU on interior-only, lane-dense (L, Cout_p) blocks."""
    return pl.pallas_call(
        _bn_relu_kernel,
        grid=(N,),
        in_specs=[
            pl.BlockSpec((1, L, cout_p), lambda b: (b, 0, 0)),
            pl.BlockSpec((1, cout_p), lambda b: (0, 0)),
            pl.BlockSpec((1, cout_p), lambda b: (0, 0)),
        ],
        out_specs=pl.BlockSpec((1, L, cout_p), lambda b: (b, 0, 0)),
        out_shape=jax.ShapeDtypeStruct((N, L, cout_p), jnp.float32),
        compiler_params=pltpu.CompilerParams(
            dimension_semantics=("parallel",),
            vmem_limit_bytes=_VMEM_LIMIT),
    )(y_raw, scale, shift)


def _bn_scale_shift(psum, psumsq, gamma_p, beta_p, count):
    # Biased batch variance from per-batch partial sums, reduced in plain JAX (f32).
    mean = jnp.sum(psum, axis=0) / count            # (1, Cp)
    ex2 = jnp.sum(psumsq, axis=0) / count
    var = jnp.maximum(ex2 - mean * mean, 0.0)
    inv_std = jax.lax.rsqrt(var + EPS)
    scale = gamma_p.reshape(1, -1) * inv_std
    shift = beta_p.reshape(1, -1) - mean * scale
    return scale, shift


def _prep_weights(w_ochw, cin_p, cout_p):
    # PyTorch conv weight (Cout, Cin, 3, 3) -> (3, 3*Cin_p, Cout_p):
    #   w_cat[kh, kw*Cin_p + c, o] = w_ochw[o, c, kh, kw]
    cout, cin = w_ochw.shape[0], w_ochw.shape[1]
    w = jnp.transpose(w_ochw.astype(jnp.float32), (2, 3, 1, 0))    # (3, 3, Cin, Cout)
    w = jnp.pad(w, ((0, 0), (0, 0), (0, cin_p - cin), (0, cout_p - cout)))
    return w.reshape(3, 3 * cin_p, cout_p).astype(_MXU_DTYPE)


def _pad_vec(v, cp, fill):
    return jnp.pad(v.astype(jnp.float32), (0, cp - v.shape[0]), constant_values=fill)


@jax.jit
def double_conv(x_nchw, w1, g1, b1, w2, g2, b2):
    N, Cin, H, W = x_nchw.shape
    Cmid, Cout = w1.shape[0], w2.shape[0]

    Wp = _round_up(W + 2, 8)
    cin_p = max(128, _round_up(Cin, 128))
    cmid_p = max(128, _round_up(Cmid, 128))
    cout_p = max(128, _round_up(Cout, 128))
    R = (H + 4) * Wp
    L = H * Wp

    # Canonical flat zero-padded NHWC input (only host-side relayout; all inter-stage
    # activations are produced directly in this layout on-chip).
    x = jnp.transpose(x_nchw, (0, 2, 3, 1)).astype(jnp.float32)
    x = jnp.pad(x, ((0, 0), (2, 2), (1, Wp - W - 1), (0, cin_p - Cin)))
    x = x.reshape(N, R, cin_p)

    # Precomputed validity mask of the canonical frame (1.0 = real pixel).
    ridx = jnp.arange(R, dtype=jnp.int32)
    p, q = ridx // Wp, ridx % Wp
    valid = (p >= 2) & (p < H + 2) & (q >= 1) & (q <= W)
    mask = valid.astype(jnp.float32).reshape(R, 1)

    w1c = _prep_weights(w1, cin_p, cmid_p)
    w2c = _prep_weights(w2, cmid_p, cout_p)
    g1p, b1p = _pad_vec(g1, cmid_p, 1.0), _pad_vec(b1, cmid_p, 0.0)
    g2p, b2p = _pad_vec(g2, cout_p, 1.0), _pad_vec(b2, cout_p, 0.0)

    count = jnp.float32(N * H * W)
    dummy = jnp.zeros((1, cin_p), jnp.float32)

    # Stage 1: conv1 + per-batch partial stats (full canonical frame for stage 2).
    y1, s1, ss1 = _conv_stage(x, w1c, mask, dummy, dummy,
                              N=N, H=H, Wp=Wp, cin_p=cin_p, cout_p=cmid_p,
                              fuse_bn=False, full_frame_out=True)
    scale1, shift1 = _bn_scale_shift(s1, ss1, g1p, b1p, count)

    # Stage 2: BN1 + ReLU fused into conv2; interior-only output + partial stats.
    y2, s2, ss2 = _conv_stage(y1, w2c, mask, scale1, shift1,
                              N=N, H=H, Wp=Wp, cin_p=cmid_p, cout_p=cout_p,
                              fuse_bn=True, full_frame_out=False)
    scale2, shift2 = _bn_scale_shift(s2, ss2, g2p, b2p, count)

    # Final BN2 + ReLU (elementwise, lane-dense interior blocks).
    a2 = _bn_relu_stage(y2, scale2, shift2, N=N, L=L, cout_p=cout_p)

    y = a2.reshape(N, H, Wp, cout_p)[:, :, 1:W + 1, :Cout]
    return jnp.transpose(y, (0, 3, 1, 2))  # NCHW


def _reference(x, w1, g1, b1, w2, g2, b2, eps=EPS):
    # Pure-JAX reference with the same bf16 MXU operand cast / f32 accumulation.
    def stage(x_nchw, w, g, b):
        y = jax.lax.conv_general_dilated(
            x_nchw.astype(_MXU_DTYPE), w.astype(_MXU_DTYPE),
            window_strides=(1, 1), padding=((1, 1), (1, 1)),
            dimension_numbers=("NCHW", "OIHW", "NCHW"),
            preferred_element_type=jnp.float32)
        mean = jnp.mean(y, axis=(0, 2, 3), keepdims=True)
        var = jnp.mean((y - mean) ** 2, axis=(0, 2, 3), keepdims=True)
        yhat = (y - mean) * jax.lax.rsqrt(var + eps)
        yhat = yhat * g.reshape(1, -1, 1, 1) + b.reshape(1, -1, 1, 1)
        return jnp.maximum(yhat, 0.0)

    return stage(stage(x, w1, g1, b1), w2, g2, b2)


if __name__ == "__main__":
    # Small deterministic example: batch=2, in_channel=4, out_channels=8, 16x16.
    N, Cin, H, W = 2, 4, 16, 16
    Cmid = Cout = 8  # mid_channels defaults to out_channels

    key = jax.random.PRNGKey(0)
    kx, kw1, kw2 = jax.random.split(key, 3)

    x = jax.random.normal(kx, (N, Cin, H, W), dtype=jnp.float32)
    w1 = jax.random.normal(kw1, (Cmid, Cin, 3, 3), dtype=jnp.float32) * 0.1
    w2 = jax.random.normal(kw2, (Cout, Cmid, 3, 3), dtype=jnp.float32) * 0.1
    # Non-trivial affine params to exercise the fused-BN padding re-zero path.
    g1 = jnp.full((Cmid,), 1.2, jnp.float32)
    b1 = jnp.full((Cmid,), 0.1, jnp.float32)
    g2 = jnp.full((Cout,), 0.9, jnp.float32)
    b2 = jnp.full((Cout,), -0.05, jnp.float32)

    out = jax.block_until_ready(double_conv(x, w1, g1, b1, w2, g2, b2))
    assert out.shape == (N, Cout, H, W)
    assert bool(jnp.all(out >= 0.0))  # ReLU output

    ref = jax.block_until_ready(_reference(x, w1, g1, b1, w2, g2, b2))
    max_err = float(jnp.max(jnp.abs(out - ref)))
    assert bool(jnp.allclose(out, ref, atol=5e-2, rtol=5e-2)), max_err

    print("KERNEL_OK")
</pallas_src>

<mosaic_0001>
module attributes {stable_mosaic.version = 11 : i64} {
  func.func @_conv_bn_stats_kernel(%arg0: i32, %arg1: memref<480x1xf32, #tpu.memory_space<vmem>>, %arg2: memref<1x480x128xf32, #tpu.memory_space<vmem>>, %arg3: memref<1x128xf32, #tpu.memory_space<vmem>>, %arg4: memref<1x128xf32, #tpu.memory_space<vmem>>, %arg5: memref<3x384x128xbf16, #tpu.memory_space<vmem>>, %arg6: memref<1x480x128xf32, #tpu.memory_space<vmem>>, %arg7: memref<1x1x128xf32, #tpu.memory_space<vmem>>, %arg8: memref<1x1x128xf32, #tpu.memory_space<vmem>>, %arg9: memref<432x384xbf16, #tpu.memory_space<vmem>>) attributes {dimension_semantics = [#tpu.dimension_semantics<parallel>], iteration_bounds = array<i64: 2>, scalar_prefetch = 0 : i64, scratch_operands = 1 : i64, tpu.core_type = #tpu.core_type<tc>, window_params = [{pipeline_mode = #tpu.pipeline_mode<synchronous>, transform_indices = @transform_0, window_bounds = array<i64: 480, 1>}, {transform_indices = @transform_1, window_bounds = array<i64: 1, 480, 128>}, {pipeline_mode = #tpu.pipeline_mode<synchronous>, transform_indices = @transform_2, window_bounds = array<i64: 1, 128>}, {pipeline_mode = #tpu.pipeline_mode<synchronous>, transform_indices = @transform_3, window_bounds = array<i64: 1, 128>}, {pipeline_mode = #tpu.pipeline_mode<synchronous>, transform_indices = @transform_4, window_bounds = array<i64: 3, 384, 128>}, {transform_indices = @transform_5, window_bounds = array<i64: 1, 480, 128>}, {transform_indices = @transform_6, window_bounds = array<i64: 1, 1, 128>}, {transform_indices = @transform_7, window_bounds = array<i64: 1, 1, 128>}]} {
    %c0 = arith.constant 0 : index
    %c0_0 = arith.constant 0 : index
    %c0_1 = arith.constant 0 : index
    %0 = vector.load %arg2[%c0, %c0_0, %c0_1] : memref<1x480x128xf32, #tpu.memory_space<vmem>>, vector<1x480x128xf32>
    %1 = vector.shape_cast %0 : vector<1x480x128xf32> to vector<480x128xf32>
    %c1_i32 = arith.constant 1 : i32
    %2 = tpu.dynamic_rotate %1 by %c1_i32 dim 0 : vector<480x128xf32>, i32 -> vector<480x128xf32>
    %c479_i32 = arith.constant 479 : i32
    %3 = tpu.dynamic_rotate %1 by %c479_i32 dim 0 : vector<480x128xf32>, i32 -> vector<480x128xf32>
    %4 = vector.extract_strided_slice %2 {offsets = [24, 0], sizes = [432, 128], strides = [1, 1]} : vector<480x128xf32> to vector<432x128xf32>
    %5 = arith.truncf %4 : vector<432x128xf32> to vector<432x128xbf16>
    %c0_2 = arith.constant 0 : index
    %c0_3 = arith.constant 0 : index
    %6 = vector.load %arg9[%c0_2, %c0_3] : memref<432x384xbf16, #tpu.memory_space<vmem>>, vector<432x128xbf16>
    tpu.vector_store %arg9[%c0_2, %c0_3], %5 {strides = array<i32>} : memref<432x384xbf16, #tpu.memory_space<vmem>>, vector<432x128xbf16>,
    %7 = vector.extract_strided_slice %1 {offsets = [24, 0], sizes = [432, 128], strides = [1, 1]} : vector<480x128xf32> to vector<432x128xf32>
    %8 = arith.truncf %7 : vector<432x128xf32> to vector<432x128xbf16>
    %c0_4 = arith.constant 0 : index
    %c128 = arith.constant 128 : index
    %9 = vector.load %arg9[%c0_4, %c128] : memref<432x384xbf16, #tpu.memory_space<vmem>>, vector<432x128xbf16>
    tpu.vector_store %arg9[%c0_4, %c128], %8 {strides = array<i32>} : memref<432x384xbf16, #tpu.memory_space<vmem>>, vector<432x128xbf16>,
    %10 = vector.extract_strided_slice %3 {offsets = [24, 0], sizes = [432, 128], strides = [1, 1]} : vector<480x128xf32> to vector<432x128xf32>
    %11 = arith.truncf %10 : vector<432x128xf32> to vector<432x128xbf16>
    %c0_5 = arith.constant 0 : index
    %c256 = arith.constant 256 : index
    %12 = vector.load %arg9[%c0_5, %c256] : memref<432x384xbf16, #tpu.memory_space<vmem>>, vector<432x128xbf16>
    tpu.vector_store %arg9[%c0_5, %c256], %11 {strides = array<i32>} : memref<432x384xbf16, #tpu.memory_space<vmem>>, vector<432x128xbf16>,
    %c0_6 = arith.constant 0 : index
    %c0_7 = arith.constant 0 : index
    %13 = vector.load %arg9[%c0_6, %c0_7] : memref<432x384xbf16, #tpu.memory_space<vmem>>, vector<384x384xbf16>
    %c0_8 = arith.constant 0 : index
    %c0_9 = arith.constant 0 : index
    %c0_10 = arith.constant 0 : index
    %14 = vector.load %arg5[%c0_8, %c0_9, %c0_10] : memref<3x384x128xbf16, #tpu.memory_space<vmem>>, vector<1x384x128xbf16>
    %15 = vector.shape_cast %14 : vector<1x384x128xbf16> to vector<384x128xbf16>
    %cst = arith.constant dense<0.000000e+00> : vector<384x128xf32>
    %16 = tpu.matmul %13, %15, %cst {dimension_numbers = #tpu.dot_dimension_numbers<[1], [0], [0], [1], [0, 0, 1, 1], [], []>} : vector<384x384xbf16>, vector<384x128xbf16>, vector<384x128xf32> -> vector<384x128xf32>
    %c0_11 = arith.constant 0 : index
    %c48 = arith.constant 48 : index
    %c0_12 = arith.constant 0 : index
    %17 = vector.load %arg6[%c0_11, %c48, %c0_12] : memref<1x480x128xf32, #tpu.memory_space<vmem>>, vector<1x384x128xf32>
    %18 = vector.shape_cast %17 : vector<1x384x128xf32> to vector<384x128xf32>
    %19 = vector.shape_cast %16 : vector<384x128xf32> to vector<1x384x128xf32>
    tpu.vector_store %arg6[%c0_11, %c48, %c0_12], %19 {strides = array<i32>} : memref<1x480x128xf32, #tpu.memory_space<vmem>>, vector<1x384x128xf32>,
    %c24 = arith.constant 24 : index
    %c0_13 = arith.constant 0 : index
    %20 = vector.load %arg9[%c24, %c0_13] : memref<432x384xbf16, #tpu.memory_space<vmem>>, vector<384x384xbf16>
    %c1 = arith.constant 1 : index
    %c0_14 = arith.constant 0 : index
    %c0_15 = arith.constant 0 : index
    %21 = vector.load %arg5[%c1, %c0_14, %c0_15] : memref<3x384x128xbf16, #tpu.memory_space<vmem>>, vector<1x384x128xbf16>
    %22 = vector.shape_cast %21 : vector<1x384x128xbf16> to vector<384x128xbf16>
    %cst_16 = arith.constant dense<0.000000e+00> : vector<384x128xf32>
    %23 = tpu.matmul %20, %22, %cst_16 {dimension_numbers = #tpu.dot_dimension_numbers<[1], [0], [0], [1], [0, 0, 1, 1], [], []>} : vector<384x384xbf16>, vector<384x128xbf16>, vector<384x128xf32> -> vector<384x128xf32>
    %c0_17 = arith.constant 0 : index
    %c48_18 = arith.constant 48 : index
    %c0_19 = arith.constant 0 : index
    %24 = vector.load %arg6[%c0_17, %c48_18, %c0_19] : memref<1x480x128xf32, #tpu.memory_space<vmem>>, vector<1x384x128xf32>
    %25 = vector.shape_cast %24 : vector<1x384x128xf32> to vector<384x128xf32>
    %26 = arith.addf %25, %23 : vector<384x128xf32>
    %c0_20 = arith.constant 0 : index
    %c48_21 = arith.constant 48 : index
    %c0_22 = arith.constant 0 : index
    %27 = vector.load %arg6[%c0_20, %c48_21, %c0_22] : memref<1x480x128xf32, #tpu.memory_space<vmem>>, vector<1x384x128xf32>
    %28 = vector.shape_cast %27 : vector<1x384x128xf32> to vector<384x128xf32>
    %29 = vector.shape_cast %26 : vector<384x128xf32> to vector<1x384x128xf32>
    tpu.vector_store %arg6[%c0_20, %c48_21, %c0_22], %29 {strides = array<i32>} : memref<1x480x128xf32, #tpu.memory_space<vmem>>, vector<1x384x128xf32>,
    %c48_23 = arith.constant 48 : index
    %c0_24 = arith.constant 0 : index
    %30 = vector.load %arg9[%c48_23, %c0_24] : memref<432x384xbf16, #tpu.memory_space<vmem>>, vector<384x384xbf16>
    %c2 = arith.constant 2 : index
    %c0_25 = arith.constant 0 : index
    %c0_26 = arith.constant 0 : index
    %31 = vector.load %arg5[%c2, %c0_25, %c0_26] : memref<3x384x128xbf16, #tpu.memory_space<vmem>>, vector<1x384x128xbf16>
    %32 = vector.shape_cast %31 : vector<1x384x128xbf16> to vector<384x128xbf16>
    %cst_27 = arith.constant dense<0.000000e+00> : vector<384x128xf32>
    %33 = tpu.matmul %30, %32, %cst_27 {dimension_numbers = #tpu.dot_dimension_numbers<[1], [0], [0], [1], [0, 0, 1, 1], [], []>} : vector<384x384xbf16>, vector<384x128xbf16>, vector<384x128xf32> -> vector<384x128xf32>
    %c0_28 = arith.constant 0 : index
    %c48_29 = arith.constant 48 : index
    %c0_30 = arith.constant 0 : index
    %34 = vector.load %arg6[%c0_28, %c48_29, %c0_30] : memref<1x480x128xf32, #tpu.memory_space<vmem>>, vector<1x384x128xf32>
    %35 = vector.shape_cast %34 : vector<1x384x128xf32> to vector<384x128xf32>
    %36 = arith.addf %35, %33 : vector<384x128xf32>
    %c0_31 = arith.constant 0 : index
    %c48_32 = arith.constant 48 : index
    %c0_33 = arith.constant 0 : index
    %37 = vector.load %arg6[%c0_31, %c48_32, %c0_33] : memref<1x480x128xf32, #tpu.memory_space<vmem>>, vector<1x384x128xf32>
    %38 = vector.shape_cast %37 : vector<1x384x128xf32> to vector<384x128xf32>
    %39 = vector.shape_cast %36 : vector<384x128xf32> to vector<1x384x128xf32>
    tpu.vector_store %arg6[%c0_31, %c48_32, %c0_33], %39 {strides = array<i32>} : memref<1x480x128xf32, #tpu.memory_space<vmem>>, vector<1x384x128xf32>,
    %cst_34 = arith.constant 0.000000e+00 : f32
    %40 = vector.broadcast %cst_34 : f32 to vector<48x128xf32>
    %c0_35 = arith.constant 0 : index
    %c0_36 = arith.constant 0 : index
    %c0_37 = arith.constant 0 : index
    %41 = vector.load %arg6[%c0_35, %c0_36, %c0_37] : memref<1x480x128xf32, #tpu.memory_space<vmem>>, vector<1x48x128xf32>
    %42 = vector.shape_cast %41 : vector<1x48x128xf32> to vector<48x128xf32>
    %43 = vector.shape_cast %40 : vector<48x128xf32> to vector<1x48x128xf32>
    tpu.vector_store %arg6[%c0_35, %c0_36, %c0_37], %43 {strides = array<i32>} : memref<1x480x128xf32, #tpu.memory_space<vmem>>, vector<1x48x128xf32>,
    %c0_38 = arith.constant 0 : index
    %c432 = arith.constant 432 : index
    %c0_39 = arith.constant 0 : index
    %44 = vector.load %arg6[%c0_38, %c432, %c0_39] : memref<1x480x128xf32, #tpu.memory_space<vmem>>, vector<1x48x128xf32>
    %45 = vector.shape_cast %44 : vector<1x48x128xf32> to vector<48x128xf32>
    %46 = vector.shape_cast %40 : vector<48x128xf32> to vector<1x48x128xf32>
    tpu.vector_store %arg6[%c0_38, %c432, %c0_39], %46 {strides = array<i32>} : memref<1x480x128xf32, #tpu.memory_space<vmem>>, vector<1x48x128xf32>,
    %c48_40 = arith.constant 48 : index
    %c0_41 = arith.constant 0 : index
    %47 = vector.load %arg1[%c48_40, %c0_41] : memref<480x1xf32, #tpu.memory_space<vmem>>, vector<384x1xf32>
    %c0_42 = arith.constant 0 : index
    %c48_43 = arith.constant 48 : index
    %c0_44 = arith.constant 0 : index
    %48 = vector.load %arg6[%c0_42, %c48_43, %c0_44] : memref<1x480x128xf32, #tpu.memory_space<vmem>>, vector<1x384x128xf32>
    %49 = vector.shape_cast %48 : vector<1x384x128xf32> to vector<384x128xf32>
    %cst_45 = arith.constant 0.000000e+00 : f32
    %50 = vector.broadcast %cst_45 : f32 to vector<384x1xf32>
    %51 = arith.cmpf ogt, %47, %50 : vector<384x1xf32>
    %cst_46 = arith.constant 0.000000e+00 : f32
    %52 = vector.shape_cast %51 : vector<384x1xi1> to vector<384x1xi1>
    %53 = vector.broadcast %52 : vector<384x1xi1> to vector<384x128xi1>
    %54 = vector.broadcast %cst_46 : f32 to vector<384x128xf32>
    %55 = arith.select %53, %49, %54 : vector<384x128xi1>, vector<384x128xf32>
    %cst_47 = arith.constant dense<0.000000e+00> : vector<128xf32>
    %56 = vector.multi_reduction <add>, %55, %cst_47 [0] : vector<384x128xf32> to vector<128xf32>
    %57 = vector.shape_cast %56 : vector<128xf32> to vector<1x128xf32>
    %c0_48 = arith.constant 0 : index
    %c0_49 = arith.constant 0 : index
    %c0_50 = arith.constant 0 : index
    %58 = vector.load %arg7[%c0_48, %c0_49, %c0_50] : memref<1x1x128xf32, #tpu.memory_space<vmem>>, vector<1x1x128xf32>
    %59 = vector.shape_cast %58 : vector<1x1x128xf32> to vector<1x128xf32>
    %60 = vector.shape_cast %57 : vector<1x128xf32> to vector<1x1x128xf32>
    tpu.vector_store %arg7[%c0_48, %c0_49, %c0_50], %60 {strides = array<i32>} : memref<1x1x128xf32, #tpu.memory_space<vmem>>, vector<1x1x128xf32>,
    %61 = arith.mulf %55, %55 : vector<384x128xf32>
    %cst_51 = arith.constant dense<0.000000e+00> : vector<128xf32>
    %62 = vector.multi_reduction <add>, %61, %cst_51 [0] : vector<384x128xf32> to vector<128xf32>
    %63 = vector.shape_cast %62 : vector<128xf32> to vector<1x128xf32>
    %c0_52 = arith.constant 0 : index
    %c0_53 = arith.constant 0 : index
    %c0_54 = arith.constant 0 : index
    %64 = vector.load %arg8[%c0_52, %c0_53, %c0_54] : memref<1x1x128xf32, #tpu.memory_space<vmem>>, vector<1x1x128xf32>
    %65 = vector.shape_cast %64 : vector<1x1x128xf32> to vector<1x128xf32>
    %66 = vector.shape_cast %63 : vector<1x128xf32> to vector<1x1x128xf32>
    tpu.vector_store %arg8[%c0_52, %c0_53, %c0_54], %66 {strides = array<i32>} : memref<1x1x128xf32, #tpu.memory_space<vmem>>, vector<1x1x128xf32>,
    return
  }
  func.func @transform_0(%arg0: i32) -> (i32, i32) {
    %c0_i32 = arith.constant 0 : i32
    %c0_i32_0 = arith.constant 0 : i32
    %c0_i32_1 = arith.constant 0 : i32
    return %c0_i32, %c0_i32_0 : i32, i32
  }
  func.func @transform_1(%arg0: i32) -> (i32, i32, i32) {
    %c0_i32 = arith.constant 0 : i32
    %c0_i32_0 = arith.constant 0 : i32
    %c0_i32_1 = arith.constant 0 : i32
    return %arg0, %c0_i32, %c0_i32_0 : i32, i32, i32
  }
  func.func @transform_2(%arg0: i32) -> (i32, i32) {
    %c0_i32 = arith.constant 0 : i32
    %c0_i32_0 = arith.constant 0 : i32
    %c0_i32_1 = arith.constant 0 : i32
    return %c0_i32, %c0_i32_0 : i32, i32
  }
  func.func @transform_3(%arg0: i32) -> (i32, i32) {
    %c0_i32 = arith.constant 0 : i32
    %c0_i32_0 = arith.constant 0 : i32
    %c0_i32_1 = arith.constant 0 : i32
    return %c0_i32, %c0_i32_0 : i32, i32
  }
  func.func @transform_4(%arg0: i32) -> (i32, i32, i32) {
    %c0_i32 = arith.constant 0 : i32
    %c0_i32_0 = arith.constant 0 : i32
    %c0_i32_1 = arith.constant 0 : i32
    %c0_i32_2 = arith.constant 0 : i32
    return %c0_i32, %c0_i32_0, %c0_i32_1 : i32, i32, i32
  }
  func.func @transform_5(%arg0: i32) -> (i32, i32, i32) {
    %c0_i32 = arith.constant 0 : i32
    %c0_i32_0 = arith.constant 0 : i32
    %c0_i32_1 = arith.constant 0 : i32
    return %arg0, %c0_i32, %c0_i32_0 : i32, i32, i32
  }
  func.func @transform_6(%arg0: i32) -> (i32, i32, i32) {
    %c0_i32 = arith.constant 0 : i32
    %c0_i32_0 = arith.constant 0 : i32
    %c0_i32_1 = arith.constant 0 : i32
    return %arg0, %c0_i32, %c0_i32_0 : i32, i32, i32
  }
  func.func @transform_7(%arg0: i32) -> (i32, i32, i32) {
    %c0_i32 = arith.constant 0 : i32
    %c0_i32_0 = arith.constant 0 : i32
    %c0_i32_1 = arith.constant 0 : i32
    return %arg0, %c0_i32, %c0_i32_0 : i32, i32, i32
  }
}

module attributes {stable_mosaic.version = 11 : i64} {
  func.func @_conv_bn_stats_kernel(%arg0: i32, %arg1: memref<480x1xf32, #tpu.memory_space<vmem>>, %arg2: memref<1x480x128xf32, #tpu.memory_space<vmem>>, %arg3: memref<1x128xf32, #tpu.memory_space<vmem>>, %arg4: memref<1x128xf32, #tpu.memory_space<vmem>>, %arg5: memref<3x384x128xbf16, #tpu.memory_space<vmem>>, %arg6: memref<1x384x128xf32, #tpu.memory_space<vmem>>, %arg7: memref<1x1x128xf32, #tpu.memory_space<vmem>>, %arg8: memref<1x1x128xf32, #tpu.memory_space<vmem>>, %arg9: memref<432x384xbf16, #tpu.memory_space<vmem>>) attributes {dimension_semantics = [#tpu.dimension_semantics<parallel>], iteration_bounds = array<i64: 2>, scalar_prefetch = 0 : i64, scratch_operands = 1 : i64, tpu.core_type = #tpu.core_type<tc>, window_params = [{pipeline_mode = #tpu.pipeline_mode<synchronous>, transform_indices = @transform_0, window_bounds = array<i64: 480, 1>}, {transform_indices = @transform_1, window_bounds = array<i64: 1, 480, 128>}, {pipeline_mode = #tpu.pipeline_mode<synchronous>, transform_indices = @transform_2, window_bounds = array<i64: 1, 128>}, {pipeline_mode = #tpu.pipeline_mode<synchronous>, transform_indices = @transform_3, window_bounds = array<i64: 1, 128>}, {pipeline_mode = #tpu.pipeline_mode<synchronous>, transform_indices = @transform_4, window_bounds = array<i64: 3, 384, 128>}, {transform_indices = @transform_5, window_bounds = array<i64: 1, 384, 128>}, {transform_indices = @transform_6, window_bounds = array<i64: 1, 1, 128>}, {transform_indices = @transform_7, window_bounds = array<i64: 1, 1, 128>}]} {
    %c0 = arith.constant 0 : index
    %c0_0 = arith.constant 0 : index
    %c0_1 = arith.constant 0 : index
    %0 = vector.load %arg2[%c0, %c0_0, %c0_1] : memref<1x480x128xf32, #tpu.memory_space<vmem>>, vector<1x480x128xf32>
    %1 = vector.shape_cast %0 : vector<1x480x128xf32> to vector<480x128xf32>
    %c0_2 = arith.constant 0 : index
    %c0_3 = arith.constant 0 : index
    %2 = vector.load %arg3[%c0_2, %c0_3] : memref<1x128xf32, #tpu.memory_space<vmem>>, vector<1x128xf32>
    %3 = vector.broadcast %2 : vector<1x128xf32> to vector<480x128xf32>
    %4 = arith.mulf %1, %3 : vector<480x128xf32>
    %c0_4 = arith.constant 0 : index
    %c0_5 = arith.constant 0 : index
    %5 = vector.load %arg4[%c0_4, %c0_5] : memref<1x128xf32, #tpu.memory_space<vmem>>, vector<1x128xf32>
    %6 = vector.broadcast %5 : vector<1x128xf32> to vector<480x128xf32>
    %7 = arith.addf %4, %6 : vector<480x128xf32>
    %cst = arith.constant 0.000000e+00 : f32
    %8 = vector.broadcast %cst : f32 to vector<480x128xf32>
    %9 = arith.maximumf %7, %8 : vector<480x128xf32>
    %c0_6 = arith.constant 0 : index
    %c0_7 = arith.constant 0 : index
    %10 = vector.load %arg1[%c0_6, %c0_7] : memref<480x1xf32, #tpu.memory_space<vmem>>, vector<480x1xf32>
    %cst_8 = arith.constant 0.000000e+00 : f32
    %11 = vector.broadcast %cst_8 : f32 to vector<480x1xf32>
    %12 = arith.cmpf ogt, %10, %11 : vector<480x1xf32>
    %cst_9 = arith.constant 0.000000e+00 : f32
    %13 = vector.shape_cast %12 : vector<480x1xi1> to vector<480x1xi1>
    %14 = vector.broadcast %13 : vector<480x1xi1> to vector<480x128xi1>
    %15 = vector.broadcast %cst_9 : f32 to vector<480x128xf32>
    %16 = arith.select %14, %9, %15 : vector<480x128xi1>, vector<480x128xf32>
    %c1_i32 = arith.constant 1 : i32
    %17 = tpu.dynamic_rotate %16 by %c1_i32 dim 0 : vector<480x128xf32>, i32 -> vector<480x128xf32>
    %c479_i32 = arith.constant 479 : i32
    %18 = tpu.dynamic_rotate %16 by %c479_i32 dim 0 : vector<480x128xf32>, i32 -> vector<480x128xf32>
    %19 = vector.extract_strided_slice %17 {offsets = [24, 0], sizes = [432, 128], strides = [1, 1]} : vector<480x128xf32> to vector<432x128xf32>
    %20 = arith.truncf %19 : vector<432x128xf32> to vector<432x128xbf16>
    %c0_10 = arith.constant 0 : index
    %c0_11 = arith.constant 0 : index
    %21 = vector.load %arg9[%c0_10, %c0_11] : memref<432x384xbf16, #tpu.memory_space<vmem>>, vector<432x128xbf16>
    tpu.vector_store %arg9[%c0_10, %c0_11], %20 {strides = array<i32>} : memref<432x384xbf16, #tpu.memory_space<vmem>>, vector<432x128xbf16>,
    %22 = vector.extract_strided_slice %16 {offsets = [24, 0], sizes = [432, 128], strides = [1, 1]} : vector<480x128xf32> to vector<432x128xf32>
    %23 = arith.truncf %22 : vector<432x128xf32> to vector<432x128xbf16>
    %c0_12 = arith.constant 0 : index
    %c128 = arith.constant 128 : index
    %24 = vector.load %arg9[%c0_12, %c128] : memref<432x384xbf16, #tpu.memory_space<vmem>>, vector<432x128xbf16>
    tpu.vector_store %arg9[%c0_12, %c128], %23 {strides = array<i32>} : memref<432x384xbf16, #tpu.memory_space<vmem>>, vector<432x128xbf16>,
    %25 = vector.extract_strided_slice %18 {offsets = [24, 0], sizes = [432, 128], strides = [1, 1]} : vector<480x128xf32> to vector<432x128xf32>
    %26 = arith.truncf %25 : vector<432x128xf32> to vector<432x128xbf16>
    %c0_13 = arith.constant 0 : index
    %c256 = arith.constant 256 : index
    %27 = vector.load %arg9[%c0_13, %c256] : memref<432x384xbf16, #tpu.memory_space<vmem>>, vector<432x128xbf16>
    tpu.vector_store %arg9[%c0_13, %c256], %26 {strides = array<i32>} : memref<432x384xbf16, #tpu.memory_space<vmem>>, vector<432x128xbf16>,
    %c0_14 = arith.constant 0 : index
    %c0_15 = arith.constant 0 : index
    %28 = vector.load %arg9[%c0_14, %c0_15] : memref<432x384xbf16, #tpu.memory_space<vmem>>, vector<384x384xbf16>
    %c0_16 = arith.constant 0 : index
    %c0_17 = arith.constant 0 : index
    %c0_18 = arith.constant 0 : index
    %29 = vector.load %arg5[%c0_16, %c0_17, %c0_18] : memref<3x384x128xbf16, #tpu.memory_space<vmem>>, vector<1x384x128xbf16>
    %30 = vector.shape_cast %29 : vector<1x384x128xbf16> to vector<384x128xbf16>
    %cst_19 = arith.constant dense<0.000000e+00> : vector<384x128xf32>
    %31 = tpu.matmul %28, %30, %cst_19 {dimension_numbers = #tpu.dot_dimension_numbers<[1], [0], [0], [1], [0, 0, 1, 1], [], []>} : vector<384x384xbf16>, vector<384x128xbf16>, vector<384x128xf32> -> vector<384x128xf32>
    %c0_20 = arith.constant 0 : index
    %c0_21 = arith.constant 0 : index
    %c0_22 = arith.constant 0 : index
    %32 = vector.load %arg6[%c0_20, %c0_21, %c0_22] : memref<1x384x128xf32, #tpu.memory_space<vmem>>, vector<1x384x128xf32>
    %33 = vector.shape_cast %32 : vector<1x384x128xf32> to vector<384x128xf32>
    %34 = vector.shape_cast %31 : vector<384x128xf32> to vector<1x384x128xf32>
    tpu.vector_store %arg6[%c0_20, %c0_21, %c0_22], %34 {strides = array<i32>} : memref<1x384x128xf32, #tpu.memory_space<vmem>>, vector<1x384x128xf32>,
    %c24 = arith.constant 24 : index
    %c0_23 = arith.constant 0 : index
    %35 = vector.load %arg9[%c24, %c0_23] : memref<432x384xbf16, #tpu.memory_space<vmem>>, vector<384x384xbf16>
    %c1 = arith.constant 1 : index
    %c0_24 = arith.constant 0 : index
    %c0_25 = arith.constant 0 : index
    %36 = vector.load %arg5[%c1, %c0_24, %c0_25] : memref<3x384x128xbf16, #tpu.memory_space<vmem>>, vector<1x384x128xbf16>
    %37 = vector.shape_cast %36 : vector<1x384x128xbf16> to vector<384x128xbf16>
    %cst_26 = arith.constant dense<0.000000e+00> : vector<384x128xf32>
    %38 = tpu.matmul %35, %37, %cst_26 {dimension_numbers = #tpu.dot_dimension_numbers<[1], [0], [0], [1], [0, 0, 1, 1], [], []>} : vector<384x384xbf16>, vector<384x128xbf16>, vector<384x128xf32> -> vector<384x128xf32>
    %c0_27 = arith.constant 0 : index
    %c0_28 = arith.constant 0 : index
    %c0_29 = arith.constant 0 : index
    %39 = vector.load %arg6[%c0_27, %c0_28, %c0_29] : memref<1x384x128xf32, #tpu.memory_space<vmem>>, vector<1x384x128xf32>
    %40 = vector.shape_cast %39 : vector<1x384x128xf32> to vector<384x128xf32>
    %41 = arith.addf %40, %38 : vector<384x128xf32>
    %c0_30 = arith.constant 0 : index
    %c0_31 = arith.constant 0 : index
    %c0_32 = arith.constant 0 : index
    %42 = vector.load %arg6[%c0_30, %c0_31, %c0_32] : memref<1x384x128xf32, #tpu.memory_space<vmem>>, vector<1x384x128xf32>
    %43 = vector.shape_cast %42 : vector<1x384x128xf32> to vector<384x128xf32>
    %44 = vector.shape_cast %41 : vector<384x128xf32> to vector<1x384x128xf32>
    tpu.vector_store %arg6[%c0_30, %c0_31, %c0_32], %44 {strides = array<i32>} : memref<1x384x128xf32, #tpu.memory_space<vmem>>, vector<1x384x128xf32>,
    %c48 = arith.constant 48 : index
    %c0_33 = arith.constant 0 : index
    %45 = vector.load %arg9[%c48, %c0_33] : memref<432x384xbf16, #tpu.memory_space<vmem>>, vector<384x384xbf16>
    %c2 = arith.constant 2 : index
    %c0_34 = arith.constant 0 : index
    %c0_35 = arith.constant 0 : index
    %46 = vector.load %arg5[%c2, %c0_34, %c0_35] : memref<3x384x128xbf16, #tpu.memory_space<vmem>>, vector<1x384x128xbf16>
    %47 = vector.shape_cast %46 : vector<1x384x128xbf16> to vector<384x128xbf16>
    %cst_36 = arith.constant dense<0.000000e+00> : vector<384x128xf32>
    %48 = tpu.matmul %45, %47, %cst_36 {dimension_numbers = #tpu.dot_dimension_numbers<[1], [0], [0], [1], [0, 0, 1, 1], [], []>} : vector<384x384xbf16>, vector<384x128xbf16>, vector<384x128xf32> -> vector<384x128xf32>
    %c0_37 = arith.constant 0 : index
    %c0_38 = arith.constant 0 : index
    %c0_39 = arith.constant 0 : index
    %49 = vector.load %arg6[%c0_37, %c0_38, %c0_39] : memref<1x384x128xf32, #tpu.memory_space<vmem>>, vector<1x384x128xf32>
    %50 = vector.shape_cast %49 : vector<1x384x128xf32> to vector<384x128xf32>
    %51 = arith.addf %50, %48 : vector<384x128xf32>
    %c0_40 = arith.constant 0 : index
    %c0_41 = arith.constant 0 : index
    %c0_42 = arith.constant 0 : index
    %52 = vector.load %arg6[%c0_40, %c0_41, %c0_42] : memref<1x384x128xf32, #tpu.memory_space<vmem>>, vector<1x384x128xf32>
    %53 = vector.shape_cast %52 : vector<1x384x128xf32> to vector<384x128xf32>
    %54 = vector.shape_cast %51 : vector<384x128xf32> to vector<1x384x128xf32>
    tpu.vector_store %arg6[%c0_40, %c0_41, %c0_42], %54 {strides = array<i32>} : memref<1x384x128xf32, #tpu.memory_space<vmem>>, vector<1x384x128xf32>,
    %c48_43 = arith.constant 48 : index
    %c0_44 = arith.constant 0 : index
    %55 = vector.load %arg1[%c48_43, %c0_44] : memref<480x1xf32, #tpu.memory_space<vmem>>, vector<384x1xf32>
    %c0_45 = arith.constant 0 : index
    %c0_46 = arith.constant 0 : index
    %c0_47 = arith.constant 0 : index
    %56 = vector.load %arg6[%c0_45, %c0_46, %c0_47] : memref<1x384x128xf32, #tpu.memory_space<vmem>>, vector<1x384x128xf32>
    %57 = vector.shape_cast %56 : vector<1x384x128xf32> to vector<384x128xf32>
    %cst_48 = arith.constant 0.000000e+00 : f32
    %58 = vector.broadcast %cst_48 : f32 to vector<384x1xf32>
    %59 = arith.cmpf ogt, %55, %58 : vector<384x1xf32>
    %cst_49 = arith.constant 0.000000e+00 : f32
    %60 = vector.shape_cast %59 : vector<384x1xi1> to vector<384x1xi1>
    %61 = vector.broadcast %60 : vector<384x1xi1> to vector<384x128xi1>
    %62 = vector.broadcast %cst_49 : f32 to vector<384x128xf32>
    %63 = arith.select %61, %57, %62 : vector<384x128xi1>, vector<384x128xf32>
    %cst_50 = arith.constant dense<0.000000e+00> : vector<128xf32>
    %64 = vector.multi_reduction <add>, %63, %cst_50 [0] : vector<384x128xf32> to vector<128xf32>
    %65 = vector.shape_cast %64 : vector<128xf32> to vector<1x128xf32>
    %c0_51 = arith.constant 0 : index
    %c0_52 = arith.constant 0 : index
    %c0_53 = arith.constant 0 : index
    %66 = vector.load %arg7[%c0_51, %c0_52, %c0_53] : memref<1x1x128xf32, #tpu.memory_space<vmem>>, vector<1x1x128xf32>
    %67 = vector.shape_cast %66 : vector<1x1x128xf32> to vector<1x128xf32>
    %68 = vector.shape_cast %65 : vector<1x128xf32> to vector<1x1x128xf32>
    tpu.vector_store %arg7[%c0_51, %c0_52, %c0_53], %68 {strides = array<i32>} : memref<1x1x128xf32, #tpu.memory_space<vmem>>, vector<1x1x128xf32>,
    %69 = arith.mulf %63, %63 : vector<384x128xf32>
    %cst_54 = arith.constant dense<0.000000e+00> : vector<128xf32>
    %70 = vector.multi_reduction <add>, %69, %cst_54 [0] : vector<384x128xf32> to vector<128xf32>
    %71 = vector.shape_cast %70 : vector<128xf32> to vector<1x128xf32>
    %c0_55 = arith.constant 0 : index
    %c0_56 = arith.constant 0 : index
    %c0_57 = arith.constant 0 : index
    %72 = vector.load %arg8[%c0_55, %c0_56, %c0_57] : memref<1x1x128xf32, #tpu.memory_space<vmem>>, vector<1x1x128xf32>
    %73 = vector.shape_cast %72 : vector<1x1x128xf32> to vector<1x128xf32>
    %74 = vector.shape_cast %71 : vector<1x128xf32> to vector<1x1x128xf32>
    tpu.vector_store %arg8[%c0_55, %c0_56, %c0_57], %74 {strides = array<i32>} : memref<1x1x128xf32, #tpu.memory_space<vmem>>, vector<1x1x128xf32>,
    return
  }
  func.func @transform_0(%arg0: i32) -> (i32, i32) {
    %c0_i32 = arith.constant 0 : i32
    %c0_i32_0 = arith.constant 0 : i32
    %c0_i32_1 = arith.constant 0 : i32
    return %c0_i32, %c0_i32_0 : i32, i32
  }
  func.func @transform_1(%arg0: i32) -> (i32, i32, i32) {
    %c0_i32 = arith.constant 0 : i32
    %c0_i32_0 = arith.constant 0 : i32
    %c0_i32_1 = arith.constant 0 : i32
    return %arg0, %c0_i32, %c0_i32_0 : i32, i32, i32
  }
  func.func @transform_2(%arg0: i32) -> (i32, i32) {
    %c0_i32 = arith.constant 0 : i32
    %c0_i32_0 = arith.constant 0 : i32
    %c0_i32_1 = arith.constant 0 : i32
    return %c0_i32, %c0_i32_0 : i32, i32
  }
  func.func @transform_3(%arg0: i32) -> (i32, i32) {
    %c0_i32 = arith.constant 0 : i32
    %c0_i32_0 = arith.constant 0 : i32
    %c0_i32_1 = arith.constant 0 : i32
    return %c0_i32, %c0_i32_0 : i32, i32
  }
  func.func @transform_4(%arg0: i32) -> (i32, i32, i32) {
    %c0_i32 = arith.constant 0 : i32
    %c0_i32_0 = arith.constant 0 : i32
    %c0_i32_1 = arith.constant 0 : i32
    %c0_i32_2 = arith.constant 0 : i32
    return %c0_i32, %c0_i32_0, %c0_i32_1 : i32, i32, i32
  }
  func.func @transform_5(%arg0: i32) -> (i32, i32, i32) {
    %c0_i32 = arith.constant 0 : i32
    %c0_i32_0 = arith.constant 0 : i32
    %c0_i32_1 = arith.constant 0 : i32
    return %arg0, %c0_i32, %c0_i32_0 : i32, i32, i32
  }
  func.func @transform_6(%arg0: i32) -> (i32, i32, i32) {
    %c0_i32 = arith.constant 0 : i32
    %c0_i32_0 = arith.constant 0 : i32
    %c0_i32_1 = arith.constant 0 : i32
    return %arg0, %c0_i32, %c0_i32_0 : i32, i32, i32
  }
  func.func @transform_7(%arg0: i32) -> (i32, i32, i32) {
    %c0_i32 = arith.constant 0 : i32
    %c0_i32_0 = arith.constant 0 : i32
    %c0_i32_1 = arith.constant 0 : i32
    return %arg0, %c0_i32, %c0_i32_0 : i32, i32, i32
  }
}

module attributes {stable_mosaic.version = 11 : i64} {
  func.func @_bn_relu_kernel(%arg0: i32, %arg1: memref<1x384x128xf32, #tpu.memory_space<vmem>>, %arg2: memref<1x128xf32, #tpu.memory_space<vmem>>, %arg3: memref<1x128xf32, #tpu.memory_space<vmem>>, %arg4: memref<1x384x128xf32, #tpu.memory_space<vmem>>) attributes {dimension_semantics = [#tpu.dimension_semantics<parallel>], iteration_bounds = array<i64: 2>, scalar_prefetch = 0 : i64, scratch_operands = 0 : i64, tpu.core_type = #tpu.core_type<tc>, window_params = [{transform_indices = @transform_0, window_bounds = array<i64: 1, 384, 128>}, {pipeline_mode = #tpu.pipeline_mode<synchronous>, transform_indices = @transform_1, window_bounds = array<i64: 1, 128>}, {pipeline_mode = #tpu.pipeline_mode<synchronous>, transform_indices = @transform_2, window_bounds = array<i64: 1, 128>}, {transform_indices = @transform_3, window_bounds = array<i64: 1, 384, 128>}]} {
    %c0 = arith.constant 0 : index
    %c0_0 = arith.constant 0 : index
    %c0_1 = arith.constant 0 : index
    %0 = vector.load %arg1[%c0, %c0_0, %c0_1] : memref<1x384x128xf32, #tpu.memory_space<vmem>>, vector<1x384x128xf32>
    %1 = vector.shape_cast %0 : vector<1x384x128xf32> to vector<384x128xf32>
    %c0_2 = arith.constant 0 : index
    %c0_3 = arith.constant 0 : index
    %2 = vector.load %arg2[%c0_2, %c0_3] : memref<1x128xf32, #tpu.memory_space<vmem>>, vector<1x128xf32>
    %3 = vector.broadcast %2 : vector<1x128xf32> to vector<384x128xf32>
    %4 = arith.mulf %1, %3 : vector<384x128xf32>
    %c0_4 = arith.constant 0 : index
    %c0_5 = arith.constant 0 : index
    %5 = vector.load %arg3[%c0_4, %c0_5] : memref<1x128xf32, #tpu.memory_space<vmem>>, vector<1x128xf32>
    %6 = vector.broadcast %5 : vector<1x128xf32> to vector<384x128xf32>
    %7 = arith.addf %4, %6 : vector<384x128xf32>
    %cst = arith.constant 0.000000e+00 : f32
    %8 = vector.broadcast %cst : f32 to vector<384x128xf32>
    %9 = arith.maximumf %7, %8 : vector<384x128xf32>
    %c0_6 = arith.constant 0 : index
    %c0_7 = arith.constant 0 : index
    %c0_8 = arith.constant 0 : index
    %10 = vector.load %arg4[%c0_6, %c0_7, %c0_8] : memref<1x384x128xf32, #tpu.memory_space<vmem>>, vector<1x384x128xf32>
    %11 = vector.shape_cast %10 : vector<1x384x128xf32> to vector<384x128xf32>
    %12 = vector.shape_cast %9 : vector<384x128xf32> to vector<1x384x128xf32>
    tpu.vector_store %arg4[%c0_6, %c0_7, %c0_8], %12 {strides = array<i32>} : memref<1x384x128xf32, #tpu.memory_space<vmem>>, vector<1x384x128xf32>,
    return
  }
  func.func @transform_0(%arg0: i32) -> (i32, i32, i32) {
    %c0_i32 = arith.constant 0 : i32
    %c0_i32_0 = arith.constant 0 : i32
    %c0_i32_1 = arith.constant 0 : i32
    return %arg0, %c0_i32, %c0_i32_0 : i32, i32, i32
  }
  func.func @transform_1(%arg0: i32) -> (i32, i32) {
    %c0_i32 = arith.constant 0 : i32
    %c0_i32_0 = arith.constant 0 : i32
    %c0_i32_1 = arith.constant 0 : i32
    return %c0_i32, %c0_i32_0 : i32, i32
  }
  func.func @transform_2(%arg0: i32) -> (i32, i32) {
    %c0_i32 = arith.constant 0 : i32
    %c0_i32_0 = arith.constant 0 : i32
    %c0_i32_1 = arith.constant 0 : i32
    return %c0_i32, %c0_i32_0 : i32, i32
  }
  func.func @transform_3(%arg0: i32) -> (i32, i32, i32) {
    %c0_i32 = arith.constant 0 : i32
    %c0_i32_0 = arith.constant 0 : i32
    %c0_i32_1 = arith.constant 0 : i32
    return %arg0, %c0_i32, %c0_i32_0 : i32, i32, i32
  }
}

</mosaic_0001>

<llo_original>
// kernel: double_conv.5
$region0: #{double_conv.5}
  #allocation0 [shape = 'u32[]', space=smem, size = 0x4, offset = 0x4, fixed_abs, tag = 'smem constant byte address 0x4 - core index']
  #allocation1 [shape = 'u32[144,128]{1,0:T(1,128)}', space=vmem, size = 0x12000, scoped, tag = 'internal scratch']
  %s0 = inlined_call_operand.vmem [shape: f32[2,384,128], index: 0, kind: input, shape index: {}]
  %s1 = inlined_call_operand.vmem [shape: f32[1,128], index: 1, kind: input, shape index: {}]
  %s2 = inlined_call_operand.vmem [shape: f32[1,128], index: 2, kind: input, shape index: {}]
  %s3 = inlined_call_operand.vmem [shape: f32[2,384,128], index: 3, kind: output, shape index: {}]
  %s4 = sld [smem:[#allocation0]]
  $region45: #{double_conv.5} parent=0
    _
  %s6 = ssub.s32 1, %s4
  %s7 = scalar_select 0, %s6, %s4
  loop: start=0, step=1, limit=4
  $region2: #{double_conv.5} parent=0 // loop_pre_header
    _
  $region3: #{double_conv.5} parent=0 // loop_header
    %s9 = sphi 0, %s13
    %p10 = scmp.ge.s32.totalorder %s9, 4
    %s19 = sphi 0, %s21
    %s22 = sphi 0, %s19
    %s23 = sphi 0, %s22
    %s39 = sphi 0, %s23
    %s43 = sphi 0, %s43
    %s45 = sphi 0, %s43
    %s46 = sphi 0, %s45
    %s60 = sphi 0, %s46
    %s64 = sphi 0, %s64
    %s66 = sphi 0, %s64
    %s67 = sphi 0, %s66
    %s81 = sphi 0, %s67
    %s87 = sphi 0, %s89
    %s90 = sphi 0, %s87
    %s91 = sphi 0, %s90
    %s107 = sphi 0, %s91
  $region4: #{double_conv.5} parent=0 // loop_header_branch
    %12 = sbr.rel (%p10) target = $region8
  $region5: #{double_conv.5} parent=0 // loop_body
    %s14 = ssub.s32 %s9, 1
    %s15 = ssub.s32 %s9, 2
    %s16 = sadd.s32 %s9, 1
    %s17 = ssub.s32 %s9, %s16
    %p18 = scmp.eq.s32.totalorder %s17, 0
    %s20 = sadd.s32 %s19, 1
    %s21 = scalar_select %p18, %s19, %s20
    %p24 = pneg %p18
    %p25 = scmp.eq.s32.totalorder %s9, 1
    %p26 = por %p24, %p25
    %p27 = scmp.ne.s32.totalorder %s19, %s22
    %p28 = scmp.eq.s32.totalorder %s9, 0
    %p29 = por %p27, %p28
    %p30 = scmp.ne.s32.totalorder %s19, %s22
    %p31 = scmp.eq.s32.totalorder %s14, 1
    %p32 = por %p30, %p31
    %p33 = scmp.ne.s32.totalorder %s22, %s23
    %p34 = scmp.eq.s32.totalorder %s14, 0
    %p35 = por %p33, %p34
    %p36 = scmp.ne.s32.totalorder %s22, %s23
    %p37 = scmp.eq.s32.totalorder %s15, 1
    %p38 = por %p36, %p37
    %p40 = scmp.ne.s32.totalorder %s23, %s39
    %p41 = scmp.eq.s32.totalorder %s15, 0
    %p42 = por %p40, %p41
    %s44 = sadd.s32 %s43, 1
    %p47 = scmp.eq.s32.totalorder %s9, 1
    %p48 = scmp.ne.s32.totalorder %s43, %s45
    %p49 = scmp.eq.s32.totalorder %s9, 0
    %p50 = por %p48, %p49
    %p51 = scmp.ne.s32.totalorder %s43, %s45
    %p52 = scmp.eq.s32.totalorder %s14, 1
    %p53 = por %p51, %p52
    %p54 = scmp.ne.s32.totalorder %s45, %s46
    %p55 = scmp.eq.s32.totalorder %s14, 0
    %p56 = por %p54, %p55
    %p57 = scmp.ne.s32.totalorder %s45, %s46
    %p58 = scmp.eq.s32.totalorder %s15, 1
    %p59 = por %p57, %p58
    %p61 = scmp.ne.s32.totalorder %s46, %s60
    %p62 = scmp.eq.s32.totalorder %s15, 0
    %p63 = por %p61, %p62
    %s65 = sadd.s32 %s64, 1
    %p68 = scmp.eq.s32.totalorder %s9, 1
    %p69 = scmp.ne.s32.totalorder %s64, %s66
    %p70 = scmp.eq.s32.totalorder %s9, 0
    %p71 = por %p69, %p70
    %p72 = scmp.ne.s32.totalorder %s64, %s66
    %p73 = scmp.eq.s32.totalorder %s14, 1
    %p74 = por %p72, %p73
    %p75 = scmp.ne.s32.totalorder %s66, %s67
    %p76 = scmp.eq.s32.totalorder %s14, 0
    %p77 = por %p75, %p76
    %p78 = scmp.ne.s32.totalorder %s66, %s67
    %p79 = scmp.eq.s32.totalorder %s15, 1
    %p80 = por %p78, %p79
    %p82 = scmp.ne.s32.totalorder %s67, %s81
    %p83 = scmp.eq.s32.totalorder %s15, 0
    %p84 = por %p82, %p83
    %s85 = ssub.s32 %s9, %s16
    %p86 = scmp.eq.s32.totalorder %s85, 0
    %s88 = sadd.s32 %s87, 1
    %s89 = scalar_select %p86, %s87, %s88
    %p92 = pneg %p86
    %p93 = scmp.eq.s32.totalorder %s9, 1
    %p94 = por %p92, %p93
    %p95 = scmp.ne.s32.totalorder %s87, %s90
    %p96 = scmp.eq.s32.totalorder %s9, 0
    %p97 = por %p95, %p96
    %p98 = scmp.ne.s32.totalorder %s87, %s90
    %p99 = scmp.eq.s32.totalorder %s14, 1
    %p100 = por %p98, %p99
    %p101 = scmp.ne.s32.totalorder %s90, %s91
    %p102 = scmp.eq.s32.totalorder %s14, 0
    %p103 = por %p101, %p102
    %p104 = scmp.ne.s32.totalorder %s90, %s91
    %p105 = scmp.eq.s32.totalorder %s15, 1
    %p106 = por %p104, %p105
    %p108 = scmp.ne.s32.totalorder %s91, %s107
    %p109 = scmp.eq.s32.totalorder %s15, 0
    %p110 = por %p108, %p109
    %p111 = scmp.le.s32.totalorder 1, %s9
    %p112 = scmp.lt.s32.totalorder %s9, 3
    %p113 = pnand %p111, %p112
    %p114 = pneg %p113
    // Predicated region
    $region9: #{double_conv.5} parent=5 // pred_check
      _
    $region10: #{double_conv.5} parent=5 // pred_check_branch
      %116 = sbr.rel (%p113) target = $region12
    $region11: #{double_conv.5} parent=5 // pred_region
      %s117 = ssub.s32 %s9, 1
      // Predicated region
      $region13: #{double_conv.5} parent=11 // pred_check
        %p118 = pneg %p56
      $region14: #{double_conv.5} parent=11 // pred_check_branch
        %120 = sbr.rel (%p118) target = $region16
      $region15: #{double_conv.5} parent=11 // pred_region
        _
      $region16: #{double_conv.5} parent=11 // pred_fallthru
        _
      // Predicated region
      $region17: #{double_conv.5} parent=11 // pred_check
        %p121 = pneg %p77
      $region18: #{double_conv.5} parent=11 // pred_check_branch
        %123 = sbr.rel (%p121) target = $region20
      $region19: #{double_conv.5} parent=11 // pred_region
        _
      $region20: #{double_conv.5} parent=11 // pred_fallthru
        _
    $region12: #{double_conv.5} parent=5 // pred_fallthru
      _
    %p124 = scmp.lt.s32.totalorder %s9, 2
    // Predicated region
    $region21: #{double_conv.5} parent=5 // pred_check
      %p125 = pneg %p124
    $region22: #{double_conv.5} parent=5 // pred_check_branch
      %127 = sbr.rel (%p125) target = $region24
    $region23: #{double_conv.5} parent=5 // pred_region
      // Predicated region
      $region25: #{double_conv.5} parent=23 // pred_check
        %p128 = pneg %p29
      $region26: #{double_conv.5} parent=23 // pred_check_branch
        %130 = sbr.rel (%p128) target = $region28
      $region27: #{double_conv.5} parent=23 // pred_region
        %p131 = scmp.lt.s32.totalorder %s9, 1
        %s132 = scalar_select %p131, %s9, 1
        %s133 = smul.addr %s132, 48
        %s134 = smul.addr %s133, 8
        %s135 = scalar_lea.vmem %s0, %s134
      $region28: #{double_conv.5} parent=23 // pred_fallthru
        _
    $region24: #{double_conv.5} parent=5 // pred_fallthru
      _
    %p136 = scmp.le.s32.totalorder 1, %s9
    %p137 = scmp.lt.s32.totalorder %s9, 3
    %p138 = pnand %p136, %p137
    %p139 = pneg %p138
    // Predicated region
    $region29: #{double_conv.5} parent=5 // pred_check
      _
    $region30: #{double_conv.5} parent=5 // pred_check_branch
      %141 = sbr.rel (%p138) target = $region32
    $region31: #{double_conv.5} parent=5 // pred_region
      %s142 = ssub.s32 %s9, 1
      %p143 = scmp.lt.s32.totalorder %s14, 1
      %s144 = scalar_select %p143, %s14, 1
      %s145 = smul.addr %s144, 48
      %s146 = smul.addr %s145, 8
      %s147 = scalar_lea.vmem %s0, %s146
      %p148 = pneg %p35
      %p149 = pneg %p32
      %p150 = pneg %p56
      %p151 = pneg %p53
      %p152 = pneg %p77
      %p153 = pneg %p74
      %p154 = pneg %p103
      %p155 = pneg %p100
      %p156 = scmp.lt.s32.totalorder %s14, 1
      %s157 = scalar_select %p156, %s14, 1
      %s158 = smul.addr %s157, 48
      %s159 = smul.addr %s158, 8
      %s160 = scalar_lea.vmem %s3, %s159
      %p161 = scmp.lt.s32.totalorder %s14, 1
      %s162 = scalar_select %p161, %s14, 1
      %s163 = smul.addr %s162, 48
      %s164 = smul.addr %s163, 8
      %s165 = scalar_lea.vmem %s0, %s164
      %p166 = scmp.lt.s32.totalorder %s14, 1
      %s167 = scalar_select %p166, %s14, 1
      %s168 = smul.addr %s167, 48
      %s169 = smul.addr %s168, 8
      %s170 = scalar_lea.vmem %s3, %s169
      %v171 = vld [vmem:[%s165] sm:$0xff]
      %v172 = vld [vmem:[%s165 + $0x8] sm:$0xff]
      %v173 = vld [vmem:[%s165 + $0x10] sm:$0xff]
      %v174 = vld [vmem:[%s165 + $0x18] sm:$0xff]
      %v175 = vld [vmem:[%s165 + $0x20] sm:$0xff]
      %v176 = vld [vmem:[%s165 + $0x28] sm:$0xff]
      %v177 = vld [vmem:[%s165 + $0x30] sm:$0xff]
      %v178 = vld [vmem:[%s165 + $0x38] sm:$0xff]
      %v179 = vld [vmem:[%s165 + $0x40] sm:$0xff]
      %v180 = vld [vmem:[%s165 + $0x48] sm:$0xff]
      %v181 = vld [vmem:[%s165 + $0x50] sm:$0xff]
      %v182 = vld [vmem:[%s165 + $0x58] sm:$0xff]
      %v183 = vld [vmem:[%s165 + $0x60] sm:$0xff]
      %v184 = vld [vmem:[%s165 + $0x68] sm:$0xff]
      %v185 = vld [vmem:[%s165 + $0x70] sm:$0xff]
      %v186 = vld [vmem:[%s165 + $0x78] sm:$0xff]
      %v187 = vld [vmem:[%s165 + $0x80] sm:$0xff]
      %v188 = vld [vmem:[%s165 + $0x88] sm:$0xff]
      %v189 = vld [vmem:[%s165 + $0x90] sm:$0xff]
      %v190 = vld [vmem:[%s165 + $0x98] sm:$0xff]
      %v191 = vld [vmem:[%s165 + $0xa0] sm:$0xff]
      %v192 = vld [vmem:[%s165 + $0xa8] sm:$0xff]
      %v193 = vld [vmem:[%s165 + $0xb0] sm:$0xff]
      %v194 = vld [vmem:[%s165 + $0xb8] sm:$0xff]
      %v195 = vld [vmem:[%s165 + $0xc0] sm:$0xff]
      %v196 = vld [vmem:[%s165 + $0xc8] sm:$0xff]
      %v197 = vld [vmem:[%s165 + $0xd0] sm:$0xff]
      %v198 = vld [vmem:[%s165 + $0xd8] sm:$0xff]
      %v199 = vld [vmem:[%s165 + $0xe0] sm:$0xff]
      %v200 = vld [vmem:[%s165 + $0xe8] sm:$0xff]
      %v201 = vld [vmem:[%s165 + $0xf0] sm:$0xff]
      %v202 = vld [vmem:[%s165 + $0xf8] sm:$0xff]
      %v203 = vld [vmem:[%s165 + $0x100] sm:$0xff]
      %v204 = vld [vmem:[%s165 + $0x108] sm:$0xff]
      %v205 = vld [vmem:[%s165 + $0x110] sm:$0xff]
      %v206 = vld [vmem:[%s165 + $0x118] sm:$0xff]
      %v207 = vld [vmem:[%s165 + $0x120] sm:$0xff]
      %v208 = vld [vmem:[%s165 + $0x128] sm:$0xff]
      %v209 = vld [vmem:[%s165 + $0x130] sm:$0xff]
      %v210 = vld [vmem:[%s165 + $0x138] sm:$0xff]
      %v211 = vld [vmem:[%s165 + $0x140] sm:$0xff]
      %v212 = vld [vmem:[%s165 + $0x148] sm:$0xff]
      %v213 = vld [vmem:[%s165 + $0x150] sm:$0xff]
      %v214 = vld [vmem:[%s165 + $0x158] sm:$0xff]
      %v215 = vld [vmem:[%s165 + $0x160] sm:$0xff]
      %v216 = vld [vmem:[%s165 + $0x168] sm:$0xff]
      %v217 = vld [vmem:[%s165 + $0x170] sm:$0xff]
      %v218 = vld [vmem:[%s165 + $0x178] sm:$0xff]
      %v219 = vld [vmem:[%s1] sm:$0x1]
      %v221 = vlaneseq
      %v222 = vshrl.u32 %v221, 7
      %v223 = vsub.s32 0, %v222
      %v224 = vrot.slane %v219, %v223
      %v226 = vmul.f32 %v171, %v224
      %v227 = vmul.f32 %v172, %v224
      %v228 = vmul.f32 %v173, %v224
      %v229 = vmul.f32 %v174, %v224
      %v230 = vmul.f32 %v175, %v224
      %v231 = vmul.f32 %v176, %v224
      %v232 = vmul.f32 %v177, %v224
      %v233 = vmul.f32 %v178, %v224
      %v234 = vmul.f32 %v179, %v224
      %v235 = vmul.f32 %v180, %v224
      %v236 = vmul.f32 %v181, %v224
      %v237 = vmul.f32 %v182, %v224
      %v238 = vmul.f32 %v183, %v224
      %v239 = vmul.f32 %v184, %v224
      %v240 = vmul.f32 %v185, %v224
      %v241 = vmul.f32 %v186, %v224
      %v242 = vmul.f32 %v187, %v224
      %v243 = vmul.f32 %v188, %v224
      %v244 = vmul.f32 %v189, %v224
      %v245 = vmul.f32 %v190, %v224
      %v246 = vmul.f32 %v191, %v224
      %v247 = vmul.f32 %v192, %v224
      %v248 = vmul.f32 %v193, %v224
      %v249 = vmul.f32 %v194, %v224
      %v250 = vmul.f32 %v195, %v224
      %v251 = vmul.f32 %v196, %v224
      %v252 = vmul.f32 %v197, %v224
      %v253 = vmul.f32 %v198, %v224
      %v254 = vmul.f32 %v199, %v224
      %v255 = vmul.f32 %v200, %v224
      %v256 = vmul.f32 %v201, %v224
      %v257 = vmul.f32 %v202, %v224
      %v258 = vmul.f32 %v203, %v224
      %v259 = vmul.f32 %v204, %v224
      %v260 = vmul.f32 %v205, %v224
      %v261 = vmul.f32 %v206, %v224
      %v262 = vmul.f32 %v207, %v224
      %v263 = vmul.f32 %v208, %v224
      %v264 = vmul.f32 %v209, %v224
      %v265 = vmul.f32 %v210, %v224
      %v266 = vmul.f32 %v211, %v224
      %v267 = vmul.f32 %v212, %v224
      %v268 = vmul.f32 %v213, %v224
      %v269 = vmul.f32 %v214, %v224
      %v270 = vmul.f32 %v215, %v224
      %v271 = vmul.f32 %v216, %v224
      %v272 = vmul.f32 %v217, %v224
      %v273 = vmul.f32 %v218, %v224
      %v274 = vld [vmem:[%s2] sm:$0x1]
      %v276 = vlaneseq
      %v277 = vshrl.u32 %v276, 7
      %v278 = vsub.s32 0, %v277
      %v279 = vrot.slane %v274, %v278
      %v281 = vadd.f32 %v226, %v279
      %v282 = vadd.f32 %v227, %v279
      %v283 = vadd.f32 %v228, %v279
      %v284 = vadd.f32 %v229, %v279
      %v285 = vadd.f32 %v230, %v279
      %v286 = vadd.f32 %v231, %v279
      %v287 = vadd.f32 %v232, %v279
      %v288 = vadd.f32 %v233, %v279
      %v289 = vadd.f32 %v234, %v279
      %v290 = vadd.f32 %v235, %v279
      %v291 = vadd.f32 %v236, %v279
      %v292 = vadd.f32 %v237, %v279
      %v293 = vadd.f32 %v238, %v279
      %v294 = vadd.f32 %v239, %v279
      %v295 = vadd.f32 %v240, %v279
      %v296 = vadd.f32 %v241, %v279
      %v297 = vadd.f32 %v242, %v279
      %v298 = vadd.f32 %v243, %v279
      %v299 = vadd.f32 %v244, %v279
      %v300 = vadd.f32 %v245, %v279
      %v301 = vadd.f32 %v246, %v279
      %v302 = vadd.f32 %v247, %v279
      %v303 = vadd.f32 %v248, %v279
      %v304 = vadd.f32 %v249, %v279
      %v305 = vadd.f32 %v250, %v279
      %v306 = vadd.f32 %v251, %v279
      %v307 = vadd.f32 %v252, %v279
      %v308 = vadd.f32 %v253, %v279
      %v309 = vadd.f32 %v254, %v279
      %v310 = vadd.f32 %v255, %v279
      %v311 = vadd.f32 %v256, %v279
      %v312 = vadd.f32 %v257, %v279
      %v313 = vadd.f32 %v258, %v279
      %v314 = vadd.f32 %v259, %v279
      %v315 = vadd.f32 %v260, %v279
      %v316 = vadd.f32 %v261, %v279
      %v317 = vadd.f32 %v262, %v279
      %v318 = vadd.f32 %v263, %v279
      %v319 = vadd.f32 %v264, %v279
      %v320 = vadd.f32 %v265, %v279
      %v321 = vadd.f32 %v266, %v279
      %v322 = vadd.f32 %v267, %v279
      %v323 = vadd.f32 %v268, %v279
      %v324 = vadd.f32 %v269, %v279
      %v325 = vadd.f32 %v270, %v279
      %v326 = vadd.f32 %v271, %v279
      %v327 = vadd.f32 %v272, %v279
      %v328 = vadd.f32 %v273, %v279
      %v329 = vmax.f32 %v281, 0.0
      %v330 = vmax.f32 %v282, 0.0
      %v331 = vmax.f32 %v283, 0.0
      %v332 = vmax.f32 %v284, 0.0
      %v333 = vmax.f32 %v285, 0.0
      %v334 = vmax.f32 %v286, 0.0
      %v335 = vmax.f32 %v287, 0.0
      %v336 = vmax.f32 %v288, 0.0
      %v337 = vmax.f32 %v289, 0.0
      %v338 = vmax.f32 %v290, 0.0
      %v339 = vmax.f32 %v291, 0.0
      %v340 = vmax.f32 %v292, 0.0
      %v341 = vmax.f32 %v293, 0.0
      %v342 = vmax.f32 %v294, 0.0
      %v343 = vmax.f32 %v295, 0.0
      %v344 = vmax.f32 %v296, 0.0
      %v345 = vmax.f32 %v297, 0.0
      %v346 = vmax.f32 %v298, 0.0
      %v347 = vmax.f32 %v299, 0.0
      %v348 = vmax.f32 %v300, 0.0
      %v349 = vmax.f32 %v301, 0.0
      %v350 = vmax.f32 %v302, 0.0
      %v351 = vmax.f32 %v303, 0.0
      %v352 = vmax.f32 %v304, 0.0
      %v353 = vmax.f32 %v305, 0.0
      %v354 = vmax.f32 %v306, 0.0
      %v355 = vmax.f32 %v307, 0.0
      %v356 = vmax.f32 %v308, 0.0
      %v357 = vmax.f32 %v309, 0.0
      %v358 = vmax.f32 %v310, 0.0
      %v359 = vmax.f32 %v311, 0.0
      %v360 = vmax.f32 %v312, 0.0
      %v361 = vmax.f32 %v313, 0.0
      %v362 = vmax.f32 %v314, 0.0
      %v363 = vmax.f32 %v315, 0.0
      %v364 = vmax.f32 %v316, 0.0
      %v365 = vmax.f32 %v317, 0.0
      %v366 = vmax.f32 %v318, 0.0
      %v367 = vmax.f32 %v319, 0.0
      %v368 = vmax.f32 %v320, 0.0
      %v369 = vmax.f32 %v321, 0.0
      %v370 = vmax.f32 %v322, 0.0
      %v371 = vmax.f32 %v323, 0.0
      %v372 = vmax.f32 %v324, 0.0
      %v373 = vmax.f32 %v325, 0.0
      %v374 = vmax.f32 %v326, 0.0
      %v375 = vmax.f32 %v327, 0.0
      %v376 = vmax.f32 %v328, 0.0
      %377 = vst [vmem:[%s170] sm:$0xff] %v329
      %378 = vst [vmem:[%s170 + $0x8] sm:$0xff] %v330
      %379 = vst [vmem:[%s170 + $0x10] sm:$0xff] %v331
      %380 = vst [vmem:[%s170 + $0x18] sm:$0xff] %v332
      %381 = vst [vmem:[%s170 + $0x20] sm:$0xff] %v333
      %382 = vst [vmem:[%s170 + $0x28] sm:$0xff] %v334
      %383 = vst [vmem:[%s170 + $0x30] sm:$0xff] %v335
      %384 = vst [vmem:[%s170 + $0x38] sm:$0xff] %v336
      %385 = vst [vmem:[%s170 + $0x40] sm:$0xff] %v337
      %386 = vst [vmem:[%s170 + $0x48] sm:$0xff] %v338
      %387 = vst [vmem:[%s170 + $0x50] sm:$0xff] %v339
      %388 = vst [vmem:[%s170 + $0x58] sm:$0xff] %v340
      %389 = vst [vmem:[%s170 + $0x60] sm:$0xff] %v341
      %390 = vst [vmem:[%s170 + $0x68] sm:$0xff] %v342
      %391 = vst [vmem:[%s170 + $0x70] sm:$0xff] %v343
      %392 = vst [vmem:[%s170 + $0x78] sm:$0xff] %v344
      %393 = vst [vmem:[%s170 + $0x80] sm:$0xff] %v345
      %394 = vst [vmem:[%s170 + $0x88] sm:$0xff] %v346
      %395 = vst [vmem:[%s170 + $0x90] sm:$0xff] %v347
      %396 = vst [vmem:[%s170 + $0x98] sm:$0xff] %v348
      %397 = vst [vmem:[%s170 + $0xa0] sm:$0xff] %v349
      %398 = vst [vmem:[%s170 + $0xa8] sm:$0xff] %v350
      %399 = vst [vmem:[%s170 + $0xb0] sm:$0xff] %v351
      %400 = vst [vmem:[%s170 + $0xb8] sm:$0xff] %v352
      %401 = vst [vmem:[%s170 + $0xc0] sm:$0xff] %v353
      %402 = vst [vmem:[%s170 + $0xc8] sm:$0xff] %v354
      %403 = vst [vmem:[%s170 + $0xd0] sm:$0xff] %v355
      %404 = vst [vmem:[%s170 + $0xd8] sm:$0xff] %v356
      %405 = vst [vmem:[%s170 + $0xe0] sm:$0xff] %v357
      %406 = vst [vmem:[%s170 + $0xe8] sm:$0xff] %v358
      %407 = vst [vmem:[%s170 + $0xf0] sm:$0xff] %v359
      %408 = vst [vmem:[%s170 + $0xf8] sm:$0xff] %v360
      %409 = vst [vmem:[%s170 + $0x100] sm:$0xff] %v361
      %410 = vst [vmem:[%s170 + $0x108] sm:$0xff] %v362
      %411 = vst [vmem:[%s170 + $0x110] sm:$0xff] %v363
      %412 = vst [vmem:[%s170 + $0x118] sm:$0xff] %v364
      %413 = vst [vmem:[%s170 + $0x120] sm:$0xff] %v365
      %414 = vst [vmem:[%s170 + $0x128] sm:$0xff] %v366
      %415 = vst [vmem:[%s170 + $0x130] sm:$0xff] %v367
      %416 = vst [vmem:[%s170 + $0x138] sm:$0xff] %v368
      %417 = vst [vmem:[%s170 + $0x140] sm:$0xff] %v369
      %418 = vst [vmem:[%s170 + $0x148] sm:$0xff] %v370
      %419 = vst [vmem:[%s170 + $0x150] sm:$0xff] %v371
      %420 = vst [vmem:[%s170 + $0x158] sm:$0xff] %v372
      %421 = vst [vmem:[%s170 + $0x160] sm:$0xff] %v373
      %422 = vst [vmem:[%s170 + $0x168] sm:$0xff] %v374
      %423 = vst [vmem:[%s170 + $0x170] sm:$0xff] %v375
      %424 = vst [vmem:[%s170 + $0x178] sm:$0xff] %v376
      %p425 = scmp.lt.s32.totalorder %s14, 1
      %s426 = scalar_select %p425, %s14, 1
      %s427 = smul.addr %s426, 48
      %s428 = smul.addr %s427, 8
      %s429 = scalar_lea.vmem %s3, %s428
      // Predicated region
      $region33: #{double_conv.5} parent=31 // pred_check
        %p430 = pneg %p100
      $region34: #{double_conv.5} parent=31 // pred_check_branch
        %432 = sbr.rel (%p430) target = $region36
      $region35: #{double_conv.5} parent=31 // pred_region
        _
      $region36: #{double_conv.5} parent=31 // pred_fallthru
        _
    $region32: #{double_conv.5} parent=5 // pred_fallthru
      _
    %p433 = scmp.le.s32.totalorder 2, %s9
    // Predicated region
    $region37: #{double_conv.5} parent=5 // pred_check
      %p434 = pneg %p433
    $region38: #{double_conv.5} parent=5 // pred_check_branch
      %436 = sbr.rel (%p434) target = $region40
    $region39: #{double_conv.5} parent=5 // pred_region
      %s437 = ssub.s32 %s9, 2
      // Predicated region
      $region41: #{double_conv.5} parent=39 // pred_check
        %p438 = pneg %p106
      $region42: #{double_conv.5} parent=39 // pred_check_branch
        %440 = sbr.rel (%p438) target = $region44
      $region43: #{double_conv.5} parent=39 // pred_region
        %p441 = scmp.lt.s32.totalorder %s15, 1
        %s442 = scalar_select %p441, %s15, 1
        %s443 = smul.addr %s442, 48
        %s444 = smul.addr %s443, 8
        %s445 = scalar_lea.vmem %s3, %s444
      $region44: #{double_conv.5} parent=39 // pred_fallthru
        _
    $region40: #{double_conv.5} parent=5 // pred_fallthru
      _
  $region6: #{double_conv.5} parent=0 // loop_footer
    %s13 = sadd.s32 1, %s9
  $region7: #{double_conv.5} parent=0 // loop_footer_branch
    %8 = sbr.rel target = $region3
  $region8: #{double_conv.5} parent=0 // loop_exit
    _

// kernel: double_conv.3
$region0: #{double_conv.3}
  #allocation0 [shape = 'u32[]', space=smem, size = 0x4, offset = 0x4, fixed_abs, tag = 'smem constant byte address 0x4 - core index']
  #allocation1 [shape = 'u32[144,128]{1,0:T(1,128)}', space=vmem, size = 0x12000, scoped, tag = 'internal scratch']
  #allocation2 [shape = 'bf16[432,384]{1,0:T(16,128)(2,1)}', space=vmem, size = 0x51000, scoped, tag = 'scratch operand']
  %s0 = inlined_call_operand.vmem [shape: f32[480,1], index: 0, kind: input, shape index: {}]
  %s1 = inlined_call_operand.vmem [shape: f32[2,480,128], index: 1, kind: input, shape index: {}]
  %s2 = inlined_call_operand.vmem [shape: f32[1,128], index: 2, kind: input, shape index: {}, may-alias: {2,3}]
  %s3 = inlined_call_operand.vmem [shape: f32[1,128], index: 3, kind: input, shape index: {}, may-alias: {2,3}]
  %s4 = inlined_call_operand.vmem [shape: bf16[3,384,128], index: 4, kind: input, shape index: {}]
  %s5 = inlined_call_operand.vmem [shape: f32[2,480,128], index: 5, kind: output, shape index: {0}]
  %s6 = inlined_call_operand.vmem [shape: f32[2,1,128], index: 6, kind: output, shape index: {1}]
  %s7 = inlined_call_operand.vmem [shape: f32[2,1,128], index: 7, kind: output, shape index: {2}]
  %8 = xla_tuple %s5, %s6, %s7
  %s9 = sld [smem:[#allocation0]]
  $region69: #{double_conv.3} parent=0
    _
  %s11 = ssub.s32 1, %s9
  %s12 = scalar_select 0, %s11, %s9
  loop: start=0, step=1, limit=4
  $region2: #{double_conv.3} parent=0 // loop_pre_header
    _
  $region3: #{double_conv.3} parent=0 // loop_header
    %s14 = sphi 0, %s18
    %p15 = scmp.ge.s32.totalorder %s14, 4
    %s22 = sphi 0, %s22
    %s24 = sphi 0, %s22
    %s25 = sphi 0, %s24
    %s39 = sphi 0, %s25
    %s45 = sphi 0, %s47
    %s48 = sphi 0, %s45
    %s49 = sphi 0, %s48
    %s65 = sphi 0, %s49
    %s69 = sphi 0, %s69
    %s71 = sphi 0, %s69
    %s72 = sphi 0, %s71
    %s86 = sphi 0, %s72
    %s90 = sphi 0, %s90
    %s92 = sphi 0, %s90
    %s93 = sphi 0, %s92
    %s107 = sphi 0, %s93
    %s111 = sphi 0, %s111
    %s113 = sphi 0, %s111
    %s114 = sphi 0, %s113
    %s128 = sphi 0, %s114
    %s134 = sphi 0, %s136
    %s137 = sphi 0, %s134
    %s138 = sphi 0, %s137
    %s154 = sphi 0, %s138
    %s160 = sphi 0, %s162
    %s163 = sphi 0, %s160
    %s164 = sphi 0, %s163
    %s180 = sphi 0, %s164
    %s186 = sphi 0, %s188
    %s189 = sphi 0, %s186
    %s190 = sphi 0, %s189
    %s206 = sphi 0, %s190
  $region4: #{double_conv.3} parent=0 // loop_header_branch
    %17 = sbr.rel (%p15) target = $region8
  $region5: #{double_conv.3} parent=0 // loop_body
    %s19 = ssub.s32 %s14, 1
    %s20 = ssub.s32 %s14, 2
    %s21 = sadd.s32 %s14, 1
    %s23 = sadd.s32 %s22, 1
    %p26 = scmp.eq.s32.totalorder %s14, 1
    %p27 = scmp.ne.s32.totalorder %s22, %s24
    %p28 = scmp.eq.s32.totalorder %s14, 0
    %p29 = por %p27, %p28
    %p30 = scmp.ne.s32.totalorder %s22, %s24
    %p31 = scmp.eq.s32.totalorder %s19, 1
    %p32 = por %p30, %p31
    %p33 = scmp.ne.s32.totalorder %s24, %s25
    %p34 = scmp.eq.s32.totalorder %s19, 0
    %p35 = por %p33, %p34
    %p36 = scmp.ne.s32.totalorder %s24, %s25
    %p37 = scmp.eq.s32.totalorder %s20, 1
    %p38 = por %p36, %p37
    %p40 = scmp.ne.s32.totalorder %s25, %s39
    %p41 = scmp.eq.s32.totalorder %s20, 0
    %p42 = por %p40, %p41
    %s43 = ssub.s32 %s14, %s21
    %p44 = scmp.eq.s32.totalorder %s43, 0
    %s46 = sadd.s32 %s45, 1
    %s47 = scalar_select %p44, %s45, %s46
    %p50 = pneg %p44
    %p51 = scmp.eq.s32.totalorder %s14, 1
    %p52 = por %p50, %p51
    %p53 = scmp.ne.s32.totalorder %s45, %s48
    %p54 = scmp.eq.s32.totalorder %s14, 0
    %p55 = por %p53, %p54
    %p56 = scmp.ne.s32.totalorder %s45, %s48
    %p57 = scmp.eq.s32.totalorder %s19, 1
    %p58 = por %p56, %p57
    %p59 = scmp.ne.s32.totalorder %s48, %s49
    %p60 = scmp.eq.s32.totalorder %s19, 0
    %p61 = por %p59, %p60
    %p62 = scmp.ne.s32.totalorder %s48, %s49
    %p63 = scmp.eq.s32.totalorder %s20, 1
    %p64 = por %p62, %p63
    %p66 = scmp.ne.s32.totalorder %s49, %s65
    %p67 = scmp.eq.s32.totalorder %s20, 0
    %p68 = por %p66, %p67
    %s70 = sadd.s32 %s69, 1
    %p73 = scmp.eq.s32.totalorder %s14, 1
    %p74 = scmp.ne.s32.totalorder %s69, %s71
    %p75 = scmp.eq.s32.totalorder %s14, 0
    %p76 = por %p74, %p75
    %p77 = scmp.ne.s32.totalorder %s69, %s71
    %p78 = scmp.eq.s32.totalorder %s19, 1
    %p79 = por %p77, %p78
    %p80 = scmp.ne.s32.totalorder %s71, %s72
    %p81 = scmp.eq.s32.totalorder %s19, 0
    %p82 = por %p80, %p81
    %p83 = scmp.ne.s32.totalorder %s71, %s72
    %p84 = scmp.eq.s32.totalorder %s20, 1
    %p85 = por %p83, %p84
    %p87 = scmp.ne.s32.totalorder %s72, %s86
    %p88 = scmp.eq.s32.totalorder %s20, 0
    %p89 = por %p87, %p88
    %s91 = sadd.s32 %s90, 1
    %p94 = scmp.eq.s32.totalorder %s14, 1
    %p95 = scmp.ne.s32.totalorder %s90, %s92
    %p96 = scmp.eq.s32.totalorder %s14, 0
    %p97 = por %p95, %p96
    %p98 = scmp.ne.s32.totalorder %s90, %s92
    %p99 = scmp.eq.s32.totalorder %s19, 1
    %p100 = por %p98, %p99
    %p101 = scmp.ne.s32.totalorder %s92, %s93
    %p102 = scmp.eq.s32.totalorder %s19, 0
    %p103 = por %p101, %p102
    %p104 = scmp.ne.s32.totalorder %s92, %s93
    %p105 = scmp.eq.s32.totalorder %s20, 1
    %p106 = por %p104, %p105
    %p108 = scmp.ne.s32.totalorder %s93, %s107
    %p109 = scmp.eq.s32.totalorder %s20, 0
    %p110 = por %p108, %p109
    %s112 = sadd.s32 %s111, 1
    %p115 = scmp.eq.s32.totalorder %s14, 1
    %p116 = scmp.ne.s32.totalorder %s111, %s113
    %p117 = scmp.eq.s32.totalorder %s14, 0
    %p118 = por %p116, %p117
    %p119 = scmp.ne.s32.totalorder %s111, %s113
    %p120 = scmp.eq.s32.totalorder %s19, 1
    %p121 = por %p119, %p120
    %p122 = scmp.ne.s32.totalorder %s113, %s114
    %p123 = scmp.eq.s32.totalorder %s19, 0
    %p124 = por %p122, %p123
    %p125 = scmp.ne.s32.totalorder %s113, %s114
    %p126 = scmp.eq.s32.totalorder %s20, 1
    %p127 = por %p125, %p126
    %p129 = scmp.ne.s32.totalorder %s114, %s128
    %p130 = scmp.eq.s32.totalorder %s20, 0
    %p131 = por %p129, %p130
    %s132 = ssub.s32 %s14, %s21
    %p133 = scmp.eq.s32.totalorder %s132, 0
    %s135 = sadd.s32 %s134, 1
    %s136 = scalar_select %p133, %s134, %s135
    %p139 = pneg %p133
    %p140 = scmp.eq.s32.totalorder %s14, 1
    %p141 = por %p139, %p140
    %p142 = scmp.ne.s32.totalorder %s134, %s137
    %p143 = scmp.eq.s32.totalorder %s14, 0
    %p144 = por %p142, %p143
    %p145 = scmp.ne.s32.totalorder %s134, %s137
    %p146 = scmp.eq.s32.totalorder %s19, 1
    %p147 = por %p145, %p146
    %p148 = scmp.ne.s32.totalorder %s137, %s138
    %p149 = scmp.eq.s32.totalorder %s19, 0
    %p150 = por %p148, %p149
    %p151 = scmp.ne.s32.totalorder %s137, %s138
    %p152 = scmp.eq.s32.totalorder %s20, 1
    %p153 = por %p151, %p152
    %p155 = scmp.ne.s32.totalorder %s138, %s154
    %p156 = scmp.eq.s32.totalorder %s20, 0
    %p157 = por %p155, %p156
    %s158 = ssub.s32 %s14, %s21
    %p159 = scmp.eq.s32.totalorder %s158, 0
    %s161 = sadd.s32 %s160, 1
    %s162 = scalar_select %p159, %s160, %s161
    %p165 = pneg %p159
    %p166 = scmp.eq.s32.totalorder %s14, 1
    %p167 = por %p165, %p166
    %p168 = scmp.ne.s32.totalorder %s160, %s163
    %p169 = scmp.eq.s32.totalorder %s14, 0
    %p170 = por %p168, %p169
    %p171 = scmp.ne.s32.totalorder %s160, %s163
    %p172 = scmp.eq.s32.totalorder %s19, 1
    %p173 = por %p171, %p172
    %p174 = scmp.ne.s32.totalorder %s163, %s164
    %p175 = scmp.eq.s32.totalorder %s19, 0
    %p176 = por %p174, %p175
    %p177 = scmp.ne.s32.totalorder %s163, %s164
    %p178 = scmp.eq.s32.totalorder %s20, 1
    %p179 = por %p177, %p178
    %p181 = scmp.ne.s32.totalorder %s164, %s180
    %p182 = scmp.eq.s32.totalorder %s20, 0
    %p183 = por %p181, %p182
    %s184 = ssub.s32 %s14, %s21
    %p185 = scmp.eq.s32.totalorder %s184, 0
    %s187 = sadd.s32 %s186, 1
    %s188 = scalar_select %p185, %s186, %s187
    %p191 = pneg %p185
    %p192 = scmp.eq.s32.totalorder %s14, 1
    %p193 = por %p191, %p192
    %p194 = scmp.ne.s32.totalorder %s186, %s189
    %p195 = scmp.eq.s32.totalorder %s14, 0
    %p196 = por %p194, %p195
    %p197 = scmp.ne.s32.totalorder %s186, %s189
    %p198 = scmp.eq.s32.totalorder %s19, 1
    %p199 = por %p197, %p198
    %p200 = scmp.ne.s32.totalorder %s189, %s190
    %p201 = scmp.eq.s32.totalorder %s19, 0
    %p202 = por %p200, %p201
    %p203 = scmp.ne.s32.totalorder %s189, %s190
    %p204 = scmp.eq.s32.totalorder %s20, 1
    %p205 = por %p203, %p204
    %p207 = scmp.ne.s32.totalorder %s190, %s206
    %p208 = scmp.eq.s32.totalorder %s20, 0
    %p209 = por %p207, %p208
    %p210 = scmp.le.s32.totalorder 1, %s14
    %p211 = scmp.lt.s32.totalorder %s14, 3
    %p212 = pnand %p210, %p211
    %p213 = pneg %p212
    // Predicated region
    $region9: #{double_conv.3} parent=5 // pred_check
      _
    $region10: #{double_conv.3} parent=5 // pred_check_branch
      %215 = sbr.rel (%p212) target = $region12
    $region11: #{double_conv.3} parent=5 // pred_region
      %s216 = ssub.s32 %s14, 1
      // Predicated region
      $region13: #{double_conv.3} parent=11 // pred_check
        %p217 = pneg %p35
      $region14: #{double_conv.3} parent=11 // pred_check_branch
        %219 = sbr.rel (%p217) target = $region16
      $region15: #{double_conv.3} parent=11 // pred_region
        _
      $region16: #{double_conv.3} parent=11 // pred_fallthru
        _
      // Predicated region
      $region17: #{double_conv.3} parent=11 // pred_check
        %p220 = pneg %p82
      $region18: #{double_conv.3} parent=11 // pred_check_branch
        %222 = sbr.rel (%p220) target = $region20
      $region19: #{double_conv.3} parent=11 // pred_region
        _
      $region20: #{double_conv.3} parent=11 // pred_fallthru
        _
      // Predicated region
      $region21: #{double_conv.3} parent=11 // pred_check
        %p223 = pneg %p103
      $region22: #{double_conv.3} parent=11 // pred_check_branch
        %225 = sbr.rel (%p223) target = $region24
      $region23: #{double_conv.3} parent=11 // pred_region
        _
      $region24: #{double_conv.3} parent=11 // pred_fallthru
        _
      // Predicated region
      $region25: #{double_conv.3} parent=11 // pred_check
        %p226 = pneg %p124
      $region26: #{double_conv.3} parent=11 // pred_check_branch
        %228 = sbr.rel (%p226) target = $region28
      $region27: #{double_conv.3} parent=11 // pred_region
        _
      $region28: #{double_conv.3} parent=11 // pred_fallthru
        _
    $region12: #{double_conv.3} parent=5 // pred_fallthru
      _
    %p229 = scmp.lt.s32.totalorder %s14, 2
    // Predicated region
    $region29: #{double_conv.3} parent=5 // pred_check
      %p230 = pneg %p229
    $region30: #{double_conv.3} parent=5 // pred_check_branch
      %232 = sbr.rel (%p230) target = $region32
    $region31: #{double_conv.3} parent=5 // pred_region
      // Predicated region
      $region33: #{double_conv.3} parent=31 // pred_check
        %p233 = pneg %p55
      $region34: #{double_conv.3} parent=31 // pred_check_branch
        %235 = sbr.rel (%p233) target = $region36
      $region35: #{double_conv.3} parent=31 // pred_region
        %p236 = scmp.lt.s32.totalorder %s14, 1
        %s237 = scalar_select %p236, %s14, 1
        %s238 = smul.addr %s237, 60
        %s239 = smul.addr %s238, 8
        %s240 = scalar_lea.vmem %s1, %s239
      $region36: #{double_conv.3} parent=31 // pred_fallthru
        _
    $region32: #{double_conv.3} parent=5 // pred_fallthru
      _
    %p241 = scmp.le.s32.totalorder 1, %s14
    %p242 = scmp.lt.s32.totalorder %s14, 3
    %p243 = pnand %p241, %p242
    %p244 = pneg %p243
    // Predicated region
    $region37: #{double_conv.3} parent=5 // pred_check
      _
    $region38: #{double_conv.3} parent=5 // pred_check_branch
      %246 = sbr.rel (%p243) target = $region40
    $region39: #{double_conv.3} parent=5 // pred_region
      %s247 = ssub.s32 %s14, 1
      %p248 = pneg %p35
      %p249 = pneg %p32
      %p250 = scmp.lt.s32.totalorder %s19, 1
      %s251 = scalar_select %p250, %s19, 1
      %s252 = smul.addr %s251, 60
      %s253 = smul.addr %s252, 8
      %s254 = scalar_lea.vmem %s1, %s253
      %p255 = pneg %p61
      %p256 = pneg %p58
      %p257 = pneg %p82
      %p258 = pneg %p79
      %p259 = pneg %p103
      %p260 = pneg %p100
      %p261 = pneg %p124
      %p262 = pneg %p121
      %p263 = pneg %p150
      %p264 = pneg %p147
      %p265 = scmp.lt.s32.totalorder %s19, 1
      %s266 = scalar_select %p265, %s19, 1
      %s267 = smul.addr %s266, 60
      %s268 = smul.addr %s267, 8
      %s269 = scalar_lea.vmem %s5, %s268
      %p270 = pneg %p176
      %p271 = pneg %p173
      %p272 = scmp.lt.s32.totalorder %s19, 1
      %s273 = scalar_select %p272, %s19, 1
      %s274 = scalar_lea.vmem %s6, %s273
      %p275 = pneg %p202
      %p276 = pneg %p199
      %p277 = scmp.lt.s32.totalorder %s19, 1
      %s278 = scalar_select %p277, %s19, 1
      %s279 = scalar_lea.vmem %s7, %s278
      %p280 = scmp.lt.s32.totalorder %s19, 1
      %s281 = scalar_select %p280, %s19, 1
      %s282 = smul.addr %s281, 60
      %s283 = smul.addr %s282, 8
      %s284 = scalar_lea.vmem %s1, %s283
      %p285 = scmp.lt.s32.totalorder %s19, 1
      %s286 = scalar_select %p285, %s19, 1
      %s287 = smul.addr %s286, 60
      %s288 = smul.addr %s287, 8
      %s289 = scalar_lea.vmem %s5, %s288
      %p290 = scmp.lt.s32.totalorder %s19, 1
      %s291 = scalar_select %p290, %s19, 1
      %s292 = scalar_lea.vmem %s6, %s291
      %p293 = scmp.lt.s32.totalorder %s19, 1
      %s294 = scalar_select %p293, %s19, 1
      %s295 = scalar_lea.vmem %s7, %s294
      %v297 = vld [vmem:[%s284 + $0x10] sm:$0xff]
      %v298 = vld [vmem:[%s284 + $0x18] sm:$0xff]
      %v299 = vld [vmem:[%s284 + $0x20] sm:$0xff]
      %v300 = vld [vmem:[%s284 + $0x28] sm:$0xff]
      %v301 = vld [vmem:[%s284 + $0x30] sm:$0xff]
      %v302 = vld [vmem:[%s284 + $0x38] sm:$0xff]
      %v303 = vld [vmem:[%s284 + $0x40] sm:$0xff]
      %v304 = vld [vmem:[%s284 + $0x48] sm:$0xff]
      %v305 = vld [vmem:[%s284 + $0x50] sm:$0xff]
      %v306 = vld [vmem:[%s284 + $0x58] sm:$0xff]
      %v307 = vld [vmem:[%s284 + $0x60] sm:$0xff]
      %v308 = vld [vmem:[%s284 + $0x68] sm:$0xff]
      %v309 = vld [vmem:[%s284 + $0x70] sm:$0xff]
      %v310 = vld [vmem:[%s284 + $0x78] sm:$0xff]
      %v311 = vld [vmem:[%s284 + $0x80] sm:$0xff]
      %v312 = vld [vmem:[%s284 + $0x88] sm:$0xff]
      %v313 = vld [vmem:[%s284 + $0x90] sm:$0xff]
      %v314 = vld [vmem:[%s284 + $0x98] sm:$0xff]
      %v315 = vld [vmem:[%s284 + $0xa0] sm:$0xff]
      %v316 = vld [vmem:[%s284 + $0xa8] sm:$0xff]
      %v317 = vld [vmem:[%s284 + $0xb0] sm:$0xff]
      %v318 = vld [vmem:[%s284 + $0xb8] sm:$0xff]
      %v319 = vld [vmem:[%s284 + $0xc0] sm:$0xff]
      %v320 = vld [vmem:[%s284 + $0xc8] sm:$0xff]
      %v321 = vld [vmem:[%s284 + $0xd0] sm:$0xff]
      %v322 = vld [vmem:[%s284 + $0xd8] sm:$0xff]
      %v323 = vld [vmem:[%s284 + $0xe0] sm:$0xff]
      %v324 = vld [vmem:[%s284 + $0xe8] sm:$0xff]
      %v325 = vld [vmem:[%s284 + $0xf0] sm:$0xff]
      %v326 = vld [vmem:[%s284 + $0xf8] sm:$0xff]
      %v327 = vld [vmem:[%s284 + $0x100] sm:$0xff]
      %v328 = vld [vmem:[%s284 + $0x108] sm:$0xff]
      %v329 = vld [vmem:[%s284 + $0x110] sm:$0xff]
      %v330 = vld [vmem:[%s284 + $0x118] sm:$0xff]
      %v331 = vld [vmem:[%s284 + $0x120] sm:$0xff]
      %v332 = vld [vmem:[%s284 + $0x128] sm:$0xff]
      %v333 = vld [vmem:[%s284 + $0x130] sm:$0xff]
      %v334 = vld [vmem:[%s284 + $0x138] sm:$0xff]
      %v335 = vld [vmem:[%s284 + $0x140] sm:$0xff]
      %v336 = vld [vmem:[%s284 + $0x148] sm:$0xff]
      %v337 = vld [vmem:[%s284 + $0x150] sm:$0xff]
      %v338 = vld [vmem:[%s284 + $0x158] sm:$0xff]
      %v339 = vld [vmem:[%s284 + $0x160] sm:$0xff]
      %v340 = vld [vmem:[%s284 + $0x168] sm:$0xff]
      %v341 = vld [vmem:[%s284 + $0x170] sm:$0xff]
      %v342 = vld [vmem:[%s284 + $0x178] sm:$0xff]
      %v343 = vld [vmem:[%s284 + $0x180] sm:$0xff]
      %v344 = vld [vmem:[%s284 + $0x188] sm:$0xff]
      %v345 = vld [vmem:[%s284 + $0x190] sm:$0xff]
      %v346 = vld [vmem:[%s284 + $0x198] sm:$0xff]
      %v347 = vld [vmem:[%s284 + $0x1a0] sm:$0xff]
      %v348 = vld [vmem:[%s284 + $0x1a8] sm:$0xff]
      %v349 = vld [vmem:[%s284 + $0x1b0] sm:$0xff]
      %v350 = vld [vmem:[%s284 + $0x1b8] sm:$0xff]
      %v351 = vld [vmem:[%s284 + $0x1c0] sm:$0xff]
      %v352 = vld [vmem:[%s284 + $0x1c8] sm:$0xff]
      %v353 = vrot.slane %v297, 7
      %v354 = vrot.slane %v298, 7
      %v355 = vrot.slane %v299, 7
      %v356 = vrot.slane %v300, 7
      %v357 = vrot.slane %v301, 7
      %v358 = vrot.slane %v302, 7
      %v359 = vrot.slane %v303, 7
      %v360 = vrot.slane %v304, 7
      %v361 = vrot.slane %v305, 7
      %v362 = vrot.slane %v306, 7
      %v363 = vrot.slane %v307, 7
      %v364 = vrot.slane %v308, 7
      %v365 = vrot.slane %v309, 7
      %v366 = vrot.slane %v310, 7
      %v367 = vrot.slane %v311, 7
      %v368 = vrot.slane %v312, 7
      %v369 = vrot.slane %v313, 7
      %v370 = vrot.slane %v314, 7
      %v371 = vrot.slane %v315, 7
      %v372 = vrot.slane %v316, 7
      %v373 = vrot.slane %v317, 7
      %v374 = vrot.slane %v318, 7
      %v375 = vrot.slane %v319, 7
      %v376 = vrot.slane %v320, 7
      %v377 = vrot.slane %v321, 7
      %v378 = vrot.slane %v322, 7
      %v379 = vrot.slane %v323, 7
      %v380 = vrot.slane %v324, 7
      %v381 = vrot.slane %v325, 7
      %v382 = vrot.slane %v326, 7
      %v383 = vrot.slane %v327, 7
      %v384 = vrot.slane %v328, 7
      %v385 = vrot.slane %v329, 7
      %v386 = vrot.slane %v330, 7
      %v387 = vrot.slane %v331, 7
      %v388 = vrot.slane %v332, 7
      %v389 = vrot.slane %v333, 7
      %v390 = vrot.slane %v334, 7
      %v391 = vrot.slane %v335, 7
      %v392 = vrot.slane %v336, 7
      %v393 = vrot.slane %v337, 7
      %v394 = vrot.slane %v338, 7
      %v395 = vrot.slane %v339, 7
      %v396 = vrot.slane %v340, 7
      %v397 = vrot.slane %v341, 7
      %v398 = vrot.slane %v342, 7
      %v399 = vrot.slane %v343, 7
      %v400 = vrot.slane %v344, 7
      %v401 = vrot.slane %v345, 7
      %v402 = vrot.slane %v346, 7
      %v403 = vrot.slane %v347, 7
      %v404 = vrot.slane %v348, 7
      %v405 = vrot.slane %v349, 7
      %v406 = vrot.slane %v350, 7
      %v407 = vrot.slane %v351, 7
      %v408 = vlaneseq
      %v409 = vshrl.u32 %v408, 7
      %vm410 = vcmp.lt.s32.totalorder %v409, 1
      %v411 = vsel %vm410, %v406, %v407
      %v412 = vsel %vm410, %v405, %v406
      %v413 = vsel %vm410, %v404, %v405
      %v414 = vsel %vm410, %v403, %v404
      %v415 = vsel %vm410, %v402, %v403
      %v416 = vsel %vm410, %v401, %v402
      %v417 = vsel %vm410, %v400, %v401
      %v418 = vsel %vm410, %v399, %v400
      %v419 = vsel %vm410, %v398, %v399
      %v420 = vsel %vm410, %v397, %v398
      %v421 = vsel %vm410, %v396, %v397
      %v422 = vsel %vm410, %v395, %v396
      %v423 = vsel %vm410, %v394, %v395
      %v424 = vsel %vm410, %v393, %v394
      %v425 = vsel %vm410, %v392, %v393
      %v426 = vsel %vm410, %v391, %v392
      %v427 = vsel %vm410, %v390, %v391
      %v428 = vsel %vm410, %v389, %v390
      %v429 = vsel %vm410, %v388, %v389
      %v430 = vsel %vm410, %v387, %v388
      %v431 = vsel %vm410, %v386, %v387
      %v432 = vsel %vm410, %v385, %v386
      %v433 = vsel %vm410, %v384, %v385
      %v434 = vsel %vm410, %v383, %v384
      %v435 = vsel %vm410, %v382, %v383
      %v436 = vsel %vm410, %v381, %v382
      %v437 = vsel %vm410, %v380, %v381
      %v438 = vsel %vm410, %v379, %v380
      %v439 = vsel %vm410, %v378, %v379
      %v440 = vsel %vm410, %v377, %v378
      %v441 = vsel %vm410, %v376, %v377
      %v442 = vsel %vm410, %v375, %v376
      %v443 = vsel %vm410, %v374, %v375
      %v444 = vsel %vm410, %v373, %v374
      %v445 = vsel %vm410, %v372, %v373
      %v446 = vsel %vm410, %v371, %v372
      %v447 = vsel %vm410, %v370, %v371
      %v448 = vsel %vm410, %v369, %v370
      %v449 = vsel %vm410, %v368, %v369
      %v450 = vsel %vm410, %v367, %v368
      %v451 = vsel %vm410, %v366, %v367
      %v452 = vsel %vm410, %v365, %v366
      %v453 = vsel %vm410, %v364, %v365
      %v454 = vsel %vm410, %v363, %v364
      %v455 = vsel %vm410, %v362, %v363
      %v456 = vsel %vm410, %v361, %v362
      %v457 = vsel %vm410, %v360, %v361
      %v458 = vsel %vm410, %v359, %v360
      %v459 = vsel %vm410, %v358, %v359
      %v460 = vsel %vm410, %v357, %v358
      %v461 = vsel %vm410, %v356, %v357
      %v462 = vsel %vm410, %v355, %v356
      %v463 = vsel %vm410, %v354, %v355
      %v464 = vsel %vm410, %v353, %v354
      %v465 = vrot.slane %v298, 1
      %v466 = vrot.slane %v299, 1
      %v467 = vrot.slane %v300, 1
      %v468 = vrot.slane %v301, 1
      %v469 = vrot.slane %v302, 1
      %v470 = vrot.slane %v303, 1
      %v471 = vrot.slane %v304, 1
      %v472 = vrot.slane %v305, 1
      %v473 = vrot.slane %v306, 1
      %v474 = vrot.slane %v307, 1
      %v475 = vrot.slane %v308, 1
      %v476 = vrot.slane %v309, 1
      %v477 = vrot.slane %v310, 1
      %v478 = vrot.slane %v311, 1
      %v479 = vrot.slane %v312, 1
      %v480 = vrot.slane %v313, 1
      %v481 = vrot.slane %v314, 1
      %v482 = vrot.slane %v315, 1
      %v483 = vrot.slane %v316, 1
      %v484 = vrot.slane %v317, 1
      %v485 = vrot.slane %v318, 1
      %v486 = vrot.slane %v319, 1
      %v487 = vrot.slane %v320, 1
      %v488 = vrot.slane %v321, 1
      %v489 = vrot.slane %v322, 1
      %v490 = vrot.slane %v323, 1
      %v491 = vrot.slane %v324, 1
      %v492 = vrot.slane %v325, 1
      %v493 = vrot.slane %v326, 1
      %v494 = vrot.slane %v327, 1
      %v495 = vrot.slane %v328, 1
      %v496 = vrot.slane %v329, 1
      %v497 = vrot.slane %v330, 1
      %v498 = vrot.slane %v331, 1
      %v499 = vrot.slane %v332, 1
      %v500 = vrot.slane %v333, 1
      %v501 = vrot.slane %v334, 1
      %v502 = vrot.slane %v335, 1
      %v503 = vrot.slane %v336, 1
      %v504 = vrot.slane %v337, 1
      %v505 = vrot.slane %v338, 1
      %v506 = vrot.slane %v339, 1
      %v507 = vrot.slane %v340, 1
      %v508 = vrot.slane %v341, 1
      %v509 = vrot.slane %v342, 1
      %v510 = vrot.slane %v343, 1
      %v511 = vrot.slane %v344, 1
      %v512 = vrot.slane %v345, 1
      %v513 = vrot.slane %v346, 1
      %v514 = vrot.slane %v347, 1
      %v515 = vrot.slane %v348, 1
      %v516 = vrot.slane %v349, 1
      %v517 = vrot.slane %v350, 1
      %v518 = vrot.slane %v351, 1
      %v519 = vrot.slane %v352, 1
      %vm520 = vcmp.lt.s32.totalorder %v409, 7
      %v521 = vsel %vm520, %v518, %v519
      %v522 = vsel %vm520, %v517, %v518
      %v523 = vsel %vm520, %v516, %v517
      %v524 = vsel %vm520, %v515, %v516
      %v525 = vsel %vm520, %v514, %v515
      %v526 = vsel %vm520, %v513, %v514
      %v527 = vsel %vm520, %v512, %v513
      %v528 = vsel %vm520, %v511, %v512
      %v529 = vsel %vm520, %v510, %v511
      %v530 = vsel %vm520, %v509, %v510
      %v531 = vsel %vm520, %v508, %v509
      %v532 = vsel %vm520, %v507, %v508
      %v533 = vsel %vm520, %v506, %v507
      %v534 = vsel %vm520, %v505, %v506
      %v535 = vsel %vm520, %v504, %v505
      %v536 = vsel %vm520, %v503, %v504
      %v537 = vsel %vm520, %v502, %v503
      %v538 = vsel %vm520, %v501, %v502
      %v539 = vsel %vm520, %v500, %v501
      %v540 = vsel %vm520, %v499, %v500
      %v541 = vsel %vm520, %v498, %v499
      %v542 = vsel %vm520, %v497, %v498
      %v543 = vsel %vm520, %v496, %v497
      %v544 = vsel %vm520, %v495, %v496
      %v545 = vsel %vm520, %v494, %v495
      %v546 = vsel %vm520, %v493, %v494
      %v547 = vsel %vm520, %v492, %v493
      %v548 = vsel %vm520, %v491, %v492
      %v549 = vsel %vm520, %v490, %v491
      %v550 = vsel %vm520, %v489, %v490
      %v551 = vsel %vm520, %v488, %v489
      %v552 = vsel %vm520, %v487, %v488
      %v553 = vsel %vm520, %v486, %v487
      %v554 = vsel %vm520, %v485, %v486
      %v555 = vsel %vm520, %v484, %v485
      %v556 = vsel %vm520, %v483, %v484
      %v557 = vsel %vm520, %v482, %v483
      %v558 = vsel %vm520, %v481, %v482
      %v559 = vsel %vm520, %v480, %v481
      %v560 = vsel %vm520, %v479, %v480
      %v561 = vsel %vm520, %v478, %v479
      %v562 = vsel %vm520, %v477, %v478
      %v563 = vsel %vm520, %v476, %v477
      %v564 = vsel %vm520, %v475, %v476
      %v565 = vsel %vm520, %v474, %v475
      %v566 = vsel %vm520, %v473, %v474
      %v567 = vsel %vm520, %v472, %v473
      %v568 = vsel %vm520, %v471, %v472
      %v569 = vsel %vm520, %v470, %v471
      %v570 = vsel %vm520, %v469, %v470
      %v571 = vsel %vm520, %v468, %v469
      %v572 = vsel %vm520, %v467, %v468
      %v573 = vsel %vm520, %v466, %v467
      %v574 = vsel %vm520, %v465, %v466
      %v575 = vpack.c.bf16 %v463, %v464
      %v576 = vpack.c.bf16 %v461, %v462
      %v577 = vpack.c.bf16 %v459, %v460
      %v578 = vpack.c.bf16 %v457, %v458
      %v579 = vpack.c.bf16 %v455, %v456
      %v580 = vpack.c.bf16 %v453, %v454
      %v581 = vpack.c.bf16 %v451, %v452
      %v582 = vpack.c.bf16 %v449, %v450
      %v583 = vpack.c.bf16 %v447, %v448
      %v584 = vpack.c.bf16 %v445, %v446
      %v585 = vpack.c.bf16 %v443, %v444
      %v586 = vpack.c.bf16 %v441, %v442
      %v587 = vpack.c.bf16 %v439, %v440
      %v588 = vpack.c.bf16 %v437, %v438
      %v589 = vpack.c.bf16 %v435, %v436
      %v590 = vpack.c.bf16 %v433, %v434
      %v591 = vpack.c.bf16 %v431, %v432
      %v592 = vpack.c.bf16 %v429, %v430
      %v593 = vpack.c.bf16 %v427, %v428
      %v594 = vpack.c.bf16 %v425, %v426
      %v595 = vpack.c.bf16 %v423, %v424
      %v596 = vpack.c.bf16 %v421, %v422
      %v597 = vpack.c.bf16 %v419, %v420
      %v598 = vpack.c.bf16 %v417, %v418
      %v599 = vpack.c.bf16 %v415, %v416
      %v600 = vpack.c.bf16 %v413, %v414
      %v601 = vpack.c.bf16 %v411, %v412
      %602 = vst [vmem:[#allocation2] sm:$0xff] %v575
      %603 = vst [vmem:[#allocation2 + $0x18] sm:$0xff] %v576
      %604 = vst [vmem:[#allocation2 + $0x30] sm:$0xff] %v577
      %605 = vst [vmem:[#allocation2 + $0x48] sm:$0xff] %v578
      %606 = vst [vmem:[#allocation2 + $0x60] sm:$0xff] %v579
      %607 = vst [vmem:[#allocation2 + $0x78] sm:$0xff] %v580
      %608 = vst [vmem:[#allocation2 + $0x90] sm:$0xff] %v581
      %609 = vst [vmem:[#allocation2 + $0xa8] sm:$0xff] %v582
      %610 = vst [vmem:[#allocation2 + $0xc0] sm:$0xff] %v583
      %611 = vst [vmem:[#allocation2 + $0xd8] sm:$0xff] %v584
      %612 = vst [vmem:[#allocation2 + $0xf0] sm:$0xff] %v585
      %613 = vst [vmem:[#allocation2 + $0x108] sm:$0xff] %v586
      %614 = vst [vmem:[#allocation2 + $0x120] sm:$0xff] %v587
      %615 = vst [vmem:[#allocation2 + $0x138] sm:$0xff] %v588
      %616 = vst [vmem:[#allocation2 + $0x150] sm:$0xff] %v589
      %617 = vst [vmem:[#allocation2 + $0x168] sm:$0xff] %v590
      %618 = vst [vmem:[#allocation2 + $0x180] sm:$0xff] %v591
      %619 = vst [vmem:[#allocation2 + $0x198] sm:$0xff] %v592
      %620 = vst [vmem:[#allocation2 + $0x1b0] sm:$0xff] %v593
      %621 = vst [vmem:[#allocation2 + $0x1c8] sm:$0xff] %v594
      %622 = vst [vmem:[#allocation2 + $0x1e0] sm:$0xff] %v595
      %623 = vst [vmem:[#allocation2 + $0x1f8] sm:$0xff] %v596
      %624 = vst [vmem:[#allocation2 + $0x210] sm:$0xff] %v597
      %625 = vst [vmem:[#allocation2 + $0x228] sm:$0xff] %v598
      %626 = vst [vmem:[#allocation2 + $0x240] sm:$0xff] %v599
      %627 = vst [vmem:[#allocation2 + $0x258] sm:$0xff] %v600
      %628 = vst [vmem:[#allocation2 + $0x270] sm:$0xff] %v601
      %v629 = vpack.c.bf16 %v299, %v298
      %v630 = vpack.c.bf16 %v301, %v300
      %v631 = vpack.c.bf16 %v303, %v302
      %v632 = vpack.c.bf16 %v305, %v304
      %v633 = vpack.c.bf16 %v307, %v306
      %v634 = vpack.c.bf16 %v309, %v308
      %v635 = vpack.c.bf16 %v311, %v310
      %v636 = vpack.c.bf16 %v313, %v312
      %v637 = vpack.c.bf16 %v315, %v314
      %v638 = vpack.c.bf16 %v317, %v316
      %v639 = vpack.c.bf16 %v319, %v318
      %v640 = vpack.c.bf16 %v321, %v320
      %v641 = vpack.c.bf16 %v323, %v322
      %v642 = vpack.c.bf16 %v325, %v324
      %v643 = vpack.c.bf16 %v327, %v326
      %v644 = vpack.c.bf16 %v329, %v328
      %v645 = vpack.c.bf16 %v331, %v330
      %v646 = vpack.c.bf16 %v333, %v332
      %v647 = vpack.c.bf16 %v335, %v334
      %v648 = vpack.c.bf16 %v337, %v336
      %v649 = vpack.c.bf16 %v339, %v338
      %v650 = vpack.c.bf16 %v341, %v340
      %v651 = vpack.c.bf16 %v343, %v342
      %v652 = vpack.c.bf16 %v345, %v344
      %v653 = vpack.c.bf16 %v347, %v346
      %v654 = vpack.c.bf16 %v349, %v348
      %v655 = vpack.c.bf16 %v351, %v350
      %656 = vst [vmem:[#allocation2 + $0x8] sm:$0xff] %v629
      %657 = vst [vmem:[#allocation2 + $0x20] sm:$0xff] %v630
      %658 = vst [vmem:[#allocation2 + $0x38] sm:$0xff] %v631
      %659 = vst [vmem:[#allocation2 + $0x50] sm:$0xff] %v632
      %660 = vst [vmem:[#allocation2 + $0x68] sm:$0xff] %v633
      %661 = vst [vmem:[#allocation2 + $0x80] sm:$0xff] %v634
      %662 = vst [vmem:[#allocation2 + $0x98] sm:$0xff] %v635
      %663 = vst [vmem:[#allocation2 + $0xb0] sm:$0xff] %v636
      %664 = vst [vmem:[#allocation2 + $0xc8] sm:$0xff] %v637
      %665 = vst [vmem:[#allocation2 + $0xe0] sm:$0xff] %v638
      %666 = vst [vmem:[#allocation2 + $0xf8] sm:$0xff] %v639
      %667 = vst [vmem:[#allocation2 + $0x110] sm:$0xff] %v640
      %668 = vst [vmem:[#allocation2 + $0x128] sm:$0xff] %v641
      %669 = vst [vmem:[#allocation2 + $0x140] sm:$0xff] %v642
      %670 = vst [vmem:[#allocation2 + $0x158] sm:$0xff] %v643
      %671 = vst [vmem:[#allocation2 + $0x170] sm:$0xff] %v644
      %672 = vst [vmem:[#allocation2 + $0x188] sm:$0xff] %v645
      %673 = vst [vmem:[#allocation2 + $0x1a0] sm:$0xff] %v646
      %674 = vst [vmem:[#allocation2 + $0x1b8] sm:$0xff] %v647
      %675 = vst [vmem:[#allocation2 + $0x1d0] sm:$0xff] %v648
      %676 = vst [vmem:[#allocation2 + $0x1e8] sm:$0xff] %v649
      %677 = vst [vmem:[#allocation2 + $0x200] sm:$0xff] %v650
      %678 = vst [vmem:[#allocation2 + $0x218] sm:$0xff] %v651
      %679 = vst [vmem:[#allocation2 + $0x230] sm:$0xff] %v652
      %680 = vst [vmem:[#allocation2 + $0x248] sm:$0xff] %v653
      %681 = vst [vmem:[#allocation2 + $0x260] sm:$0xff] %v654
      %682 = vst [vmem:[#allocation2 + $0x278] sm:$0xff] %v655
      %v683 = vpack.c.bf16 %v573, %v574
      %v684 = vpack.c.bf16 %v571, %v572
      %v685 = vpack.c.bf16 %v569, %v570
      %v686 = vpack.c.bf16 %v567, %v568
      %v687 = vpack.c.bf16 %v565, %v566
      %v688 = vpack.c.bf16 %v563, %v564
      %v689 = vpack.c.bf16 %v561, %v562
      %v690 = vpack.c.bf16 %v559, %v560
      %v691 = vpack.c.bf16 %v557, %v558
      %v692 = vpack.c.bf16 %v555, %v556
      %v693 = vpack.c.bf16 %v553, %v554
      %v694 = vpack.c.bf16 %v551, %v552
      %v695 = vpack.c.bf16 %v549, %v550
      %v696 = vpack.c.bf16 %v547, %v548
      %v697 = vpack.c.bf16 %v545, %v546
      %v698 = vpack.c.bf16 %v543, %v544
      %v699 = vpack.c.bf16 %v541, %v542
      %v700 = vpack.c.bf16 %v539, %v540
      %v701 = vpack.c.bf16 %v537, %v538
      %v702 = vpack.c.bf16 %v535, %v536
      %v703 = vpack.c.bf16 %v533, %v534
      %v704 = vpack.c.bf16 %v531, %v532
      %v705 = vpack.c.bf16 %v529, %v530
      %v706 = vpack.c.bf16 %v527, %v528
      %v707 = vpack.c.bf16 %v525, %v526
      %v708 = vpack.c.bf16 %v523, %v524
      %v709 = vpack.c.bf16 %v521, %v522
      %710 = vst [vmem:[#allocation2 + $0x10] sm:$0xff] %v683
      %711 = vst [vmem:[#allocation2 + $0x28] sm:$0xff] %v684
      %712 = vst [vmem:[#allocation2 + $0x40] sm:$0xff] %v685
      %713 = vst [vmem:[#allocation2 + $0x58] sm:$0xff] %v686
      %714 = vst [vmem:[#allocation2 + $0x70] sm:$0xff] %v687
      %715 = vst [vmem:[#allocation2 + $0x88] sm:$0xff] %v688
      %716 = vst [vmem:[#allocation2 + $0xa0] sm:$0xff] %v689
      %717 = vst [vmem:[#allocation2 + $0xb8] sm:$0xff] %v690
      %718 = vst [vmem:[#allocation2 + $0xd0] sm:$0xff] %v691
      %719 = vst [vmem:[#allocation2 + $0xe8] sm:$0xff] %v692
      %720 = vst [vmem:[#allocation2 + $0x100] sm:$0xff] %v693
      %721 = vst [vmem:[#allocation2 + $0x118] sm:$0xff] %v694
      %722 = vst [vmem:[#allocation2 + $0x130] sm:$0xff] %v695
      %723 = vst [vmem:[#allocation2 + $0x148] sm:$0xff] %v696
      %724 = vst [vmem:[#allocation2 + $0x160] sm:$0xff] %v697
      %725 = vst [vmem:[#allocation2 + $0x178] sm:$0xff] %v698
      %726 = vst [vmem:[#allocation2 + $0x190] sm:$0xff] %v699
      %727 = vst [vmem:[#allocation2 + $0x1a8] sm:$0xff] %v700
      %728 = vst [vmem:[#allocation2 + $0x1c0] sm:$0xff] %v701
      %729 = vst [vmem:[#allocation2 + $0x1d8] sm:$0xff] %v702
      %730 = vst [vmem:[#allocation2 + $0x1f0] sm:$0xff] %v703
      %731 = vst [vmem:[#allocation2 + $0x208] sm:$0xff] %v704
      %732 = vst [vmem:[#allocation2 + $0x220] sm:$0xff] %v705
      %733 = vst [vmem:[#allocation2 + $0x238] sm:$0xff] %v706
      %734 = vst [vmem:[#allocation2 + $0x250] sm:$0xff] %v707
      %735 = vst [vmem:[#allocation2 + $0x268] sm:$0xff] %v708
      %736 = vst [vmem:[#allocation2 + $0x280] sm:$0xff] %v709
      %v737 = vld [vmem:[#allocation2] sm:$0xff]
      %v738 = vld [vmem:[#allocation2 + $0x8] sm:$0xff]
      %v739 = vld [vmem:[#allocation2 + $0x10] sm:$0xff]
      %v740 = vld [vmem:[#allocation2 + $0x18] sm:$0xff]
      %v741 = vld [vmem:[#allocation2 + $0x20] sm:$0xff]
      %v742 = vld [vmem:[#allocation2 + $0x28] sm:$0xff]
      %v743 = vld [vmem:[#allocation2 + $0x30] sm:$0xff]
      %v744 = vld [vmem:[#allocation2 + $0x38] sm:$0xff]
      %v745 = vld [vmem:[#allocation2 + $0x40] sm:$0xff]
      %v746 = vld [vmem:[#allocation2 + $0x48] sm:$0xff]
      %v747 = vld [vmem:[#allocation2 + $0x50] sm:$0xff]
      %v748 = vld [vmem:[#allocation2 + $0x58] sm:$0xff]
      %v749 = vld [vmem:[#allocation2 + $0x60] sm:$0xff]
      %v750 = vld [vmem:[#allocation2 + $0x68] sm:$0xff]
      %v751 = vld [vmem:[#allocation2 + $0x70] sm:$0xff]
      %v752 = vld [vmem:[#allocation2 + $0x78] sm:$0xff]
      %v753 = vld [vmem:[#allocation2 + $0x80] sm:$0xff]
      %v754 = vld [vmem:[#allocation2 + $0x88] sm:$0xff]
      %v755 = vld [vmem:[#allocation2 + $0x90] sm:$0xff]
      %v756 = vld [vmem:[#allocation2 + $0x98] sm:$0xff]
      %v757 = vld [vmem:[#allocation2 + $0xa0] sm:$0xff]
      %v758 = vld [vmem:[#allocation2 + $0xa8] sm:$0xff]
      %v759 = vld [vmem:[#allocation2 + $0xb0] sm:$0xff]
      %v760 = vld [vmem:[#allocation2 + $0xb8] sm:$0xff]
      %v761 = vld [vmem:[#allocation2 + $0xc0] sm:$0xff]
      %v762 = vld [vmem:[#allocation2 + $0xc8] sm:$0xff]
      %v763 = vld [vmem:[#allocation2 + $0xd0] sm:$0xff]
      %v764 = vld [vmem:[#allocation2 + $0xd8] sm:$0xff]
      %v765 = vld [vmem:[#allocation2 + $0xe0] sm:$0xff]
      %v766 = vld [vmem:[#allocation2 + $0xe8] sm:$0xff]
      %v767 = vld [vmem:[#allocation2 + $0xf0] sm:$0xff]
      %v768 = vld [vmem:[#allocation2 + $0xf8] sm:$0xff]
      %v769 = vld [vmem:[#allocation2 + $0x100] sm:$0xff]
      %v770 = vld [vmem:[#allocation2 + $0x108] sm:$0xff]
      %v771 = vld [vmem:[#allocation2 + $0x110] sm:$0xff]
      %v772 = vld [vmem:[#allocation2 + $0x118] sm:$0xff]
      %v773 = vld [vmem:[#allocation2 + $0x120] sm:$0xff]
      %v774 = vld [vmem:[#allocation2 + $0x128] sm:$0xff]
      %v775 = vld [vmem:[#allocation2 + $0x130] sm:$0xff]
      %v776 = vld [vmem:[#allocation2 + $0x138] sm:$0xff]
      %v777 = vld [vmem:[#allocation2 + $0x140] sm:$0xff]
      %v778 = vld [vmem:[#allocation2 + $0x148] sm:$0xff]
      %v779 = vld [vmem:[#allocation2 + $0x150] sm:$0xff]
      %v780 = vld [vmem:[#allocation2 + $0x158] sm:$0xff]
      %v781 = vld [vmem:[#allocation2 + $0x160] sm:$0xff]
      %v782 = vld [vmem:[#allocation2 + $0x168] sm:$0xff]
      %v783 = vld [vmem:[#allocation2 + $0x170] sm:$0xff]
      %v784 = vld [vmem:[#allocation2 + $0x178] sm:$0xff]
      %v785 = vld [vmem:[#allocation2 + $0x180] sm:$0xff]
      %v786 = vld [vmem:[#allocation2 + $0x188] sm:$0xff]
      %v787 = vld [vmem:[#allocation2 + $0x190] sm:$0xff]
      %v788 = vld [vmem:[#allocation2 + $0x198] sm:$0xff]
      %v789 = vld [vmem:[#allocation2 + $0x1a0] sm:$0xff]
      %v790 = vld [vmem:[#allocation2 + $0x1a8] sm:$0xff]
      %v791 = vld [vmem:[#allocation2 + $0x1b0] sm:$0xff]
      %v792 = vld [vmem:[#allocation2 + $0x1b8] sm:$0xff]
      %v793 = vld [vmem:[#allocation2 + $0x1c0] sm:$0xff]
      %v794 = vld [vmem:[#allocation2 + $0x1c8] sm:$0xff]
      %v795 = vld [vmem:[#allocation2 + $0x1d0] sm:$0xff]
      %v796 = vld [vmem:[#allocation2 + $0x1d8] sm:$0xff]
      %v797 = vld [vmem:[#allocation2 + $0x1e0] sm:$0xff]
      %v798 = vld [vmem:[#allocation2 + $0x1e8] sm:$0xff]
      %v799 = vld [vmem:[#allocation2 + $0x1f0] sm:$0xff]
      %v800 = vld [vmem:[#allocation2 + $0x1f8] sm:$0xff]
      %v801 = vld [vmem:[#allocation2 + $0x200] sm:$0xff]
      %v802 = vld [vmem:[#allocation2 + $0x208] sm:$0xff]
      %v803 = vld [vmem:[#allocation2 + $0x210] sm:$0xff]
      %v804 = vld [vmem:[#allocation2 + $0x218] sm:$0xff]
      %v805 = vld [vmem:[#allocation2 + $0x220] sm:$0xff]
      %v806 = vld [vmem:[#allocation2 + $0x228] sm:$0xff]
      %v807 = vld [vmem:[#allocation2 + $0x230] sm:$0xff]
      %v808 = vld [vmem:[#allocation2 + $0x238] sm:$0xff]
      %v809 = vld [vmem:[%s4] sm:$0xf]
      %v810 = vld [vmem:[%s4 + $0x4] sm:$0xf]
      %v811 = vld [vmem:[%s4 + $0x8] sm:$0xf]
      %v812 = vld [vmem:[%s4 + $0xc] sm:$0xf]
      %v813 = vld [vmem:[%s4 + $0x10] sm:$0xf]
      %v814 = vld [vmem:[%s4 + $0x14] sm:$0xf]
      %v815 = vld [vmem:[%s4 + $0x18] sm:$0xf]
      %v816 = vld [vmem:[%s4 + $0x1c] sm:$0xf]
      %v817 = vld [vmem:[%s4 + $0x20] sm:$0xf]
      %v818 = vld [vmem:[%s4 + $0x24] sm:$0xf]
      %v819 = vld [vmem:[%s4 + $0x28] sm:$0xf]
      %v820 = vld [vmem:[%s4 + $0x2c] sm:$0xf]
      %v821 = vld [vmem:[%s4 + $0x30] sm:$0xf]
      %v822 = vld [vmem:[%s4 + $0x34] sm:$0xf]
      %v823 = vld [vmem:[%s4 + $0x38] sm:$0xf]
      %v824 = vld [vmem:[%s4 + $0x3c] sm:$0xf]
      %v825 = vld [vmem:[%s4 + $0x40] sm:$0xf]
      %v826 = vld [vmem:[%s4 + $0x44] sm:$0xf]
      %v827 = vld [vmem:[%s4 + $0x48] sm:$0xf]
      %v828 = vld [vmem:[%s4 + $0x4c] sm:$0xf]
      %v829 = vld [vmem:[%s4 + $0x50] sm:$0xf]
      %v830 = vld [vmem:[%s4 + $0x54] sm:$0xf]
      %v831 = vld [vmem:[%s4 + $0x58] sm:$0xf]
      %v832 = vld [vmem:[%s4 + $0x5c] sm:$0xf]
      %v833 = vld [vmem:[%s4 + $0x60] sm:$0xf]
      %v834 = vld [vmem:[%s4 + $0x64] sm:$0xf]
      %v835 = vld [vmem:[%s4 + $0x68] sm:$0xf]
      %v836 = vld [vmem:[%s4 + $0x6c] sm:$0xf]
      %v837 = vld [vmem:[%s4 + $0x70] sm:$0xf]
      %v838 = vld [vmem:[%s4 + $0x74] sm:$0xf]
      %v839 = vld [vmem:[%s4 + $0x78] sm:$0xf]
      %v840 = vld [vmem:[%s4 + $0x7c] sm:$0xf]
      %v841 = vld [vmem:[%s4 + $0x80] sm:$0xf]
      %v842 = vld [vmem:[%s4 + $0x84] sm:$0xf]
      %v843 = vld [vmem:[%s4 + $0x88] sm:$0xf]
      %v844 = vld [vmem:[%s4 + $0x8c] sm:$0xf]
      %v845 = vld [vmem:[%s4 + $0x90] sm:$0xf]
      %v846 = vld [vmem:[%s4 + $0x94] sm:$0xf]
      %v847 = vld [vmem:[%s4 + $0x98] sm:$0xf]
      %v848 = vld [vmem:[%s4 + $0x9c] sm:$0xf]
      %v849 = vld [vmem:[%s4 + $0xa0] sm:$0xf]
      %v850 = vld [vmem:[%s4 + $0xa4] sm:$0xf]
      %v851 = vld [vmem:[%s4 + $0xa8] sm:$0xf]
      %v852 = vld [vmem:[%s4 + $0xac] sm:$0xf]
      %v853 = vld [vmem:[%s4 + $0xb0] sm:$0xf]
      %v854 = vld [vmem:[%s4 + $0xb4] sm:$0xf]
      %v855 = vld [vmem:[%s4 + $0xb8] sm:$0xf]
      %v856 = vld [vmem:[%s4 + $0xbc] sm:$0xf]
      %v905 = vunpack.c.l.b16 %v809
      %v906 = vunpack.c.l.b16 %v810
      %v907 = vunpack.c.l.b16 %v811
      %v908 = vunpack.c.l.b16 %v812
      %v909 = vunpack.c.l.b16 %v813
      %v910 = vunpack.c.l.b16 %v814
      %v911 = vunpack.c.l.b16 %v815
      %v912 = vunpack.c.l.b16 %v816
      %v913 = vunpack.c.l.b16 %v817
      %v914 = vunpack.c.l.b16 %v818
      %v915 = vunpack.c.l.b16 %v819
      %v916 = vunpack.c.l.b16 %v820
      %v917 = vunpack.c.l.b16 %v821
      %v918 = vunpack.c.l.b16 %v822
      %v919 = vunpack.c.l.b16 %v823
      %v920 = vunpack.c.l.b16 %v824
      %v921 = vunpack.c.l.b16 %v825
      %v922 = vunpack.c.l.b16 %v826
      %v923 = vunpack.c.l.b16 %v827
      %v924 = vunpack.c.l.b16 %v828
      %v925 = vunpack.c.l.b16 %v829
      %v926 = vunpack.c.l.b16 %v830
      %v927 = vunpack.c.l.b16 %v831
      %v928 = vunpack.c.l.b16 %v832
      %v929 = vunpack.c.l.b16 %v833
      %v930 = vunpack.c.l.b16 %v834
      %v931 = vunpack.c.l.b16 %v835
      %v932 = vunpack.c.l.b16 %v836
      %v933 = vunpack.c.l.b16 %v837
      %v934 = vunpack.c.l.b16 %v838
      %v935 = vunpack.c.l.b16 %v839
      %v936 = vunpack.c.l.b16 %v840
      %v937 = vunpack.c.l.b16 %v841
      %v938 = vunpack.c.l.b16 %v842
      %v939 = vunpack.c.l.b16 %v843
      %v940 = vunpack.c.l.b16 %v844
      %v941 = vunpack.c.l.b16 %v845
      %v942 = vunpack.c.l.b16 %v846
      %v943 = vunpack.c.l.b16 %v847
      %v944 = vunpack.c.l.b16 %v848
      %v945 = vunpack.c.l.b16 %v849
      %v946 = vunpack.c.l.b16 %v850
      %v947 = vunpack.c.l.b16 %v851
      %v948 = vunpack.c.l.b16 %v852
      %v949 = vunpack.c.l.b16 %v853
      %v950 = vunpack.c.l.b16 %v854
      %v951 = vunpack.c.l.b16 %v855
      %v952 = vunpack.c.l.b16 %v856
      %v953 = vpack.c.b16 %v906, %v905
      %v954 = vpack.c.b16 %v908, %v907
      %v955 = vpack.c.b16 %v910, %v909
      %v956 = vpack.c.b16 %v912, %v911
      %v957 = vpack.c.b16 %v914, %v913
      %v958 = vpack.c.b16 %v916, %v915
      %v959 = vpack.c.b16 %v918, %v917
      %v960 = vpack.c.b16 %v920, %v919
      %v961 = vpack.c.b16 %v922, %v921
      %v962 = vpack.c.b16 %v924, %v923
      %v963 = vpack.c.b16 %v926, %v925
      %v964 = vpack.c.b16 %v928, %v927
      %v965 = vpack.c.b16 %v930, %v929
      %v966 = vpack.c.b16 %v932, %v931
      %v967 = vpack.c.b16 %v934, %v933
      %v968 = vpack.c.b16 %v936, %v935
      %v969 = vpack.c.b16 %v938, %v937
      %v970 = vpack.c.b16 %v940, %v939
      %v971 = vpack.c.b16 %v942, %v941
      %v972 = vpack.c.b16 %v944, %v943
      %v973 = vpack.c.b16 %v946, %v945
      %v974 = vpack.c.b16 %v948, %v947
      %v975 = vpack.c.b16 %v950, %v949
      %v976 = vpack.c.b16 %v952, %v951
      %1001 = vmatprep.subr.bf16.mxu0 0
      %1002 = vmatpush1.bf16.msra.mxu0 %v953
      %1003 = vmatprep.subr.bf16.mxu0 0
      %1004 = vmatpush1.bf16.msra.mxu0 %v954
      %1005 = vmatprep.subr.bf16.mxu0 0
      %1006 = vmatpush1.bf16.msra.mxu0 %v955
      %1007 = vmatprep.subr.bf16.mxu0 0
      %1008 = vmatpush1.bf16.msra.mxu0 %v956
      %1009 = vmatprep.subr.bf16.mxu0 0
      %1010 = vmatpush1.bf16.msra.mxu0 %v957
      %1011 = vmatprep.subr.bf16.mxu0 0
      %1012 = vmatpush1.bf16.msra.mxu0 %v958
      %1013 = vmatprep.subr.bf16.mxu0 0
      %1014 = vmatpush1.bf16.msra.mxu0 %v959
      %1015 = vmatprep.subr.bf16.mxu0 0
      %1016 = vmatpush1.bf16.msra.mxu0 %v960
      %1017 = vmatprep.subr.bf16.mxu0 0
      %1018 = vmatpush1.bf16.msra.mxu0 %v961
      %1019 = vmatprep.subr.bf16.mxu0 0
      %1020 = vmatpush1.bf16.msra.mxu0 %v962
      %1021 = vmatprep.subr.bf16.mxu0 0
      %1022 = vmatpush1.bf16.msra.mxu0 %v963
      %1023 = vmatprep.subr.bf16.mxu0 0
      %1024 = vmatpush1.bf16.msra.mxu0 %v964
      %1025 = vmatprep.subr.bf16.mxu0 0
      %1026 = vmatpush1.bf16.msra.mxu0 %v965
      %1027 = vmatprep.subr.bf16.mxu0 0
      %1028 = vmatpush1.bf16.msra.mxu0 %v966
      %1029 = vmatprep.subr.bf16.mxu0 0
      %1030 = vmatpush1.bf16.msra.mxu0 %v967
      %1031 = vmatprep.subr.bf16.mxu0 0
      %1032 = vmatpush1.bf16.msra.mxu0 %v968
      %1033 = vmatprep.mubr.bf16.mxu0 %v738
      %1034 = vmatmul.mubr.bf16.gmra.mrb[0].mxu0 %v737
      %v1035 = vpop.f32.mrb[0].mxu0
      %v1036 = vadd.f32 0.0, %v1035
      %v1037 = vpop.f32.mrb[0].mxu0
      %v1038 = vpop.f32.mrb[0].mxu0
      %v1039 = vadd.f32 0.0, %v1038
      %v1040 = vpop.f32.mrb[0].mxu0
      %1041 = vmatprep.mubr.bf16.mxu0 %v741
      %1042 = vmatmul.mubr.bf16.gmra.mrb[0].mxu0 %v740
      %v1043 = vpop.f32.mrb[0].mxu0
      %v1044 = vadd.f32 0.0, %v1043
      %v1045 = vpop.f32.mrb[0].mxu0
      %v1046 = vpop.f32.mrb[0].mxu0
      %v1047 = vadd.f32 0.0, %v1046
      %v1048 = vpop.f32.mrb[0].mxu0
      %1049 = vmatprep.mubr.bf16.mxu0 %v744
      %1050 = vmatmul.mubr.bf16.gmra.mrb[0].mxu0 %v743
      %v1051 = vpop.f32.mrb[0].mxu0
      %v1052 = vadd.f32 0.0, %v1051
      %v1053 = vpop.f32.mrb[0].mxu0
      %v1054 = vpop.f32.mrb[0].mxu0
      %v1055 = vadd.f32 0.0, %v1054
      %v1056 = vpop.f32.mrb[0].mxu0
      %1057 = vmatprep.mubr.bf16.mxu0 %v747
      %1058 = vmatmul.mubr.bf16.gmra.mrb[0].mxu0 %v746
      %v1059 = vpop.f32.mrb[0].mxu0
      %v1060 = vadd.f32 0.0, %v1059
      %v1061 = vpop.f32.mrb[0].mxu0
      %v1062 = vpop.f32.mrb[0].mxu0
      %v1063 = vadd.f32 0.0, %v1062
      %v1064 = vpop.f32.mrb[0].mxu0
      %1065 = vmatprep.mubr.bf16.mxu0 %v750
      %1066 = vmatmul.mubr.bf16.gmra.mrb[0].mxu0 %v749
      %v1067 = vpop.f32.mrb[0].mxu0
      %v1068 = vadd.f32 0.0, %v1067
      %v1069 = vpop.f32.mrb[0].mxu0
      %v1070 = vpop.f32.mrb[0].mxu0
      %v1071 = vadd.f32 0.0, %v1070
      %v1072 = vpop.f32.mrb[0].mxu0
      %1073 = vmatprep.mubr.bf16.mxu0 %v753
      %1074 = vmatmul.mubr.bf16.gmra.mrb[0].mxu0 %v752
      %v1075 = vpop.f32.mrb[0].mxu0
      %v1076 = vadd.f32 0.0, %v1075
      %v1077 = vpop.f32.mrb[0].mxu0
      %v1078 = vpop.f32.mrb[0].mxu0
      %v1079 = vadd.f32 0.0, %v1078
      %v1080 = vpop.f32.mrb[0].mxu0
      %1081 = vmatprep.mubr.bf16.mxu0 %v756
      %1082 = vmatmul.mubr.bf16.gmra.mrb[0].mxu0 %v755
      %v1083 = vpop.f32.mrb[0].mxu0
      %v1084 = vadd.f32 0.0, %v1083
      %v1085 = vpop.f32.mrb[0].mxu0
      %v1086 = vpop.f32.mrb[0].mxu0
      %v1087 = vadd.f32 0.0, %v1086
      %v1088 = vpop.f32.mrb[0].mxu0
      %1089 = vmatprep.mubr.bf16.mxu0 %v759
      %1090 = vmatmul.mubr.bf16.gmra.mrb[0].mxu0 %v758
      %v1091 = vpop.f32.mrb[0].mxu0
      %v1092 = vadd.f32 0.0, %v1091
      %v1093 = vpop.f32.mrb[0].mxu0
      %v1094 = vpop.f32.mrb[0].mxu0
      %v1095 = vadd.f32 0.0, %v1094
      %v1096 = vpop.f32.mrb[0].mxu0
      %1097 = vmatprep.mubr.bf16.mxu0 %v762
      %1098 = vmatmul.mubr.bf16.gmra.mrb[0].mxu0 %v761
      %v1099 = vpop.f32.mrb[0].mxu0
      %v1100 = vadd.f32 0.0, %v1099
      %v1101 = vpop.f32.mrb[0].mxu0
      %v1102 = vpop.f32.mrb[0].mxu0
      %v1103 = vadd.f32 0.0, %v1102
      %v1104 = vpop.f32.mrb[0].mxu0
      %1105 = vmatprep.mubr.bf16.mxu0 %v765
      %1106 = vmatmul.mubr.bf16.gmra.mrb[0].mxu0 %v764
      %v1107 = vpop.f32.mrb[0].mxu0
      %v1108 = vadd.f32 0.0, %v1107
      %v1109 = vpop.f32.mrb[0].mxu0
      %v1110 = vpop.f32.mrb[0].mxu0
      %v1111 = vadd.f32 0.0, %v1110
      %v1112 = vpop.f32.mrb[0].mxu0
      %1113 = vmatprep.mubr.bf16.mxu0 %v768
      %1114 = vmatmul.mubr.bf16.gmra.mrb[0].mxu0 %v767
      %v1115 = vpop.f32.mrb[0].mxu0
      %v1116 = vadd.f32 0.0, %v1115
      %v1117 = vpop.f32.mrb[0].mxu0
      %v1118 = vpop.f32.mrb[0].mxu0
      %v1119 = vadd.f32 0.0, %v1118
      %v1120 = vpop.f32.mrb[0].mxu0
      %1121 = vmatprep.mubr.bf16.mxu0 %v771
      %1122 = vmatmul.mubr.bf16.gmra.mrb[0].mxu0 %v770
      %v1123 = vpop.f32.mrb[0].mxu0
      %v1124 = vadd.f32 0.0, %v1123
      %v1125 = vpop.f32.mrb[0].mxu0
      %v1126 = vpop.f32.mrb[0].mxu0
      %v1127 = vadd.f32 0.0, %v1126
      %v1128 = vpop.f32.mrb[0].mxu0
      %1129 = vmatprep.mubr.bf16.mxu0 %v774
      %1130 = vmatmul.mubr.bf16.gmra.mrb[0].mxu0 %v773
      %v1131 = vpop.f32.mrb[0].mxu0
      %v1132 = vadd.f32 0.0, %v1131
      %v1133 = vpop.f32.mrb[0].mxu0
      %v1134 = vpop.f32.mrb[0].mxu0
      %v1135 = vadd.f32 0.0, %v1134
      %v1136 = vpop.f32.mrb[0].mxu0
      %1137 = vmatprep.mubr.bf16.mxu0 %v777
      %1138 = vmatmul.mubr.bf16.gmra.mrb[0].mxu0 %v776
      %v1139 = vpop.f32.mrb[0].mxu0
      %v1140 = vadd.f32 0.0, %v1139
      %v1141 = vpop.f32.mrb[0].mxu0
      %v1142 = vpop.f32.mrb[0].mxu0
      %v1143 = vadd.f32 0.0, %v1142
      %v1144 = vpop.f32.mrb[0].mxu0
      %1145 = vmatprep.mubr.bf16.mxu0 %v780
      %1146 = vmatmul.mubr.bf16.gmra.mrb[0].mxu0 %v779
      %v1147 = vpop.f32.mrb[0].mxu0
      %v1148 = vadd.f32 0.0, %v1147
      %v1149 = vpop.f32.mrb[0].mxu0
      %v1150 = vpop.f32.mrb[0].mxu0
      %v1151 = vadd.f32 0.0, %v1150
      %v1152 = vpop.f32.mrb[0].mxu0
      %1153 = vmatprep.mubr.bf16.mxu0 %v783
      %1154 = vmatmul.mubr.bf16.gmra.mrb[0].mxu0 %v782
      %v1155 = vpop.f32.mrb[0].mxu0
      %v1156 = vadd.f32 0.0, %v1155
      %v1157 = vpop.f32.mrb[0].mxu0
      %v1158 = vpop.f32.mrb[0].mxu0
      %v1159 = vadd.f32 0.0, %v1158
      %v1160 = vpop.f32.mrb[0].mxu0
      %1161 = vmatprep.mubr.bf16.mxu0 %v786
      %1162 = vmatmul.mubr.bf16.gmra.mrb[0].mxu0 %v785
      %v1163 = vpop.f32.mrb[0].mxu0
      %v1164 = vadd.f32 0.0, %v1163
      %v1165 = vpop.f32.mrb[0].mxu0
      %v1166 = vpop.f32.mrb[0].mxu0
      %v1167 = vadd.f32 0.0, %v1166
      %v1168 = vpop.f32.mrb[0].mxu0
      %1169 = vmatprep.mubr.bf16.mxu0 %v789
      %1170 = vmatmul.mubr.bf16.gmra.mrb[0].mxu0 %v788
      %v1171 = vpop.f32.mrb[0].mxu0
      %v1172 = vadd.f32 0.0, %v1171
      %v1173 = vpop.f32.mrb[0].mxu0
      %v1174 = vpop.f32.mrb[0].mxu0
      %v1175 = vadd.f32 0.0, %v1174
      %v1176 = vpop.f32.mrb[0].mxu0
      %1177 = vmatprep.mubr.bf16.mxu0 %v792
      %1178 = vmatmul.mubr.bf16.gmra.mrb[0].mxu0 %v791
      %v1179 = vpop.f32.mrb[0].mxu0
      %v1180 = vadd.f32 0.0, %v1179
      %v1181 = vpop.f32.mrb[0].mxu0
      %v1182 = vpop.f32.mrb[0].mxu0
      %v1183 = vadd.f32 0.0, %v1182
      %v1184 = vpop.f32.mrb[0].mxu0
      %1185 = vmatprep.mubr.bf16.mxu0 %v795
      %1186 = vmatmul.mubr.bf16.gmra.mrb[0].mxu0 %v794
      %v1187 = vpop.f32.mrb[0].mxu0
      %v1188 = vadd.f32 0.0, %v1187
      %v1189 = vpop.f32.mrb[0].mxu0
      %v1190 = vpop.f32.mrb[0].mxu0
      %v1191 = vadd.f32 0.0, %v1190
      %v1192 = vpop.f32.mrb[0].mxu0
      %1193 = vmatprep.mubr.bf16.mxu0 %v798
      %1194 = vmatmul.mubr.bf16.gmra.mrb[0].mxu0 %v797
      %v1195 = vpop.f32.mrb[0].mxu0
      %v1196 = vadd.f32 0.0, %v1195
      %v1197 = vpop.f32.mrb[0].mxu0
      %v1198 = vpop.f32.mrb[0].mxu0
      %v1199 = vadd.f32 0.0, %v1198
      %v1200 = vpop.f32.mrb[0].mxu0
      %1201 = vmatprep.mubr.bf16.mxu0 %v801
      %1202 = vmatmul.mubr.bf16.gmra.mrb[0].mxu0 %v800
      %v1203 = vpop.f32.mrb[0].mxu0
      %v1204 = vadd.f32 0.0, %v1203
      %v1205 = vpop.f32.mrb[0].mxu0
      %v1206 = vpop.f32.mrb[0].mxu0
      %v1207 = vadd.f32 0.0, %v1206
      %v1208 = vpop.f32.mrb[0].mxu0
      %1209 = vmatprep.mubr.bf16.mxu0 %v804
      %1210 = vmatmul.mubr.bf16.gmra.mrb[0].mxu0 %v803
      %v1211 = vpop.f32.mrb[0].mxu0
      %v1212 = vadd.f32 0.0, %v1211
      %v1213 = vpop.f32.mrb[0].mxu0
      %v1214 = vpop.f32.mrb[0].mxu0
      %v1215 = vadd.f32 0.0, %v1214
      %v1216 = vpop.f32.mrb[0].mxu0
      %1217 = vmatprep.mubr.bf16.mxu0 %v807
      %1218 = vmatmul.mubr.bf16.gmra.mrb[0].mxu0 %v806
      %v1219 = vpop.f32.mrb[0].mxu0
      %v1220 = vadd.f32 0.0, %v1219
      %v1221 = vpop.f32.mrb[0].mxu0
      %v1222 = vpop.f32.mrb[0].mxu0
      %v1223 = vadd.f32 0.0, %v1222
      %v1224 = vpop.f32.mrb[0].mxu0
      %1225 = vdwg.mxu0
      %1226 = vmatprep.subr.bf16.mxu0 0
      %1227 = vmatpush1.bf16.msra.mxu0 %v969
      %1228 = vmatprep.subr.bf16.mxu0 0
      %1229 = vmatpush1.bf16.msra.mxu0 %v970
      %1230 = vmatprep.subr.bf16.mxu0 0
      %1231 = vmatpush1.bf16.msra.mxu0 %v971
      %1232 = vmatprep.subr.bf16.mxu0 0
      %1233 = vmatpush1.bf16.msra.mxu0 %v972
      %1234 = vmatprep.subr.bf16.mxu0 0
      %1235 = vmatpush1.bf16.msra.mxu0 %v973
      %1236 = vmatprep.subr.bf16.mxu0 0
      %1237 = vmatpush1.bf16.msra.mxu0 %v974
      %1238 = vmatprep.subr.bf16.mxu0 0
      %1239 = vmatpush1.bf16.msra.mxu0 %v975
      %1240 = vmatprep.subr.bf16.mxu0 0
      %1241 = vmatpush1.bf16.msra.mxu0 %v976
      %1242 = vmatprep.subr.bf16.mxu0 0
      %1243 = vmatpush1.bf16.msra.mxu0 0
      %1244 = vmatprep.subr.bf16.mxu0 0
      %1245 = vmatpush1.bf16.msra.mxu0 0
      %1246 = vmatprep.subr.bf16.mxu0 0
      %1247 = vmatpush1.bf16.msra.mxu0 0
      %1248 = vmatprep.subr.bf16.mxu0 0
      %1249 = vmatpush1.bf16.msra.mxu0 0
      %1250 = vmatprep.subr.bf16.mxu0 0
      %1251 = vmatpush1.bf16.msra.mxu0 0
      %1252 = vmatprep.subr.bf16.mxu0 0
      %1253 = vmatpush1.bf16.msra.mxu0 0
      %1254 = vmatprep.subr.bf16.mxu0 0
      %1255 = vmatpush1.bf16.msra.mxu0 0
      %1256 = vmatprep.subr.bf16.mxu0 0
      %1257 = vmatpush1.bf16.msra.mxu0 0
      %1258 = vmatprep.mubr.bf16.mxu0 0
      %1259 = vmatmul.mubr.bf16.gmra.mrb[0].mxu0 %v739
      %v1260 = vpop.f32.mrb[0].mxu0
      %v1261 = vadd.f32 %v1036, %v1260
      %v1262 = vpop.f32.mrb[0].mxu0
      %v1263 = vpop.f32.mrb[0].mxu0
      %v1264 = vadd.f32 %v1039, %v1263
      %v1265 = vpop.f32.mrb[0].mxu0
      %1266 = vmatprep.mubr.bf16.mxu0 0
      %1267 = vmatmul.mubr.bf16.gmra.mrb[0].mxu0 %v742
      %v1268 = vpop.f32.mrb[0].mxu0
      %v1269 = vadd.f32 %v1044, %v1268
      %v1270 = vpop.f32.mrb[0].mxu0
      %v1271 = vpop.f32.mrb[0].mxu0
      %v1272 = vadd.f32 %v1047, %v1271
      %v1273 = vpop.f32.mrb[0].mxu0
      %1274 = vmatprep.mubr.bf16.mxu0 0
      %1275 = vmatmul.mubr.bf16.gmra.mrb[0].mxu0 %v745
      %v1276 = vpop.f32.mrb[0].mxu0
      %v1277 = vadd.f32 %v1052, %v1276
      %v1278 = vpop.f32.mrb[0].mxu0
      %v1279 = vpop.f32.mrb[0].mxu0
      %v1280 = vadd.f32 %v1055, %v1279
      %v1281 = vpop.f32.mrb[0].mxu0
      %1282 = vmatprep.mubr.bf16.mxu0 0
      %1283 = vmatmul.mubr.bf16.gmra.mrb[0].mxu0 %v748
      %v1284 = vpop.f32.mrb[0].mxu0
      %v1285 = vadd.f32 %v1060, %v1284
      %v1286 = vpop.f32.mrb[0].mxu0
      %v1287 = vpop.f32.mrb[0].mxu0
      %v1288 = vadd.f32 %v1063, %v1287
      %v1289 = vpop.f32.mrb[0].mxu0
      %1290 = vmatprep.mubr.bf16.mxu0 0
      %1291 = vmatmul.mubr.bf16.gmra.mrb[0].mxu0 %v751
      %v1292 = vpop.f32.mrb[0].mxu0
      %v1293 = vadd.f32 %v1068, %v1292
      %v1294 = vpop.f32.mrb[0].mxu0
      %v1295 = vpop.f32.mrb[0].mxu0
      %v1296 = vadd.f32 %v1071, %v1295
      %v1297 = vpop.f32.mrb[0].mxu0
      %1298 = vmatprep.mubr.bf16.mxu0 0
      %1299 = vmatmul.mubr.bf16.gmra.mrb[0].mxu0 %v754
      %v1300 = vpop.f32.mrb[0].mxu0
      %v1301 = vadd.f32 %v1076, %v1300
      %v1302 = vpop.f32.mrb[0].mxu0
      %v1303 = vpop.f32.mrb[0].mxu0
      %v1304 = vadd.f32 %v1079, %v1303
      %v1305 = vpop.f32.mrb[0].mxu0
      %1306 = vmatprep.mubr.bf16.mxu0 0
      %1307 = vmatmul.mubr.bf16.gmra.mrb[0].mxu0 %v757
      %v1308 = vpop.f32.mrb[0].mxu0
      %v1309 = vadd.f32 %v1084, %v1308
      %v1310 = vpop.f32.mrb[0].mxu0
      %v1311 = vpop.f32.mrb[0].mxu0
      %v1312 = vadd.f32 %v1087, %v1311
      %v1313 = vpop.f32.mrb[0].mxu0
      %1314 = vmatprep.mubr.bf16.mxu0 0
      %1315 = vmatmul.mubr.bf16.gmra.mrb[0].mxu0 %v760
      %v1316 = vpop.f32.mrb[0].mxu0
      %v1317 = vadd.f32 %v1092, %v1316
      %v1318 = vpop.f32.mrb[0].mxu0
      %v1319 = vpop.f32.mrb[0].mxu0
      %v1320 = vadd.f32 %v1095, %v1319
      %v1321 = vpop.f32.mrb[0].mxu0
      %1322 = vmatprep.mubr.bf16.mxu0 0
      %1323 = vmatmul.mubr.bf16.gmra.mrb[0].mxu0 %v763
      %v1324 = vpop.f32.mrb[0].mxu0
      %v1325 = vadd.f32 %v1100, %v1324
      %v1326 = vpop.f32.mrb[0].mxu0
      %v1327 = vpop.f32.mrb[0].mxu0
      %v1328 = vadd.f32 %v1103, %v1327
      %v1329 = vpop.f32.mrb[0].mxu0
      %1330 = vmatprep.mubr.bf16.mxu0 0
      %1331 = vmatmul.mubr.bf16.gmra.mrb[0].mxu0 %v766
      %v1332 = vpop.f32.mrb[0].mxu0
      %v1333 = vadd.f32 %v1108, %v1332
      %v1334 = vpop.f32.mrb[0].mxu0
      %v1335 = vpop.f32.mrb[0].mxu0
      %v1336 = vadd.f32 %v1111, %v1335
      %v1337 = vpop.f32.mrb[0].mxu0
      %1338 = vmatprep.mubr.bf16.mxu0 0
      %1339 = vmatmul.mubr.bf16.gmra.mrb[0].mxu0 %v769
      %v1340 = vpop.f32.mrb[0].mxu0
      %v1341 = vadd.f32 %v1116, %v1340
      %v1342 = vpop.f32.mrb[0].mxu0
      %v1343 = vpop.f32.mrb[0].mxu0
      %v1344 = vadd.f32 %v1119, %v1343
      %v1345 = vpop.f32.mrb[0].mxu0
      %1346 = vmatprep.mubr.bf16.mxu0 0
      %1347 = vmatmul.mubr.bf16.gmra.mrb[0].mxu0 %v772
      %v1348 = vpop.f32.mrb[0].mxu0
      %v1349 = vadd.f32 %v1124, %v1348
      %v1350 = vpop.f32.mrb[0].mxu0
      %v1351 = vpop.f32.mrb[0].mxu0
      %v1352 = vadd.f32 %v1127, %v1351
      %v1353 = vpop.f32.mrb[0].mxu0
      %1354 = vmatprep.mubr.bf16.mxu0 0
      %1355 = vmatmul.mubr.bf16.gmra.mrb[0].mxu0 %v775
      %v1356 = vpop.f32.mrb[0].mxu0
      %v1357 = vadd.f32 %v1132, %v1356
      %v1358 = vpop.f32.mrb[0].mxu0
      %v1359 = vpop.f32.mrb[0].mxu0
      %v1360 = vadd.f32 %v1135, %v1359
      %v1361 = vpop.f32.mrb[0].mxu0
      %1362 = vmatprep.mubr.bf16.mxu0 0
      %1363 = vmatmul.mubr.bf16.gmra.mrb[0].mxu0 %v778
      %v1364 = vpop.f32.mrb[0].mxu0
      %v1365 = vadd.f32 %v1140, %v1364
      %v1366 = vpop.f32.mrb[0].mxu0
      %v1367 = vpop.f32.mrb[0].mxu0
      %v1368 = vadd.f32 %v1143, %v1367
      %v1369 = vpop.f32.mrb[0].mxu0
      %1370 = vmatprep.mubr.bf16.mxu0 0
      %1371 = vmatmul.mubr.bf16.gmra.mrb[0].mxu0 %v781
      %v1372 = vpop.f32.mrb[0].mxu0
      %v1373 = vadd.f32 %v1148, %v1372
      %v1374 = vpop.f32.mrb[0].mxu0
      %v1375 = vpop.f32.mrb[0].mxu0
      %v1376 = vadd.f32 %v1151, %v1375
      %v1377 = vpop.f32.mrb[0].mxu0
      %1378 = vmatprep.mubr.bf16.mxu0 0
      %1379 = vmatmul.mubr.bf16.gmra.mrb[0].mxu0 %v784
      %v1380 = vpop.f32.mrb[0].mxu0
      %v1381 = vadd.f32 %v1156, %v1380
      %v1382 = vpop.f32.mrb[0].mxu0
      %v1383 = vpop.f32.mrb[0].mxu0
      %v1384 = vadd.f32 %v1159, %v1383
      %v1385 = vpop.f32.mrb[0].mxu0
      %1386 = vmatprep.mubr.bf16.mxu0 0
      %1387 = vmatmul.mubr.bf16.gmra.mrb[0].mxu0 %v787
      %v1388 = vpop.f32.mrb[0].mxu0
      %v1389 = vadd.f32 %v1164, %v1388
      %v1390 = vpop.f32.mrb[0].mxu0
      %v1391 = vpop.f32.mrb[0].mxu0
      %v1392 = vadd.f32 %v1167, %v1391
      %v1393 = vpop.f32.mrb[0].mxu0
      %1394 = vmatprep.mubr.bf16.mxu0 0
      %1395 = vmatmul.mubr.bf16.gmra.mrb[0].mxu0 %v790
      %v1396 = vpop.f32.mrb[0].mxu0
      %v1397 = vadd.f32 %v1172, %v1396
      %v1398 = vpop.f32.mrb[0].mxu0
      %v1399 = vpop.f32.mrb[0].mxu0
      %v1400 = vadd.f32 %v1175, %v1399
      %v1401 = vpop.f32.mrb[0].mxu0
      %1402 = vmatprep.mubr.bf16.mxu0 0
      %1403 = vmatmul.mubr.bf16.gmra.mrb[0].mxu0 %v793
      %v1404 = vpop.f32.mrb[0].mxu0
      %v1405 = vadd.f32 %v1180, %v1404
      %v1406 = vpop.f32.mrb[0].mxu0
      %v1407 = vpop.f32.mrb[0].mxu0
      %v1408 = vadd.f32 %v1183, %v1407
      %v1409 = vpop.f32.mrb[0].mxu0
      %1410 = vmatprep.mubr.bf16.mxu0 0
      %1411 = vmatmul.mubr.bf16.gmra.mrb[0].mxu0 %v796
      %v1412 = vpop.f32.mrb[0].mxu0
      %v1413 = vadd.f32 %v1188, %v1412
      %v1414 = vpop.f32.mrb[0].mxu0
      %v1415 = vpop.f32.mrb[0].mxu0
      %v1416 = vadd.f32 %v1191, %v1415
      %v1417 = vpop.f32.mrb[0].mxu0
      %1418 = vmatprep.mubr.bf16.mxu0 0
      %1419 = vmatmul.mubr.bf16.gmra.mrb[0].mxu0 %v799
      %v1420 = vpop.f32.mrb[0].mxu0
      %v1421 = vadd.f32 %v1196, %v1420
      %v1422 = vpop.f32.mrb[0].mxu0
      %v1423 = vpop.f32.mrb[0].mxu0
      %v1424 = vadd.f32 %v1199, %v1423
      %v1425 = vpop.f32.mrb[0].mxu0
      %1426 = vmatprep.mubr.bf16.mxu0 0
      %1427 = vmatmul.mubr.bf16.gmra.mrb[0].mxu0 %v802
      %v1428 = vpop.f32.mrb[0].mxu0
      %v1429 = vadd.f32 %v1204, %v1428
      %v1430 = vpop.f32.mrb[0].mxu0
      %v1431 = vpop.f32.mrb[0].mxu0
      %v1432 = vadd.f32 %v1207, %v1431
      %v1433 = vpop.f32.mrb[0].mxu0
      %1434 = vmatprep.mubr.bf16.mxu0 0
      %1435 = vmatmul.mubr.bf16.gmra.mrb[0].mxu0 %v805
      %v1436 = vpop.f32.mrb[0].mxu0
      %v1437 = vadd.f32 %v1212, %v1436
      %v1438 = vpop.f32.mrb[0].mxu0
      %v1439 = vpop.f32.mrb[0].mxu0
      %v1440 = vadd.f32 %v1215, %v1439
      %v1441 = vpop.f32.mrb[0].mxu0
      %1442 = vmatprep.mubr.bf16.mxu0 0
      %1443 = vmatmul.mubr.bf16.gmra.mrb[0].mxu0 %v808
      %v1444 = vpop.f32.mrb[0].mxu0
      %v1445 = vadd.f32 %v1220, %v1444
      %v1446 = vpop.f32.mrb[0].mxu0
      %v1447 = vpop.f32.mrb[0].mxu0
      %v1448 = vadd.f32 %v1223, %v1447
      %v1449 = vpop.f32.mrb[0].mxu0
      %1450 = vdwg.mxu0
      %1451 = vst [vmem:[%s289 + $0x30] sm:$0xff] %v1261
      %1452 = vst [vmem:[%s289 + $0x38] sm:$0xff] %v1264
      %1453 = vst [vmem:[%s289 + $0x40] sm:$0xff] %v1269
      %1454 = vst [vmem:[%s289 + $0x48] sm:$0xff] %v1272
      %1455 = vst [vmem:[%s289 + $0x50] sm:$0xff] %v1277
      %1456 = vst [vmem:[%s289 + $0x58] sm:$0xff] %v1280
      %1457 = vst [vmem:[%s289 + $0x60] sm:$0xff] %v1285
      %1458 = vst [vmem:[%s289 + $0x68] sm:$0xff] %v1288
      %1459 = vst [vmem:[%s289 + $0x70] sm:$0xff] %v1293
      %1460 = vst [vmem:[%s289 + $0x78] sm:$0xff] %v1296
      %1461 = vst [vmem:[%s289 + $0x80] sm:$0xff] %v1301
      %1462 = vst [vmem:[%s289 + $0x88] sm:$0xff] %v1304
      %1463 = vst [vmem:[%s289 + $0x90] sm:$0xff] %v1309
      %1464 = vst [vmem:[%s289 + $0x98] sm:$0xff] %v1312
      %1465 = vst [vmem:[%s289 + $0xa0] sm:$0xff] %v1317
      %1466 = vst [vmem:[%s289 + $0xa8] sm:$0xff] %v1320
      %1467 = vst [vmem:[%s289 + $0xb0] sm:$0xff] %v1325
      %1468 = vst [vmem:[%s289 + $0xb8] sm:$0xff] %v1328
      %1469 = vst [vmem:[%s289 + $0xc0] sm:$0xff] %v1333
      %1470 = vst [vmem:[%s289 + $0xc8] sm:$0xff] %v1336
      %1471 = vst [vmem:[%s289 + $0xd0] sm:$0xff] %v1341
      %1472 = vst [vmem:[%s289 + $0xd8] sm:$0xff] %v1344
      %1473 = vst [vmem:[%s289 + $0xe0] sm:$0xff] %v1349
      %1474 = vst [vmem:[%s289 + $0xe8] sm:$0xff] %v1352
      %1475 = vst [vmem:[%s289 + $0xf0] sm:$0xff] %v1357
      %1476 = vst [vmem:[%s289 + $0xf8] sm:$0xff] %v1360
      %1477 = vst [vmem:[%s289 + $0x100] sm:$0xff] %v1365
      %1478 = vst [vmem:[%s289 + $0x108] sm:$0xff] %v1368
      %1479 = vst [vmem:[%s289 + $0x110] sm:$0xff] %v1373
      %1480 = vst [vmem:[%s289 + $0x118] sm:$0xff] %v1376
      %1481 = vst [vmem:[%s289 + $0x120] sm:$0xff] %v1381
      %1482 = vst [vmem:[%s289 + $0x128] sm:$0xff] %v1384
      %1483 = vst [vmem:[%s289 + $0x130] sm:$0xff] %v1389
      %1484 = vst [vmem:[%s289 + $0x138] sm:$0xff] %v1392
      %1485 = vst [vmem:[%s289 + $0x140] sm:$0xff] %v1397
      %1486 = vst [vmem:[%s289 + $0x148] sm:$0xff] %v1400
      %1487 = vst [vmem:[%s289 + $0x150] sm:$0xff] %v1405
      %1488 = vst [vmem:[%s289 + $0x158] sm:$0xff] %v1408
      %1489 = vst [vmem:[%s289 + $0x160] sm:$0xff] %v1413
      %1490 = vst [vmem:[%s289 + $0x168] sm:$0xff] %v1416
      %1491 = vst [vmem:[%s289 + $0x170] sm:$0xff] %v1421
      %1492 = vst [vmem:[%s289 + $0x178] sm:$0xff] %v1424
      %1493 = vst [vmem:[%s289 + $0x180] sm:$0xff] %v1429
      %1494 = vst [vmem:[%s289 + $0x188] sm:$0xff] %v1432
      %1495 = vst [vmem:[%s289 + $0x190] sm:$0xff] %v1437
      %1496 = vst [vmem:[%s289 + $0x198] sm:$0xff] %v1440
      %1497 = vst [vmem:[%s289 + $0x1a0] sm:$0xff] %v1445
      %1498 = vst [vmem:[%s289 + $0x1a8] sm:$0xff] %v1448
      %v1499 = vld [vmem:[#allocation2 + $0x18] sm:$0xf0]
      %v1500 = vld [vmem:[#allocation2 + $0x20] sm:$0xf0]
      %v1501 = vld [vmem:[#allocation2 + $0x28] sm:$0xf0]
      %v1502 = vld [vmem:[#allocation2 + $0x30] sm:$0xff]
      %v1503 = vld [vmem:[#allocation2 + $0x38] sm:$0xff]
      %v1504 = vld [vmem:[#allocation2 + $0x40] sm:$0xff]
      %v1505 = vld [vmem:[#allocation2 + $0x48] sm:$0xff]
      %v1506 = vld [vmem:[#allocation2 + $0x50] sm:$0xff]
      %v1507 = vld [vmem:[#allocation2 + $0x58] sm:$0xff]
      %v1508 = vld [vmem:[#allocation2 + $0x60] sm:$0xff]
      %v1509 = vld [vmem:[#allocation2 + $0x68] sm:$0xff]
      %v1510 = vld [vmem:[#allocation2 + $0x70] sm:$0xff]
      %v1511 = vld [vmem:[#allocation2 + $0x78] sm:$0xff]
      %v1512 = vld [vmem:[#allocation2 + $0x80] sm:$0xff]
      %v1513 = vld [vmem:[#allocation2 + $0x88] sm:$0xff]
      %v1514 = vld [vmem:[#allocation2 + $0x90] sm:$0xff]
      %v1515 = vld [vmem:[#allocation2 + $0x98] sm:$0xff]
      %v1516 = vld [vmem:[#allocation2 + $0xa0] sm:$0xff]
      %v1517 = vld [vmem:[#allocation2 + $0xa8] sm:$0xff]
      %v1518 = vld [vmem:[#allocation2 + $0xb0] sm:$0xff]
      %v1519 = vld [vmem:[#allocation2 + $0xb8] sm:$0xff]
      %v1520 = vld [vmem:[#allocation2 + $0xc0] sm:$0xff]
      %v1521 = vld [vmem:[#allocation2 + $0xc8] sm:$0xff]
      %v1522 = vld [vmem:[#allocation2 + $0xd0] sm:$0xff]
      %v1523 = vld [vmem:[#allocation2 + $0xd8] sm:$0xff]
      %v1524 = vld [vmem:[#allocation2 + $0xe0] sm:$0xff]
      %v1525 = vld [vmem:[#allocation2 + $0xe8] sm:$0xff]
      %v1526 = vld [vmem:[#allocation2 + $0xf0] sm:$0xff]
      %v1527 = vld [vmem:[#allocation2 + $0xf8] sm:$0xff]
      %v1528 = vld [vmem:[#allocation2 + $0x100] sm:$0xff]
      %v1529 = vld [vmem:[#allocation2 + $0x108] sm:$0xff]
      %v1530 = vld [vmem:[#allocation2 + $0x110] sm:$0xff]
      %v1531 = vld [vmem:[#allocation2 + $0x118] sm:$0xff]
      %v1532 = vld [vmem:[#allocation2 + $0x120] sm:$0xff]
      %v1533 = vld [vmem:[#allocation2 + $0x128] sm:$0xff]
      %v1534 = vld [vmem:[#allocation2 + $0x130] sm:$0xff]
      %v1535 = vld [vmem:[#allocation2 + $0x138] sm:$0xff]
      %v1536 = vld [vmem:[#allocation2 + $0x140] sm:$0xff]
      %v1537 = vld [vmem:[#allocation2 + $0x148] sm:$0xff]
      %v1538 = vld [vmem:[#allocation2 + $0x150] sm:$0xff]
      %v1539 = vld [vmem:[#allocation2 + $0x158] sm:$0xff]
      %v1540 = vld [vmem:[#allocation2 + $0x160] sm:$0xff]
      %v1541 = vld [vmem:[#allocation2 + $0x168] sm:$0xff]
      %v1542 = vld [vmem:[#allocation2 + $0x170] sm:$0xff]
      %v1543 = vld [vmem:[#allocation2 + $0x178] sm:$0xff]
      %v1544 = vld [vmem:[#allocation2 + $0x180] sm:$0xff]
      %v1545 = vld [vmem:[#allocation2 + $0x188] sm:$0xff]
      %v1546 = vld [vmem:[#allocation2 + $0x190] sm:$0xff]
      %v1547 = vld [vmem:[#allocation2 + $0x198] sm:$0xff]
      %v1548 = vld [vmem:[#allocation2 + $0x1a0] sm:$0xff]
      %v1549 = vld [vmem:[#allocation2 + $0x1a8] sm:$0xff]
      %v1550 = vld [vmem:[#allocation2 + $0x1b0] sm:$0xff]
      %v1551 = vld [vmem:[#allocation2 + $0x1b8] sm:$0xff]
      %v1552 = vld [vmem:[#allocation2 + $0x1c0] sm:$0xff]
      %v1553 = vld [vmem:[#allocation2 + $0x1c8] sm:$0xff]
      %v1554 = vld [vmem:[#allocation2 + $0x1d0] sm:$0xff]
      %v1555 = vld [vmem:[#allocation2 + $0x1d8] sm:$0xff]
      %v1556 = vld [vmem:[#allocation2 + $0x1e0] sm:$0xff]
      %v1557 = vld [vmem:[#allocation2 + $0x1e8] sm:$0xff]
      %v1558 = vld [vmem:[#allocation2 + $0x1f0] sm:$0xff]
      %v1559 = vld [vmem:[#allocation2 + $0x1f8] sm:$0xff]
      %v1560 = vld [vmem:[#allocation2 + $0x200] sm:$0xff]
      %v1561 = vld [vmem:[#allocation2 + $0x208] sm:$0xff]
      %v1562 = vld [vmem:[#allocation2 + $0x210] sm:$0xff]
      %v1563 = vld [vmem:[#allocation2 + $0x218] sm:$0xff]
      %v1564 = vld [vmem:[#allocation2 + $0x220] sm:$0xff]
      %v1565 = vld [vmem:[#allocation2 + $0x228] sm:$0xff]
      %v1566 = vld [vmem:[#allocation2 + $0x230] sm:$0xff]
      %v1567 = vld [vmem:[#allocation2 + $0x238] sm:$0xff]
      %v1568 = vld [vmem:[#allocation2 + $0x240] sm:$0xff]
      %v1569 = vld [vmem:[#allocation2 + $0x248] sm:$0xff]
      %v1570 = vld [vmem:[#allocation2 + $0x250] sm:$0xff]
      %v1571 = vld [vmem:[#allocation2 + $0x258] sm:$0xf]
      %v1572 = vld [vmem:[#allocation2 + $0x260] sm:$0xf]
      %v1573 = vld [vmem:[#allocation2 + $0x268] sm:$0xf]
      %s1574 = scalar_lea.vmem %s4, 192
      %v1575 = vld [vmem:[%s1574] sm:$0xf]
      %v1576 = vld [vmem:[%s1574 + $0x4] sm:$0xf]
      %v1577 = vld [vmem:[%s1574 + $0x8] sm:$0xf]
      %v1578 = vld [vmem:[%s1574 + $0xc] sm:$0xf]
      %v1579 = vld [vmem:[%s1574 + $0x10] sm:$0xf]
      %v1580 = vld [vmem:[%s1574 + $0x14] sm:$0xf]
      %v1581 = vld [vmem:[%s1574 + $0x18] sm:$0xf]
      %v1582 = vld [vmem:[%s1574 + $0x1c] sm:$0xf]
      %v1583 = vld [vmem:[%s1574 + $0x20] sm:$0xf]
      %v1584 = vld [vmem:[%s1574 + $0x24] sm:$0xf]
      %v1585 = vld [vmem:[%s1574 + $0x28] sm:$0xf]
      %v1586 = vld [vmem:[%s1574 + $0x2c] sm:$0xf]
      %v1587 = vld [vmem:[%s1574 + $0x30] sm:$0xf]
      %v1588 = vld [vmem:[%s1574 + $0x34] sm:$0xf]
      %v1589 = vld [vmem:[%s1574 + $0x38] sm:$0xf]
      %v1590 = vld [vmem:[%s1574 + $0x3c] sm:$0xf]
      %v1591 = vld [vmem:[%s1574 + $0x40] sm:$0xf]
      %v1592 = vld [vmem:[%s1574 + $0x44] sm:$0xf]
      %v1593 = vld [vmem:[%s1574 + $0x48] sm:$0xf]
      %v1594 = vld [vmem:[%s1574 + $0x4c] sm:$0xf]
      %v1595 = vld [vmem:[%s1574 + $0x50] sm:$0xf]
      %v1596 = vld [vmem:[%s1574 + $0x54] sm:$0xf]
      %v1597 = vld [vmem:[%s1574 + $0x58] sm:$0xf]
      %v1598 = vld [vmem:[%s1574 + $0x5c] sm:$0xf]
      %v1599 = vld [vmem:[%s1574 + $0x60] sm:$0xf]
      %v1600 = vld [vmem:[%s1574 + $0x64] sm:$0xf]
      %v1601 = vld [vmem:[%s1574 + $0x68] sm:$0xf]
      %v1602 = vld [vmem:[%s1574 + $0x6c] sm:$0xf]
      %v1603 = vld [vmem:[%s1574 + $0x70] sm:$0xf]
      %v1604 = vld [vmem:[%s1574 + $0x74] sm:$0xf]
      %v1605 = vld [vmem:[%s1574 + $0x78] sm:$0xf]
      %v1606 = vld [vmem:[%s1574 + $0x7c] sm:$0xf]
      %v1607 = vld [vmem:[%s1574 + $0x80] sm:$0xf]
      %v1608 = vld [vmem:[%s1574 + $0x84] sm:$0xf]
      %v1609 = vld [vmem:[%s1574 + $0x88] sm:$0xf]
      %v1610 = vld [vmem:[%s1574 + $0x8c] sm:$0xf]
      %v1611 = vld [vmem:[%s1574 + $0x90] sm:$0xf]
      %v1612 = vld [vmem:[%s1574 + $0x94] sm:$0xf]
      %v1613 = vld [vmem:[%s1574 + $0x98] sm:$0xf]
      %v1614 = vld [vmem:[%s1574 + $0x9c] sm:$0xf]
      %v1615 = vld [vmem:[%s1574 + $0xa0] sm:$0xf]
      %v1616 = vld [vmem:[%s1574 + $0xa4] sm:$0xf]
      %v1617 = vld [vmem:[%s1574 + $0xa8] sm:$0xf]
      %v1618 = vld [vmem:[%s1574 + $0xac] sm:$0xf]
      %v1619 = vld [vmem:[%s1574 + $0xb0] sm:$0xf]
      %v1620 = vld [vmem:[%s1574 + $0xb4] sm:$0xf]
      %v1621 = vld [vmem:[%s1574 + $0xb8] sm:$0xf]
      %v1622 = vld [vmem:[%s1574 + $0xbc] sm:$0xf]
      %vm1698 = vcmask 1043456
      %v1699 = vrot.slane %v1499, 4
      %v1700 = vrot.slane %v1502, 4
      %v1701 = vsel %vm1698, %v1699, %v1700
      %v1702 = vrot.slane %v1500, 4
      %v1703 = vrot.slane %v1503, 4
      %v1704 = vsel %vm1698, %v1702, %v1703
      %v1705 = vrot.slane %v1501, 4
      %v1706 = vrot.slane %v1504, 4
      %v1707 = vsel %vm1698, %v1705, %v1706
      %v1708 = vrot.slane %v1505, 4
      %v1709 = vsel %vm1698, %v1700, %v1708
      %v1710 = vrot.slane %v1506, 4
      %v1711 = vsel %vm1698, %v1703, %v1710
      %v1712 = vrot.slane %v1507, 4
      %v1713 = vsel %vm1698, %v1706, %v1712
      %v1714 = vrot.slane %v1508, 4
      %v1715 = vsel %vm1698, %v1708, %v1714
      %v1716 = vrot.slane %v1509, 4
      %v1717 = vsel %vm1698, %v1710, %v1716
      %v1718 = vrot.slane %v1510, 4
      %v1719 = vsel %vm1698, %v1712, %v1718
      %v1720 = vrot.slane %v1511, 4
      %v1721 = vsel %vm1698, %v1714, %v1720
      %v1722 = vrot.slane %v1512, 4
      %v1723 = vsel %vm1698, %v1716, %v1722
      %v1724 = vrot.slane %v1513, 4
      %v1725 = vsel %vm1698, %v1718, %v1724
      %v1726 = vrot.slane %v1514, 4
      %v1727 = vsel %vm1698, %v1720, %v1726
      %v1728 = vrot.slane %v1515, 4
      %v1729 = vsel %vm1698, %v1722, %v1728
      %v1730 = vrot.slane %v1516, 4
      %v1731 = vsel %vm1698, %v1724, %v1730
      %v1732 = vrot.slane %v1517, 4
      %v1733 = vsel %vm1698, %v1726, %v1732
      %v1734 = vrot.slane %v1518, 4
      %v1735 = vsel %vm1698, %v1728, %v1734
      %v1736 = vrot.slane %v1519, 4
      %v1737 = vsel %vm1698, %v1730, %v1736
      %v1738 = vrot.slane %v1520, 4
      %v1739 = vsel %vm1698, %v1732, %v1738
      %v1740 = vrot.slane %v1521, 4
      %v1741 = vsel %vm1698, %v1734, %v1740
      %v1742 = vrot.slane %v1522, 4
      %v1743 = vsel %vm1698, %v1736, %v1742
      %v1744 = vrot.slane %v1523, 4
      %v1745 = vsel %vm1698, %v1738, %v1744
      %v1746 = vrot.slane %v1524, 4
      %v1747 = vsel %vm1698, %v1740, %v1746
      %v1748 = vrot.slane %v1525, 4
      %v1749 = vsel %vm1698, %v1742, %v1748
      %v1750 = vrot.slane %v1526, 4
      %v1751 = vsel %vm1698, %v1744, %v1750
      %v1752 = vrot.slane %v1527, 4
      %v1753 = vsel %vm1698, %v1746, %v1752
      %v1754 = vrot.slane %v1528, 4
      %v1755 = vsel %vm1698, %v1748, %v1754
      %v1756 = vrot.slane %v1529, 4
      %v1757 = vsel %vm1698, %v1750, %v1756
      %v1758 = vrot.slane %v1530, 4
      %v1759 = vsel %vm1698, %v1752, %v1758
      %v1760 = vrot.slane %v1531, 4
      %v1761 = vsel %vm1698, %v1754, %v1760
      %v1762 = vrot.slane %v1532, 4
      %v1763 = vsel %vm1698, %v1756, %v1762
      %v1764 = vrot.slane %v1533, 4
      %v1765 = vsel %vm1698, %v1758, %v1764
      %v1766 = vrot.slane %v1534, 4
      %v1767 = vsel %vm1698, %v1760, %v1766
      %v1768 = vrot.slane %v1535, 4
      %v1769 = vsel %vm1698, %v1762, %v1768
      %v1770 = vrot.slane %v1536, 4
      %v1771 = vsel %vm1698, %v1764, %v1770
      %v1772 = vrot.slane %v1537, 4
      %v1773 = vsel %vm1698, %v1766, %v1772
      %v1774 = vrot.slane %v1538, 4
      %v1775 = vsel %vm1698, %v1768, %v1774
      %v1776 = vrot.slane %v1539, 4
      %v1777 = vsel %vm1698, %v1770, %v1776
      %v1778 = vrot.slane %v1540, 4
      %v1779 = vsel %vm1698, %v1772, %v1778
      %v1780 = vrot.slane %v1541, 4
      %v1781 = vsel %vm1698, %v1774, %v1780
      %v1782 = vrot.slane %v1542, 4
      %v1783 = vsel %vm1698, %v1776, %v1782
      %v1784 = vrot.slane %v1543, 4
      %v1785 = vsel %vm1698, %v1778, %v1784
      %v1786 = vrot.slane %v1544, 4
      %v1787 = vsel %vm1698, %v1780, %v1786
      %v1788 = vrot.slane %v1545, 4
      %v1789 = vsel %vm1698, %v1782, %v1788
      %v1790 = vrot.slane %v1546, 4
      %v1791 = vsel %vm1698, %v1784, %v1790
      %v1792 = vrot.slane %v1547, 4
      %v1793 = vsel %vm1698, %v1786, %v1792
      %v1794 = vrot.slane %v1548, 4
      %v1795 = vsel %vm1698, %v1788, %v1794
      %v1796 = vrot.slane %v1549, 4
      %v1797 = vsel %vm1698, %v1790, %v1796
      %v1798 = vrot.slane %v1550, 4
      %v1799 = vsel %vm1698, %v1792, %v1798
      %v1800 = vrot.slane %v1551, 4
      %v1801 = vsel %vm1698, %v1794, %v1800
      %v1802 = vrot.slane %v1552, 4
      %v1803 = vsel %vm1698, %v1796, %v1802
      %v1804 = vrot.slane %v1553, 4
      %v1805 = vsel %vm1698, %v1798, %v1804
      %v1806 = vrot.slane %v1554, 4
      %v1807 = vsel %vm1698, %v1800, %v1806
      %v1808 = vrot.slane %v1555, 4
      %v1809 = vsel %vm1698, %v1802, %v1808
      %v1810 = vrot.slane %v1556, 4
      %v1811 = vsel %vm1698, %v1804, %v1810
      %v1812 = vrot.slane %v1557, 4
      %v1813 = vsel %vm1698, %v1806, %v1812
      %v1814 = vrot.slane %v1558, 4
      %v1815 = vsel %vm1698, %v1808, %v1814
      %v1816 = vrot.slane %v1559, 4
      %v1817 = vsel %vm1698, %v1810, %v1816
      %v1818 = vrot.slane %v1560, 4
      %v1819 = vsel %vm1698, %v1812, %v1818
      %v1820 = vrot.slane %v1561, 4
      %v1821 = vsel %vm1698, %v1814, %v1820
      %v1822 = vrot.slane %v1562, 4
      %v1823 = vsel %vm1698, %v1816, %v1822
      %v1824 = vrot.slane %v1563, 4
      %v1825 = vsel %vm1698, %v1818, %v1824
      %v1826 = vrot.slane %v1564, 4
      %v1827 = vsel %vm1698, %v1820, %v1826
      %v1828 = vrot.slane %v1565, 4
      %v1829 = vsel %vm1698, %v1822, %v1828
      %v1830 = vrot.slane %v1566, 4
      %v1831 = vsel %vm1698, %v1824, %v1830
      %v1832 = vrot.slane %v1567, 4
      %v1833 = vsel %vm1698, %v1826, %v1832
      %v1834 = vrot.slane %v1568, 4
      %v1835 = vsel %vm1698, %v1828, %v1834
      %v1836 = vrot.slane %v1569, 4
      %v1837 = vsel %vm1698, %v1830, %v1836
      %v1838 = vrot.slane %v1570, 4
      %v1839 = vsel %vm1698, %v1832, %v1838
      %v1840 = vrot.slane %v1571, 4
      %v1841 = vsel %vm1698, %v1834, %v1840
      %v1842 = vrot.slane %v1572, 4
      %v1843 = vsel %vm1698, %v1836, %v1842
      %v1844 = vrot.slane %v1573, 4
      %v1845 = vsel %vm1698, %v1838, %v1844
      %v1966 = vunpack.c.l.b16 %v1575
      %v1967 = vunpack.c.l.b16 %v1576
      %v1968 = vunpack.c.l.b16 %v1577
      %v1969 = vunpack.c.l.b16 %v1578
      %v1970 = vunpack.c.l.b16 %v1579
      %v1971 = vunpack.c.l.b16 %v1580
      %v1972 = vunpack.c.l.b16 %v1581
      %v1973 = vunpack.c.l.b16 %v1582
      %v1974 = vunpack.c.l.b16 %v1583
      %v1975 = vunpack.c.l.b16 %v1584
      %v1976 = vunpack.c.l.b16 %v1585
      %v1977 = vunpack.c.l.b16 %v1586
      %v1978 = vunpack.c.l.b16 %v1587
      %v1979 = vunpack.c.l.b16 %v1588
      %v1980 = vunpack.c.l.b16 %v1589
      %v1981 = vunpack.c.l.b16 %v1590
      %v1982 = vunpack.c.l.b16 %v1591
      %v1983 = vunpack.c.l.b16 %v1592
      %v1984 = vunpack.c.l.b16 %v1593
      %v1985 = vunpack.c.l.b16 %v1594
      %v1986 = vunpack.c.l.b16 %v1595
      %v1987 = vunpack.c.l.b16 %v1596
      %v1988 = vunpack.c.l.b16 %v1597
      %v1989 = vunpack.c.l.b16 %v1598
      %v1990 = vunpack.c.l.b16 %v1599
      %v1991 = vunpack.c.l.b16 %v1600
      %v1992 = vunpack.c.l.b16 %v1601
      %v1993 = vunpack.c.l.b16 %v1602
      %v1994 = vunpack.c.l.b16 %v1603
      %v1995 = vunpack.c.l.b16 %v1604
      %v1996 = vunpack.c.l.b16 %v1605
      %v1997 = vunpack.c.l.b16 %v1606
      %v1998 = vunpack.c.l.b16 %v1607
      %v1999 = vunpack.c.l.b16 %v1608
      %v2000 = vunpack.c.l.b16 %v1609
      %v2001 = vunpack.c.l.b16 %v1610
      %v2002 = vunpack.c.l.b16 %v1611
      %v2003 = vunpack.c.l.b16 %v1612
      %v2004 = vunpack.c.l.b16 %v1613
      %v2005 = vunpack.c.l.b16 %v1614
      %v2006 = vunpack.c.l.b16 %v1615
      %v2007 = vunpack.c.l.b16 %v1616
      %v2008 = vunpack.c.l.b16 %v1617
      %v2009 = vunpack.c.l.b16 %v1618
      %v2010 = vunpack.c.l.b16 %v1619
      %v2011 = vunpack.c.l.b16 %v1620
      %v2012 = vunpack.c.l.b16 %v1621
      %v2013 = vunpack.c.l.b16 %v1622
      %v2014 = vpack.c.b16 %v1967, %v1966
      %v2015 = vpack.c.b16 %v1969, %v1968
      %v2016 = vpack.c.b16 %v1971, %v1970
      %v2017 = vpack.c.b16 %v1973, %v1972
      %v2018 = vpack.c.b16 %v1975, %v1974
      %v2019 = vpack.c.b16 %v1977, %v1976
      %v2020 = vpack.c.b16 %v1979, %v1978
      %v2021 = vpack.c.b16 %v1981, %v1980
      %v2022 = vpack.c.b16 %v1983, %v1982
      %v2023 = vpack.c.b16 %v1985, %v1984
      %v2024 = vpack.c.b16 %v1987, %v1986
      %v2025 = vpack.c.b16 %v1989, %v1988
      %v2026 = vpack.c.b16 %v1991, %v1990
      %v2027 = vpack.c.b16 %v1993, %v1992
      %v2028 = vpack.c.b16 %v1995, %v1994
      %v2029 = vpack.c.b16 %v1997, %v1996
      %v2030 = vpack.c.b16 %v1999, %v1998
      %v2031 = vpack.c.b16 %v2001, %v2000
      %v2032 = vpack.c.b16 %v2003, %v2002
      %v2033 = vpack.c.b16 %v2005, %v2004
      %v2034 = vpack.c.b16 %v2007, %v2006
      %v2035 = vpack.c.b16 %v2009, %v2008
      %v2036 = vpack.c.b16 %v2011, %v2010
      %v2037 = vpack.c.b16 %v2013, %v2012
      %2062 = vmatprep.subr.bf16.mxu0 0
      %2063 = vmatpush1.bf16.msra.mxu0 %v2014
      %2064 = vmatprep.subr.bf16.mxu0 0
      %2065 = vmatpush1.bf16.msra.mxu0 %v2015
      %2066 = vmatprep.subr.bf16.mxu0 0
      %2067 = vmatpush1.bf16.msra.mxu0 %v2016
      %2068 = vmatprep.subr.bf16.mxu0 0
      %2069 = vmatpush1.bf16.msra.mxu0 %v2017
      %2070 = vmatprep.subr.bf16.mxu0 0
      %2071 = vmatpush1.bf16.msra.mxu0 %v2018
      %2072 = vmatprep.subr.bf16.mxu0 0
      %2073 = vmatpush1.bf16.msra.mxu0 %v2019
      %2074 = vmatprep.subr.bf16.mxu0 0
      %2075 = vmatpush1.bf16.msra.mxu0 %v2020
      %2076 = vmatprep.subr.bf16.mxu0 0
      %2077 = vmatpush1.bf16.msra.mxu0 %v2021
      %2078 = vmatprep.subr.bf16.mxu0 0
      %2079 = vmatpush1.bf16.msra.mxu0 %v2022
      %2080 = vmatprep.subr.bf16.mxu0 0
      %2081 = vmatpush1.bf16.msra.mxu0 %v2023
      %2082 = vmatprep.subr.bf16.mxu0 0
      %2083 = vmatpush1.bf16.msra.mxu0 %v2024
      %2084 = vmatprep.subr.bf16.mxu0 0
      %2085 = vmatpush1.bf16.msra.mxu0 %v2025
      %2086 = vmatprep.subr.bf16.mxu0 0
      %2087 = vmatpush1.bf16.msra.mxu0 %v2026
      %2088 = vmatprep.subr.bf16.mxu0 0
      %2089 = vmatpush1.bf16.msra.mxu0 %v2027
      %2090 = vmatprep.subr.bf16.mxu0 0
      %2091 = vmatpush1.bf16.msra.mxu0 %v2028
      %2092 = vmatprep.subr.bf16.mxu0 0
      %2093 = vmatpush1.bf16.msra.mxu0 %v2029
      %2094 = vmatprep.mubr.bf16.mxu0 %v1704
      %2095 = vmatmul.mubr.bf16.gmra.mrb[0].mxu0 %v1701
      %v2096 = vpop.f32.mrb[0].mxu0
      %v2097 = vadd.f32 0.0, %v2096
      %v2098 = vpop.f32.mrb[0].mxu0
      %v2099 = vpop.f32.mrb[0].mxu0
      %v2100 = vadd.f32 0.0, %v2099
      %v2101 = vpop.f32.mrb[0].mxu0
      %2102 = vmatprep.mubr.bf16.mxu0 %v1711
      %2103 = vmatmul.mubr.bf16.gmra.mrb[0].mxu0 %v1709
      %v2104 = vpop.f32.mrb[0].mxu0
      %v2105 = vadd.f32 0.0, %v2104
      %v2106 = vpop.f32.mrb[0].mxu0
      %v2107 = vpop.f32.mrb[0].mxu0
      %v2108 = vadd.f32 0.0, %v2107
      %v2109 = vpop.f32.mrb[0].mxu0
      %2110 = vmatprep.mubr.bf16.mxu0 %v1717
      %2111 = vmatmul.mubr.bf16.gmra.mrb[0].mxu0 %v1715
      %v2112 = vpop.f32.mrb[0].mxu0
      %v2113 = vadd.f32 0.0, %v2112
      %v2114 = vpop.f32.mrb[0].mxu0
      %v2115 = vpop.f32.mrb[0].mxu0
      %v2116 = vadd.f32 0.0, %v2115
      %v2117 = vpop.f32.mrb[0].mxu0
      %2118 = vmatprep.mubr.bf16.mxu0 %v1723
      %2119 = vmatmul.mubr.bf16.gmra.mrb[0].mxu0 %v1721
      %v2120 = vpop.f32.mrb[0].mxu0
      %v2121 = vadd.f32 0.0, %v2120
      %v2122 = vpop.f32.mrb[0].mxu0
      %v2123 = vpop.f32.mrb[0].mxu0
      %v2124 = vadd.f32 0.0, %v2123
      %v2125 = vpop.f32.mrb[0].mxu0
      %2126 = vmatprep.mubr.bf16.mxu0 %v1729
      %2127 = vmatmul.mubr.bf16.gmra.mrb[0].mxu0 %v1727
      %v2128 = vpop.f32.mrb[0].mxu0
      %v2129 = vadd.f32 0.0, %v2128
      %v2130 = vpop.f32.mrb[0].mxu0
      %v2131 = vpop.f32.mrb[0].mxu0
      %v2132 = vadd.f32 0.0, %v2131
      %v2133 = vpop.f32.mrb[0].mxu0
      %2134 = vmatprep.mubr.bf16.mxu0 %v1735
      %2135 = vmatmul.mubr.bf16.gmra.mrb[0].mxu0 %v1733
      %v2136 = vpop.f32.mrb[0].mxu0
      %v2137 = vadd.f32 0.0, %v2136
      %v2138 = vpop.f32.mrb[0].mxu0
      %v2139 = vpop.f32.mrb[0].mxu0
      %v2140 = vadd.f32 0.0, %v2139
      %v2141 = vpop.f32.mrb[0].mxu0
      %2142 = vmatprep.mubr.bf16.mxu0 %v1741
      %2143 = vmatmul.mubr.bf16.gmra.mrb[0].mxu0 %v1739
      %v2144 = vpop.f32.mrb[0].mxu0
      %v2145 = vadd.f32 0.0, %v2144
      %v2146 = vpop.f32.mrb[0].mxu0
      %v2147 = vpop.f32.mrb[0].mxu0
      %v2148 = vadd.f32 0.0, %v2147
      %v2149 = vpop.f32.mrb[0].mxu0
      %2150 = vmatprep.mubr.bf16.mxu0 %v1747
      %2151 = vmatmul.mubr.bf16.gmra.mrb[0].mxu0 %v1745
      %v2152 = vpop.f32.mrb[0].mxu0
      %v2153 = vadd.f32 0.0, %v2152
      %v2154 = vpop.f32.mrb[0].mxu0
      %v2155 = vpop.f32.mrb[0].mxu0
      %v2156 = vadd.f32 0.0, %v2155
      %v2157 = vpop.f32.mrb[0].mxu0
      %2158 = vmatprep.mubr.bf16.mxu0 %v1753
      %2159 = vmatmul.mubr.bf16.gmra.mrb[0].mxu0 %v1751
      %v2160 = vpop.f32.mrb[0].mxu0
      %v2161 = vadd.f32 0.0, %v2160
      %v2162 = vpop.f32.mrb[0].mxu0
      %v2163 = vpop.f32.mrb[0].mxu0
      %v2164 = vadd.f32 0.0, %v2163
      %v2165 = vpop.f32.mrb[0].mxu0
      %2166 = vmatprep.mubr.bf16.mxu0 %v1759
      %2167 = vmatmul.mubr.bf16.gmra.mrb[0].mxu0 %v1757
      %v2168 = vpop.f32.mrb[0].mxu0
      %v2169 = vadd.f32 0.0, %v2168
      %v2170 = vpop.f32.mrb[0].mxu0
      %v2171 = vpop.f32.mrb[0].mxu0
      %v2172 = vadd.f32 0.0, %v2171
      %v2173 = vpop.f32.mrb[0].mxu0
      %2174 = vmatprep.mubr.bf16.mxu0 %v1765
      %2175 = vmatmul.mubr.bf16.gmra.mrb[0].mxu0 %v1763
      %v2176 = vpop.f32.mrb[0].mxu0
      %v2177 = vadd.f32 0.0, %v2176
      %v2178 = vpop.f32.mrb[0].mxu0
      %v2179 = vpop.f32.mrb[0].mxu0
      %v2180 = vadd.f32 0.0, %v2179
      %v2181 = vpop.f32.mrb[0].mxu0
      %2182 = vmatprep.mubr.bf16.mxu0 %v1771
      %2183 = vmatmul.mubr.bf16.gmra.mrb[0].mxu0 %v1769
      %v2184 = vpop.f32.mrb[0].mxu0
      %v2185 = vadd.f32 0.0, %v2184
      %v2186 = vpop.f32.mrb[0].mxu0
      %v2187 = vpop.f32.mrb[0].mxu0
      %v2188 = vadd.f32 0.0, %v2187
      %v2189 = vpop.f32.mrb[0].mxu0
      %2190 = vmatprep.mubr.bf16.mxu0 %v1777
      %2191 = vmatmul.mubr.bf16.gmra.mrb[0].mxu0 %v1775
      %v2192 = vpop.f32.mrb[0].mxu0
      %v2193 = vadd.f32 0.0, %v2192
      %v2194 = vpop.f32.mrb[0].mxu0
      %v2195 = vpop.f32.mrb[0].mxu0
      %v2196 = vadd.f32 0.0, %v2195
      %v2197 = vpop.f32.mrb[0].mxu0
      %2198 = vmatprep.mubr.bf16.mxu0 %v1783
      %2199 = vmatmul.mubr.bf16.gmra.mrb[0].mxu0 %v1781
      %v2200 = vpop.f32.mrb[0].mxu0
      %v2201 = vadd.f32 0.0, %v2200
      %v2202 = vpop.f32.mrb[0].mxu0
      %v2203 = vpop.f32.mrb[0].mxu0
      %v2204 = vadd.f32 0.0, %v2203
      %v2205 = vpop.f32.mrb[0].mxu0
      %2206 = vmatprep.mubr.bf16.mxu0 %v1789
      %2207 = vmatmul.mubr.bf16.gmra.mrb[0].mxu0 %v1787
      %v2208 = vpop.f32.mrb[0].mxu0
      %v2209 = vadd.f32 0.0, %v2208
      %v2210 = vpop.f32.mrb[0].mxu0
      %v2211 = vpop.f32.mrb[0].mxu0
      %v2212 = vadd.f32 0.0, %v2211
      %v2213 = vpop.f32.mrb[0].mxu0
      %2214 = vmatprep.mubr.bf16.mxu0 %v1795
      %2215 = vmatmul.mubr.bf16.gmra.mrb[0].mxu0 %v1793
      %v2216 = vpop.f32.mrb[0].mxu0
      %v2217 = vadd.f32 0.0, %v2216
      %v2218 = vpop.f32.mrb[0].mxu0
      %v2219 = vpop.f32.mrb[0].mxu0
      %v2220 = vadd.f32 0.0, %v2219
      %v2221 = vpop.f32.mrb[0].mxu0
      %2222 = vmatprep.mubr.bf16.mxu0 %v1801
      %2223 = vmatmul.mubr.bf16.gmra.mrb[0].mxu0 %v1799
      %v2224 = vpop.f32.mrb[0].mxu0
      %v2225 = vadd.f32 0.0, %v2224
      %v2226 = vpop.f32.mrb[0].mxu0
      %v2227 = vpop.f32.mrb[0].mxu0
      %v2228 = vadd.f32 0.0, %v2227
      %v2229 = vpop.f32.mrb[0].mxu0
      %2230 = vmatprep.mubr.bf16.mxu0 %v1807
      %2231 = vmatmul.mubr.bf16.gmra.mrb[0].mxu0 %v1805
      %v2232 = vpop.f32.mrb[0].mxu0
      %v2233 = vadd.f32 0.0, %v2232
      %v2234 = vpop.f32.mrb[0].mxu0
      %v2235 = vpop.f32.mrb[0].mxu0
      %v2236 = vadd.f32 0.0, %v2235
      %v2237 = vpop.f32.mrb[0].mxu0
      %2238 = vmatprep.mubr.bf16.mxu0 %v1813
      %2239 = vmatmul.mubr.bf16.gmra.mrb[0].mxu0 %v1811
      %v2240 = vpop.f32.mrb[0].mxu0
      %v2241 = vadd.f32 0.0, %v2240
      %v2242 = vpop.f32.mrb[0].mxu0
      %v2243 = vpop.f32.mrb[0].mxu0
      %v2244 = vadd.f32 0.0, %v2243
      %v2245 = vpop.f32.mrb[0].mxu0
      %2246 = vmatprep.mubr.bf16.mxu0 %v1819
      %2247 = vmatmul.mubr.bf16.gmra.mrb[0].mxu0 %v1817
      %v2248 = vpop.f32.mrb[0].mxu0
      %v2249 = vadd.f32 0.0, %v2248
      %v2250 = vpop.f32.mrb[0].mxu0
      %v2251 = vpop.f32.mrb[0].mxu0
      %v2252 = vadd.f32 0.0, %v2251
      %v2253 = vpop.f32.mrb[0].mxu0
      %2254 = vmatprep.mubr.bf16.mxu0 %v1825
      %2255 = vmatmul.mubr.bf16.gmra.mrb[0].mxu0 %v1823
      %v2256 = vpop.f32.mrb[0].mxu0
      %v2257 = vadd.f32 0.0, %v2256
      %v2258 = vpop.f32.mrb[0].mxu0
      %v2259 = vpop.f32.mrb[0].mxu0
      %v2260 = vadd.f32 0.0, %v2259
      %v2261 = vpop.f32.mrb[0].mxu0
      %2262 = vmatprep.mubr.bf16.mxu0 %v1831
      %2263 = vmatmul.mubr.bf16.gmra.mrb[0].mxu0 %v1829
      %v2264 = vpop.f32.mrb[0].mxu0
      %v2265 = vadd.f32 0.0, %v2264
      %v2266 = vpop.f32.mrb[0].mxu0
      %v2267 = vpop.f32.mrb[0].mxu0
      %v2268 = vadd.f32 0.0, %v2267
      %v2269 = vpop.f32.mrb[0].mxu0
      %2270 = vmatprep.mubr.bf16.mxu0 %v1837
      %2271 = vmatmul.mubr.bf16.gmra.mrb[0].mxu0 %v1835
      %v2272 = vpop.f32.mrb[0].mxu0
      %v2273 = vadd.f32 0.0, %v2272
      %v2274 = vpop.f32.mrb[0].mxu0
      %v2275 = vpop.f32.mrb[0].mxu0
      %v2276 = vadd.f32 0.0, %v2275
      %v2277 = vpop.f32.mrb[0].mxu0
      %2278 = vmatprep.mubr.bf16.mxu0 %v1843
      %2279 = vmatmul.mubr.bf16.gmra.mrb[0].mxu0 %v1841
      %v2280 = vpop.f32.mrb[0].mxu0
      %v2281 = vadd.f32 0.0, %v2280
      %v2282 = vpop.f32.mrb[0].mxu0
      %v2283 = vpop.f32.mrb[0].mxu0
      %v2284 = vadd.f32 0.0, %v2283
      %v2285 = vpop.f32.mrb[0].mxu0
      %2286 = vdwg.mxu0
      %2287 = vmatprep.subr.bf16.mxu0 0
      %2288 = vmatpush1.bf16.msra.mxu0 %v2030
      %2289 = vmatprep.subr.bf16.mxu0 0
      %2290 = vmatpush1.bf16.msra.mxu0 %v2031
      %2291 = vmatprep.subr.bf16.mxu0 0
      %2292 = vmatpush1.bf16.msra.mxu0 %v2032
      %2293 = vmatprep.subr.bf16.mxu0 0
      %2294 = vmatpush1.bf16.msra.mxu0 %v2033
      %2295 = vmatprep.subr.bf16.mxu0 0
      %2296 = vmatpush1.bf16.msra.mxu0 %v2034
      %2297 = vmatprep.subr.bf16.mxu0 0
      %2298 = vmatpush1.bf16.msra.mxu0 %v2035
      %2299 = vmatprep.subr.bf16.mxu0 0
      %2300 = vmatpush1.bf16.msra.mxu0 %v2036
      %2301 = vmatprep.subr.bf16.mxu0 0
      %2302 = vmatpush1.bf16.msra.mxu0 %v2037
      %2303 = vmatprep.subr.bf16.mxu0 0
      %2304 = vmatpush1.bf16.msra.mxu0 0
      %2305 = vmatprep.subr.bf16.mxu0 0
      %2306 = vmatpush1.bf16.msra.mxu0 0
      %2307 = vmatprep.subr.bf16.mxu0 0
      %2308 = vmatpush1.bf16.msra.mxu0 0
      %2309 = vmatprep.subr.bf16.mxu0 0
      %2310 = vmatpush1.bf16.msra.mxu0 0
      %2311 = vmatprep.subr.bf16.mxu0 0
      %2312 = vmatpush1.bf16.msra.mxu0 0
      %2313 = vmatprep.subr.bf16.mxu0 0
      %2314 = vmatpush1.bf16.msra.mxu0 0
      %2315 = vmatprep.subr.bf16.mxu0 0
      %2316 = vmatpush1.bf16.msra.mxu0 0
      %2317 = vmatprep.subr.bf16.mxu0 0
      %2318 = vmatpush1.bf16.msra.mxu0 0
      %2319 = vmatprep.mubr.bf16.mxu0 0
      %2320 = vmatmul.mubr.bf16.gmra.mrb[0].mxu0 %v1707
      %v2321 = vpop.f32.mrb[0].mxu0
      %v2322 = vadd.f32 %v2097, %v2321
      %v2323 = vpop.f32.mrb[0].mxu0
      %v2324 = vpop.f32.mrb[0].mxu0
      %v2325 = vadd.f32 %v2100, %v2324
      %v2326 = vpop.f32.mrb[0].mxu0
      %2327 = vmatprep.mubr.bf16.mxu0 0
      %2328 = vmatmul.mubr.bf16.gmra.mrb[0].mxu0 %v1713
      %v2329 = vpop.f32.mrb[0].mxu0
      %v2330 = vadd.f32 %v2105, %v2329
      %v2331 = vpop.f32.mrb[0].mxu0
      %v2332 = vpop.f32.mrb[0].mxu0
      %v2333 = vadd.f32 %v2108, %v2332
      %v2334 = vpop.f32.mrb[0].mxu0
      %2335 = vmatprep.mubr.bf16.mxu0 0
      %2336 = vmatmul.mubr.bf16.gmra.mrb[0].mxu0 %v1719
      %v2337 = vpop.f32.mrb[0].mxu0
      %v2338 = vadd.f32 %v2113, %v2337
      %v2339 = vpop.f32.mrb[0].mxu0
      %v2340 = vpop.f32.mrb[0].mxu0
      %v2341 = vadd.f32 %v2116, %v2340
      %v2342 = vpop.f32.mrb[0].mxu0
      %2343 = vmatprep.mubr.bf16.mxu0 0
      %2344 = vmatmul.mubr.bf16.gmra.mrb[0].mxu0 %v1725
      %v2345 = vpop.f32.mrb[0].mxu0
      %v2346 = vadd.f32 %v2121, %v2345
      %v2347 = vpop.f32.mrb[0].mxu0
      %v2348 = vpop.f32.mrb[0].mxu0
      %v2349 = vadd.f32 %v2124, %v2348
      %v2350 = vpop.f32.mrb[0].mxu0
      %2351 = vmatprep.mubr.bf16.mxu0 0
      %2352 = vmatmul.mubr.bf16.gmra.mrb[0].mxu0 %v1731
      %v2353 = vpop.f32.mrb[0].mxu0
      %v2354 = vadd.f32 %v2129, %v2353
      %v2355 = vpop.f32.mrb[0].mxu0
      %v2356 = vpop.f32.mrb[0].mxu0
      %v2357 = vadd.f32 %v2132, %v2356
      %v2358 = vpop.f32.mrb[0].mxu0
      %2359 = vmatprep.mubr.bf16.mxu0 0
      %2360 = vmatmul.mubr.bf16.gmra.mrb[0].mxu0 %v1737
      %v2361 = vpop.f32.mrb[0].mxu0
      %v2362 = vadd.f32 %v2137, %v2361
      %v2363 = vpop.f32.mrb[0].mxu0
      %v2364 = vpop.f32.mrb[0].mxu0
      %v2365 = vadd.f32 %v2140, %v2364
      %v2366 = vpop.f32.mrb[0].mxu0
      %2367 = vmatprep.mubr.bf16.mxu0 0
      %2368 = vmatmul.mubr.bf16.gmra.mrb[0].mxu0 %v1743
      %v2369 = vpop.f32.mrb[0].mxu0
      %v2370 = vadd.f32 %v2145, %v2369
      %v2371 = vpop.f32.mrb[0].mxu0
      %v2372 = vpop.f32.mrb[0].mxu0
      %v2373 = vadd.f32 %v2148, %v2372
      %v2374 = vpop.f32.mrb[0].mxu0
      %2375 = vmatprep.mubr.bf16.mxu0 0
      %2376 = vmatmul.mubr.bf16.gmra.mrb[0].mxu0 %v1749
      %v2377 = vpop.f32.mrb[0].mxu0
      %v2378 = vadd.f32 %v2153, %v2377
      %v2379 = vpop.f32.mrb[0].mxu0
      %v2380 = vpop.f32.mrb[0].mxu0
      %v2381 = vadd.f32 %v2156, %v2380
      %v2382 = vpop.f32.mrb[0].mxu0
      %2383 = vmatprep.mubr.bf16.mxu0 0
      %2384 = vmatmul.mubr.bf16.gmra.mrb[0].mxu0 %v1755
      %v2385 = vpop.f32.mrb[0].mxu0
      %v2386 = vadd.f32 %v2161, %v2385
      %v2387 = vpop.f32.mrb[0].mxu0
      %v2388 = vpop.f32.mrb[0].mxu0
      %v2389 = vadd.f32 %v2164, %v2388
      %v2390 = vpop.f32.mrb[0].mxu0
      %2391 = vmatprep.mubr.bf16.mxu0 0
      %2392 = vmatmul.mubr.bf16.gmra.mrb[0].mxu0 %v1761
      %v2393 = vpop.f32.mrb[0].mxu0
      %v2394 = vadd.f32 %v2169, %v2393
      %v2395 = vpop.f32.mrb[0].mxu0
      %v2396 = vpop.f32.mrb[0].mxu0
      %v2397 = vadd.f32 %v2172, %v2396
      %v2398 = vpop.f32.mrb[0].mxu0
      %2399 = vmatprep.mubr.bf16.mxu0 0
      %2400 = vmatmul.mubr.bf16.gmra.mrb[0].mxu0 %v1767
      %v2401 = vpop.f32.mrb[0].mxu0
      %v2402 = vadd.f32 %v2177, %v2401
      %v2403 = vpop.f32.mrb[0].mxu0
      %v2404 = vpop.f32.mrb[0].mxu0
      %v2405 = vadd.f32 %v2180, %v2404
      %v2406 = vpop.f32.mrb[0].mxu0
      %2407 = vmatprep.mubr.bf16.mxu0 0
      %2408 = vmatmul.mubr.bf16.gmra.mrb[0].mxu0 %v1773
      %v2409 = vpop.f32.mrb[0].mxu0
      %v2410 = vadd.f32 %v2185, %v2409
      %v2411 = vpop.f32.mrb[0].mxu0
      %v2412 = vpop.f32.mrb[0].mxu0
      %v2413 = vadd.f32 %v2188, %v2412
      %v2414 = vpop.f32.mrb[0].mxu0
      %2415 = vmatprep.mubr.bf16.mxu0 0
      %2416 = vmatmul.mubr.bf16.gmra.mrb[0].mxu0 %v1779
      %v2417 = vpop.f32.mrb[0].mxu0
      %v2418 = vadd.f32 %v2193, %v2417
      %v2419 = vpop.f32.mrb[0].mxu0
      %v2420 = vpop.f32.mrb[0].mxu0
      %v2421 = vadd.f32 %v2196, %v2420
      %v2422 = vpop.f32.mrb[0].mxu0
      %2423 = vmatprep.mubr.bf16.mxu0 0
      %2424 = vmatmul.mubr.bf16.gmra.mrb[0].mxu0 %v1785
      %v2425 = vpop.f32.mrb[0].mxu0
      %v2426 = vadd.f32 %v2201, %v2425
      %v2427 = vpop.f32.mrb[0].mxu0
      %v2428 = vpop.f32.mrb[0].mxu0
      %v2429 = vadd.f32 %v2204, %v2428
      %v2430 = vpop.f32.mrb[0].mxu0
      %2431 = vmatprep.mubr.bf16.mxu0 0
      %2432 = vmatmul.mubr.bf16.gmra.mrb[0].mxu0 %v1791
      %v2433 = vpop.f32.mrb[0].mxu0
      %v2434 = vadd.f32 %v2209, %v2433
      %v2435 = vpop.f32.mrb[0].mxu0
      %v2436 = vpop.f32.mrb[0].mxu0
      %v2437 = vadd.f32 %v2212, %v2436
      %v2438 = vpop.f32.mrb[0].mxu0
      %2439 = vmatprep.mubr.bf16.mxu0 0
      %2440 = vmatmul.mubr.bf16.gmra.mrb[0].mxu0 %v1797
      %v2441 = vpop.f32.mrb[0].mxu0
      %v2442 = vadd.f32 %v2217, %v2441
      %v2443 = vpop.f32.mrb[0].mxu0
      %v2444 = vpop.f32.mrb[0].mxu0
      %v2445 = vadd.f32 %v2220, %v2444
      %v2446 = vpop.f32.mrb[0].mxu0
      %2447 = vmatprep.mubr.bf16.mxu0 0
      %2448 = vmatmul.mubr.bf16.gmra.mrb[0].mxu0 %v1803
      %v2449 = vpop.f32.mrb[0].mxu0
      %v2450 = vadd.f32 %v2225, %v2449
      %v2451 = vpop.f32.mrb[0].mxu0
      %v2452 = vpop.f32.mrb[0].mxu0
      %v2453 = vadd.f32 %v2228, %v2452
      %v2454 = vpop.f32.mrb[0].mxu0
      %2455 = vmatprep.mubr.bf16.mxu0 0
      %2456 = vmatmul.mubr.bf16.gmra.mrb[0].mxu0 %v1809
      %v2457 = vpop.f32.mrb[0].mxu0
      %v2458 = vadd.f32 %v2233, %v2457
      %v2459 = vpop.f32.mrb[0].mxu0
      %v2460 = vpop.f32.mrb[0].mxu0
      %v2461 = vadd.f32 %v2236, %v2460
      %v2462 = vpop.f32.mrb[0].mxu0
      %2463 = vmatprep.mubr.bf16.mxu0 0
      %2464 = vmatmul.mubr.bf16.gmra.mrb[0].mxu0 %v1815
      %v2465 = vpop.f32.mrb[0].mxu0
      %v2466 = vadd.f32 %v2241, %v2465
      %v2467 = vpop.f32.mrb[0].mxu0
      %v2468 = vpop.f32.mrb[0].mxu0
      %v2469 = vadd.f32 %v2244, %v2468
      %v2470 = vpop.f32.mrb[0].mxu0
      %2471 = vmatprep.mubr.bf16.mxu0 0
      %2472 = vmatmul.mubr.bf16.gmra.mrb[0].mxu0 %v1821
      %v2473 = vpop.f32.mrb[0].mxu0
      %v2474 = vadd.f32 %v2249, %v2473
      %v2475 = vpop.f32.mrb[0].mxu0
      %v2476 = vpop.f32.mrb[0].mxu0
      %v2477 = vadd.f32 %v2252, %v2476
      %v2478 = vpop.f32.mrb[0].mxu0
      %2479 = vmatprep.mubr.bf16.mxu0 0
      %2480 = vmatmul.mubr.bf16.gmra.mrb[0].mxu0 %v1827
      %v2481 = vpop.f32.mrb[0].mxu0
      %v2482 = vadd.f32 %v2257, %v2481
      %v2483 = vpop.f32.mrb[0].mxu0
      %v2484 = vpop.f32.mrb[0].mxu0
      %v2485 = vadd.f32 %v2260, %v2484
      %v2486 = vpop.f32.mrb[0].mxu0
      %2487 = vmatprep.mubr.bf16.mxu0 0
      %2488 = vmatmul.mubr.bf16.gmra.mrb[0].mxu0 %v1833
      %v2489 = vpop.f32.mrb[0].mxu0
      %v2490 = vadd.f32 %v2265, %v2489
      %v2491 = vpop.f32.mrb[0].mxu0
      %v2492 = vpop.f32.mrb[0].mxu0
      %v2493 = vadd.f32 %v2268, %v2492
      %v2494 = vpop.f32.mrb[0].mxu0
      %2495 = vmatprep.mubr.bf16.mxu0 0
      %2496 = vmatmul.mubr.bf16.gmra.mrb[0].mxu0 %v1839
      %v2497 = vpop.f32.mrb[0].mxu0
      %v2498 = vadd.f32 %v2273, %v2497
      %v2499 = vpop.f32.mrb[0].mxu0
      %v2500 = vpop.f32.mrb[0].mxu0
      %v2501 = vadd.f32 %v2276, %v2500
      %v2502 = vpop.f32.mrb[0].mxu0
      %2503 = vmatprep.mubr.bf16.mxu0 0
      %2504 = vmatmul.mubr.bf16.gmra.mrb[0].mxu0 %v1845
      %v2505 = vpop.f32.mrb[0].mxu0
      %v2506 = vadd.f32 %v2281, %v2505
      %v2507 = vpop.f32.mrb[0].mxu0
      %v2508 = vpop.f32.mrb[0].mxu0
      %v2509 = vadd.f32 %v2284, %v2508
      %v2510 = vpop.f32.mrb[0].mxu0
      %2511 = vdwg.mxu0
      %v2512 = vld [vmem:[%s289 + $0x30] sm:$0xff]
      %v2513 = vld [vmem:[%s289 + $0x38] sm:$0xff]
      %v2514 = vld [vmem:[%s289 + $0x40] sm:$0xff]
      %v2515 = vld [vmem:[%s289 + $0x48] sm:$0xff]
      %v2516 = vld [vmem:[%s289 + $0x50] sm:$0xff]
      %v2517 = vld [vmem:[%s289 + $0x58] sm:$0xff]
      %v2518 = vld [vmem:[%s289 + $0x60] sm:$0xff]
      %v2519 = vld [vmem:[%s289 + $0x68] sm:$0xff]
      %v2520 = vld [vmem:[%s289 + $0x70] sm:$0xff]
      %v2521 = vld [vmem:[%s289 + $0x78] sm:$0xff]
      %v2522 = vld [vmem:[%s289 + $0x80] sm:$0xff]
      %v2523 = vld [vmem:[%s289 + $0x88] sm:$0xff]
      %v2524 = vld [vmem:[%s289 + $0x90] sm:$0xff]
      %v2525 = vld [vmem:[%s289 + $0x98] sm:$0xff]
      %v2526 = vld [vmem:[%s289 + $0xa0] sm:$0xff]
      %v2527 = vld [vmem:[%s289 + $0xa8] sm:$0xff]
      %v2528 = vld [vmem:[%s289 + $0xb0] sm:$0xff]
      %v2529 = vld [vmem:[%s289 + $0xb8] sm:$0xff]
      %v2530 = vld [vmem:[%s289 + $0xc0] sm:$0xff]
      %v2531 = vld [vmem:[%s289 + $0xc8] sm:$0xff]
      %v2532 = vld [vmem:[%s289 + $0xd0] sm:$0xff]
      %v2533 = vld [vmem:[%s289 + $0xd8] sm:$0xff]
      %v2534 = vld [vmem:[%s289 + $0xe0] sm:$0xff]
      %v2535 = vld [vmem:[%s289 + $0xe8] sm:$0xff]
      %v2536 = vld [vmem:[%s289 + $0xf0] sm:$0xff]
      %v2537 = vld [vmem:[%s289 + $0xf8] sm:$0xff]
      %v2538 = vld [vmem:[%s289 + $0x100] sm:$0xff]
      %v2539 = vld [vmem:[%s289 + $0x108] sm:$0xff]
      %v2540 = vld [vmem:[%s289 + $0x110] sm:$0xff]
      %v2541 = vld [vmem:[%s289 + $0x118] sm:$0xff]
      %v2542 = vld [vmem:[%s289 + $0x120] sm:$0xff]
      %v2543 = vld [vmem:[%s289 + $0x128] sm:$0xff]
      %v2544 = vld [vmem:[%s289 + $0x130] sm:$0xff]
      %v2545 = vld [vmem:[%s289 + $0x138] sm:$0xff]
      %v2546 = vld [vmem:[%s289 + $0x140] sm:$0xff]
      %v2547 = vld [vmem:[%s289 + $0x148] sm:$0xff]
      %v2548 = vld [vmem:[%s289 + $0x150] sm:$0xff]
      %v2549 = vld [vmem:[%s289 + $0x158] sm:$0xff]
      %v2550 = vld [vmem:[%s289 + $0x160] sm:$0xff]
      %v2551 = vld [vmem:[%s289 + $0x168] sm:$0xff]
      %v2552 = vld [vmem:[%s289 + $0x170] sm:$0xff]
      %v2553 = vld [vmem:[%s289 + $0x178] sm:$0xff]
      %v2554 = vld [vmem:[%s289 + $0x180] sm:$0xff]
      %v2555 = vld [vmem:[%s289 + $0x188] sm:$0xff]
      %v2556 = vld [vmem:[%s289 + $0x190] sm:$0xff]
      %v2557 = vld [vmem:[%s289 + $0x198] sm:$0xff]
      %v2558 = vld [vmem:[%s289 + $0x1a0] sm:$0xff]
      %v2559 = vld [vmem:[%s289 + $0x1a8] sm:$0xff]
      %v2560 = vadd.f32 %v2512, %v2322
      %v2561 = vadd.f32 %v2513, %v2325
      %v2562 = vadd.f32 %v2514, %v2330
      %v2563 = vadd.f32 %v2515, %v2333
      %v2564 = vadd.f32 %v2516, %v2338
      %v2565 = vadd.f32 %v2517, %v2341
      %v2566 = vadd.f32 %v2518, %v2346
      %v2567 = vadd.f32 %v2519, %v2349
      %v2568 = vadd.f32 %v2520, %v2354
      %v2569 = vadd.f32 %v2521, %v2357
      %v2570 = vadd.f32 %v2522, %v2362
      %v2571 = vadd.f32 %v2523, %v2365
      %v2572 = vadd.f32 %v2524, %v2370
      %v2573 = vadd.f32 %v2525, %v2373
      %v2574 = vadd.f32 %v2526, %v2378
      %v2575 = vadd.f32 %v2527, %v2381
      %v2576 = vadd.f32 %v2528, %v2386
      %v2577 = vadd.f32 %v2529, %v2389
      %v2578 = vadd.f32 %v2530, %v2394
      %v2579 = vadd.f32 %v2531, %v2397
      %v2580 = vadd.f32 %v2532, %v2402
      %v2581 = vadd.f32 %v2533, %v2405
      %v2582 = vadd.f32 %v2534, %v2410
      %v2583 = vadd.f32 %v2535, %v2413
      %v2584 = vadd.f32 %v2536, %v2418
      %v2585 = vadd.f32 %v2537, %v2421
      %v2586 = vadd.f32 %v2538, %v2426
      %v2587 = vadd.f32 %v2539, %v2429
      %v2588 = vadd.f32 %v2540, %v2434
      %v2589 = vadd.f32 %v2541, %v2437
      %v2590 = vadd.f32 %v2542, %v2442
      %v2591 = vadd.f32 %v2543, %v2445
      %v2592 = vadd.f32 %v2544, %v2450
      %v2593 = vadd.f32 %v2545, %v2453
      %v2594 = vadd.f32 %v2546, %v2458
      %v2595 = vadd.f32 %v2547, %v2461
      %v2596 = vadd.f32 %v2548, %v2466
      %v2597 = vadd.f32 %v2549, %v2469
      %v2598 = vadd.f32 %v2550, %v2474
      %v2599 = vadd.f32 %v2551, %v2477
      %v2600 = vadd.f32 %v2552, %v2482
      %v2601 = vadd.f32 %v2553, %v2485
      %v2602 = vadd.f32 %v2554, %v2490
      %v2603 = vadd.f32 %v2555, %v2493
      %v2604 = vadd.f32 %v2556, %v2498
      %v2605 = vadd.f32 %v2557, %v2501
      %v2606 = vadd.f32 %v2558, %v2506
      %v2607 = vadd.f32 %v2559, %v2509
      %2608 = vst [vmem:[%s289 + $0x30] sm:$0xff] %v2560
      %2609 = vst [vmem:[%s289 + $0x38] sm:$0xff] %v2561
      %2610 = vst [vmem:[%s289 + $0x40] sm:$0xff] %v2562
      %2611 = vst [vmem:[%s289 + $0x48] sm:$0xff] %v2563
      %2612 = vst [vmem:[%s289 + $0x50] sm:$0xff] %v2564
      %2613 = vst [vmem:[%s289 + $0x58] sm:$0xff] %v2565
      %2614 = vst [vmem:[%s289 + $0x60] sm:$0xff] %v2566
      %2615 = vst [vmem:[%s289 + $0x68] sm:$0xff] %v2567
      %2616 = vst [vmem:[%s289 + $0x70] sm:$0xff] %v2568
      %2617 = vst [vmem:[%s289 + $0x78] sm:$0xff] %v2569
      %2618 = vst [vmem:[%s289 + $0x80] sm:$0xff] %v2570
      %2619 = vst [vmem:[%s289 + $0x88] sm:$0xff] %v2571
      %2620 = vst [vmem:[%s289 + $0x90] sm:$0xff] %v2572
      %2621 = vst [vmem:[%s289 + $0x98] sm:$0xff] %v2573
      %2622 = vst [vmem:[%s289 + $0xa0] sm:$0xff] %v2574
      %2623 = vst [vmem:[%s289 + $0xa8] sm:$0xff] %v2575
      %2624 = vst [vmem:[%s289 + $0xb0] sm:$0xff] %v2576
      %2625 = vst [vmem:[%s289 + $0xb8] sm:$0xff] %v2577
      %2626 = vst [vmem:[%s289 + $0xc0] sm:$0xff] %v2578
      %2627 = vst [vmem:[%s289 + $0xc8] sm:$0xff] %v2579
      %2628 = vst [vmem:[%s289 + $0xd0] sm:$0xff] %v2580
      %2629 = vst [vmem:[%s289 + $0xd8] sm:$0xff] %v2581
      %2630 = vst [vmem:[%s289 + $0xe0] sm:$0xff] %v2582
      %2631 = vst [vmem:[%s289 + $0xe8] sm:$0xff] %v2583
      %2632 = vst [vmem:[%s289 + $0xf0] sm:$0xff] %v2584
      %2633 = vst [vmem:[%s289 + $0xf8] sm:$0xff] %v2585
      %2634 = vst [vmem:[%s289 + $0x100] sm:$0xff] %v2586
      %2635 = vst [vmem:[%s289 + $0x108] sm:$0xff] %v2587
      %2636 = vst [vmem:[%s289 + $0x110] sm:$0xff] %v2588
      %2637 = vst [vmem:[%s289 + $0x118] sm:$0xff] %v2589
      %2638 = vst [vmem:[%s289 + $0x120] sm:$0xff] %v2590
      %2639 = vst [vmem:[%s289 + $0x128] sm:$0xff] %v2591
      %2640 = vst [vmem:[%s289 + $0x130] sm:$0xff] %v2592
      %2641 = vst [vmem:[%s289 + $0x138] sm:$0xff] %v2593
      %2642 = vst [vmem:[%s289 + $0x140] sm:$0xff] %v2594
      %2643 = vst [vmem:[%s289 + $0x148] sm:$0xff] %v2595
      %2644 = vst [vmem:[%s289 + $0x150] sm:$0xff] %v2596
      %2645 = vst [vmem:[%s289 + $0x158] sm:$0xff] %v2597
      %2646 = vst [vmem:[%s289 + $0x160] sm:$0xff] %v2598
      %2647 = vst [vmem:[%s289 + $0x168] sm:$0xff] %v2599
      %2648 = vst [vmem:[%s289 + $0x170] sm:$0xff] %v2600
      %2649 = vst [vmem:[%s289 + $0x178] sm:$0xff] %v2601
      %2650 = vst [vmem:[%s289 + $0x180] sm:$0xff] %v2602
      %2651 = vst [vmem:[%s289 + $0x188] sm:$0xff] %v2603
      %2652 = vst [vmem:[%s289 + $0x190] sm:$0xff] %v2604
      %2653 = vst [vmem:[%s289 + $0x198] sm:$0xff] %v2605
      %2654 = vst [vmem:[%s289 + $0x1a0] sm:$0xff] %v2606
      %2655 = vst [vmem:[%s289 + $0x1a8] sm:$0xff] %v2607
      %v2656 = vld [vmem:[#allocation2 + $0x48] sm:$0xff]
      %v2657 = vld [vmem:[#allocation2 + $0x50] sm:$0xff]
      %v2658 = vld [vmem:[#allocation2 + $0x58] sm:$0xff]
      %v2659 = vld [vmem:[#allocation2 + $0x60] sm:$0xff]
      %v2660 = vld [vmem:[#allocation2 + $0x68] sm:$0xff]
      %v2661 = vld [vmem:[#allocation2 + $0x70] sm:$0xff]
      %v2662 = vld [vmem:[#allocation2 + $0x78] sm:$0xff]
      %v2663 = vld [vmem:[#allocation2 + $0x80] sm:$0xff]
      %v2664 = vld [vmem:[#allocation2 + $0x88] sm:$0xff]
      %v2665 = vld [vmem:[#allocation2 + $0x90] sm:$0xff]
      %v2666 = vld [vmem:[#allocation2 + $0x98] sm:$0xff]
      %v2667 = vld [vmem:[#allocation2 + $0xa0] sm:$0xff]
      %v2668 = vld [vmem:[#allocation2 + $0xa8] sm:$0xff]
      %v2669 = vld [vmem:[#allocation2 + $0xb0] sm:$0xff]
      %v2670 = vld [vmem:[#allocation2 + $0xb8] sm:$0xff]
      %v2671 = vld [vmem:[#allocation2 + $0xc0] sm:$0xff]
      %v2672 = vld [vmem:[#allocation2 + $0xc8] sm:$0xff]
      %v2673 = vld [vmem:[#allocation2 + $0xd0] sm:$0xff]
      %v2674 = vld [vmem:[#allocation2 + $0xd8] sm:$0xff]
      %v2675 = vld [vmem:[#allocation2 + $0xe0] sm:$0xff]
      %v2676 = vld [vmem:[#allocation2 + $0xe8] sm:$0xff]
      %v2677 = vld [vmem:[#allocation2 + $0xf0] sm:$0xff]
      %v2678 = vld [vmem:[#allocation2 + $0xf8] sm:$0xff]
      %v2679 = vld [vmem:[#allocation2 + $0x100] sm:$0xff]
      %v2680 = vld [vmem:[#allocation2 + $0x108] sm:$0xff]
      %v2681 = vld [vmem:[#allocation2 + $0x110] sm:$0xff]
      %v2682 = vld [vmem:[#allocation2 + $0x118] sm:$0xff]
      %v2683 = vld [vmem:[#allocation2 + $0x120] sm:$0xff]
      %v2684 = vld [vmem:[#allocation2 + $0x128] sm:$0xff]
      %v2685 = vld [vmem:[#allocation2 + $0x130] sm:$0xff]
      %v2686 = vld [vmem:[#allocation2 + $0x138] sm:$0xff]
      %v2687 = vld [vmem:[#allocation2 + $0x140] sm:$0xff]
      %v2688 = vld [vmem:[#allocation2 + $0x148] sm:$0xff]
      %v2689 = vld [vmem:[#allocation2 + $0x150] sm:$0xff]
      %v2690 = vld [vmem:[#allocation2 + $0x158] sm:$0xff]
      %v2691 = vld [vmem:[#allocation2 + $0x160] sm:$0xff]
      %v2692 = vld [vmem:[#allocation2 + $0x168] sm:$0xff]
      %v2693 = vld [vmem:[#allocation2 + $0x170] sm:$0xff]
      %v2694 = vld [vmem:[#allocation2 + $0x178] sm:$0xff]
      %v2695 = vld [vmem:[#allocation2 + $0x180] sm:$0xff]
      %v2696 = vld [vmem:[#allocation2 + $0x188] sm:$0xff]
      %v2697 = vld [vmem:[#allocation2 + $0x190] sm:$0xff]
      %v2698 = vld [vmem:[#allocation2 + $0x198] sm:$0xff]
      %v2699 = vld [vmem:[#allocation2 + $0x1a0] sm:$0xff]
      %v2700 = vld [vmem:[#allocation2 + $0x1a8] sm:$0xff]
      %v2701 = vld [vmem:[#allocation2 + $0x1b0] sm:$0xff]
      %v2702 = vld [vmem:[#allocation2 + $0x1b8] sm:$0xff]
      %v2703 = vld [vmem:[#allocation2 + $0x1c0] sm:$0xff]
      %v2704 = vld [vmem:[#allocation2 + $0x1c8] sm:$0xff]
      %v2705 = vld [vmem:[#allocation2 + $0x1d0] sm:$0xff]
      %v2706 = vld [vmem:[#allocation2 + $0x1d8] sm:$0xff]
      %v2707 = vld [vmem:[#allocation2 + $0x1e0] sm:$0xff]
      %v2708 = vld [vmem:[#allocation2 + $0x1e8] sm:$0xff]
      %v2709 = vld [vmem:[#allocation2 + $0x1f0] sm:$0xff]
      %v2710 = vld [vmem:[#allocation2 + $0x1f8] sm:$0xff]
      %v2711 = vld [vmem:[#allocation2 + $0x200] sm:$0xff]
      %v2712 = vld [vmem:[#allocation2 + $0x208] sm:$0xff]
      %v2713 = vld [vmem:[#allocation2 + $0x210] sm:$0xff]
      %v2714 = vld [vmem:[#allocation2 + $0x218] sm:$0xff]
      %v2715 = vld [vmem:[#allocation2 + $0x220] sm:$0xff]
      %v2716 = vld [vmem:[#allocation2 + $0x228] sm:$0xff]
      %v2717 = vld [vmem:[#allocation2 + $0x230] sm:$0xff]
      %v2718 = vld [vmem:[#allocation2 + $0x238] sm:$0xff]
      %v2719 = vld [vmem:[#allocation2 + $0x240] sm:$0xff]
      %v2720 = vld [vmem:[#allocation2 + $0x248] sm:$0xff]
      %v2721 = vld [vmem:[#allocation2 + $0x250] sm:$0xff]
      %v2722 = vld [vmem:[#allocation2 + $0x258] sm:$0xff]
      %v2723 = vld [vmem:[#allocation2 + $0x260] sm:$0xff]
      %v2724 = vld [vmem:[#allocation2 + $0x268] sm:$0xff]
      %v2725 = vld [vmem:[#allocation2 + $0x270] sm:$0xff]
      %v2726 = vld [vmem:[#allocation2 + $0x278] sm:$0xff]
      %v2727 = vld [vmem:[#allocation2 + $0x280] sm:$0xff]
      %s2728 = scalar_lea.vmem %s4, 384
      %v2729 = vld [vmem:[%s2728] sm:$0xf]
      %v2730 = vld [vmem:[%s2728 + $0x4] sm:$0xf]
      %v2731 = vld [vmem:[%s2728 + $0x8] sm:$0xf]
      %v2732 = vld [vmem:[%s2728 + $0xc] sm:$0xf]
      %v2733 = vld [vmem:[%s2728 + $0x10] sm:$0xf]
      %v2734 = vld [vmem:[%s2728 + $0x14] sm:$0xf]
      %v2735 = vld [vmem:[%s2728 + $0x18] sm:$0xf]
      %v2736 = vld [vmem:[%s2728 + $0x1c] sm:$0xf]
      %v2737 = vld [vmem:[%s2728 + $0x20] sm:$0xf]
      %v2738 = vld [vmem:[%s2728 + $0x24] sm:$0xf]
      %v2739 = vld [vmem:[%s2728 + $0x28] sm:$0xf]
      %v2740 = vld [vmem:[%s2728 + $0x2c] sm:$0xf]
      %v2741 = vld [vmem:[%s2728 + $0x30] sm:$0xf]
      %v2742 = vld [vmem:[%s2728 + $0x34] sm:$0xf]
      %v2743 = vld [vmem:[%s2728 + $0x38] sm:$0xf]
      %v2744 = vld [vmem:[%s2728 + $0x3c] sm:$0xf]
      %v2745 = vld [vmem:[%s2728 + $0x40] sm:$0xf]
      %v2746 = vld [vmem:[%s2728 + $0x44] sm:$0xf]
      %v2747 = vld [vmem:[%s2728 + $0x48] sm:$0xf]
      %v2748 = vld [vmem:[%s2728 + $0x4c] sm:$0xf]
      %v2749 = vld [vmem:[%s2728 + $0x50] sm:$0xf]
      %v2750 = vld [vmem:[%s2728 + $0x54] sm:$0xf]
      %v2751 = vld [vmem:[%s2728 + $0x58] sm:$0xf]
      %v2752 = vld [vmem:[%s2728 + $0x5c] sm:$0xf]
      %v2753 = vld [vmem:[%s2728 + $0x60] sm:$0xf]
      %v2754 = vld [vmem:[%s2728 + $0x64] sm:$0xf]
      %v2755 = vld [vmem:[%s2728 + $0x68] sm:$0xf]
      %v2756 = vld [vmem:[%s2728 + $0x6c] sm:$0xf]
      %v2757 = vld [vmem:[%s2728 + $0x70] sm:$0xf]
      %v2758 = vld [vmem:[%s2728 + $0x74] sm:$0xf]
      %v2759 = vld [vmem:[%s2728 + $0x78] sm:$0xf]
      %v2760 = vld [vmem:[%s2728 + $0x7c] sm:$0xf]
      %v2761 = vld [vmem:[%s2728 + $0x80] sm:$0xf]
      %v2762 = vld [vmem:[%s2728 + $0x84] sm:$0xf]
      %v2763 = vld [vmem:[%s2728 + $0x88] sm:$0xf]
      %v2764 = vld [vmem:[%s2728 + $0x8c] sm:$0xf]
      %v2765 = vld [vmem:[%s2728 + $0x90] sm:$0xf]
      %v2766 = vld [vmem:[%s2728 + $0x94] sm:$0xf]
      %v2767 = vld [vmem:[%s2728 + $0x98] sm:$0xf]
      %v2768 = vld [vmem:[%s2728 + $0x9c] sm:$0xf]
      %v2769 = vld [vmem:[%s2728 + $0xa0] sm:$0xf]
      %v2770 = vld [vmem:[%s2728 + $0xa4] sm:$0xf]
      %v2771 = vld [vmem:[%s2728 + $0xa8] sm:$0xf]
      %v2772 = vld [vmem:[%s2728 + $0xac] sm:$0xf]
      %v2773 = vld [vmem:[%s2728 + $0xb0] sm:$0xf]
      %v2774 = vld [vmem:[%s2728 + $0xb4] sm:$0xf]
      %v2775 = vld [vmem:[%s2728 + $0xb8] sm:$0xf]
      %v2776 = vld [vmem:[%s2728 + $0xbc] sm:$0xf]
      %v2825 = vunpack.c.l.b16 %v2729
      %v2826 = vunpack.c.l.b16 %v2730
      %v2827 = vunpack.c.l.b16 %v2731
      %v2828 = vunpack.c.l.b16 %v2732
      %v2829 = vunpack.c.l.b16 %v2733
      %v2830 = vunpack.c.l.b16 %v2734
      %v2831 = vunpack.c.l.b16 %v2735
      %v2832 = vunpack.c.l.b16 %v2736
      %v2833 = vunpack.c.l.b16 %v2737
      %v2834 = vunpack.c.l.b16 %v2738
      %v2835 = vunpack.c.l.b16 %v2739
      %v2836 = vunpack.c.l.b16 %v2740
      %v2837 = vunpack.c.l.b16 %v2741
      %v2838 = vunpack.c.l.b16 %v2742
      %v2839 = vunpack.c.l.b16 %v2743
      %v2840 = vunpack.c.l.b16 %v2744
      %v2841 = vunpack.c.l.b16 %v2745
      %v2842 = vunpack.c.l.b16 %v2746
      %v2843 = vunpack.c.l.b16 %v2747
      %v2844 = vunpack.c.l.b16 %v2748
      %v2845 = vunpack.c.l.b16 %v2749
      %v2846 = vunpack.c.l.b16 %v2750
      %v2847 = vunpack.c.l.b16 %v2751
      %v2848 = vunpack.c.l.b16 %v2752
      %v2849 = vunpack.c.l.b16 %v2753
      %v2850 = vunpack.c.l.b16 %v2754
      %v2851 = vunpack.c.l.b16 %v2755
      %v2852 = vunpack.c.l.b16 %v2756
      %v2853 = vunpack.c.l.b16 %v2757
      %v2854 = vunpack.c.l.b16 %v2758
      %v2855 = vunpack.c.l.b16 %v2759
      %v2856 = vunpack.c.l.b16 %v2760
      %v2857 = vunpack.c.l.b16 %v2761
      %v2858 = vunpack.c.l.b16 %v2762
      %v2859 = vunpack.c.l.b16 %v2763
      %v2860 = vunpack.c.l.b16 %v2764
      %v2861 = vunpack.c.l.b16 %v2765
      %v2862 = vunpack.c.l.b16 %v2766
      %v2863 = vunpack.c.l.b16 %v2767
      %v2864 = vunpack.c.l.b16 %v2768
      %v2865 = vunpack.c.l.b16 %v2769
      %v2866 = vunpack.c.l.b16 %v2770
      %v2867 = vunpack.c.l.b16 %v2771
      %v2868 = vunpack.c.l.b16 %v2772
      %v2869 = vunpack.c.l.b16 %v2773
      %v2870 = vunpack.c.l.b16 %v2774
      %v2871 = vunpack.c.l.b16 %v2775
      %v2872 = vunpack.c.l.b16 %v2776
      %v2873 = vpack.c.b16 %v2826, %v2825
      %v2874 = vpack.c.b16 %v2828, %v2827
      %v2875 = vpack.c.b16 %v2830, %v2829
      %v2876 = vpack.c.b16 %v2832, %v2831
      %v2877 = vpack.c.b16 %v2834, %v2833
      %v2878 = vpack.c.b16 %v2836, %v2835
      %v2879 = vpack.c.b16 %v2838, %v2837
      %v2880 = vpack.c.b16 %v2840, %v2839
      %v2881 = vpack.c.b16 %v2842, %v2841
      %v2882 = vpack.c.b16 %v2844, %v2843
      %v2883 = vpack.c.b16 %v2846, %v2845
      %v2884 = vpack.c.b16 %v2848, %v2847
      %v2885 = vpack.c.b16 %v2850, %v2849
      %v2886 = vpack.c.b16 %v2852, %v2851
      %v2887 = vpack.c.b16 %v2854, %v2853
      %v2888 = vpack.c.b16 %v2856, %v2855
      %v2889 = vpack.c.b16 %v2858, %v2857
      %v2890 = vpack.c.b16 %v2860, %v2859
      %v2891 = vpack.c.b16 %v2862, %v2861
      %v2892 = vpack.c.b16 %v2864, %v2863
      %v2893 = vpack.c.b16 %v2866, %v2865
      %v2894 = vpack.c.b16 %v2868, %v2867
      %v2895 = vpack.c.b16 %v2870, %v2869
      %v2896 = vpack.c.b16 %v2872, %v2871
      %2921 = vmatprep.subr.bf16.mxu0 0
      %2922 = vmatpush1.bf16.msra.mxu0 %v2873
      %2923 = vmatprep.subr.bf16.mxu0 0
      %2924 = vmatpush1.bf16.msra.mxu0 %v2874
      %2925 = vmatprep.subr.bf16.mxu0 0
      %2926 = vmatpush1.bf16.msra.mxu0 %v2875
      %2927 = vmatprep.subr.bf16.mxu0 0
      %2928 = vmatpush1.bf16.msra.mxu0 %v2876
      %2929 = vmatprep.subr.bf16.mxu0 0
      %2930 = vmatpush1.bf16.msra.mxu0 %v2877
      %2931 = vmatprep.subr.bf16.mxu0 0
      %2932 = vmatpush1.bf16.msra.mxu0 %v2878
      %2933 = vmatprep.subr.bf16.mxu0 0
      %2934 = vmatpush1.bf16.msra.mxu0 %v2879
      %2935 = vmatprep.subr.bf16.mxu0 0
      %2936 = vmatpush1.bf16.msra.mxu0 %v2880
      %2937 = vmatprep.subr.bf16.mxu0 0
      %2938 = vmatpush1.bf16.msra.mxu0 %v2881
      %2939 = vmatprep.subr.bf16.mxu0 0
      %2940 = vmatpush1.bf16.msra.mxu0 %v2882
      %2941 = vmatprep.subr.bf16.mxu0 0
      %2942 = vmatpush1.bf16.msra.mxu0 %v2883
      %2943 = vmatprep.subr.bf16.mxu0 0
      %2944 = vmatpush1.bf16.msra.mxu0 %v2884
      %2945 = vmatprep.subr.bf16.mxu0 0
      %2946 = vmatpush1.bf16.msra.mxu0 %v2885
      %2947 = vmatprep.subr.bf16.mxu0 0
      %2948 = vmatpush1.bf16.msra.mxu0 %v2886
      %2949 = vmatprep.subr.bf16.mxu0 0
      %2950 = vmatpush1.bf16.msra.mxu0 %v2887
      %2951 = vmatprep.subr.bf16.mxu0 0
      %2952 = vmatpush1.bf16.msra.mxu0 %v2888
      %2953 = vmatprep.mubr.bf16.mxu0 %v2657
      %2954 = vmatmul.mubr.bf16.gmra.mrb[0].mxu0 %v2656
      %v2955 = vpop.f32.mrb[0].mxu0
      %v2956 = vadd.f32 0.0, %v2955
      %v2957 = vpop.f32.mrb[0].mxu0
      %v2958 = vpop.f32.mrb[0].mxu0
      %v2959 = vadd.f32 0.0, %v2958
      %v2960 = vpop.f32.mrb[0].mxu0
      %2961 = vmatprep.mubr.bf16.mxu0 %v2660
      %2962 = vmatmul.mubr.bf16.gmra.mrb[0].mxu0 %v2659
      %v2963 = vpop.f32.mrb[0].mxu0
      %v2964 = vadd.f32 0.0, %v2963
      %v2965 = vpop.f32.mrb[0].mxu0
      %v2966 = vpop.f32.mrb[0].mxu0
      %v2967 = vadd.f32 0.0, %v2966
      %v2968 = vpop.f32.mrb[0].mxu0
      %2969 = vmatprep.mubr.bf16.mxu0 %v2663
      %2970 = vmatmul.mubr.bf16.gmra.mrb[0].mxu0 %v2662
      %v2971 = vpop.f32.mrb[0].mxu0
      %v2972 = vadd.f32 0.0, %v2971
      %v2973 = vpop.f32.mrb[0].mxu0
      %v2974 = vpop.f32.mrb[0].mxu0
      %v2975 = vadd.f32 0.0, %v2974
      %v2976 = vpop.f32.mrb[0].mxu0
      %2977 = vmatprep.mubr.bf16.mxu0 %v2666
      %2978 = vmatmul.mubr.bf16.gmra.mrb[0].mxu0 %v2665
      %v2979 = vpop.f32.mrb[0].mxu0
      %v2980 = vadd.f32 0.0, %v2979
      %v2981 = vpop.f32.mrb[0].mxu0
      %v2982 = vpop.f32.mrb[0].mxu0
      %v2983 = vadd.f32 0.0, %v2982
      %v2984 = vpop.f32.mrb[0].mxu0
      %2985 = vmatprep.mubr.bf16.mxu0 %v2669
      %2986 = vmatmul.mubr.bf16.gmra.mrb[0].mxu0 %v2668
      %v2987 = vpop.f32.mrb[0].mxu0
      %v2988 = vadd.f32 0.0, %v2987
      %v2989 = vpop.f32.mrb[0].mxu0
      %v2990 = vpop.f32.mrb[0].mxu0
      %v2991 = vadd.f32 0.0, %v2990
      %v2992 = vpop.f32.mrb[0].mxu0
      %2993 = vmatprep.mubr.bf16.mxu0 %v2672
      %2994 = vmatmul.mubr.bf16.gmra.mrb[0].mxu0 %v2671
      %v2995 = vpop.f32.mrb[0].mxu0
      %v2996 = vadd.f32 0.0, %v2995
      %v2997 = vpop.f32.mrb[0].mxu0
      %v2998 = vpop.f32.mrb[0].mxu0
      %v2999 = vadd.f32 0.0, %v2998
      %v3000 = vpop.f32.mrb[0].mxu0
      %3001 = vmatprep.mubr.bf16.mxu0 %v2675
      %3002 = vmatmul.mubr.bf16.gmra.mrb[0].mxu0 %v2674
      %v3003 = vpop.f32.mrb[0].mxu0
      %v3004 = vadd.f32 0.0, %v3003
      %v3005 = vpop.f32.mrb[0].mxu0
      %v3006 = vpop.f32.mrb[0].mxu0
      %v3007 = vadd.f32 0.0, %v3006
      %v3008 = vpop.f32.mrb[0].mxu0
      %3009 = vmatprep.mubr.bf16.mxu0 %v2678
      %3010 = vmatmul.mubr.bf16.gmra.mrb[0].mxu0 %v2677
      %v3011 = vpop.f32.mrb[0].mxu0
      %v3012 = vadd.f32 0.0, %v3011
      %v3013 = vpop.f32.mrb[0].mxu0
      %v3014 = vpop.f32.mrb[0].mxu0
      %v3015 = vadd.f32 0.0, %v3014
      %v3016 = vpop.f32.mrb[0].mxu0
      %3017 = vmatprep.mubr.bf16.mxu0 %v2681
      %3018 = vmatmul.mubr.bf16.gmra.mrb[0].mxu0 %v2680
      %v3019 = vpop.f32.mrb[0].mxu0
      %v3020 = vadd.f32 0.0, %v3019
      %v3021 = vpop.f32.mrb[0].mxu0
      %v3022 = vpop.f32.mrb[0].mxu0
      %v3023 = vadd.f32 0.0, %v3022
      %v3024 = vpop.f32.mrb[0].mxu0
      %3025 = vmatprep.mubr.bf16.mxu0 %v2684
      %3026 = vmatmul.mubr.bf16.gmra.mrb[0].mxu0 %v2683
      %v3027 = vpop.f32.mrb[0].mxu0
      %v3028 = vadd.f32 0.0, %v3027
      %v3029 = vpop.f32.mrb[0].mxu0
      %v3030 = vpop.f32.mrb[0].mxu0
      %v3031 = vadd.f32 0.0, %v3030
      %v3032 = vpop.f32.mrb[0].mxu0
      %3033 = vmatprep.mubr.bf16.mxu0 %v2687
      %3034 = vmatmul.mubr.bf16.gmra.mrb[0].mxu0 %v2686
      %v3035 = vpop.f32.mrb[0].mxu0
      %v3036 = vadd.f32 0.0, %v3035
      %v3037 = vpop.f32.mrb[0].mxu0
      %v3038 = vpop.f32.mrb[0].mxu0
      %v3039 = vadd.f32 0.0, %v3038
      %v3040 = vpop.f32.mrb[0].mxu0
      %3041 = vmatprep.mubr.bf16.mxu0 %v2690
      %3042 = vmatmul.mubr.bf16.gmra.mrb[0].mxu0 %v2689
      %v3043 = vpop.f32.mrb[0].mxu0
      %v3044 = vadd.f32 0.0, %v3043
      %v3045 = vpop.f32.mrb[0].mxu0
      %v3046 = vpop.f32.mrb[0].mxu0
      %v3047 = vadd.f32 0.0, %v3046
      %v3048 = vpop.f32.mrb[0].mxu0
      %3049 = vmatprep.mubr.bf16.mxu0 %v2693
      %3050 = vmatmul.mubr.bf16.gmra.mrb[0].mxu0 %v2692
      %v3051 = vpop.f32.mrb[0].mxu0
      %v3052 = vadd.f32 0.0, %v3051
      %v3053 = vpop.f32.mrb[0].mxu0
      %v3054 = vpop.f32.mrb[0].mxu0
      %v3055 = vadd.f32 0.0, %v3054
      %v3056 = vpop.f32.mrb[0].mxu0
      %3057 = vmatprep.mubr.bf16.mxu0 %v2696
      %3058 = vmatmul.mubr.bf16.gmra.mrb[0].mxu0 %v2695
      %v3059 = vpop.f32.mrb[0].mxu0
      %v3060 = vadd.f32 0.0, %v3059
      %v3061 = vpop.f32.mrb[0].mxu0
      %v3062 = vpop.f32.mrb[0].mxu0
      %v3063 = vadd.f32 0.0, %v3062
      %v3064 = vpop.f32.mrb[0].mxu0
      %3065 = vmatprep.mubr.bf16.mxu0 %v2699
      %3066 = vmatmul.mubr.bf16.gmra.mrb[0].mxu0 %v2698
      %v3067 = vpop.f32.mrb[0].mxu0
      %v3068 = vadd.f32 0.0, %v3067
      %v3069 = vpop.f32.mrb[0].mxu0
      %v3070 = vpop.f32.mrb[0].mxu0
      %v3071 = vadd.f32 0.0, %v3070
      %v3072 = vpop.f32.mrb[0].mxu0
      %3073 = vmatprep.mubr.bf16.mxu0 %v2702
      %3074 = vmatmul.mubr.bf16.gmra.mrb[0].mxu0 %v2701
      %v3075 = vpop.f32.mrb[0].mxu0
      %v3076 = vadd.f32 0.0, %v3075
      %v3077 = vpop.f32.mrb[0].mxu0
      %v3078 = vpop.f32.mrb[0].mxu0
      %v3079 = vadd.f32 0.0, %v3078
      %v3080 = vpop.f32.mrb[0].mxu0
      %3081 = vmatprep.mubr.bf16.mxu0 %v2705
      %3082 = vmatmul.mubr.bf16.gmra.mrb[0].mxu0 %v2704
      %v3083 = vpop.f32.mrb[0].mxu0
      %v3084 = vadd.f32 0.0, %v3083
      %v3085 = vpop.f32.mrb[0].mxu0
      %v3086 = vpop.f32.mrb[0].mxu0
      %v3087 = vadd.f32 0.0, %v3086
      %v3088 = vpop.f32.mrb[0].mxu0
      %3089 = vmatprep.mubr.bf16.mxu0 %v2708
      %3090 = vmatmul.mubr.bf16.gmra.mrb[0].mxu0 %v2707
      %v3091 = vpop.f32.mrb[0].mxu0
      %v3092 = vadd.f32 0.0, %v3091
      %v3093 = vpop.f32.mrb[0].mxu0
      %v3094 = vpop.f32.mrb[0].mxu0
      %v3095 = vadd.f32 0.0, %v3094
      %v3096 = vpop.f32.mrb[0].mxu0
      %3097 = vmatprep.mubr.bf16.mxu0 %v2711
      %3098 = vmatmul.mubr.bf16.gmra.mrb[0].mxu0 %v2710
      %v3099 = vpop.f32.mrb[0].mxu0
      %v3100 = vadd.f32 0.0, %v3099
      %v3101 = vpop.f32.mrb[0].mxu0
      %v3102 = vpop.f32.mrb[0].mxu0
      %v3103 = vadd.f32 0.0, %v3102
      %v3104 = vpop.f32.mrb[0].mxu0
      %3105 = vmatprep.mubr.bf16.mxu0 %v2714
      %3106 = vmatmul.mubr.bf16.gmra.mrb[0].mxu0 %v2713
      %v3107 = vpop.f32.mrb[0].mxu0
      %v3108 = vadd.f32 0.0, %v3107
      %v3109 = vpop.f32.mrb[0].mxu0
      %v3110 = vpop.f32.mrb[0].mxu0
      %v3111 = vadd.f32 0.0, %v3110
      %v3112 = vpop.f32.mrb[0].mxu0
      %3113 = vmatprep.mubr.bf16.mxu0 %v2717
      %3114 = vmatmul.mubr.bf16.gmra.mrb[0].mxu0 %v2716
      %v3115 = vpop.f32.mrb[0].mxu0
      %v3116 = vadd.f32 0.0, %v3115
      %v3117 = vpop.f32.mrb[0].mxu0
      %v3118 = vpop.f32.mrb[0].mxu0
      %v3119 = vadd.f32 0.0, %v3118
      %v3120 = vpop.f32.mrb[0].mxu0
      %3121 = vmatprep.mubr.bf16.mxu0 %v2720
      %3122 = vmatmul.mubr.bf16.gmra.mrb[0].mxu0 %v2719
      %v3123 = vpop.f32.mrb[0].mxu0
      %v3124 = vadd.f32 0.0, %v3123
      %v3125 = vpop.f32.mrb[0].mxu0
      %v3126 = vpop.f32.mrb[0].mxu0
      %v3127 = vadd.f32 0.0, %v3126
      %v3128 = vpop.f32.mrb[0].mxu0
      %3129 = vmatprep.mubr.bf16.mxu0 %v2723
      %3130 = vmatmul.mubr.bf16.gmra.mrb[0].mxu0 %v2722
      %v3131 = vpop.f32.mrb[0].mxu0
      %v3132 = vadd.f32 0.0, %v3131
      %v3133 = vpop.f32.mrb[0].mxu0
      %v3134 = vpop.f32.mrb[0].mxu0
      %v3135 = vadd.f32 0.0, %v3134
      %v3136 = vpop.f32.mrb[0].mxu0
      %3137 = vmatprep.mubr.bf16.mxu0 %v2726
      %3138 = vmatmul.mubr.bf16.gmra.mrb[0].mxu0 %v2725
      %v3139 = vpop.f32.mrb[0].mxu0
      %v3140 = vadd.f32 0.0, %v3139
      %v3141 = vpop.f32.mrb[0].mxu0
      %v3142 = vpop.f32.mrb[0].mxu0
      %v3143 = vadd.f32 0.0, %v3142
      %v3144 = vpop.f32.mrb[0].mxu0
      %3145 = vdwg.mxu0
      %3146 = vmatprep.subr.bf16.mxu0 0
      %3147 = vmatpush1.bf16.msra.mxu0 %v2889
      %3148 = vmatprep.subr.bf16.mxu0 0
      %3149 = vmatpush1.bf16.msra.mxu0 %v2890
      %3150 = vmatprep.subr.bf16.mxu0 0
      %3151 = vmatpush1.bf16.msra.mxu0 %v2891
      %3152 = vmatprep.subr.bf16.mxu0 0
      %3153 = vmatpush1.bf16.msra.mxu0 %v2892
      %3154 = vmatprep.subr.bf16.mxu0 0
      %3155 = vmatpush1.bf16.msra.mxu0 %v2893
      %3156 = vmatprep.subr.bf16.mxu0 0
      %3157 = vmatpush1.bf16.msra.mxu0 %v2894
      %3158 = vmatprep.subr.bf16.mxu0 0
      %3159 = vmatpush1.bf16.msra.mxu0 %v2895
      %3160 = vmatprep.subr.bf16.mxu0 0
      %3161 = vmatpush1.bf16.msra.mxu0 %v2896
      %3162 = vmatprep.subr.bf16.mxu0 0
      %3163 = vmatpush1.bf16.msra.mxu0 0
      %3164 = vmatprep.subr.bf16.mxu0 0
      %3165 = vmatpush1.bf16.msra.mxu0 0
      %3166 = vmatprep.subr.bf16.mxu0 0
      %3167 = vmatpush1.bf16.msra.mxu0 0
      %3168 = vmatprep.subr.bf16.mxu0 0
      %3169 = vmatpush1.bf16.msra.mxu0 0
      %3170 = vmatprep.subr.bf16.mxu0 0
      %3171 = vmatpush1.bf16.msra.mxu0 0
      %3172 = vmatprep.subr.bf16.mxu0 0
      %3173 = vmatpush1.bf16.msra.mxu0 0
      %3174 = vmatprep.subr.bf16.mxu0 0
      %3175 = vmatpush1.bf16.msra.mxu0 0
      %3176 = vmatprep.subr.bf16.mxu0 0
      %3177 = vmatpush1.bf16.msra.mxu0 0
      %3178 = vmatprep.mubr.bf16.mxu0 0
      %3179 = vmatmul.mubr.bf16.gmra.mrb[0].mxu0 %v2658
      %v3180 = vpop.f32.mrb[0].mxu0
      %v3181 = vadd.f32 %v2956, %v3180
      %v3182 = vpop.f32.mrb[0].mxu0
      %v3183 = vpop.f32.mrb[0].mxu0
      %v3184 = vadd.f32 %v2959, %v3183
      %v3185 = vpop.f32.mrb[0].mxu0
      %3186 = vmatprep.mubr.bf16.mxu0 0
      %3187 = vmatmul.mubr.bf16.gmra.mrb[0].mxu0 %v2661
      %v3188 = vpop.f32.mrb[0].mxu0
      %v3189 = vadd.f32 %v2964, %v3188
      %v3190 = vpop.f32.mrb[0].mxu0
      %v3191 = vpop.f32.mrb[0].mxu0
      %v3192 = vadd.f32 %v2967, %v3191
      %v3193 = vpop.f32.mrb[0].mxu0
      %3194 = vmatprep.mubr.bf16.mxu0 0
      %3195 = vmatmul.mubr.bf16.gmra.mrb[0].mxu0 %v2664
      %v3196 = vpop.f32.mrb[0].mxu0
      %v3197 = vadd.f32 %v2972, %v3196
      %v3198 = vpop.f32.mrb[0].mxu0
      %v3199 = vpop.f32.mrb[0].mxu0
      %v3200 = vadd.f32 %v2975, %v3199
      %v3201 = vpop.f32.mrb[0].mxu0
      %3202 = vmatprep.mubr.bf16.mxu0 0
      %3203 = vmatmul.mubr.bf16.gmra.mrb[0].mxu0 %v2667
      %v3204 = vpop.f32.mrb[0].mxu0
      %v3205 = vadd.f32 %v2980, %v3204
      %v3206 = vpop.f32.mrb[0].mxu0
      %v3207 = vpop.f32.mrb[0].mxu0
      %v3208 = vadd.f32 %v2983, %v3207
      %v3209 = vpop.f32.mrb[0].mxu0
      %3210 = vmatprep.mubr.bf16.mxu0 0
      %3211 = vmatmul.mubr.bf16.gmra.mrb[0].mxu0 %v2670
      %v3212 = vpop.f32.mrb[0].mxu0
      %v3213 = vadd.f32 %v2988, %v3212
      %v3214 = vpop.f32.mrb[0].mxu0
      %v3215 = vpop.f32.mrb[0].mxu0
      %v3216 = vadd.f32 %v2991, %v3215
      %v3217 = vpop.f32.mrb[0].mxu0
      %3218 = vmatprep.mubr.bf16.mxu0 0
      %3219 = vmatmul.mubr.bf16.gmra.mrb[0].mxu0 %v2673
      %v3220 = vpop.f32.mrb[0].mxu0
      %v3221 = vadd.f32 %v2996, %v3220
      %v3222 = vpop.f32.mrb[0].mxu0
      %v3223 = vpop.f32.mrb[0].mxu0
      %v3224 = vadd.f32 %v2999, %v3223
      %v3225 = vpop.f32.mrb[0].mxu0
      %3226 = vmatprep.mubr.bf16.mxu0 0
      %3227 = vmatmul.mubr.bf16.gmra.mrb[0].mxu0 %v2676
      %v3228 = vpop.f32.mrb[0].mxu0
      %v3229 = vadd.f32 %v3004, %v3228
      %v3230 = vpop.f32.mrb[0].mxu0
      %v3231 = vpop.f32.mrb[0].mxu0
      %v3232 = vadd.f32 %v3007, %v3231
      %v3233 = vpop.f32.mrb[0].mxu0
      %3234 = vmatprep.mubr.bf16.mxu0 0
      %3235 = vmatmul.mubr.bf16.gmra.mrb[0].mxu0 %v2679
      %v3236 = vpop.f32.mrb[0].mxu0
      %v3237 = vadd.f32 %v3012, %v3236
      %v3238 = vpop.f32.mrb[0].mxu0
      %v3239 = vpop.f32.mrb[0].mxu0
      %v3240 = vadd.f32 %v3015, %v3239
      %v3241 = vpop.f32.mrb[0].mxu0
      %3242 = vmatprep.mubr.bf16.mxu0 0
      %3243 = vmatmul.mubr.bf16.gmra.mrb[0].mxu0 %v2682
      %v3244 = vpop.f32.mrb[0].mxu0
      %v3245 = vadd.f32 %v3020, %v3244
      %v3246 = vpop.f32.mrb[0].mxu0
      %v3247 = vpop.f32.mrb[0].mxu0
      %v3248 = vadd.f32 %v3023, %v3247
      %v3249 = vpop.f32.mrb[0].mxu0
      %3250 = vmatprep.mubr.bf16.mxu0 0
      %3251 = vmatmul.mubr.bf16.gmra.mrb[0].mxu0 %v2685
      %v3252 = vpop.f32.mrb[0].mxu0
      %v3253 = vadd.f32 %v3028, %v3252
      %v3254 = vpop.f32.mrb[0].mxu0
      %v3255 = vpop.f32.mrb[0].mxu0
      %v3256 = vadd.f32 %v3031, %v3255
      %v3257 = vpop.f32.mrb[0].mxu0
      %3258 = vmatprep.mubr.bf16.mxu0 0
      %3259 = vmatmul.mubr.bf16.gmra.mrb[0].mxu0 %v2688
      %v3260 = vpop.f32.mrb[0].mxu0
      %v3261 = vadd.f32 %v3036, %v3260
      %v3262 = vpop.f32.mrb[0].mxu0
      %v3263 = vpop.f32.mrb[0].mxu0
      %v3264 = vadd.f32 %v3039, %v3263
      %v3265 = vpop.f32.mrb[0].mxu0
      %3266 = vmatprep.mubr.bf16.mxu0 0
      %3267 = vmatmul.mubr.bf16.gmra.mrb[0].mxu0 %v2691
      %v3268 = vpop.f32.mrb[0].mxu0
      %v3269 = vadd.f32 %v3044, %v3268
      %v3270 = vpop.f32.mrb[0].mxu0
      %v3271 = vpop.f32.mrb[0].mxu0
      %v3272 = vadd.f32 %v3047, %v3271
      %v3273 = vpop.f32.mrb[0].mxu0
      %3274 = vmatprep.mubr.bf16.mxu0 0
      %3275 = vmatmul.mubr.bf16.gmra.mrb[0].mxu0 %v2694
      %v3276 = vpop.f32.mrb[0].mxu0
      %v3277 = vadd.f32 %v3052, %v3276
      %v3278 = vpop.f32.mrb[0].mxu0
      %v3279 = vpop.f32.mrb[0].mxu0
      %v3280 = vadd.f32 %v3055, %v3279
      %v3281 = vpop.f32.mrb[0].mxu0
      %3282 = vmatprep.mubr.bf16.mxu0 0
      %3283 = vmatmul.mubr.bf16.gmra.mrb[0].mxu0 %v2697
      %v3284 = vpop.f32.mrb[0].mxu0
      %v3285 = vadd.f32 %v3060, %v3284
      %v3286 = vpop.f32.mrb[0].mxu0
      %v3287 = vpop.f32.mrb[0].mxu0
      %v3288 = vadd.f32 %v3063, %v3287
      %v3289 = vpop.f32.mrb[0].mxu0
      %3290 = vmatprep.mubr.bf16.mxu0 0
      %3291 = vmatmul.mubr.bf16.gmra.mrb[0].mxu0 %v2700
      %v3292 = vpop.f32.mrb[0].mxu0
      %v3293 = vadd.f32 %v3068, %v3292
      %v3294 = vpop.f32.mrb[0].mxu0
      %v3295 = vpop.f32.mrb[0].mxu0
      %v3296 = vadd.f32 %v3071, %v3295
      %v3297 = vpop.f32.mrb[0].mxu0
      %3298 = vmatprep.mubr.bf16.mxu0 0
      %3299 = vmatmul.mubr.bf16.gmra.mrb[0].mxu0 %v2703
      %v3300 = vpop.f32.mrb[0].mxu0
      %v3301 = vadd.f32 %v3076, %v3300
      %v3302 = vpop.f32.mrb[0].mxu0
      %v3303 = vpop.f32.mrb[0].mxu0
      %v3304 = vadd.f32 %v3079, %v3303
      %v3305 = vpop.f32.mrb[0].mxu0
      %3306 = vmatprep.mubr.bf16.mxu0 0
      %3307 = vmatmul.mubr.bf16.gmra.mrb[0].mxu0 %v2706
      %v3308 = vpop.f32.mrb[0].mxu0
      %v3309 = vadd.f32 %v3084, %v3308
      %v3310 = vpop.f32.mrb[0].mxu0
      %v3311 = vpop.f32.mrb[0].mxu0
      %v3312 = vadd.f32 %v3087, %v3311
      %v3313 = vpop.f32.mrb[0].mxu0
      %3314 = vmatprep.mubr.bf16.mxu0 0
      %3315 = vmatmul.mubr.bf16.gmra.mrb[0].mxu0 %v2709
      %v3316 = vpop.f32.mrb[0].mxu0
      %v3317 = vadd.f32 %v3092, %v3316
      %v3318 = vpop.f32.mrb[0].mxu0
      %v3319 = vpop.f32.mrb[0].mxu0
      %v3320 = vadd.f32 %v3095, %v3319
      %v3321 = vpop.f32.mrb[0].mxu0
      %3322 = vmatprep.mubr.bf16.mxu0 0
      %3323 = vmatmul.mubr.bf16.gmra.mrb[0].mxu0 %v2712
      %v3324 = vpop.f32.mrb[0].mxu0
      %v3325 = vadd.f32 %v3100, %v3324
      %v3326 = vpop.f32.mrb[0].mxu0
      %v3327 = vpop.f32.mrb[0].mxu0
      %v3328 = vadd.f32 %v3103, %v3327
      %v3329 = vpop.f32.mrb[0].mxu0
      %3330 = vmatprep.mubr.bf16.mxu0 0
      %3331 = vmatmul.mubr.bf16.gmra.mrb[0].mxu0 %v2715
      %v3332 = vpop.f32.mrb[0].mxu0
      %v3333 = vadd.f32 %v3108, %v3332
      %v3334 = vpop.f32.mrb[0].mxu0
      %v3335 = vpop.f32.mrb[0].mxu0
      %v3336 = vadd.f32 %v3111, %v3335
      %v3337 = vpop.f32.mrb[0].mxu0
      %3338 = vmatprep.mubr.bf16.mxu0 0
      %3339 = vmatmul.mubr.bf16.gmra.mrb[0].mxu0 %v2718
      %v3340 = vpop.f32.mrb[0].mxu0
      %v3341 = vadd.f32 %v3116, %v3340
      %v3342 = vpop.f32.mrb[0].mxu0
      %v3343 = vpop.f32.mrb[0].mxu0
      %v3344 = vadd.f32 %v3119, %v3343
      %v3345 = vpop.f32.mrb[0].mxu0
      %3346 = vmatprep.mubr.bf16.mxu0 0
      %3347 = vmatmul.mubr.bf16.gmra.mrb[0].mxu0 %v2721
      %v3348 = vpop.f32.mrb[0].mxu0
      %v3349 = vadd.f32 %v3124, %v3348
      %v3350 = vpop.f32.mrb[0].mxu0
      %v3351 = vpop.f32.mrb[0].mxu0
      %v3352 = vadd.f32 %v3127, %v3351
      %v3353 = vpop.f32.mrb[0].mxu0
      %3354 = vmatprep.mubr.bf16.mxu0 0
      %3355 = vmatmul.mubr.bf16.gmra.mrb[0].mxu0 %v2724
      %v3356 = vpop.f32.mrb[0].mxu0
      %v3357 = vadd.f32 %v3132, %v3356
      %v3358 = vpop.f32.mrb[0].mxu0
      %v3359 = vpop.f32.mrb[0].mxu0
      %v3360 = vadd.f32 %v3135, %v3359
      %v3361 = vpop.f32.mrb[0].mxu0
      %3362 = vmatprep.mubr.bf16.mxu0 0
      %3363 = vmatmul.mubr.bf16.gmra.mrb[0].mxu0 %v2727
      %v3364 = vpop.f32.mrb[0].mxu0
      %v3365 = vadd.f32 %v3140, %v3364
      %v3366 = vpop.f32.mrb[0].mxu0
      %v3367 = vpop.f32.mrb[0].mxu0
      %v3368 = vadd.f32 %v3143, %v3367
      %v3369 = vpop.f32.mrb[0].mxu0
      %3370 = vdwg.mxu0
      %v3371 = vld [vmem:[%s289 + $0x30] sm:$0xff]
      %v3372 = vld [vmem:[%s289 + $0x38] sm:$0xff]
      %v3373 = vld [vmem:[%s289 + $0x40] sm:$0xff]
      %v3374 = vld [vmem:[%s289 + $0x48] sm:$0xff]
      %v3375 = vld [vmem:[%s289 + $0x50] sm:$0xff]
      %v3376 = vld [vmem:[%s289 + $0x58] sm:$0xff]
      %v3377 = vld [vmem:[%s289 + $0x60] sm:$0xff]
      %v3378 = vld [vmem:[%s289 + $0x68] sm:$0xff]
      %v3379 = vld [vmem:[%s289 + $0x70] sm:$0xff]
      %v3380 = vld [vmem:[%s289 + $0x78] sm:$0xff]
      %v3381 = vld [vmem:[%s289 + $0x80] sm:$0xff]
      %v3382 = vld [vmem:[%s289 + $0x88] sm:$0xff]
      %v3383 = vld [vmem:[%s289 + $0x90] sm:$0xff]
      %v3384 = vld [vmem:[%s289 + $0x98] sm:$0xff]
      %v3385 = vld [vmem:[%s289 + $0xa0] sm:$0xff]
      %v3386 = vld [vmem:[%s289 + $0xa8] sm:$0xff]
      %v3387 = vld [vmem:[%s289 + $0xb0] sm:$0xff]
      %v3388 = vld [vmem:[%s289 + $0xb8] sm:$0xff]
      %v3389 = vld [vmem:[%s289 + $0xc0] sm:$0xff]
      %v3390 = vld [vmem:[%s289 + $0xc8] sm:$0xff]
      %v3391 = vld [vmem:[%s289 + $0xd0] sm:$0xff]
      %v3392 = vld [vmem:[%s289 + $0xd8] sm:$0xff]
      %v3393 = vld [vmem:[%s289 + $0xe0] sm:$0xff]
      %v3394 = vld [vmem:[%s289 + $0xe8] sm:$0xff]
      %v3395 = vld [vmem:[%s289 + $0xf0] sm:$0xff]
      %v3396 = vld [vmem:[%s289 + $0xf8] sm:$0xff]
      %v3397 = vld [vmem:[%s289 + $0x100] sm:$0xff]
      %v3398 = vld [vmem:[%s289 + $0x108] sm:$0xff]
      %v3399 = vld [vmem:[%s289 + $0x110] sm:$0xff]
      %v3400 = vld [vmem:[%s289 + $0x118] sm:$0xff]
      %v3401 = vld [vmem:[%s289 + $0x120] sm:$0xff]
      %v3402 = vld [vmem:[%s289 + $0x128] sm:$0xff]
      %v3403 = vld [vmem:[%s289 + $0x130] sm:$0xff]
      %v3404 = vld [vmem:[%s289 + $0x138] sm:$0xff]
      %v3405 = vld [vmem:[%s289 + $0x140] sm:$0xff]
      %v3406 = vld [vmem:[%s289 + $0x148] sm:$0xff]
      %v3407 = vld [vmem:[%s289 + $0x150] sm:$0xff]
      %v3408 = vld [vmem:[%s289 + $0x158] sm:$0xff]
      %v3409 = vld [vmem:[%s289 + $0x160] sm:$0xff]
      %v3410 = vld [vmem:[%s289 + $0x168] sm:$0xff]
      %v3411 = vld [vmem:[%s289 + $0x170] sm:$0xff]
      %v3412 = vld [vmem:[%s289 + $0x178] sm:$0xff]
      %v3413 = vld [vmem:[%s289 + $0x180] sm:$0xff]
      %v3414 = vld [vmem:[%s289 + $0x188] sm:$0xff]
      %v3415 = vld [vmem:[%s289 + $0x190] sm:$0xff]
      %v3416 = vld [vmem:[%s289 + $0x198] sm:$0xff]
      %v3417 = vld [vmem:[%s289 + $0x1a0] sm:$0xff]
      %v3418 = vld [vmem:[%s289 + $0x1a8] sm:$0xff]
      %v3419 = vadd.f32 %v3371, %v3181
      %v3420 = vadd.f32 %v3372, %v3184
      %v3421 = vadd.f32 %v3373, %v3189
      %v3422 = vadd.f32 %v3374, %v3192
      %v3423 = vadd.f32 %v3375, %v3197
      %v3424 = vadd.f32 %v3376, %v3200
      %v3425 = vadd.f32 %v3377, %v3205
      %v3426 = vadd.f32 %v3378, %v3208
      %v3427 = vadd.f32 %v3379, %v3213
      %v3428 = vadd.f32 %v3380, %v3216
      %v3429 = vadd.f32 %v3381, %v3221
      %v3430 = vadd.f32 %v3382, %v3224
      %v3431 = vadd.f32 %v3383, %v3229
      %v3432 = vadd.f32 %v3384, %v3232
      %v3433 = vadd.f32 %v3385, %v3237
      %v3434 = vadd.f32 %v3386, %v3240
      %v3435 = vadd.f32 %v3387, %v3245
      %v3436 = vadd.f32 %v3388, %v3248
      %v3437 = vadd.f32 %v3389, %v3253
      %v3438 = vadd.f32 %v3390, %v3256
      %v3439 = vadd.f32 %v3391, %v3261
      %v3440 = vadd.f32 %v3392, %v3264
      %v3441 = vadd.f32 %v3393, %v3269
      %v3442 = vadd.f32 %v3394, %v3272
      %v3443 = vadd.f32 %v3395, %v3277
      %v3444 = vadd.f32 %v3396, %v3280
      %v3445 = vadd.f32 %v3397, %v3285
      %v3446 = vadd.f32 %v3398, %v3288
      %v3447 = vadd.f32 %v3399, %v3293
      %v3448 = vadd.f32 %v3400, %v3296
      %v3449 = vadd.f32 %v3401, %v3301
      %v3450 = vadd.f32 %v3402, %v3304
      %v3451 = vadd.f32 %v3403, %v3309
      %v3452 = vadd.f32 %v3404, %v3312
      %v3453 = vadd.f32 %v3405, %v3317
      %v3454 = vadd.f32 %v3406, %v3320
      %v3455 = vadd.f32 %v3407, %v3325
      %v3456 = vadd.f32 %v3408, %v3328
      %v3457 = vadd.f32 %v3409, %v3333
      %v3458 = vadd.f32 %v3410, %v3336
      %v3459 = vadd.f32 %v3411, %v3341
      %v3460 = vadd.f32 %v3412, %v3344
      %v3461 = vadd.f32 %v3413, %v3349
      %v3462 = vadd.f32 %v3414, %v3352
      %v3463 = vadd.f32 %v3415, %v3357
      %v3464 = vadd.f32 %v3416, %v3360
      %v3465 = vadd.f32 %v3417, %v3365
      %v3466 = vadd.f32 %v3418, %v3368
      %3467 = vst [vmem:[%s289 + $0x30] sm:$0xff] %v3419
      %3468 = vst [vmem:[%s289 + $0x38] sm:$0xff] %v3420
      %3469 = vst [vmem:[%s289 + $0x40] sm:$0xff] %v3421
      %3470 = vst [vmem:[%s289 + $0x48] sm:$0xff] %v3422
      %3471 = vst [vmem:[%s289 + $0x50] sm:$0xff] %v3423
      %3472 = vst [vmem:[%s289 + $0x58] sm:$0xff] %v3424
      %3473 = vst [vmem:[%s289 + $0x60] sm:$0xff] %v3425
      %3474 = vst [vmem:[%s289 + $0x68] sm:$0xff] %v3426
      %3475 = vst [vmem:[%s289 + $0x70] sm:$0xff] %v3427
      %3476 = vst [vmem:[%s289 + $0x78] sm:$0xff] %v3428
      %3477 = vst [vmem:[%s289 + $0x80] sm:$0xff] %v3429
      %3478 = vst [vmem:[%s289 + $0x88] sm:$0xff] %v3430
      %3479 = vst [vmem:[%s289 + $0x90] sm:$0xff] %v3431
      %3480 = vst [vmem:[%s289 + $0x98] sm:$0xff] %v3432
      %3481 = vst [vmem:[%s289 + $0xa0] sm:$0xff] %v3433
      %3482 = vst [vmem:[%s289 + $0xa8] sm:$0xff] %v3434
      %3483 = vst [vmem:[%s289 + $0xb0] sm:$0xff] %v3435
      %3484 = vst [vmem:[%s289 + $0xb8] sm:$0xff] %v3436
      %3485 = vst [vmem:[%s289 + $0xc0] sm:$0xff] %v3437
      %3486 = vst [vmem:[%s289 + $0xc8] sm:$0xff] %v3438
      %3487 = vst [vmem:[%s289 + $0xd0] sm:$0xff] %v3439
      %3488 = vst [vmem:[%s289 + $0xd8] sm:$0xff] %v3440
      %3489 = vst [vmem:[%s289 + $0xe0] sm:$0xff] %v3441
      %3490 = vst [vmem:[%s289 + $0xe8] sm:$0xff] %v3442
      %3491 = vst [vmem:[%s289 + $0xf0] sm:$0xff] %v3443
      %3492 = vst [vmem:[%s289 + $0xf8] sm:$0xff] %v3444
      %3493 = vst [vmem:[%s289 + $0x100] sm:$0xff] %v3445
      %3494 = vst [vmem:[%s289 + $0x108] sm:$0xff] %v3446
      %3495 = vst [vmem:[%s289 + $0x110] sm:$0xff] %v3447
      %3496 = vst [vmem:[%s289 + $0x118] sm:$0xff] %v3448
      %3497 = vst [vmem:[%s289 + $0x120] sm:$0xff] %v3449
      %3498 = vst [vmem:[%s289 + $0x128] sm:$0xff] %v3450
      %3499 = vst [vmem:[%s289 + $0x130] sm:$0xff] %v3451
      %3500 = vst [vmem:[%s289 + $0x138] sm:$0xff] %v3452
      %3501 = vst [vmem:[%s289 + $0x140] sm:$0xff] %v3453
      %3502 = vst [vmem:[%s289 + $0x148] sm:$0xff] %v3454
      %3503 = vst [vmem:[%s289 + $0x150] sm:$0xff] %v3455
      %3504 = vst [vmem:[%s289 + $0x158] sm:$0xff] %v3456
      %3505 = vst [vmem:[%s289 + $0x160] sm:$0xff] %v3457
      %3506 = vst [vmem:[%s289 + $0x168] sm:$0xff] %v3458
      %3507 = vst [vmem:[%s289 + $0x170] sm:$0xff] %v3459
      %3508 = vst [vmem:[%s289 + $0x178] sm:$0xff] %v3460
      %3509 = vst [vmem:[%s289 + $0x180] sm:$0xff] %v3461
      %3510 = vst [vmem:[%s289 + $0x188] sm:$0xff] %v3462
      %3511 = vst [vmem:[%s289 + $0x190] sm:$0xff] %v3463
      %3512 = vst [vmem:[%s289 + $0x198] sm:$0xff] %v3464
      %3513 = vst [vmem:[%s289 + $0x1a0] sm:$0xff] %v3465
      %3514 = vst [vmem:[%s289 + $0x1a8] sm:$0xff] %v3466
      %3515 = vst [vmem:[%s289] sm:$0xff] 0.0
      %3516 = vst [vmem:[%s289 + $0x8] sm:$0xff] 0.0
      %3517 = vst [vmem:[%s289 + $0x10] sm:$0xff] 0.0
      %3518 = vst [vmem:[%s289 + $0x18] sm:$0xff] 0.0
      %3519 = vst [vmem:[%s289 + $0x20] sm:$0xff] 0.0
      %3520 = vst [vmem:[%s289 + $0x28] sm:$0xff] 0.0
      %3521 = vst [vmem:[%s289 + $0x1b0] sm:$0xff] 0.0
      %3522 = vst [vmem:[%s289 + $0x1b8] sm:$0xff] 0.0
      %3523 = vst [vmem:[%s289 + $0x1c0] sm:$0xff] 0.0
      %3524 = vst [vmem:[%s289 + $0x1c8] sm:$0xff] 0.0
      %3525 = vst [vmem:[%s289 + $0x1d0] sm:$0xff] 0.0
      %3526 = vst [vmem:[%s289 + $0x1d8] sm:$0xff] 0.0
      %v3527 = vld [vmem:[%s0 + $0x30] sm:$0xff]
      %v3528 = vld [vmem:[%s0 + $0x38] sm:$0xff]
      %v3529 = vld [vmem:[%s0 + $0x40] sm:$0xff]
      %v3530 = vld [vmem:[%s0 + $0x48] sm:$0xff]
      %v3531 = vld [vmem:[%s0 + $0x50] sm:$0xff]
      %v3532 = vld [vmem:[%s0 + $0x58] sm:$0xff]
      %v3533 = vld [vmem:[%s0 + $0x60] sm:$0xff]
      %v3534 = vld [vmem:[%s0 + $0x68] sm:$0xff]
      %v3535 = vld [vmem:[%s0 + $0x70] sm:$0xff]
      %v3536 = vld [vmem:[%s0 + $0x78] sm:$0xff]
      %v3537 = vld [vmem:[%s0 + $0x80] sm:$0xff]
      %v3538 = vld [vmem:[%s0 + $0x88] sm:$0xff]
      %v3539 = vld [vmem:[%s0 + $0x90] sm:$0xff]
      %v3540 = vld [vmem:[%s0 + $0x98] sm:$0xff]
      %v3541 = vld [vmem:[%s0 + $0xa0] sm:$0xff]
      %v3542 = vld [vmem:[%s0 + $0xa8] sm:$0xff]
      %v3543 = vld [vmem:[%s0 + $0xb0] sm:$0xff]
      %v3544 = vld [vmem:[%s0 + $0xb8] sm:$0xff]
      %v3545 = vld [vmem:[%s0 + $0xc0] sm:$0xff]
      %v3546 = vld [vmem:[%s0 + $0xc8] sm:$0xff]
      %v3547 = vld [vmem:[%s0 + $0xd0] sm:$0xff]
      %v3548 = vld [vmem:[%s0 + $0xd8] sm:$0xff]
      %v3549 = vld [vmem:[%s0 + $0xe0] sm:$0xff]
      %v3550 = vld [vmem:[%s0 + $0xe8] sm:$0xff]
      %v3551 = vld [vmem:[%s0 + $0xf0] sm:$0xff]
      %v3552 = vld [vmem:[%s0 + $0xf8] sm:$0xff]
      %v3553 = vld [vmem:[%s0 + $0x100] sm:$0xff]
      %v3554 = vld [vmem:[%s0 + $0x108] sm:$0xff]
      %v3555 = vld [vmem:[%s0 + $0x110] sm:$0xff]
      %v3556 = vld [vmem:[%s0 + $0x118] sm:$0xff]
      %v3557 = vld [vmem:[%s0 + $0x120] sm:$0xff]
      %v3558 = vld [vmem:[%s0 + $0x128] sm:$0xff]
      %v3559 = vld [vmem:[%s0 + $0x130] sm:$0xff]
      %v3560 = vld [vmem:[%s0 + $0x138] sm:$0xff]
      %v3561 = vld [vmem:[%s0 + $0x140] sm:$0xff]
      %v3562 = vld [vmem:[%s0 + $0x148] sm:$0xff]
      %v3563 = vld [vmem:[%s0 + $0x150] sm:$0xff]
      %v3564 = vld [vmem:[%s0 + $0x158] sm:$0xff]
      %v3565 = vld [vmem:[%s0 + $0x160] sm:$0xff]
      %v3566 = vld [vmem:[%s0 + $0x168] sm:$0xff]
      %v3567 = vld [vmem:[%s0 + $0x170] sm:$0xff]
      %v3568 = vld [vmem:[%s0 + $0x178] sm:$0xff]
      %v3569 = vld [vmem:[%s0 + $0x180] sm:$0xff]
      %v3570 = vld [vmem:[%s0 + $0x188] sm:$0xff]
      %v3571 = vld [vmem:[%s0 + $0x190] sm:$0xff]
      %v3572 = vld [vmem:[%s0 + $0x198] sm:$0xff]
      %v3573 = vld [vmem:[%s0 + $0x1a0] sm:$0xff]
      %v3574 = vld [vmem:[%s0 + $0x1a8] sm:$0xff]
      %v3575 = vld [vmem:[%s289 + $0x30] sm:$0xff]
      %v3576 = vld [vmem:[%s289 + $0x38] sm:$0xff]
      %v3577 = vld [vmem:[%s289 + $0x40] sm:$0xff]
      %v3578 = vld [vmem:[%s289 + $0x48] sm:$0xff]
      %v3579 = vld [vmem:[%s289 + $0x50] sm:$0xff]
      %v3580 = vld [vmem:[%s289 + $0x58] sm:$0xff]
      %v3581 = vld [vmem:[%s289 + $0x60] sm:$0xff]
      %v3582 = vld [vmem:[%s289 + $0x68] sm:$0xff]
      %v3583 = vld [vmem:[%s289 + $0x70] sm:$0xff]
      %v3584 = vld [vmem:[%s289 + $0x78] sm:$0xff]
      %v3585 = vld [vmem:[%s289 + $0x80] sm:$0xff]
      %v3586 = vld [vmem:[%s289 + $0x88] sm:$0xff]
      %v3587 = vld [vmem:[%s289 + $0x90] sm:$0xff]
      %v3588 = vld [vmem:[%s289 + $0x98] sm:$0xff]
      %v3589 = vld [vmem:[%s289 + $0xa0] sm:$0xff]
      %v3590 = vld [vmem:[%s289 + $0xa8] sm:$0xff]
      %v3591 = vld [vmem:[%s289 + $0xb0] sm:$0xff]
      %v3592 = vld [vmem:[%s289 + $0xb8] sm:$0xff]
      %v3593 = vld [vmem:[%s289 + $0xc0] sm:$0xff]
      %v3594 = vld [vmem:[%s289 + $0xc8] sm:$0xff]
      %v3595 = vld [vmem:[%s289 + $0xd0] sm:$0xff]
      %v3596 = vld [vmem:[%s289 + $0xd8] sm:$0xff]
      %v3597 = vld [vmem:[%s289 + $0xe0] sm:$0xff]
      %v3598 = vld [vmem:[%s289 + $0xe8] sm:$0xff]
      %v3599 = vld [vmem:[%s289 + $0xf0] sm:$0xff]
      %v3600 = vld [vmem:[%s289 + $0xf8] sm:$0xff]
      %v3601 = vld [vmem:[%s289 + $0x100] sm:$0xff]
      %v3602 = vld [vmem:[%s289 + $0x108] sm:$0xff]
      %v3603 = vld [vmem:[%s289 + $0x110] sm:$0xff]
      %v3604 = vld [vmem:[%s289 + $0x118] sm:$0xff]
      %v3605 = vld [vmem:[%s289 + $0x120] sm:$0xff]
      %v3606 = vld [vmem:[%s289 + $0x128] sm:$0xff]
      %v3607 = vld [vmem:[%s289 + $0x130] sm:$0xff]
      %v3608 = vld [vmem:[%s289 + $0x138] sm:$0xff]
      %v3609 = vld [vmem:[%s289 + $0x140] sm:$0xff]
      %v3610 = vld [vmem:[%s289 + $0x148] sm:$0xff]
      %v3611 = vld [vmem:[%s289 + $0x150] sm:$0xff]
      %v3612 = vld [vmem:[%s289 + $0x158] sm:$0xff]
      %v3613 = vld [vmem:[%s289 + $0x160] sm:$0xff]
      %v3614 = vld [vmem:[%s289 + $0x168] sm:$0xff]
      %v3615 = vld [vmem:[%s289 + $0x170] sm:$0xff]
      %v3616 = vld [vmem:[%s289 + $0x178] sm:$0xff]
      %v3617 = vld [vmem:[%s289 + $0x180] sm:$0xff]
      %v3618 = vld [vmem:[%s289 + $0x188] sm:$0xff]
      %v3619 = vld [vmem:[%s289 + $0x190] sm:$0xff]
      %v3620 = vld [vmem:[%s289 + $0x198] sm:$0xff]
      %v3621 = vld [vmem:[%s289 + $0x1a0] sm:$0xff]
      %v3622 = vld [vmem:[%s289 + $0x1a8] sm:$0xff]
      %vm3623 = vcmp.gt.f32.partialorder %v3527, 0.0
      %vm3624 = vcmp.gt.f32.partialorder %v3528, 0.0
      %vm3625 = vcmp.gt.f32.partialorder %v3529, 0.0
      %vm3626 = vcmp.gt.f32.partialorder %v3530, 0.0
      %vm3627 = vcmp.gt.f32.partialorder %v3531, 0.0
      %vm3628 = vcmp.gt.f32.partialorder %v3532, 0.0
      %vm3629 = vcmp.gt.f32.partialorder %v3533, 0.0
      %vm3630 = vcmp.gt.f32.partialorder %v3534, 0.0
      %vm3631 = vcmp.gt.f32.partialorder %v3535, 0.0
      %vm3632 = vcmp.gt.f32.partialorder %v3536, 0.0
      %vm3633 = vcmp.gt.f32.partialorder %v3537, 0.0
      %vm3634 = vcmp.gt.f32.partialorder %v3538, 0.0
      %vm3635 = vcmp.gt.f32.partialorder %v3539, 0.0
      %vm3636 = vcmp.gt.f32.partialorder %v3540, 0.0
      %vm3637 = vcmp.gt.f32.partialorder %v3541, 0.0
      %vm3638 = vcmp.gt.f32.partialorder %v3542, 0.0
      %vm3639 = vcmp.gt.f32.partialorder %v3543, 0.0
      %vm3640 = vcmp.gt.f32.partialorder %v3544, 0.0
      %vm3641 = vcmp.gt.f32.partialorder %v3545, 0.0
      %vm3642 = vcmp.gt.f32.partialorder %v3546, 0.0
      %vm3643 = vcmp.gt.f32.partialorder %v3547, 0.0
      %vm3644 = vcmp.gt.f32.partialorder %v3548, 0.0
      %vm3645 = vcmp.gt.f32.partialorder %v3549, 0.0
      %vm3646 = vcmp.gt.f32.partialorder %v3550, 0.0
      %vm3647 = vcmp.gt.f32.partialorder %v3551, 0.0
      %vm3648 = vcmp.gt.f32.partialorder %v3552, 0.0
      %vm3649 = vcmp.gt.f32.partialorder %v3553, 0.0
      %vm3650 = vcmp.gt.f32.partialorder %v3554, 0.0
      %vm3651 = vcmp.gt.f32.partialorder %v3555, 0.0
      %vm3652 = vcmp.gt.f32.partialorder %v3556, 0.0
      %vm3653 = vcmp.gt.f32.partialorder %v3557, 0.0
      %vm3654 = vcmp.gt.f32.partialorder %v3558, 0.0
      %vm3655 = vcmp.gt.f32.partialorder %v3559, 0.0
      %vm3656 = vcmp.gt.f32.partialorder %v3560, 0.0
      %vm3657 = vcmp.gt.f32.partialorder %v3561, 0.0
      %vm3658 = vcmp.gt.f32.partialorder %v3562, 0.0
      %vm3659 = vcmp.gt.f32.partialorder %v3563, 0.0
      %vm3660 = vcmp.gt.f32.partialorder %v3564, 0.0
      %vm3661 = vcmp.gt.f32.partialorder %v3565, 0.0
      %vm3662 = vcmp.gt.f32.partialorder %v3566, 0.0
      %vm3663 = vcmp.gt.f32.partialorder %v3567, 0.0
      %vm3664 = vcmp.gt.f32.partialorder %v3568, 0.0
      %vm3665 = vcmp.gt.f32.partialorder %v3569, 0.0
      %vm3666 = vcmp.gt.f32.partialorder %v3570, 0.0
      %vm3667 = vcmp.gt.f32.partialorder %v3571, 0.0
      %vm3668 = vcmp.gt.f32.partialorder %v3572, 0.0
      %vm3669 = vcmp.gt.f32.partialorder %v3573, 0.0
      %vm3670 = vcmp.gt.f32.partialorder %v3574, 0.0
      %v3671 = vsel %vm3623, 1, 0
      %v3672 = vsel %vm3624, 1, 0
      %v3673 = vsel %vm3625, 1, 0
      %v3674 = vsel %vm3626, 1, 0
      %v3675 = vsel %vm3627, 1, 0
      %v3676 = vsel %vm3628, 1, 0
      %v3677 = vsel %vm3629, 1, 0
      %v3678 = vsel %vm3630, 1, 0
      %v3679 = vsel %vm3631, 1, 0
      %v3680 = vsel %vm3632, 1, 0
      %v3681 = vsel %vm3633, 1, 0
      %v3682 = vsel %vm3634, 1, 0
      %v3683 = vsel %vm3635, 1, 0
      %v3684 = vsel %vm3636, 1, 0
      %v3685 = vsel %vm3637, 1, 0
      %v3686 = vsel %vm3638, 1, 0
      %v3687 = vsel %vm3639, 1, 0
      %v3688 = vsel %vm3640, 1, 0
      %v3689 = vsel %vm3641, 1, 0
      %v3690 = vsel %vm3642, 1, 0
      %v3691 = vsel %vm3643, 1, 0
      %v3692 = vsel %vm3644, 1, 0
      %v3693 = vsel %vm3645, 1, 0
      %v3694 = vsel %vm3646, 1, 0
      %v3695 = vsel %vm3647, 1, 0
      %v3696 = vsel %vm3648, 1, 0
      %v3697 = vsel %vm3649, 1, 0
      %v3698 = vsel %vm3650, 1, 0
      %v3699 = vsel %vm3651, 1, 0
      %v3700 = vsel %vm3652, 1, 0
      %v3701 = vsel %vm3653, 1, 0
      %v3702 = vsel %vm3654, 1, 0
      %v3703 = vsel %vm3655, 1, 0
      %v3704 = vsel %vm3656, 1, 0
      %v3705 = vsel %vm3657, 1, 0
      %v3706 = vsel %vm3658, 1, 0
      %v3707 = vsel %vm3659, 1, 0
      %v3708 = vsel %vm3660, 1, 0
      %v3709 = vsel %vm3661, 1, 0
      %v3710 = vsel %vm3662, 1, 0
      %v3711 = vsel %vm3663, 1, 0
      %v3712 = vsel %vm3664, 1, 0
      %v3713 = vsel %vm3665, 1, 0
      %v3714 = vsel %vm3666, 1, 0
      %v3715 = vsel %vm3667, 1, 0
      %v3716 = vsel %vm3668, 1, 0
      %v3717 = vsel %vm3669, 1, 0
      %v3718 = vsel %vm3670, 1, 0
      %3719 = vset.pattern.permute.xlu0 0
      %3720 = vperm.xlu0 %3719, %v3671
      %v3721 = vpop.permute.xlu0 %3720
      %3722 = vset.pattern.permute.xlu0 0
      %3723 = vperm.xlu0 %3722, %v3672
      %v3724 = vpop.permute.xlu0 %3723
      %3725 = vset.pattern.permute.xlu0 0
      %3726 = vperm.xlu0 %3725, %v3673
      %v3727 = vpop.permute.xlu0 %3726
      %3728 = vset.pattern.permute.xlu0 0
      %3729 = vperm.xlu0 %3728, %v3674
      %v3730 = vpop.permute.xlu0 %3729
      %3731 = vset.pattern.permute.xlu0 0
      %3732 = vperm.xlu0 %3731, %v3675
      %v3733 = vpop.permute.xlu0 %3732
      %3734 = vset.pattern.permute.xlu0 0
      %3735 = vperm.xlu0 %3734, %v3676
      %v3736 = vpop.permute.xlu0 %3735
      %3737 = vset.pattern.permute.xlu0 0
      %3738 = vperm.xlu0 %3737, %v3677
      %v3739 = vpop.permute.xlu0 %3738
      %3740 = vset.pattern.permute.xlu0 0
      %3741 = vperm.xlu0 %3740, %v3678
      %v3742 = vpop.permute.xlu0 %3741
      %3743 = vset.pattern.permute.xlu0 0
      %3744 = vperm.xlu0 %3743, %v3679
      %v3745 = vpop.permute.xlu0 %3744
      %3746 = vset.pattern.permute.xlu0 0
      %3747 = vperm.xlu0 %3746, %v3680
      %v3748 = vpop.permute.xlu0 %3747
      %3749 = vset.pattern.permute.xlu0 0
      %3750 = vperm.xlu0 %3749, %v3681
      %v3751 = vpop.permute.xlu0 %3750
      %3752 = vset.pattern.permute.xlu0 0
      %3753 = vperm.xlu0 %3752, %v3682
      %v3754 = vpop.permute.xlu0 %3753
      %3755 = vset.pattern.permute.xlu0 0
      %3756 = vperm.xlu0 %3755, %v3683
      %v3757 = vpop.permute.xlu0 %3756
      %3758 = vset.pattern.permute.xlu0 0
      %3759 = vperm.xlu0 %3758, %v3684
      %v3760 = vpop.permute.xlu0 %3759
      %3761 = vset.pattern.permute.xlu0 0
      %3762 = vperm.xlu0 %3761, %v3685
      %v3763 = vpop.permute.xlu0 %3762
      %3764 = vset.pattern.permute.xlu0 0
      %3765 = vperm.xlu0 %3764, %v3686
      %v3766 = vpop.permute.xlu0 %3765
      %3767 = vset.pattern.permute.xlu0 0
      %3768 = vperm.xlu0 %3767, %v3687
      %v3769 = vpop.permute.xlu0 %3768
      %3770 = vset.pattern.permute.xlu0 0
      %3771 = vperm.xlu0 %3770, %v3688
      %v3772 = vpop.permute.xlu0 %3771
      %3773 = vset.pattern.permute.xlu0 0
      %3774 = vperm.xlu0 %3773, %v3689
      %v3775 = vpop.permute.xlu0 %3774
      %3776 = vset.pattern.permute.xlu0 0
      %3777 = vperm.xlu0 %3776, %v3690
      %v3778 = vpop.permute.xlu0 %3777
      %3779 = vset.pattern.permute.xlu0 0
      %3780 = vperm.xlu0 %3779, %v3691
      %v3781 = vpop.permute.xlu0 %3780
      %3782 = vset.pattern.permute.xlu0 0
      %3783 = vperm.xlu0 %3782, %v3692
      %v3784 = vpop.permute.xlu0 %3783
      %3785 = vset.pattern.permute.xlu0 0
      %3786 = vperm.xlu0 %3785, %v3693
      %v3787 = vpop.permute.xlu0 %3786
      %3788 = vset.pattern.permute.xlu0 0
      %3789 = vperm.xlu0 %3788, %v3694
      %v3790 = vpop.permute.xlu0 %3789
      %3791 = vset.pattern.permute.xlu0 0
      %3792 = vperm.xlu0 %3791, %v3695
      %v3793 = vpop.permute.xlu0 %3792
      %3794 = vset.pattern.permute.xlu0 0
      %3795 = vperm.xlu0 %3794, %v3696
      %v3796 = vpop.permute.xlu0 %3795
      %3797 = vset.pattern.permute.xlu0 0
      %3798 = vperm.xlu0 %3797, %v3697
      %v3799 = vpop.permute.xlu0 %3798
      %3800 = vset.pattern.permute.xlu0 0
      %3801 = vperm.xlu0 %3800, %v3698
      %v3802 = vpop.permute.xlu0 %3801
      %3803 = vset.pattern.permute.xlu0 0
      %3804 = vperm.xlu0 %3803, %v3699
      %v3805 = vpop.permute.xlu0 %3804
      %3806 = vset.pattern.permute.xlu0 0
      %3807 = vperm.xlu0 %3806, %v3700
      %v3808 = vpop.permute.xlu0 %3807
      %3809 = vset.pattern.permute.xlu0 0
      %3810 = vperm.xlu0 %3809, %v3701
      %v3811 = vpop.permute.xlu0 %3810
      %3812 = vset.pattern.permute.xlu0 0
      %3813 = vperm.xlu0 %3812, %v3702
      %v3814 = vpop.permute.xlu0 %3813
      %3815 = vset.pattern.permute.xlu0 0
      %3816 = vperm.xlu0 %3815, %v3703
      %v3817 = vpop.permute.xlu0 %3816
      %3818 = vset.pattern.permute.xlu0 0
      %3819 = vperm.xlu0 %3818, %v3704
      %v3820 = vpop.permute.xlu0 %3819
      %3821 = vset.pattern.permute.xlu0 0
      %3822 = vperm.xlu0 %3821, %v3705
      %v3823 = vpop.permute.xlu0 %3822
      %3824 = vset.pattern.permute.xlu0 0
      %3825 = vperm.xlu0 %3824, %v3706
      %v3826 = vpop.permute.xlu0 %3825
      %3827 = vset.pattern.permute.xlu0 0
      %3828 = vperm.xlu0 %3827, %v3707
      %v3829 = vpop.permute.xlu0 %3828
      %3830 = vset.pattern.permute.xlu0 0
      %3831 = vperm.xlu0 %3830, %v3708
      %v3832 = vpop.permute.xlu0 %3831
      %3833 = vset.pattern.permute.xlu0 0
      %3834 = vperm.xlu0 %3833, %v3709
      %v3835 = vpop.permute.xlu0 %3834
      %3836 = vset.pattern.permute.xlu0 0
      %3837 = vperm.xlu0 %3836, %v3710
      %v3838 = vpop.permute.xlu0 %3837
      %3839 = vset.pattern.permute.xlu0 0
      %3840 = vperm.xlu0 %3839, %v3711
      %v3841 = vpop.permute.xlu0 %3840
      %3842 = vset.pattern.permute.xlu0 0
      %3843 = vperm.xlu0 %3842, %v3712
      %v3844 = vpop.permute.xlu0 %3843
      %3845 = vset.pattern.permute.xlu0 0
      %3846 = vperm.xlu0 %3845, %v3713
      %v3847 = vpop.permute.xlu0 %3846
      %3848 = vset.pattern.permute.xlu0 0
      %3849 = vperm.xlu0 %3848, %v3714
      %v3850 = vpop.permute.xlu0 %3849
      %3851 = vset.pattern.permute.xlu0 0
      %3852 = vperm.xlu0 %3851, %v3715
      %v3853 = vpop.permute.xlu0 %3852
      %3854 = vset.pattern.permute.xlu0 0
      %3855 = vperm.xlu0 %3854, %v3716
      %v3856 = vpop.permute.xlu0 %3855
      %3857 = vset.pattern.permute.xlu0 0
      %3858 = vperm.xlu0 %3857, %v3717
      %v3859 = vpop.permute.xlu0 %3858
      %3860 = vset.pattern.permute.xlu0 0
      %3861 = vperm.xlu0 %3860, %v3718
      %v3862 = vpop.permute.xlu0 %3861
      %vm3863 = vcmp.eq.s32.totalorder %v3721, 1
      %vm3864 = vcmp.eq.s32.totalorder %v3724, 1
      %vm3865 = vcmp.eq.s32.totalorder %v3727, 1
      %vm3866 = vcmp.eq.s32.totalorder %v3730, 1
      %vm3867 = vcmp.eq.s32.totalorder %v3733, 1
      %vm3868 = vcmp.eq.s32.totalorder %v3736, 1
      %vm3869 = vcmp.eq.s32.totalorder %v3739, 1
      %vm3870 = vcmp.eq.s32.totalorder %v3742, 1
      %vm3871 = vcmp.eq.s32.totalorder %v3745, 1
      %vm3872 = vcmp.eq.s32.totalorder %v3748, 1
      %vm3873 = vcmp.eq.s32.totalorder %v3751, 1
      %vm3874 = vcmp.eq.s32.totalorder %v3754, 1
      %vm3875 = vcmp.eq.s32.totalorder %v3757, 1
      %vm3876 = vcmp.eq.s32.totalorder %v3760, 1
      %vm3877 = vcmp.eq.s32.totalorder %v3763, 1
      %vm3878 = vcmp.eq.s32.totalorder %v3766, 1
      %vm3879 = vcmp.eq.s32.totalorder %v3769, 1
      %vm3880 = vcmp.eq.s32.totalorder %v3772, 1
      %vm3881 = vcmp.eq.s32.totalorder %v3775, 1
      %vm3882 = vcmp.eq.s32.totalorder %v3778, 1
      %vm3883 = vcmp.eq.s32.totalorder %v3781, 1
      %vm3884 = vcmp.eq.s32.totalorder %v3784, 1
      %vm3885 = vcmp.eq.s32.totalorder %v3787, 1
      %vm3886 = vcmp.eq.s32.totalorder %v3790, 1
      %vm3887 = vcmp.eq.s32.totalorder %v3793, 1
      %vm3888 = vcmp.eq.s32.totalorder %v3796, 1
      %vm3889 = vcmp.eq.s32.totalorder %v3799, 1
      %vm3890 = vcmp.eq.s32.totalorder %v3802, 1
      %vm3891 = vcmp.eq.s32.totalorder %v3805, 1
      %vm3892 = vcmp.eq.s32.totalorder %v3808, 1
      %vm3893 = vcmp.eq.s32.totalorder %v3811, 1
      %vm3894 = vcmp.eq.s32.totalorder %v3814, 1
      %vm3895 = vcmp.eq.s32.totalorder %v3817, 1
      %vm3896 = vcmp.eq.s32.totalorder %v3820, 1
      %vm3897 = vcmp.eq.s32.totalorder %v3823, 1
      %vm3898 = vcmp.eq.s32.totalorder %v3826, 1
      %vm3899 = vcmp.eq.s32.totalorder %v3829, 1
      %vm3900 = vcmp.eq.s32.totalorder %v3832, 1
      %vm3901 = vcmp.eq.s32.totalorder %v3835, 1
      %vm3902 = vcmp.eq.s32.totalorder %v3838, 1
      %vm3903 = vcmp.eq.s32.totalorder %v3841, 1
      %vm3904 = vcmp.eq.s32.totalorder %v3844, 1
      %vm3905 = vcmp.eq.s32.totalorder %v3847, 1
      %vm3906 = vcmp.eq.s32.totalorder %v3850, 1
      %vm3907 = vcmp.eq.s32.totalorder %v3853, 1
      %vm3908 = vcmp.eq.s32.totalorder %v3856, 1
      %vm3909 = vcmp.eq.s32.totalorder %v3859, 1
      %vm3910 = vcmp.eq.s32.totalorder %v3862, 1
      %v3911 = vsel %vm3863, %v3575, 0.0
      %v3912 = vsel %vm3864, %v3576, 0.0
      %v3913 = vsel %vm3865, %v3577, 0.0
      %v3914 = vsel %vm3866, %v3578, 0.0
      %v3915 = vsel %vm3867, %v3579, 0.0
      %v3916 = vsel %vm3868, %v3580, 0.0
      %v3917 = vsel %vm3869, %v3581, 0.0
      %v3918 = vsel %vm3870, %v3582, 0.0
      %v3919 = vsel %vm3871, %v3583, 0.0
      %v3920 = vsel %vm3872, %v3584, 0.0
      %v3921 = vsel %vm3873, %v3585, 0.0
      %v3922 = vsel %vm3874, %v3586, 0.0
      %v3923 = vsel %vm3875, %v3587, 0.0
      %v3924 = vsel %vm3876, %v3588, 0.0
      %v3925 = vsel %vm3877, %v3589, 0.0
      %v3926 = vsel %vm3878, %v3590, 0.0
      %v3927 = vsel %vm3879, %v3591, 0.0
      %v3928 = vsel %vm3880, %v3592, 0.0
      %v3929 = vsel %vm3881, %v3593, 0.0
      %v3930 = vsel %vm3882, %v3594, 0.0
      %v3931 = vsel %vm3883, %v3595, 0.0
      %v3932 = vsel %vm3884, %v3596, 0.0
      %v3933 = vsel %vm3885, %v3597, 0.0
      %v3934 = vsel %vm3886, %v3598, 0.0
      %v3935 = vsel %vm3887, %v3599, 0.0
      %v3936 = vsel %vm3888, %v3600, 0.0
      %v3937 = vsel %vm3889, %v3601, 0.0
      %v3938 = vsel %vm3890, %v3602, 0.0
      %v3939 = vsel %vm3891, %v3603, 0.0
      %v3940 = vsel %vm3892, %v3604, 0.0
      %v3941 = vsel %vm3893, %v3605, 0.0
      %v3942 = vsel %vm3894, %v3606, 0.0
      %v3943 = vsel %vm3895, %v3607, 0.0
      %v3944 = vsel %vm3896, %v3608, 0.0
      %v3945 = vsel %vm3897, %v3609, 0.0
      %v3946 = vsel %vm3898, %v3610, 0.0
      %v3947 = vsel %vm3899, %v3611, 0.0
      %v3948 = vsel %vm3900, %v3612, 0.0
      %v3949 = vsel %vm3901, %v3613, 0.0
      %v3950 = vsel %vm3902, %v3614, 0.0
      %v3951 = vsel %vm3903, %v3615, 0.0
      %v3952 = vsel %vm3904, %v3616, 0.0
      %v3953 = vsel %vm3905, %v3617, 0.0
      %v3954 = vsel %vm3906, %v3618, 0.0
      %v3955 = vsel %vm3907, %v3619, 0.0
      %v3956 = vsel %vm3908, %v3620, 0.0
      %v3957 = vsel %vm3909, %v3621, 0.0
      %v3958 = vsel %vm3910, %v3622, 0.0
      %v3959 = vadd.f32 %v3911, %v3912
      %v3960 = vadd.f32 %v3959, %v3913
      %v3961 = vadd.f32 %v3960, %v3914
      %v3962 = vadd.f32 %v3961, %v3915
      %v3963 = vadd.f32 %v3962, %v3916
      %v3964 = vadd.f32 %v3963, %v3917
      %v3965 = vadd.f32 %v3964, %v3918
      %v3966 = vadd.f32 %v3965, %v3919
      %v3967 = vadd.f32 %v3966, %v3920
      %v3968 = vadd.f32 %v3967, %v3921
      %v3969 = vadd.f32 %v3968, %v3922
      %v3970 = vadd.f32 %v3969, %v3923
      %v3971 = vadd.f32 %v3970, %v3924
      %v3972 = vadd.f32 %v3971, %v3925
      %v3973 = vadd.f32 %v3972, %v3926
      %v3974 = vadd.f32 %v3973, %v3927
      %v3975 = vadd.f32 %v3974, %v3928
      %v3976 = vadd.f32 %v3975, %v3929
      %v3977 = vadd.f32 %v3976, %v3930
      %v3978 = vadd.f32 %v3977, %v3931
      %v3979 = vadd.f32 %v3978, %v3932
      %v3980 = vadd.f32 %v3979, %v3933
      %v3981 = vadd.f32 %v3980, %v3934
      %v3982 = vadd.f32 %v3981, %v3935
      %v3983 = vadd.f32 %v3982, %v3936
      %v3984 = vadd.f32 %v3983, %v3937
      %v3985 = vadd.f32 %v3984, %v3938
      %v3986 = vadd.f32 %v3985, %v3939
      %v3987 = vadd.f32 %v3986, %v3940
      %v3988 = vadd.f32 %v3987, %v3941
      %v3989 = vadd.f32 %v3988, %v3942
      %v3990 = vadd.f32 %v3989, %v3943
      %v3991 = vadd.f32 %v3990, %v3944
      %v3992 = vadd.f32 %v3991, %v3945
      %v3993 = vadd.f32 %v3992, %v3946
      %v3994 = vadd.f32 %v3993, %v3947
      %v3995 = vadd.f32 %v3994, %v3948
      %v3996 = vadd.f32 %v3995, %v3949
      %v3997 = vadd.f32 %v3996, %v3950
      %v3998 = vadd.f32 %v3997, %v3951
      %v3999 = vadd.f32 %v3998, %v3952
      %v4000 = vadd.f32 %v3999, %v3953
      %v4001 = vadd.f32 %v4000, %v3954
      %v4002 = vadd.f32 %v4001, %v3955
      %v4003 = vadd.f32 %v4002, %v3956
      %v4004 = vadd.f32 %v4003, %v3957
      %v4005 = vadd.f32 %v4004, %v3958
      %v4006 = vrot.slane %v4005, 4
      %v4007 = vadd.f32 %v4005, %v4006
      %v4008 = vrot.slane %v4007, 2
      %v4009 = vadd.f32 %v4007, %v4008
      %v4010 = vrot.slane %v4009, 1
      %v4011 = vadd.f32 %v4009, %v4010
      %4012 = vst [vmem:[%s292] sm:$0x1] %v4011
      %v4013 = vmul.f32 %v3911, %v3911
      %v4014 = vmul.f32 %v3912, %v3912
      %v4015 = vmul.f32 %v3913, %v3913
      %v4016 = vmul.f32 %v3914, %v3914
      %v4017 = vmul.f32 %v3915, %v3915
      %v4018 = vmul.f32 %v3916, %v3916
      %v4019 = vmul.f32 %v3917, %v3917
      %v4020 = vmul.f32 %v3918, %v3918
      %v4021 = vmul.f32 %v3919, %v3919
      %v4022 = vmul.f32 %v3920, %v3920
      %v4023 = vmul.f32 %v3921, %v3921
      %v4024 = vmul.f32 %v3922, %v3922
      %v4025 = vmul.f32 %v3923, %v3923
      %v4026 = vmul.f32 %v3924, %v3924
      %v4027 = vmul.f32 %v3925, %v3925
      %v4028 = vmul.f32 %v3926, %v3926
      %v4029 = vmul.f32 %v3927, %v3927
      %v4030 = vmul.f32 %v3928, %v3928
      %v4031 = vmul.f32 %v3929, %v3929
      %v4032 = vmul.f32 %v3930, %v3930
      %v4033 = vmul.f32 %v3931, %v3931
      %v4034 = vmul.f32 %v3932, %v3932
      %v4035 = vmul.f32 %v3933, %v3933
      %v4036 = vmul.f32 %v3934, %v3934
      %v4037 = vmul.f32 %v3935, %v3935
      %v4038 = vmul.f32 %v3936, %v3936
      %v4039 = vmul.f32 %v3937, %v3937
      %v4040 = vmul.f32 %v3938, %v3938
      %v4041 = vmul.f32 %v3939, %v3939
      %v4042 = vmul.f32 %v3940, %v3940
      %v4043 = vmul.f32 %v3941, %v3941
      %v4044 = vmul.f32 %v3942, %v3942
      %v4045 = vmul.f32 %v3943, %v3943
      %v4046 = vmul.f32 %v3944, %v3944
      %v4047 = vmul.f32 %v3945, %v3945
      %v4048 = vmul.f32 %v3946, %v3946
      %v4049 = vmul.f32 %v3947, %v3947
      %v4050 = vmul.f32 %v3948, %v3948
      %v4051 = vmul.f32 %v3949, %v3949
      %v4052 = vmul.f32 %v3950, %v3950
      %v4053 = vmul.f32 %v3951, %v3951
      %v4054 = vmul.f32 %v3952, %v3952
      %v4055 = vmul.f32 %v3953, %v3953
      %v4056 = vmul.f32 %v3954, %v3954
      %v4057 = vmul.f32 %v3955, %v3955
      %v4058 = vmul.f32 %v3956, %v3956
      %v4059 = vmul.f32 %v3957, %v3957
      %v4060 = vmul.f32 %v3958, %v3958
      %v4061 = vadd.f32 %v4013, %v4014
      %v4062 = vadd.f32 %v4061, %v4015
      %v4063 = vadd.f32 %v4062, %v4016
      %v4064 = vadd.f32 %v4063, %v4017
      %v4065 = vadd.f32 %v4064, %v4018
      %v4066 = vadd.f32 %v4065, %v4019
      %v4067 = vadd.f32 %v4066, %v4020
      %v4068 = vadd.f32 %v4067, %v4021
      %v4069 = vadd.f32 %v4068, %v4022
      %v4070 = vadd.f32 %v4069, %v4023
      %v4071 = vadd.f32 %v4070, %v4024
      %v4072 = vadd.f32 %v4071, %v4025
      %v4073 = vadd.f32 %v4072, %v4026
      %v4074 = vadd.f32 %v4073, %v4027
      %v4075 = vadd.f32 %v4074, %v4028
      %v4076 = vadd.f32 %v4075, %v4029
      %v4077 = vadd.f32 %v4076, %v4030
      %v4078 = vadd.f32 %v4077, %v4031
      %v4079 = vadd.f32 %v4078, %v4032
      %v4080 = vadd.f32 %v4079, %v4033
      %v4081 = vadd.f32 %v4080, %v4034
      %v4082 = vadd.f32 %v4081, %v4035
      %v4083 = vadd.f32 %v4082, %v4036
      %v4084 = vadd.f32 %v4083, %v4037
      %v4085 = vadd.f32 %v4084, %v4038
      %v4086 = vadd.f32 %v4085, %v4039
      %v4087 = vadd.f32 %v4086, %v4040
      %v4088 = vadd.f32 %v4087, %v4041
      %v4089 = vadd.f32 %v4088, %v4042
      %v4090 = vadd.f32 %v4089, %v4043
      %v4091 = vadd.f32 %v4090, %v4044
      %v4092 = vadd.f32 %v4091, %v4045
      %v4093 = vadd.f32 %v4092, %v4046
      %v4094 = vadd.f32 %v4093, %v4047
      %v4095 = vadd.f32 %v4094, %v4048
      %v4096 = vadd.f32 %v4095, %v4049
      %v4097 = vadd.f32 %v4096, %v4050
      %v4098 = vadd.f32 %v4097, %v4051
      %v4099 = vadd.f32 %v4098, %v4052
      %v4100 = vadd.f32 %v4099, %v4053
      %v4101 = vadd.f32 %v4100, %v4054
      %v4102 = vadd.f32 %v4101, %v4055
      %v4103 = vadd.f32 %v4102, %v4056
      %v4104 = vadd.f32 %v4103, %v4057
      %v4105 = vadd.f32 %v4104, %v4058
      %v4106 = vadd.f32 %v4105, %v4059
      %v4107 = vadd.f32 %v4106, %v4060
      %v4108 = vrot.slane %v4107, 4
      %v4109 = vadd.f32 %v4107, %v4108
      %v4110 = vrot.slane %v4109, 2
      %v4111 = vadd.f32 %v4109, %v4110
      %v4112 = vrot.slane %v4111, 1
      %v4113 = vadd.f32 %v4111, %v4112
      %4114 = vst [vmem:[%s295] sm:$0x1] %v4113
      %p4115 = scmp.lt.s32.totalorder %s19, 1
      %s4116 = scalar_select %p4115, %s19, 1
      %s4117 = smul.addr %s4116, 60
      %s4118 = smul.addr %s4117, 8
      %s4119 = scalar_lea.vmem %s5, %s4118
      %p4120 = scmp.lt.s32.totalorder %s19, 1
      %s4121 = scalar_select %p4120, %s19, 1
      %s4122 = scalar_lea.vmem %s6, %s4121
      %p4123 = scmp.lt.s32.totalorder %s19, 1
      %s4124 = scalar_select %p4123, %s19, 1
      %s4125 = scalar_lea.vmem %s7, %s4124
      // Predicated region
      $region41: #{double_conv.3} parent=39 // pred_check
        %p4126 = pneg %p147
      $region42: #{double_conv.3} parent=39 // pred_check_branch
        %4128 = sbr.rel (%p4126) target = $region44
      $region43: #{double_conv.3} parent=39 // pred_region
        _
      $region44: #{double_conv.3} parent=39 // pred_fallthru
        _
      // Predicated region
      $region45: #{double_conv.3} parent=39 // pred_check
        %p4129 = pneg %p173
      $region46: #{double_conv.3} parent=39 // pred_check_branch
        %4131 = sbr.rel (%p4129) target = $region48
      $region47: #{double_conv.3} parent=39 // pred_region
        _
      $region48: #{double_conv.3} parent=39 // pred_fallthru
        _
      // Predicated region
      $region49: #{double_conv.3} parent=39 // pred_check
        %p4132 = pneg %p199
      $region50: #{double_conv.3} parent=39 // pred_check_branch
        %4134 = sbr.rel (%p4132) target = $region52
      $region51: #{double_conv.3} parent=39 // pred_region
        _
      $region52: #{double_conv.3} parent=39 // pred_fallthru
        _
    $region40: #{double_conv.3} parent=5 // pred_fallthru
      _
    %p4135 = scmp.le.s32.totalorder 2, %s14
    // Predicated region
    $region53: #{double_conv.3} parent=5 // pred_check
      %p4136 = pneg %p4135
    $region54: #{double_conv.3} parent=5 // pred_check_branch
      %4138 = sbr.rel (%p4136) target = $region56
    $region55: #{double_conv.3} parent=5 // pred_region
      %s4139 = ssub.s32 %s14, 2
      // Predicated region
      $region57: #{double_conv.3} parent=55 // pred_check
        %p4140 = pneg %p153
      $region58: #{double_conv.3} parent=55 // pred_check_branch
        %4142 = sbr.rel (%p4140) target = $region60
      $region59: #{double_conv.3} parent=55 // pred_region
        %p4143 = scmp.lt.s32.totalorder %s20, 1
        %s4144 = scalar_select %p4143, %s20, 1
        %s4145 = smul.addr %s4144, 60
        %s4146 = smul.addr %s4145, 8
        %s4147 = scalar_lea.vmem %s5, %s4146
      $region60: #{double_conv.3} parent=55 // pred_fallthru
        _
      // Predicated region
      $region61: #{double_conv.3} parent=55 // pred_check
        %p4148 = pneg %p179
      $region62: #{double_conv.3} parent=55 // pred_check_branch
        %4150 = sbr.rel (%p4148) target = $region64
      $region63: #{double_conv.3} parent=55 // pred_region
        %p4151 = scmp.lt.s32.totalorder %s20, 1
        %s4152 = scalar_select %p4151, %s20, 1
        %s4153 = scalar_lea.vmem %s6, %s4152
      $region64: #{double_conv.3} parent=55 // pred_fallthru
        _
      // Predicated region
      $region65: #{double_conv.3} parent=55 // pred_check
        %p4154 = pneg %p205
      $region66: #{double_conv.3} parent=55 // pred_check_branch
        %4156 = sbr.rel (%p4154) target = $region68
      $region67: #{double_conv.3} parent=55 // pred_region
        %p4157 = scmp.lt.s32.totalorder %s20, 1
        %s4158 = scalar_select %p4157, %s20, 1
        %s4159 = scalar_lea.vmem %s7, %s4158
      $region68: #{double_conv.3} parent=55 // pred_fallthru
        _
    $region56: #{double_conv.3} parent=5 // pred_fallthru
      _
  $region6: #{double_conv.3} parent=0 // loop_footer
    %s18 = sadd.s32 1, %s14
  $region7: #{double_conv.3} parent=0 // loop_footer_branch
    %13 = sbr.rel target = $region3
  $region8: #{double_conv.3} parent=0 // loop_exit
    _

// kernel: double_conv.4
$region0: #{double_conv.4}
  #allocation0 [shape = 'u32[]', space=smem, size = 0x4, offset = 0x4, fixed_abs, tag = 'smem constant byte address 0x4 - core index']
  #allocation1 [shape = 'u32[144,128]{1,0:T(1,128)}', space=vmem, size = 0x12000, scoped, tag = 'internal scratch']
  #allocation2 [shape = 'bf16[432,384]{1,0:T(16,128)(2,1)}', space=vmem, size = 0x51000, scoped, tag = 'scratch operand']
  %s0 = inlined_call_operand.vmem [shape: f32[480,1], index: 0, kind: input, shape index: {}]
  %s1 = inlined_call_operand.vmem [shape: f32[2,480,128], index: 1, kind: input, shape index: {}]
  %s2 = inlined_call_operand.vmem [shape: f32[1,128], index: 2, kind: input, shape index: {}]
  %s3 = inlined_call_operand.vmem [shape: f32[1,128], index: 3, kind: input, shape index: {}]
  %s4 = inlined_call_operand.vmem [shape: bf16[3,384,128], index: 4, kind: input, shape index: {}]
  %s5 = inlined_call_operand.vmem [shape: f32[2,384,128], index: 5, kind: output, shape index: {0}]
  %s6 = inlined_call_operand.vmem [shape: f32[2,1,128], index: 6, kind: output, shape index: {1}]
  %s7 = inlined_call_operand.vmem [shape: f32[2,1,128], index: 7, kind: output, shape index: {2}]
  %8 = xla_tuple %s5, %s6, %s7
  %s9 = sld [smem:[#allocation0]]
  $region69: #{double_conv.4} parent=0
    _
  %s11 = ssub.s32 1, %s9
  %s12 = scalar_select 0, %s11, %s9
  loop: start=0, step=1, limit=4
  $region2: #{double_conv.4} parent=0 // loop_pre_header
    _
  $region3: #{double_conv.4} parent=0 // loop_header
    %s14 = sphi 0, %s18
    %p15 = scmp.ge.s32.totalorder %s14, 4
    %s22 = sphi 0, %s22
    %s24 = sphi 0, %s22
    %s25 = sphi 0, %s24
    %s39 = sphi 0, %s25
    %s45 = sphi 0, %s47
    %s48 = sphi 0, %s45
    %s49 = sphi 0, %s48
    %s65 = sphi 0, %s49
    %s69 = sphi 0, %s69
    %s71 = sphi 0, %s69
    %s72 = sphi 0, %s71
    %s86 = sphi 0, %s72
    %s90 = sphi 0, %s90
    %s92 = sphi 0, %s90
    %s93 = sphi 0, %s92
    %s107 = sphi 0, %s93
    %s111 = sphi 0, %s111
    %s113 = sphi 0, %s111
    %s114 = sphi 0, %s113
    %s128 = sphi 0, %s114
    %s134 = sphi 0, %s136
    %s137 = sphi 0, %s134
    %s138 = sphi 0, %s137
    %s154 = sphi 0, %s138
    %s160 = sphi 0, %s162
    %s163 = sphi 0, %s160
    %s164 = sphi 0, %s163
    %s180 = sphi 0, %s164
    %s186 = sphi 0, %s188
    %s189 = sphi 0, %s186
    %s190 = sphi 0, %s189
    %s206 = sphi 0, %s190
  $region4: #{double_conv.4} parent=0 // loop_header_branch
    %17 = sbr.rel (%p15) target = $region8
  $region5: #{double_conv.4} parent=0 // loop_body
    %s19 = ssub.s32 %s14, 1
    %s20 = ssub.s32 %s14, 2
    %s21 = sadd.s32 %s14, 1
    %s23 = sadd.s32 %s22, 1
    %p26 = scmp.eq.s32.totalorder %s14, 1
    %p27 = scmp.ne.s32.totalorder %s22, %s24
    %p28 = scmp.eq.s32.totalorder %s14, 0
    %p29 = por %p27, %p28
    %p30 = scmp.ne.s32.totalorder %s22, %s24
    %p31 = scmp.eq.s32.totalorder %s19, 1
    %p32 = por %p30, %p31
    %p33 = scmp.ne.s32.totalorder %s24, %s25
    %p34 = scmp.eq.s32.totalorder %s19, 0
    %p35 = por %p33, %p34
    %p36 = scmp.ne.s32.totalorder %s24, %s25
    %p37 = scmp.eq.s32.totalorder %s20, 1
    %p38 = por %p36, %p37
    %p40 = scmp.ne.s32.totalorder %s25, %s39
    %p41 = scmp.eq.s32.totalorder %s20, 0
    %p42 = por %p40, %p41
    %s43 = ssub.s32 %s14, %s21
    %p44 = scmp.eq.s32.totalorder %s43, 0
    %s46 = sadd.s32 %s45, 1
    %s47 = scalar_select %p44, %s45, %s46
    %p50 = pneg %p44
    %p51 = scmp.eq.s32.totalorder %s14, 1
    %p52 = por %p50, %p51
    %p53 = scmp.ne.s32.totalorder %s45, %s48
    %p54 = scmp.eq.s32.totalorder %s14, 0
    %p55 = por %p53, %p54
    %p56 = scmp.ne.s32.totalorder %s45, %s48
    %p57 = scmp.eq.s32.totalorder %s19, 1
    %p58 = por %p56, %p57
    %p59 = scmp.ne.s32.totalorder %s48, %s49
    %p60 = scmp.eq.s32.totalorder %s19, 0
    %p61 = por %p59, %p60
    %p62 = scmp.ne.s32.totalorder %s48, %s49
    %p63 = scmp.eq.s32.totalorder %s20, 1
    %p64 = por %p62, %p63
    %p66 = scmp.ne.s32.totalorder %s49, %s65
    %p67 = scmp.eq.s32.totalorder %s20, 0
    %p68 = por %p66, %p67
    %s70 = sadd.s32 %s69, 1
    %p73 = scmp.eq.s32.totalorder %s14, 1
    %p74 = scmp.ne.s32.totalorder %s69, %s71
    %p75 = scmp.eq.s32.totalorder %s14, 0
    %p76 = por %p74, %p75
    %p77 = scmp.ne.s32.totalorder %s69, %s71
    %p78 = scmp.eq.s32.totalorder %s19, 1
    %p79 = por %p77, %p78
    %p80 = scmp.ne.s32.totalorder %s71, %s72
    %p81 = scmp.eq.s32.totalorder %s19, 0
    %p82 = por %p80, %p81
    %p83 = scmp.ne.s32.totalorder %s71, %s72
    %p84 = scmp.eq.s32.totalorder %s20, 1
    %p85 = por %p83, %p84
    %p87 = scmp.ne.s32.totalorder %s72, %s86
    %p88 = scmp.eq.s32.totalorder %s20, 0
    %p89 = por %p87, %p88
    %s91 = sadd.s32 %s90, 1
    %p94 = scmp.eq.s32.totalorder %s14, 1
    %p95 = scmp.ne.s32.totalorder %s90, %s92
    %p96 = scmp.eq.s32.totalorder %s14, 0
    %p97 = por %p95, %p96
    %p98 = scmp.ne.s32.totalorder %s90, %s92
    %p99 = scmp.eq.s32.totalorder %s19, 1
    %p100 = por %p98, %p99
    %p101 = scmp.ne.s32.totalorder %s92, %s93
    %p102 = scmp.eq.s32.totalorder %s19, 0
    %p103 = por %p101, %p102
    %p104 = scmp.ne.s32.totalorder %s92, %s93
    %p105 = scmp.eq.s32.totalorder %s20, 1
    %p106 = por %p104, %p105
    %p108 = scmp.ne.s32.totalorder %s93, %s107
    %p109 = scmp.eq.s32.totalorder %s20, 0
    %p110 = por %p108, %p109
    %s112 = sadd.s32 %s111, 1
    %p115 = scmp.eq.s32.totalorder %s14, 1
    %p116 = scmp.ne.s32.totalorder %s111, %s113
    %p117 = scmp.eq.s32.totalorder %s14, 0
    %p118 = por %p116, %p117
    %p119 = scmp.ne.s32.totalorder %s111, %s113
    %p120 = scmp.eq.s32.totalorder %s19, 1
    %p121 = por %p119, %p120
    %p122 = scmp.ne.s32.totalorder %s113, %s114
    %p123 = scmp.eq.s32.totalorder %s19, 0
    %p124 = por %p122, %p123
    %p125 = scmp.ne.s32.totalorder %s113, %s114
    %p126 = scmp.eq.s32.totalorder %s20, 1
    %p127 = por %p125, %p126
    %p129 = scmp.ne.s32.totalorder %s114, %s128
    %p130 = scmp.eq.s32.totalorder %s20, 0
    %p131 = por %p129, %p130
    %s132 = ssub.s32 %s14, %s21
    %p133 = scmp.eq.s32.totalorder %s132, 0
    %s135 = sadd.s32 %s134, 1
    %s136 = scalar_select %p133, %s134, %s135
    %p139 = pneg %p133
    %p140 = scmp.eq.s32.totalorder %s14, 1
    %p141 = por %p139, %p140
    %p142 = scmp.ne.s32.totalorder %s134, %s137
    %p143 = scmp.eq.s32.totalorder %s14, 0
    %p144 = por %p142, %p143
    %p145 = scmp.ne.s32.totalorder %s134, %s137
    %p146 = scmp.eq.s32.totalorder %s19, 1
    %p147 = por %p145, %p146
    %p148 = scmp.ne.s32.totalorder %s137, %s138
    %p149 = scmp.eq.s32.totalorder %s19, 0
    %p150 = por %p148, %p149
    %p151 = scmp.ne.s32.totalorder %s137, %s138
    %p152 = scmp.eq.s32.totalorder %s20, 1
    %p153 = por %p151, %p152
    %p155 = scmp.ne.s32.totalorder %s138, %s154
    %p156 = scmp.eq.s32.totalorder %s20, 0
    %p157 = por %p155, %p156
    %s158 = ssub.s32 %s14, %s21
    %p159 = scmp.eq.s32.totalorder %s158, 0
    %s161 = sadd.s32 %s160, 1
    %s162 = scalar_select %p159, %s160, %s161
    %p165 = pneg %p159
    %p166 = scmp.eq.s32.totalorder %s14, 1
    %p167 = por %p165, %p166
    %p168 = scmp.ne.s32.totalorder %s160, %s163
    %p169 = scmp.eq.s32.totalorder %s14, 0
    %p170 = por %p168, %p169
    %p171 = scmp.ne.s32.totalorder %s160, %s163
    %p172 = scmp.eq.s32.totalorder %s19, 1
    %p173 = por %p171, %p172
    %p174 = scmp.ne.s32.totalorder %s163, %s164
    %p175 = scmp.eq.s32.totalorder %s19, 0
    %p176 = por %p174, %p175
    %p177 = scmp.ne.s32.totalorder %s163, %s164
    %p178 = scmp.eq.s32.totalorder %s20, 1
    %p179 = por %p177, %p178
    %p181 = scmp.ne.s32.totalorder %s164, %s180
    %p182 = scmp.eq.s32.totalorder %s20, 0
    %p183 = por %p181, %p182
    %s184 = ssub.s32 %s14, %s21
    %p185 = scmp.eq.s32.totalorder %s184, 0
    %s187 = sadd.s32 %s186, 1
    %s188 = scalar_select %p185, %s186, %s187
    %p191 = pneg %p185
    %p192 = scmp.eq.s32.totalorder %s14, 1
    %p193 = por %p191, %p192
    %p194 = scmp.ne.s32.totalorder %s186, %s189
    %p195 = scmp.eq.s32.totalorder %s14, 0
    %p196 = por %p194, %p195
    %p197 = scmp.ne.s32.totalorder %s186, %s189
    %p198 = scmp.eq.s32.totalorder %s19, 1
    %p199 = por %p197, %p198
    %p200 = scmp.ne.s32.totalorder %s189, %s190
    %p201 = scmp.eq.s32.totalorder %s19, 0
    %p202 = por %p200, %p201
    %p203 = scmp.ne.s32.totalorder %s189, %s190
    %p204 = scmp.eq.s32.totalorder %s20, 1
    %p205 = por %p203, %p204
    %p207 = scmp.ne.s32.totalorder %s190, %s206
    %p208 = scmp.eq.s32.totalorder %s20, 0
    %p209 = por %p207, %p208
    %p210 = scmp.le.s32.totalorder 1, %s14
    %p211 = scmp.lt.s32.totalorder %s14, 3
    %p212 = pnand %p210, %p211
    %p213 = pneg %p212
    // Predicated region
    $region9: #{double_conv.4} parent=5 // pred_check
      _
    $region10: #{double_conv.4} parent=5 // pred_check_branch
      %215 = sbr.rel (%p212) target = $region12
    $region11: #{double_conv.4} parent=5 // pred_region
      %s216 = ssub.s32 %s14, 1
      // Predicated region
      $region13: #{double_conv.4} parent=11 // pred_check
        %p217 = pneg %p35
      $region14: #{double_conv.4} parent=11 // pred_check_branch
        %219 = sbr.rel (%p217) target = $region16
      $region15: #{double_conv.4} parent=11 // pred_region
        _
      $region16: #{double_conv.4} parent=11 // pred_fallthru
        _
      // Predicated region
      $region17: #{double_conv.4} parent=11 // pred_check
        %p220 = pneg %p82
      $region18: #{double_conv.4} parent=11 // pred_check_branch
        %222 = sbr.rel (%p220) target = $region20
      $region19: #{double_conv.4} parent=11 // pred_region
        _
      $region20: #{double_conv.4} parent=11 // pred_fallthru
        _
      // Predicated region
      $region21: #{double_conv.4} parent=11 // pred_check
        %p223 = pneg %p103
      $region22: #{double_conv.4} parent=11 // pred_check_branch
        %225 = sbr.rel (%p223) target = $region24
      $region23: #{double_conv.4} parent=11 // pred_region
        _
      $region24: #{double_conv.4} parent=11 // pred_fallthru
        _
      // Predicated region
      $region25: #{double_conv.4} parent=11 // pred_check
        %p226 = pneg %p124
      $region26: #{double_conv.4} parent=11 // pred_check_branch
        %228 = sbr.rel (%p226) target = $region28
      $region27: #{double_conv.4} parent=11 // pred_region
        _
      $region28: #{double_conv.4} parent=11 // pred_fallthru
        _
    $region12: #{double_conv.4} parent=5 // pred_fallthru
      _
    %p229 = scmp.lt.s32.totalorder %s14, 2
    // Predicated region
    $region29: #{double_conv.4} parent=5 // pred_check
      %p230 = pneg %p229
    $region30: #{double_conv.4} parent=5 // pred_check_branch
      %232 = sbr.rel (%p230) target = $region32
    $region31: #{double_conv.4} parent=5 // pred_region
      // Predicated region
      $region33: #{double_conv.4} parent=31 // pred_check
        %p233 = pneg %p55
      $region34: #{double_conv.4} parent=31 // pred_check_branch
        %235 = sbr.rel (%p233) target = $region36
      $region35: #{double_conv.4} parent=31 // pred_region
        %p236 = scmp.lt.s32.totalorder %s14, 1
        %s237 = scalar_select %p236, %s14, 1
        %s238 = smul.addr %s237, 60
        %s239 = smul.addr %s238, 8
        %s240 = scalar_lea.vmem %s1, %s239
      $region36: #{double_conv.4} parent=31 // pred_fallthru
        _
    $region32: #{double_conv.4} parent=5 // pred_fallthru
      _
    %p241 = scmp.le.s32.totalorder 1, %s14
    %p242 = scmp.lt.s32.totalorder %s14, 3
    %p243 = pnand %p241, %p242
    %p244 = pneg %p243
    // Predicated region
    $region37: #{double_conv.4} parent=5 // pred_check
      _
    $region38: #{double_conv.4} parent=5 // pred_check_branch
      %246 = sbr.rel (%p243) target = $region40
    $region39: #{double_conv.4} parent=5 // pred_region
      %s247 = ssub.s32 %s14, 1
      %p248 = pneg %p35
      %p249 = pneg %p32
      %p250 = scmp.lt.s32.totalorder %s19, 1
      %s251 = scalar_select %p250, %s19, 1
      %s252 = smul.addr %s251, 60
      %s253 = smul.addr %s252, 8
      %s254 = scalar_lea.vmem %s1, %s253
      %p255 = pneg %p61
      %p256 = pneg %p58
      %p257 = pneg %p82
      %p258 = pneg %p79
      %p259 = pneg %p103
      %p260 = pneg %p100
      %p261 = pneg %p124
      %p262 = pneg %p121
      %p263 = pneg %p150
      %p264 = pneg %p147
      %p265 = scmp.lt.s32.totalorder %s19, 1
      %s266 = scalar_select %p265, %s19, 1
      %s267 = smul.addr %s266, 48
      %s268 = smul.addr %s267, 8
      %s269 = scalar_lea.vmem %s5, %s268
      %p270 = pneg %p176
      %p271 = pneg %p173
      %p272 = scmp.lt.s32.totalorder %s19, 1
      %s273 = scalar_select %p272, %s19, 1
      %s274 = scalar_lea.vmem %s6, %s273
      %p275 = pneg %p202
      %p276 = pneg %p199
      %p277 = scmp.lt.s32.totalorder %s19, 1
      %s278 = scalar_select %p277, %s19, 1
      %s279 = scalar_lea.vmem %s7, %s278
      %p280 = scmp.lt.s32.totalorder %s19, 1
      %s281 = scalar_select %p280, %s19, 1
      %s282 = smul.addr %s281, 60
      %s283 = smul.addr %s282, 8
      %s284 = scalar_lea.vmem %s1, %s283
      %p285 = scmp.lt.s32.totalorder %s19, 1
      %s286 = scalar_select %p285, %s19, 1
      %s287 = smul.addr %s286, 48
      %s288 = smul.addr %s287, 8
      %s289 = scalar_lea.vmem %s5, %s288
      %p290 = scmp.lt.s32.totalorder %s19, 1
      %s291 = scalar_select %p290, %s19, 1
      %s292 = scalar_lea.vmem %s6, %s291
      %p293 = scmp.lt.s32.totalorder %s19, 1
      %s294 = scalar_select %p293, %s19, 1
      %s295 = scalar_lea.vmem %s7, %s294
      %v297 = vld [vmem:[%s284 + $0x10] sm:$0xff]
      %v298 = vld [vmem:[%s284 + $0x18] sm:$0xff]
      %v299 = vld [vmem:[%s284 + $0x20] sm:$0xff]
      %v300 = vld [vmem:[%s284 + $0x28] sm:$0xff]
      %v301 = vld [vmem:[%s284 + $0x30] sm:$0xff]
      %v302 = vld [vmem:[%s284 + $0x38] sm:$0xff]
      %v303 = vld [vmem:[%s284 + $0x40] sm:$0xff]
      %v304 = vld [vmem:[%s284 + $0x48] sm:$0xff]
      %v305 = vld [vmem:[%s284 + $0x50] sm:$0xff]
      %v306 = vld [vmem:[%s284 + $0x58] sm:$0xff]
      %v307 = vld [vmem:[%s284 + $0x60] sm:$0xff]
      %v308 = vld [vmem:[%s284 + $0x68] sm:$0xff]
      %v309 = vld [vmem:[%s284 + $0x70] sm:$0xff]
      %v310 = vld [vmem:[%s284 + $0x78] sm:$0xff]
      %v311 = vld [vmem:[%s284 + $0x80] sm:$0xff]
      %v312 = vld [vmem:[%s284 + $0x88] sm:$0xff]
      %v313 = vld [vmem:[%s284 + $0x90] sm:$0xff]
      %v314 = vld [vmem:[%s284 + $0x98] sm:$0xff]
      %v315 = vld [vmem:[%s284 + $0xa0] sm:$0xff]
      %v316 = vld [vmem:[%s284 + $0xa8] sm:$0xff]
      %v317 = vld [vmem:[%s284 + $0xb0] sm:$0xff]
      %v318 = vld [vmem:[%s284 + $0xb8] sm:$0xff]
      %v319 = vld [vmem:[%s284 + $0xc0] sm:$0xff]
      %v320 = vld [vmem:[%s284 + $0xc8] sm:$0xff]
      %v321 = vld [vmem:[%s284 + $0xd0] sm:$0xff]
      %v322 = vld [vmem:[%s284 + $0xd8] sm:$0xff]
      %v323 = vld [vmem:[%s284 + $0xe0] sm:$0xff]
      %v324 = vld [vmem:[%s284 + $0xe8] sm:$0xff]
      %v325 = vld [vmem:[%s284 + $0xf0] sm:$0xff]
      %v326 = vld [vmem:[%s284 + $0xf8] sm:$0xff]
      %v327 = vld [vmem:[%s284 + $0x100] sm:$0xff]
      %v328 = vld [vmem:[%s284 + $0x108] sm:$0xff]
      %v329 = vld [vmem:[%s284 + $0x110] sm:$0xff]
      %v330 = vld [vmem:[%s284 + $0x118] sm:$0xff]
      %v331 = vld [vmem:[%s284 + $0x120] sm:$0xff]
      %v332 = vld [vmem:[%s284 + $0x128] sm:$0xff]
      %v333 = vld [vmem:[%s284 + $0x130] sm:$0xff]
      %v334 = vld [vmem:[%s284 + $0x138] sm:$0xff]
      %v335 = vld [vmem:[%s284 + $0x140] sm:$0xff]
      %v336 = vld [vmem:[%s284 + $0x148] sm:$0xff]
      %v337 = vld [vmem:[%s284 + $0x150] sm:$0xff]
      %v338 = vld [vmem:[%s284 + $0x158] sm:$0xff]
      %v339 = vld [vmem:[%s284 + $0x160] sm:$0xff]
      %v340 = vld [vmem:[%s284 + $0x168] sm:$0xff]
      %v341 = vld [vmem:[%s284 + $0x170] sm:$0xff]
      %v342 = vld [vmem:[%s284 + $0x178] sm:$0xff]
      %v343 = vld [vmem:[%s284 + $0x180] sm:$0xff]
      %v344 = vld [vmem:[%s284 + $0x188] sm:$0xff]
      %v345 = vld [vmem:[%s284 + $0x190] sm:$0xff]
      %v346 = vld [vmem:[%s284 + $0x198] sm:$0xff]
      %v347 = vld [vmem:[%s284 + $0x1a0] sm:$0xff]
      %v348 = vld [vmem:[%s284 + $0x1a8] sm:$0xff]
      %v349 = vld [vmem:[%s284 + $0x1b0] sm:$0xff]
      %v350 = vld [vmem:[%s284 + $0x1b8] sm:$0xff]
      %v351 = vld [vmem:[%s284 + $0x1c0] sm:$0xff]
      %v352 = vld [vmem:[%s284 + $0x1c8] sm:$0xff]
      %v353 = vld [vmem:[%s2] sm:$0x1]
      %v355 = vlaneseq
      %v356 = vshrl.u32 %v355, 7
      %v357 = vsub.s32 0, %v356
      %v358 = vrot.slane %v353, %v357
      %v360 = vmul.f32 %v297, %v358
      %v361 = vmul.f32 %v298, %v358
      %v362 = vmul.f32 %v299, %v358
      %v363 = vmul.f32 %v300, %v358
      %v364 = vmul.f32 %v301, %v358
      %v365 = vmul.f32 %v302, %v358
      %v366 = vmul.f32 %v303, %v358
      %v367 = vmul.f32 %v304, %v358
      %v368 = vmul.f32 %v305, %v358
      %v369 = vmul.f32 %v306, %v358
      %v370 = vmul.f32 %v307, %v358
      %v371 = vmul.f32 %v308, %v358
      %v372 = vmul.f32 %v309, %v358
      %v373 = vmul.f32 %v310, %v358
      %v374 = vmul.f32 %v311, %v358
      %v375 = vmul.f32 %v312, %v358
      %v376 = vmul.f32 %v313, %v358
      %v377 = vmul.f32 %v314, %v358
      %v378 = vmul.f32 %v315, %v358
      %v379 = vmul.f32 %v316, %v358
      %v380 = vmul.f32 %v317, %v358
      %v381 = vmul.f32 %v318, %v358
      %v382 = vmul.f32 %v319, %v358
      %v383 = vmul.f32 %v320, %v358
      %v384 = vmul.f32 %v321, %v358
      %v385 = vmul.f32 %v322, %v358
      %v386 = vmul.f32 %v323, %v358
      %v387 = vmul.f32 %v324, %v358
      %v388 = vmul.f32 %v325, %v358
      %v389 = vmul.f32 %v326, %v358
      %v390 = vmul.f32 %v327, %v358
      %v391 = vmul.f32 %v328, %v358
      %v392 = vmul.f32 %v329, %v358
      %v393 = vmul.f32 %v330, %v358
      %v394 = vmul.f32 %v331, %v358
      %v395 = vmul.f32 %v332, %v358
      %v396 = vmul.f32 %v333, %v358
      %v397 = vmul.f32 %v334, %v358
      %v398 = vmul.f32 %v335, %v358
      %v399 = vmul.f32 %v336, %v358
      %v400 = vmul.f32 %v337, %v358
      %v401 = vmul.f32 %v338, %v358
      %v402 = vmul.f32 %v339, %v358
      %v403 = vmul.f32 %v340, %v358
      %v404 = vmul.f32 %v341, %v358
      %v405 = vmul.f32 %v342, %v358
      %v406 = vmul.f32 %v343, %v358
      %v407 = vmul.f32 %v344, %v358
      %v408 = vmul.f32 %v345, %v358
      %v409 = vmul.f32 %v346, %v358
      %v410 = vmul.f32 %v347, %v358
      %v411 = vmul.f32 %v348, %v358
      %v412 = vmul.f32 %v349, %v358
      %v413 = vmul.f32 %v350, %v358
      %v414 = vmul.f32 %v351, %v358
      %v415 = vmul.f32 %v352, %v358
      %v416 = vld [vmem:[%s3] sm:$0x1]
      %v418 = vlaneseq
      %v419 = vshrl.u32 %v418, 7
      %v420 = vsub.s32 0, %v419
      %v421 = vrot.slane %v416, %v420
      %v423 = vadd.f32 %v360, %v421
      %v424 = vadd.f32 %v361, %v421
      %v425 = vadd.f32 %v362, %v421
      %v426 = vadd.f32 %v363, %v421
      %v427 = vadd.f32 %v364, %v421
      %v428 = vadd.f32 %v365, %v421
      %v429 = vadd.f32 %v366, %v421
      %v430 = vadd.f32 %v367, %v421
      %v431 = vadd.f32 %v368, %v421
      %v432 = vadd.f32 %v369, %v421
      %v433 = vadd.f32 %v370, %v421
      %v434 = vadd.f32 %v371, %v421
      %v435 = vadd.f32 %v372, %v421
      %v436 = vadd.f32 %v373, %v421
      %v437 = vadd.f32 %v374, %v421
      %v438 = vadd.f32 %v375, %v421
      %v439 = vadd.f32 %v376, %v421
      %v440 = vadd.f32 %v377, %v421
      %v441 = vadd.f32 %v378, %v421
      %v442 = vadd.f32 %v379, %v421
      %v443 = vadd.f32 %v380, %v421
      %v444 = vadd.f32 %v381, %v421
      %v445 = vadd.f32 %v382, %v421
      %v446 = vadd.f32 %v383, %v421
      %v447 = vadd.f32 %v384, %v421
      %v448 = vadd.f32 %v385, %v421
      %v449 = vadd.f32 %v386, %v421
      %v450 = vadd.f32 %v387, %v421
      %v451 = vadd.f32 %v388, %v421
      %v452 = vadd.f32 %v389, %v421
      %v453 = vadd.f32 %v390, %v421
      %v454 = vadd.f32 %v391, %v421
      %v455 = vadd.f32 %v392, %v421
      %v456 = vadd.f32 %v393, %v421
      %v457 = vadd.f32 %v394, %v421
      %v458 = vadd.f32 %v395, %v421
      %v459 = vadd.f32 %v396, %v421
      %v460 = vadd.f32 %v397, %v421
      %v461 = vadd.f32 %v398, %v421
      %v462 = vadd.f32 %v399, %v421
      %v463 = vadd.f32 %v400, %v421
      %v464 = vadd.f32 %v401, %v421
      %v465 = vadd.f32 %v402, %v421
      %v466 = vadd.f32 %v403, %v421
      %v467 = vadd.f32 %v404, %v421
      %v468 = vadd.f32 %v405, %v421
      %v469 = vadd.f32 %v406, %v421
      %v470 = vadd.f32 %v407, %v421
      %v471 = vadd.f32 %v408, %v421
      %v472 = vadd.f32 %v409, %v421
      %v473 = vadd.f32 %v410, %v421
      %v474 = vadd.f32 %v411, %v421
      %v475 = vadd.f32 %v412, %v421
      %v476 = vadd.f32 %v413, %v421
      %v477 = vadd.f32 %v414, %v421
      %v478 = vadd.f32 %v415, %v421
      %v479 = vmax.f32 %v423, 0.0
      %v480 = vmax.f32 %v424, 0.0
      %v481 = vmax.f32 %v425, 0.0
      %v482 = vmax.f32 %v426, 0.0
      %v483 = vmax.f32 %v427, 0.0
      %v484 = vmax.f32 %v428, 0.0
      %v485 = vmax.f32 %v429, 0.0
      %v486 = vmax.f32 %v430, 0.0
      %v487 = vmax.f32 %v431, 0.0
      %v488 = vmax.f32 %v432, 0.0
      %v489 = vmax.f32 %v433, 0.0
      %v490 = vmax.f32 %v434, 0.0
      %v491 = vmax.f32 %v435, 0.0
      %v492 = vmax.f32 %v436, 0.0
      %v493 = vmax.f32 %v437, 0.0
      %v494 = vmax.f32 %v438, 0.0
      %v495 = vmax.f32 %v439, 0.0
      %v496 = vmax.f32 %v440, 0.0
      %v497 = vmax.f32 %v441, 0.0
      %v498 = vmax.f32 %v442, 0.0
      %v499 = vmax.f32 %v443, 0.0
      %v500 = vmax.f32 %v444, 0.0
      %v501 = vmax.f32 %v445, 0.0
      %v502 = vmax.f32 %v446, 0.0
      %v503 = vmax.f32 %v447, 0.0
      %v504 = vmax.f32 %v448, 0.0
      %v505 = vmax.f32 %v449, 0.0
      %v506 = vmax.f32 %v450, 0.0
      %v507 = vmax.f32 %v451, 0.0
      %v508 = vmax.f32 %v452, 0.0
      %v509 = vmax.f32 %v453, 0.0
      %v510 = vmax.f32 %v454, 0.0
      %v511 = vmax.f32 %v455, 0.0
      %v512 = vmax.f32 %v456, 0.0
      %v513 = vmax.f32 %v457, 0.0
      %v514 = vmax.f32 %v458, 0.0
      %v515 = vmax.f32 %v459, 0.0
      %v516 = vmax.f32 %v460, 0.0
      %v517 = vmax.f32 %v461, 0.0
      %v518 = vmax.f32 %v462, 0.0
      %v519 = vmax.f32 %v463, 0.0
      %v520 = vmax.f32 %v464, 0.0
      %v521 = vmax.f32 %v465, 0.0
      %v522 = vmax.f32 %v466, 0.0
      %v523 = vmax.f32 %v467, 0.0
      %v524 = vmax.f32 %v468, 0.0
      %v525 = vmax.f32 %v469, 0.0
      %v526 = vmax.f32 %v470, 0.0
      %v527 = vmax.f32 %v471, 0.0
      %v528 = vmax.f32 %v472, 0.0
      %v529 = vmax.f32 %v473, 0.0
      %v530 = vmax.f32 %v474, 0.0
      %v531 = vmax.f32 %v475, 0.0
      %v532 = vmax.f32 %v476, 0.0
      %v533 = vmax.f32 %v477, 0.0
      %v534 = vmax.f32 %v478, 0.0
      %v535 = vld [vmem:[%s0 + $0x10] sm:$0xff]
      %v536 = vld [vmem:[%s0 + $0x18] sm:$0xff]
      %v537 = vld [vmem:[%s0 + $0x20] sm:$0xff]
      %v538 = vld [vmem:[%s0 + $0x28] sm:$0xff]
      %v539 = vld [vmem:[%s0 + $0x30] sm:$0xff]
      %v540 = vld [vmem:[%s0 + $0x38] sm:$0xff]
      %v541 = vld [vmem:[%s0 + $0x40] sm:$0xff]
      %v542 = vld [vmem:[%s0 + $0x48] sm:$0xff]
      %v543 = vld [vmem:[%s0 + $0x50] sm:$0xff]
      %v544 = vld [vmem:[%s0 + $0x58] sm:$0xff]
      %v545 = vld [vmem:[%s0 + $0x60] sm:$0xff]
      %v546 = vld [vmem:[%s0 + $0x68] sm:$0xff]
      %v547 = vld [vmem:[%s0 + $0x70] sm:$0xff]
      %v548 = vld [vmem:[%s0 + $0x78] sm:$0xff]
      %v549 = vld [vmem:[%s0 + $0x80] sm:$0xff]
      %v550 = vld [vmem:[%s0 + $0x88] sm:$0xff]
      %v551 = vld [vmem:[%s0 + $0x90] sm:$0xff]
      %v552 = vld [vmem:[%s0 + $0x98] sm:$0xff]
      %v553 = vld [vmem:[%s0 + $0xa0] sm:$0xff]
      %v554 = vld [vmem:[%s0 + $0xa8] sm:$0xff]
      %v555 = vld [vmem:[%s0 + $0xb0] sm:$0xff]
      %v556 = vld [vmem:[%s0 + $0xb8] sm:$0xff]
      %v557 = vld [vmem:[%s0 + $0xc0] sm:$0xff]
      %v558 = vld [vmem:[%s0 + $0xc8] sm:$0xff]
      %v559 = vld [vmem:[%s0 + $0xd0] sm:$0xff]
      %v560 = vld [vmem:[%s0 + $0xd8] sm:$0xff]
      %v561 = vld [vmem:[%s0 + $0xe0] sm:$0xff]
      %v562 = vld [vmem:[%s0 + $0xe8] sm:$0xff]
      %v563 = vld [vmem:[%s0 + $0xf0] sm:$0xff]
      %v564 = vld [vmem:[%s0 + $0xf8] sm:$0xff]
      %v565 = vld [vmem:[%s0 + $0x100] sm:$0xff]
      %v566 = vld [vmem:[%s0 + $0x108] sm:$0xff]
      %v567 = vld [vmem:[%s0 + $0x110] sm:$0xff]
      %v568 = vld [vmem:[%s0 + $0x118] sm:$0xff]
      %v569 = vld [vmem:[%s0 + $0x120] sm:$0xff]
      %v570 = vld [vmem:[%s0 + $0x128] sm:$0xff]
      %v571 = vld [vmem:[%s0 + $0x130] sm:$0xff]
      %v572 = vld [vmem:[%s0 + $0x138] sm:$0xff]
      %v573 = vld [vmem:[%s0 + $0x140] sm:$0xff]
      %v574 = vld [vmem:[%s0 + $0x148] sm:$0xff]
      %v575 = vld [vmem:[%s0 + $0x150] sm:$0xff]
      %v576 = vld [vmem:[%s0 + $0x158] sm:$0xff]
      %v577 = vld [vmem:[%s0 + $0x160] sm:$0xff]
      %v578 = vld [vmem:[%s0 + $0x168] sm:$0xff]
      %v579 = vld [vmem:[%s0 + $0x170] sm:$0xff]
      %v580 = vld [vmem:[%s0 + $0x178] sm:$0xff]
      %v581 = vld [vmem:[%s0 + $0x180] sm:$0xff]
      %v582 = vld [vmem:[%s0 + $0x188] sm:$0xff]
      %v583 = vld [vmem:[%s0 + $0x190] sm:$0xff]
      %v584 = vld [vmem:[%s0 + $0x198] sm:$0xff]
      %v585 = vld [vmem:[%s0 + $0x1a0] sm:$0xff]
      %v586 = vld [vmem:[%s0 + $0x1a8] sm:$0xff]
      %v587 = vld [vmem:[%s0 + $0x1b0] sm:$0xff]
      %v588 = vld [vmem:[%s0 + $0x1b8] sm:$0xff]
      %v589 = vld [vmem:[%s0 + $0x1c0] sm:$0xff]
      %v590 = vld [vmem:[%s0 + $0x1c8] sm:$0xff]
      %vm591 = vcmp.gt.f32.partialorder %v535, 0.0
      %vm592 = vcmp.gt.f32.partialorder %v536, 0.0
      %vm593 = vcmp.gt.f32.partialorder %v537, 0.0
      %vm594 = vcmp.gt.f32.partialorder %v538, 0.0
      %vm595 = vcmp.gt.f32.partialorder %v539, 0.0
      %vm596 = vcmp.gt.f32.partialorder %v540, 0.0
      %vm597 = vcmp.gt.f32.partialorder %v541, 0.0
      %vm598 = vcmp.gt.f32.partialorder %v542, 0.0
      %vm599 = vcmp.gt.f32.partialorder %v543, 0.0
      %vm600 = vcmp.gt.f32.partialorder %v544, 0.0
      %vm601 = vcmp.gt.f32.partialorder %v545, 0.0
      %vm602 = vcmp.gt.f32.partialorder %v546, 0.0
      %vm603 = vcmp.gt.f32.partialorder %v547, 0.0
      %vm604 = vcmp.gt.f32.partialorder %v548, 0.0
      %vm605 = vcmp.gt.f32.partialorder %v549, 0.0
      %vm606 = vcmp.gt.f32.partialorder %v550, 0.0
      %vm607 = vcmp.gt.f32.partialorder %v551, 0.0
      %vm608 = vcmp.gt.f32.partialorder %v552, 0.0
      %vm609 = vcmp.gt.f32.partialorder %v553, 0.0
      %vm610 = vcmp.gt.f32.partialorder %v554, 0.0
      %vm611 = vcmp.gt.f32.partialorder %v555, 0.0
      %vm612 = vcmp.gt.f32.partialorder %v556, 0.0
      %vm613 = vcmp.gt.f32.partialorder %v557, 0.0
      %vm614 = vcmp.gt.f32.partialorder %v558, 0.0
      %vm615 = vcmp.gt.f32.partialorder %v559, 0.0
      %vm616 = vcmp.gt.f32.partialorder %v560, 0.0
      %vm617 = vcmp.gt.f32.partialorder %v561, 0.0
      %vm618 = vcmp.gt.f32.partialorder %v562, 0.0
      %vm619 = vcmp.gt.f32.partialorder %v563, 0.0
      %vm620 = vcmp.gt.f32.partialorder %v564, 0.0
      %vm621 = vcmp.gt.f32.partialorder %v565, 0.0
      %vm622 = vcmp.gt.f32.partialorder %v566, 0.0
      %vm623 = vcmp.gt.f32.partialorder %v567, 0.0
      %vm624 = vcmp.gt.f32.partialorder %v568, 0.0
      %vm625 = vcmp.gt.f32.partialorder %v569, 0.0
      %vm626 = vcmp.gt.f32.partialorder %v570, 0.0
      %vm627 = vcmp.gt.f32.partialorder %v571, 0.0
      %vm628 = vcmp.gt.f32.partialorder %v572, 0.0
      %vm629 = vcmp.gt.f32.partialorder %v573, 0.0
      %vm630 = vcmp.gt.f32.partialorder %v574, 0.0
      %vm631 = vcmp.gt.f32.partialorder %v575, 0.0
      %vm632 = vcmp.gt.f32.partialorder %v576, 0.0
      %vm633 = vcmp.gt.f32.partialorder %v577, 0.0
      %vm634 = vcmp.gt.f32.partialorder %v578, 0.0
      %vm635 = vcmp.gt.f32.partialorder %v579, 0.0
      %vm636 = vcmp.gt.f32.partialorder %v580, 0.0
      %vm637 = vcmp.gt.f32.partialorder %v581, 0.0
      %vm638 = vcmp.gt.f32.partialorder %v582, 0.0
      %vm639 = vcmp.gt.f32.partialorder %v583, 0.0
      %vm640 = vcmp.gt.f32.partialorder %v584, 0.0
      %vm641 = vcmp.gt.f32.partialorder %v585, 0.0
      %vm642 = vcmp.gt.f32.partialorder %v586, 0.0
      %vm643 = vcmp.gt.f32.partialorder %v587, 0.0
      %vm644 = vcmp.gt.f32.partialorder %v588, 0.0
      %vm645 = vcmp.gt.f32.partialorder %v589, 0.0
      %vm646 = vcmp.gt.f32.partialorder %v590, 0.0
      %v647 = vsel %vm591, 1, 0
      %v648 = vsel %vm592, 1, 0
      %v649 = vsel %vm593, 1, 0
      %v650 = vsel %vm594, 1, 0
      %v651 = vsel %vm595, 1, 0
      %v652 = vsel %vm596, 1, 0
      %v653 = vsel %vm597, 1, 0
      %v654 = vsel %vm598, 1, 0
      %v655 = vsel %vm599, 1, 0
      %v656 = vsel %vm600, 1, 0
      %v657 = vsel %vm601, 1, 0
      %v658 = vsel %vm602, 1, 0
      %v659 = vsel %vm603, 1, 0
      %v660 = vsel %vm604, 1, 0
      %v661 = vsel %vm605, 1, 0
      %v662 = vsel %vm606, 1, 0
      %v663 = vsel %vm607, 1, 0
      %v664 = vsel %vm608, 1, 0
      %v665 = vsel %vm609, 1, 0
      %v666 = vsel %vm610, 1, 0
      %v667 = vsel %vm611, 1, 0
      %v668 = vsel %vm612, 1, 0
      %v669 = vsel %vm613, 1, 0
      %v670 = vsel %vm614, 1, 0
      %v671 = vsel %vm615, 1, 0
      %v672 = vsel %vm616, 1, 0
      %v673 = vsel %vm617, 1, 0
      %v674 = vsel %vm618, 1, 0
      %v675 = vsel %vm619, 1, 0
      %v676 = vsel %vm620, 1, 0
      %v677 = vsel %vm621, 1, 0
      %v678 = vsel %vm622, 1, 0
      %v679 = vsel %vm623, 1, 0
      %v680 = vsel %vm624, 1, 0
      %v681 = vsel %vm625, 1, 0
      %v682 = vsel %vm626, 1, 0
      %v683 = vsel %vm627, 1, 0
      %v684 = vsel %vm628, 1, 0
      %v685 = vsel %vm629, 1, 0
      %v686 = vsel %vm630, 1, 0
      %v687 = vsel %vm631, 1, 0
      %v688 = vsel %vm632, 1, 0
      %v689 = vsel %vm633, 1, 0
      %v690 = vsel %vm634, 1, 0
      %v691 = vsel %vm635, 1, 0
      %v692 = vsel %vm636, 1, 0
      %v693 = vsel %vm637, 1, 0
      %v694 = vsel %vm638, 1, 0
      %v695 = vsel %vm639, 1, 0
      %v696 = vsel %vm640, 1, 0
      %v697 = vsel %vm641, 1, 0
      %v698 = vsel %vm642, 1, 0
      %v699 = vsel %vm643, 1, 0
      %v700 = vsel %vm644, 1, 0
      %v701 = vsel %vm645, 1, 0
      %v702 = vsel %vm646, 1, 0
      %703 = vset.pattern.permute.xlu0 0
      %704 = vperm.xlu0 %703, %v647
      %v705 = vpop.permute.xlu0 %704
      %706 = vset.pattern.permute.xlu0 0
      %707 = vperm.xlu0 %706, %v648
      %v708 = vpop.permute.xlu0 %707
      %709 = vset.pattern.permute.xlu0 0
      %710 = vperm.xlu0 %709, %v649
      %v711 = vpop.permute.xlu0 %710
      %712 = vset.pattern.permute.xlu0 0
      %713 = vperm.xlu0 %712, %v650
      %v714 = vpop.permute.xlu0 %713
      %715 = vset.pattern.permute.xlu0 0
      %716 = vperm.xlu0 %715, %v651
      %v717 = vpop.permute.xlu0 %716
      %718 = vset.pattern.permute.xlu0 0
      %719 = vperm.xlu0 %718, %v652
      %v720 = vpop.permute.xlu0 %719
      %721 = vset.pattern.permute.xlu0 0
      %722 = vperm.xlu0 %721, %v653
      %v723 = vpop.permute.xlu0 %722
      %724 = vset.pattern.permute.xlu0 0
      %725 = vperm.xlu0 %724, %v654
      %v726 = vpop.permute.xlu0 %725
      %727 = vset.pattern.permute.xlu0 0
      %728 = vperm.xlu0 %727, %v655
      %v729 = vpop.permute.xlu0 %728
      %730 = vset.pattern.permute.xlu0 0
      %731 = vperm.xlu0 %730, %v656
      %v732 = vpop.permute.xlu0 %731
      %733 = vset.pattern.permute.xlu0 0
      %734 = vperm.xlu0 %733, %v657
      %v735 = vpop.permute.xlu0 %734
      %736 = vset.pattern.permute.xlu0 0
      %737 = vperm.xlu0 %736, %v658
      %v738 = vpop.permute.xlu0 %737
      %739 = vset.pattern.permute.xlu0 0
      %740 = vperm.xlu0 %739, %v659
      %v741 = vpop.permute.xlu0 %740
      %742 = vset.pattern.permute.xlu0 0
      %743 = vperm.xlu0 %742, %v660
      %v744 = vpop.permute.xlu0 %743
      %745 = vset.pattern.permute.xlu0 0
      %746 = vperm.xlu0 %745, %v661
      %v747 = vpop.permute.xlu0 %746
      %748 = vset.pattern.permute.xlu0 0
      %749 = vperm.xlu0 %748, %v662
      %v750 = vpop.permute.xlu0 %749
      %751 = vset.pattern.permute.xlu0 0
      %752 = vperm.xlu0 %751, %v663
      %v753 = vpop.permute.xlu0 %752
      %754 = vset.pattern.permute.xlu0 0
      %755 = vperm.xlu0 %754, %v664
      %v756 = vpop.permute.xlu0 %755
      %757 = vset.pattern.permute.xlu0 0
      %758 = vperm.xlu0 %757, %v665
      %v759 = vpop.permute.xlu0 %758
      %760 = vset.pattern.permute.xlu0 0
      %761 = vperm.xlu0 %760, %v666
      %v762 = vpop.permute.xlu0 %761
      %763 = vset.pattern.permute.xlu0 0
      %764 = vperm.xlu0 %763, %v667
      %v765 = vpop.permute.xlu0 %764
      %766 = vset.pattern.permute.xlu0 0
      %767 = vperm.xlu0 %766, %v668
      %v768 = vpop.permute.xlu0 %767
      %769 = vset.pattern.permute.xlu0 0
      %770 = vperm.xlu0 %769, %v669
      %v771 = vpop.permute.xlu0 %770
      %772 = vset.pattern.permute.xlu0 0
      %773 = vperm.xlu0 %772, %v670
      %v774 = vpop.permute.xlu0 %773
      %775 = vset.pattern.permute.xlu0 0
      %776 = vperm.xlu0 %775, %v671
      %v777 = vpop.permute.xlu0 %776
      %778 = vset.pattern.permute.xlu0 0
      %779 = vperm.xlu0 %778, %v672
      %v780 = vpop.permute.xlu0 %779
      %781 = vset.pattern.permute.xlu0 0
      %782 = vperm.xlu0 %781, %v673
      %v783 = vpop.permute.xlu0 %782
      %784 = vset.pattern.permute.xlu0 0
      %785 = vperm.xlu0 %784, %v674
      %v786 = vpop.permute.xlu0 %785
      %787 = vset.pattern.permute.xlu0 0
      %788 = vperm.xlu0 %787, %v675
      %v789 = vpop.permute.xlu0 %788
      %790 = vset.pattern.permute.xlu0 0
      %791 = vperm.xlu0 %790, %v676
      %v792 = vpop.permute.xlu0 %791
      %793 = vset.pattern.permute.xlu0 0
      %794 = vperm.xlu0 %793, %v677
      %v795 = vpop.permute.xlu0 %794
      %796 = vset.pattern.permute.xlu0 0
      %797 = vperm.xlu0 %796, %v678
      %v798 = vpop.permute.xlu0 %797
      %799 = vset.pattern.permute.xlu0 0
      %800 = vperm.xlu0 %799, %v679
      %v801 = vpop.permute.xlu0 %800
      %802 = vset.pattern.permute.xlu0 0
      %803 = vperm.xlu0 %802, %v680
      %v804 = vpop.permute.xlu0 %803
      %805 = vset.pattern.permute.xlu0 0
      %806 = vperm.xlu0 %805, %v681
      %v807 = vpop.permute.xlu0 %806
      %808 = vset.pattern.permute.xlu0 0
      %809 = vperm.xlu0 %808, %v682
      %v810 = vpop.permute.xlu0 %809
      %811 = vset.pattern.permute.xlu0 0
      %812 = vperm.xlu0 %811, %v683
      %v813 = vpop.permute.xlu0 %812
      %814 = vset.pattern.permute.xlu0 0
      %815 = vperm.xlu0 %814, %v684
      %v816 = vpop.permute.xlu0 %815
      %817 = vset.pattern.permute.xlu0 0
      %818 = vperm.xlu0 %817, %v685
      %v819 = vpop.permute.xlu0 %818
      %820 = vset.pattern.permute.xlu0 0
      %821 = vperm.xlu0 %820, %v686
      %v822 = vpop.permute.xlu0 %821
      %823 = vset.pattern.permute.xlu0 0
      %824 = vperm.xlu0 %823, %v687
      %v825 = vpop.permute.xlu0 %824
      %826 = vset.pattern.permute.xlu0 0
      %827 = vperm.xlu0 %826, %v688
      %v828 = vpop.permute.xlu0 %827
      %829 = vset.pattern.permute.xlu0 0
      %830 = vperm.xlu0 %829, %v689
      %v831 = vpop.permute.xlu0 %830
      %832 = vset.pattern.permute.xlu0 0
      %833 = vperm.xlu0 %832, %v690
      %v834 = vpop.permute.xlu0 %833
      %835 = vset.pattern.permute.xlu0 0
      %836 = vperm.xlu0 %835, %v691
      %v837 = vpop.permute.xlu0 %836
      %838 = vset.pattern.permute.xlu0 0
      %839 = vperm.xlu0 %838, %v692
      %v840 = vpop.permute.xlu0 %839
      %841 = vset.pattern.permute.xlu0 0
      %842 = vperm.xlu0 %841, %v693
      %v843 = vpop.permute.xlu0 %842
      %844 = vset.pattern.permute.xlu0 0
      %845 = vperm.xlu0 %844, %v694
      %v846 = vpop.permute.xlu0 %845
      %847 = vset.pattern.permute.xlu0 0
      %848 = vperm.xlu0 %847, %v695
      %v849 = vpop.permute.xlu0 %848
      %850 = vset.pattern.permute.xlu0 0
      %851 = vperm.xlu0 %850, %v696
      %v852 = vpop.permute.xlu0 %851
      %853 = vset.pattern.permute.xlu0 0
      %854 = vperm.xlu0 %853, %v697
      %v855 = vpop.permute.xlu0 %854
      %856 = vset.pattern.permute.xlu0 0
      %857 = vperm.xlu0 %856, %v698
      %v858 = vpop.permute.xlu0 %857
      %859 = vset.pattern.permute.xlu0 0
      %860 = vperm.xlu0 %859, %v699
      %v861 = vpop.permute.xlu0 %860
      %862 = vset.pattern.permute.xlu0 0
      %863 = vperm.xlu0 %862, %v700
      %v864 = vpop.permute.xlu0 %863
      %865 = vset.pattern.permute.xlu0 0
      %866 = vperm.xlu0 %865, %v701
      %v867 = vpop.permute.xlu0 %866
      %868 = vset.pattern.permute.xlu0 0
      %869 = vperm.xlu0 %868, %v702
      %v870 = vpop.permute.xlu0 %869
      %vm871 = vcmp.eq.s32.totalorder %v705, 1
      %vm872 = vcmp.eq.s32.totalorder %v708, 1
      %vm873 = vcmp.eq.s32.totalorder %v711, 1
      %vm874 = vcmp.eq.s32.totalorder %v714, 1
      %vm875 = vcmp.eq.s32.totalorder %v717, 1
      %vm876 = vcmp.eq.s32.totalorder %v720, 1
      %vm877 = vcmp.eq.s32.totalorder %v723, 1
      %vm878 = vcmp.eq.s32.totalorder %v726, 1
      %vm879 = vcmp.eq.s32.totalorder %v729, 1
      %vm880 = vcmp.eq.s32.totalorder %v732, 1
      %vm881 = vcmp.eq.s32.totalorder %v735, 1
      %vm882 = vcmp.eq.s32.totalorder %v738, 1
      %vm883 = vcmp.eq.s32.totalorder %v741, 1
      %vm884 = vcmp.eq.s32.totalorder %v744, 1
      %vm885 = vcmp.eq.s32.totalorder %v747, 1
      %vm886 = vcmp.eq.s32.totalorder %v750, 1
      %vm887 = vcmp.eq.s32.totalorder %v753, 1
      %vm888 = vcmp.eq.s32.totalorder %v756, 1
      %vm889 = vcmp.eq.s32.totalorder %v759, 1
      %vm890 = vcmp.eq.s32.totalorder %v762, 1
      %vm891 = vcmp.eq.s32.totalorder %v765, 1
      %vm892 = vcmp.eq.s32.totalorder %v768, 1
      %vm893 = vcmp.eq.s32.totalorder %v771, 1
      %vm894 = vcmp.eq.s32.totalorder %v774, 1
      %vm895 = vcmp.eq.s32.totalorder %v777, 1
      %vm896 = vcmp.eq.s32.totalorder %v780, 1
      %vm897 = vcmp.eq.s32.totalorder %v783, 1
      %vm898 = vcmp.eq.s32.totalorder %v786, 1
      %vm899 = vcmp.eq.s32.totalorder %v789, 1
      %vm900 = vcmp.eq.s32.totalorder %v792, 1
      %vm901 = vcmp.eq.s32.totalorder %v795, 1
      %vm902 = vcmp.eq.s32.totalorder %v798, 1
      %vm903 = vcmp.eq.s32.totalorder %v801, 1
      %vm904 = vcmp.eq.s32.totalorder %v804, 1
      %vm905 = vcmp.eq.s32.totalorder %v807, 1
      %vm906 = vcmp.eq.s32.totalorder %v810, 1
      %vm907 = vcmp.eq.s32.totalorder %v813, 1
      %vm908 = vcmp.eq.s32.totalorder %v816, 1
      %vm909 = vcmp.eq.s32.totalorder %v819, 1
      %vm910 = vcmp.eq.s32.totalorder %v822, 1
      %vm911 = vcmp.eq.s32.totalorder %v825, 1
      %vm912 = vcmp.eq.s32.totalorder %v828, 1
      %vm913 = vcmp.eq.s32.totalorder %v831, 1
      %vm914 = vcmp.eq.s32.totalorder %v834, 1
      %vm915 = vcmp.eq.s32.totalorder %v837, 1
      %vm916 = vcmp.eq.s32.totalorder %v840, 1
      %vm917 = vcmp.eq.s32.totalorder %v843, 1
      %vm918 = vcmp.eq.s32.totalorder %v846, 1
      %vm919 = vcmp.eq.s32.totalorder %v849, 1
      %vm920 = vcmp.eq.s32.totalorder %v852, 1
      %vm921 = vcmp.eq.s32.totalorder %v855, 1
      %vm922 = vcmp.eq.s32.totalorder %v858, 1
      %vm923 = vcmp.eq.s32.totalorder %v861, 1
      %vm924 = vcmp.eq.s32.totalorder %v864, 1
      %vm925 = vcmp.eq.s32.totalorder %v867, 1
      %vm926 = vcmp.eq.s32.totalorder %v870, 1
      %v927 = vsel %vm871, %v479, 0.0
      %v928 = vsel %vm872, %v480, 0.0
      %v929 = vsel %vm873, %v481, 0.0
      %v930 = vsel %vm874, %v482, 0.0
      %v931 = vsel %vm875, %v483, 0.0
      %v932 = vsel %vm876, %v484, 0.0
      %v933 = vsel %vm877, %v485, 0.0
      %v934 = vsel %vm878, %v486, 0.0
      %v935 = vsel %vm879, %v487, 0.0
      %v936 = vsel %vm880, %v488, 0.0
      %v937 = vsel %vm881, %v489, 0.0
      %v938 = vsel %vm882, %v490, 0.0
      %v939 = vsel %vm883, %v491, 0.0
      %v940 = vsel %vm884, %v492, 0.0
      %v941 = vsel %vm885, %v493, 0.0
      %v942 = vsel %vm886, %v494, 0.0
      %v943 = vsel %vm887, %v495, 0.0
      %v944 = vsel %vm888, %v496, 0.0
      %v945 = vsel %vm889, %v497, 0.0
      %v946 = vsel %vm890, %v498, 0.0
      %v947 = vsel %vm891, %v499, 0.0
      %v948 = vsel %vm892, %v500, 0.0
      %v949 = vsel %vm893, %v501, 0.0
      %v950 = vsel %vm894, %v502, 0.0
      %v951 = vsel %vm895, %v503, 0.0
      %v952 = vsel %vm896, %v504, 0.0
      %v953 = vsel %vm897, %v505, 0.0
      %v954 = vsel %vm898, %v506, 0.0
      %v955 = vsel %vm899, %v507, 0.0
      %v956 = vsel %vm900, %v508, 0.0
      %v957 = vsel %vm901, %v509, 0.0
      %v958 = vsel %vm902, %v510, 0.0
      %v959 = vsel %vm903, %v511, 0.0
      %v960 = vsel %vm904, %v512, 0.0
      %v961 = vsel %vm905, %v513, 0.0
      %v962 = vsel %vm906, %v514, 0.0
      %v963 = vsel %vm907, %v515, 0.0
      %v964 = vsel %vm908, %v516, 0.0
      %v965 = vsel %vm909, %v517, 0.0
      %v966 = vsel %vm910, %v518, 0.0
      %v967 = vsel %vm911, %v519, 0.0
      %v968 = vsel %vm912, %v520, 0.0
      %v969 = vsel %vm913, %v521, 0.0
      %v970 = vsel %vm914, %v522, 0.0
      %v971 = vsel %vm915, %v523, 0.0
      %v972 = vsel %vm916, %v524, 0.0
      %v973 = vsel %vm917, %v525, 0.0
      %v974 = vsel %vm918, %v526, 0.0
      %v975 = vsel %vm919, %v527, 0.0
      %v976 = vsel %vm920, %v528, 0.0
      %v977 = vsel %vm921, %v529, 0.0
      %v978 = vsel %vm922, %v530, 0.0
      %v979 = vsel %vm923, %v531, 0.0
      %v980 = vsel %vm924, %v532, 0.0
      %v981 = vsel %vm925, %v533, 0.0
      %v982 = vsel %vm926, %v534, 0.0
      %v983 = vrot.slane %v927, 7
      %v984 = vrot.slane %v928, 7
      %v985 = vrot.slane %v929, 7
      %v986 = vrot.slane %v930, 7
      %v987 = vrot.slane %v931, 7
      %v988 = vrot.slane %v932, 7
      %v989 = vrot.slane %v933, 7
      %v990 = vrot.slane %v934, 7
      %v991 = vrot.slane %v935, 7
      %v992 = vrot.slane %v936, 7
      %v993 = vrot.slane %v937, 7
      %v994 = vrot.slane %v938, 7
      %v995 = vrot.slane %v939, 7
      %v996 = vrot.slane %v940, 7
      %v997 = vrot.slane %v941, 7
      %v998 = vrot.slane %v942, 7
      %v999 = vrot.slane %v943, 7
      %v1000 = vrot.slane %v944, 7
      %v1001 = vrot.slane %v945, 7
      %v1002 = vrot.slane %v946, 7
      %v1003 = vrot.slane %v947, 7
      %v1004 = vrot.slane %v948, 7
      %v1005 = vrot.slane %v949, 7
      %v1006 = vrot.slane %v950, 7
      %v1007 = vrot.slane %v951, 7
      %v1008 = vrot.slane %v952, 7
      %v1009 = vrot.slane %v953, 7
      %v1010 = vrot.slane %v954, 7
      %v1011 = vrot.slane %v955, 7
      %v1012 = vrot.slane %v956, 7
      %v1013 = vrot.slane %v957, 7
      %v1014 = vrot.slane %v958, 7
      %v1015 = vrot.slane %v959, 7
      %v1016 = vrot.slane %v960, 7
      %v1017 = vrot.slane %v961, 7
      %v1018 = vrot.slane %v962, 7
      %v1019 = vrot.slane %v963, 7
      %v1020 = vrot.slane %v964, 7
      %v1021 = vrot.slane %v965, 7
      %v1022 = vrot.slane %v966, 7
      %v1023 = vrot.slane %v967, 7
      %v1024 = vrot.slane %v968, 7
      %v1025 = vrot.slane %v969, 7
      %v1026 = vrot.slane %v970, 7
      %v1027 = vrot.slane %v971, 7
      %v1028 = vrot.slane %v972, 7
      %v1029 = vrot.slane %v973, 7
      %v1030 = vrot.slane %v974, 7
      %v1031 = vrot.slane %v975, 7
      %v1032 = vrot.slane %v976, 7
      %v1033 = vrot.slane %v977, 7
      %v1034 = vrot.slane %v978, 7
      %v1035 = vrot.slane %v979, 7
      %v1036 = vrot.slane %v980, 7
      %v1037 = vrot.slane %v981, 7
      %v1038 = vlaneseq
      %v1039 = vshrl.u32 %v1038, 7
      %vm1040 = vcmp.lt.s32.totalorder %v1039, 1
      %v1041 = vsel %vm1040, %v1036, %v1037
      %v1042 = vsel %vm1040, %v1035, %v1036
      %v1043 = vsel %vm1040, %v1034, %v1035
      %v1044 = vsel %vm1040, %v1033, %v1034
      %v1045 = vsel %vm1040, %v1032, %v1033
      %v1046 = vsel %vm1040, %v1031, %v1032
      %v1047 = vsel %vm1040, %v1030, %v1031
      %v1048 = vsel %vm1040, %v1029, %v1030
      %v1049 = vsel %vm1040, %v1028, %v1029
      %v1050 = vsel %vm1040, %v1027, %v1028
      %v1051 = vsel %vm1040, %v1026, %v1027
      %v1052 = vsel %vm1040, %v1025, %v1026
      %v1053 = vsel %vm1040, %v1024, %v1025
      %v1054 = vsel %vm1040, %v1023, %v1024
      %v1055 = vsel %vm1040, %v1022, %v1023
      %v1056 = vsel %vm1040, %v1021, %v1022
      %v1057 = vsel %vm1040, %v1020, %v1021
      %v1058 = vsel %vm1040, %v1019, %v1020
      %v1059 = vsel %vm1040, %v1018, %v1019
      %v1060 = vsel %vm1040, %v1017, %v1018
      %v1061 = vsel %vm1040, %v1016, %v1017
      %v1062 = vsel %vm1040, %v1015, %v1016
      %v1063 = vsel %vm1040, %v1014, %v1015
      %v1064 = vsel %vm1040, %v1013, %v1014
      %v1065 = vsel %vm1040, %v1012, %v1013
      %v1066 = vsel %vm1040, %v1011, %v1012
      %v1067 = vsel %vm1040, %v1010, %v1011
      %v1068 = vsel %vm1040, %v1009, %v1010
      %v1069 = vsel %vm1040, %v1008, %v1009
      %v1070 = vsel %vm1040, %v1007, %v1008
      %v1071 = vsel %vm1040, %v1006, %v1007
      %v1072 = vsel %vm1040, %v1005, %v1006
      %v1073 = vsel %vm1040, %v1004, %v1005
      %v1074 = vsel %vm1040, %v1003, %v1004
      %v1075 = vsel %vm1040, %v1002, %v1003
      %v1076 = vsel %vm1040, %v1001, %v1002
      %v1077 = vsel %vm1040, %v1000, %v1001
      %v1078 = vsel %vm1040, %v999, %v1000
      %v1079 = vsel %vm1040, %v998, %v999
      %v1080 = vsel %vm1040, %v997, %v998
      %v1081 = vsel %vm1040, %v996, %v997
      %v1082 = vsel %vm1040, %v995, %v996
      %v1083 = vsel %vm1040, %v994, %v995
      %v1084 = vsel %vm1040, %v993, %v994
      %v1085 = vsel %vm1040, %v992, %v993
      %v1086 = vsel %vm1040, %v991, %v992
      %v1087 = vsel %vm1040, %v990, %v991
      %v1088 = vsel %vm1040, %v989, %v990
      %v1089 = vsel %vm1040, %v988, %v989
      %v1090 = vsel %vm1040, %v987, %v988
      %v1091 = vsel %vm1040, %v986, %v987
      %v1092 = vsel %vm1040, %v985, %v986
      %v1093 = vsel %vm1040, %v984, %v985
      %v1094 = vsel %vm1040, %v983, %v984
      %v1095 = vrot.slane %v928, 1
      %v1096 = vrot.slane %v929, 1
      %v1097 = vrot.slane %v930, 1
      %v1098 = vrot.slane %v931, 1
      %v1099 = vrot.slane %v932, 1
      %v1100 = vrot.slane %v933, 1
      %v1101 = vrot.slane %v934, 1
      %v1102 = vrot.slane %v935, 1
      %v1103 = vrot.slane %v936, 1
      %v1104 = vrot.slane %v937, 1
      %v1105 = vrot.slane %v938, 1
      %v1106 = vrot.slane %v939, 1
      %v1107 = vrot.slane %v940, 1
      %v1108 = vrot.slane %v941, 1
      %v1109 = vrot.slane %v942, 1
      %v1110 = vrot.slane %v943, 1
      %v1111 = vrot.slane %v944, 1
      %v1112 = vrot.slane %v945, 1
      %v1113 = vrot.slane %v946, 1
      %v1114 = vrot.slane %v947, 1
      %v1115 = vrot.slane %v948, 1
      %v1116 = vrot.slane %v949, 1
      %v1117 = vrot.slane %v950, 1
      %v1118 = vrot.slane %v951, 1
      %v1119 = vrot.slane %v952, 1
      %v1120 = vrot.slane %v953, 1
      %v1121 = vrot.slane %v954, 1
      %v1122 = vrot.slane %v955, 1
      %v1123 = vrot.slane %v956, 1
      %v1124 = vrot.slane %v957, 1
      %v1125 = vrot.slane %v958, 1
      %v1126 = vrot.slane %v959, 1
      %v1127 = vrot.slane %v960, 1
      %v1128 = vrot.slane %v961, 1
      %v1129 = vrot.slane %v962, 1
      %v1130 = vrot.slane %v963, 1
      %v1131 = vrot.slane %v964, 1
      %v1132 = vrot.slane %v965, 1
      %v1133 = vrot.slane %v966, 1
      %v1134 = vrot.slane %v967, 1
      %v1135 = vrot.slane %v968, 1
      %v1136 = vrot.slane %v969, 1
      %v1137 = vrot.slane %v970, 1
      %v1138 = vrot.slane %v971, 1
      %v1139 = vrot.slane %v972, 1
      %v1140 = vrot.slane %v973, 1
      %v1141 = vrot.slane %v974, 1
      %v1142 = vrot.slane %v975, 1
      %v1143 = vrot.slane %v976, 1
      %v1144 = vrot.slane %v977, 1
      %v1145 = vrot.slane %v978, 1
      %v1146 = vrot.slane %v979, 1
      %v1147 = vrot.slane %v980, 1
      %v1148 = vrot.slane %v981, 1
      %v1149 = vrot.slane %v982, 1
      %vm1150 = vcmp.lt.s32.totalorder %v1039, 7
      %v1151 = vsel %vm1150, %v1148, %v1149
      %v1152 = vsel %vm1150, %v1147, %v1148
      %v1153 = vsel %vm1150, %v1146, %v1147
      %v1154 = vsel %vm1150, %v1145, %v1146
      %v1155 = vsel %vm1150, %v1144, %v1145
      %v1156 = vsel %vm1150, %v1143, %v1144
      %v1157 = vsel %vm1150, %v1142, %v1143
      %v1158 = vsel %vm1150, %v1141, %v1142
      %v1159 = vsel %vm1150, %v1140, %v1141
      %v1160 = vsel %vm1150, %v1139, %v1140
      %v1161 = vsel %vm1150, %v1138, %v1139
      %v1162 = vsel %vm1150, %v1137, %v1138
      %v1163 = vsel %vm1150, %v1136, %v1137
      %v1164 = vsel %vm1150, %v1135, %v1136
      %v1165 = vsel %vm1150, %v1134, %v1135
      %v1166 = vsel %vm1150, %v1133, %v1134
      %v1167 = vsel %vm1150, %v1132, %v1133
      %v1168 = vsel %vm1150, %v1131, %v1132
      %v1169 = vsel %vm1150, %v1130, %v1131
      %v1170 = vsel %vm1150, %v1129, %v1130
      %v1171 = vsel %vm1150, %v1128, %v1129
      %v1172 = vsel %vm1150, %v1127, %v1128
      %v1173 = vsel %vm1150, %v1126, %v1127
      %v1174 = vsel %vm1150, %v1125, %v1126
      %v1175 = vsel %vm1150, %v1124, %v1125
      %v1176 = vsel %vm1150, %v1123, %v1124
      %v1177 = vsel %vm1150, %v1122, %v1123
      %v1178 = vsel %vm1150, %v1121, %v1122
      %v1179 = vsel %vm1150, %v1120, %v1121
      %v1180 = vsel %vm1150, %v1119, %v1120
      %v1181 = vsel %vm1150, %v1118, %v1119
      %v1182 = vsel %vm1150, %v1117, %v1118
      %v1183 = vsel %vm1150, %v1116, %v1117
      %v1184 = vsel %vm1150, %v1115, %v1116
      %v1185 = vsel %vm1150, %v1114, %v1115
      %v1186 = vsel %vm1150, %v1113, %v1114
      %v1187 = vsel %vm1150, %v1112, %v1113
      %v1188 = vsel %vm1150, %v1111, %v1112
      %v1189 = vsel %vm1150, %v1110, %v1111
      %v1190 = vsel %vm1150, %v1109, %v1110
      %v1191 = vsel %vm1150, %v1108, %v1109
      %v1192 = vsel %vm1150, %v1107, %v1108
      %v1193 = vsel %vm1150, %v1106, %v1107
      %v1194 = vsel %vm1150, %v1105, %v1106
      %v1195 = vsel %vm1150, %v1104, %v1105
      %v1196 = vsel %vm1150, %v1103, %v1104
      %v1197 = vsel %vm1150, %v1102, %v1103
      %v1198 = vsel %vm1150, %v1101, %v1102
      %v1199 = vsel %vm1150, %v1100, %v1101
      %v1200 = vsel %vm1150, %v1099, %v1100
      %v1201 = vsel %vm1150, %v1098, %v1099
      %v1202 = vsel %vm1150, %v1097, %v1098
      %v1203 = vsel %vm1150, %v1096, %v1097
      %v1204 = vsel %vm1150, %v1095, %v1096
      %v1205 = vpack.c.bf16 %v1093, %v1094
      %v1206 = vpack.c.bf16 %v1091, %v1092
      %v1207 = vpack.c.bf16 %v1089, %v1090
      %v1208 = vpack.c.bf16 %v1087, %v1088
      %v1209 = vpack.c.bf16 %v1085, %v1086
      %v1210 = vpack.c.bf16 %v1083, %v1084
      %v1211 = vpack.c.bf16 %v1081, %v1082
      %v1212 = vpack.c.bf16 %v1079, %v1080
      %v1213 = vpack.c.bf16 %v1077, %v1078
      %v1214 = vpack.c.bf16 %v1075, %v1076
      %v1215 = vpack.c.bf16 %v1073, %v1074
      %v1216 = vpack.c.bf16 %v1071, %v1072
      %v1217 = vpack.c.bf16 %v1069, %v1070
      %v1218 = vpack.c.bf16 %v1067, %v1068
      %v1219 = vpack.c.bf16 %v1065, %v1066
      %v1220 = vpack.c.bf16 %v1063, %v1064
      %v1221 = vpack.c.bf16 %v1061, %v1062
      %v1222 = vpack.c.bf16 %v1059, %v1060
      %v1223 = vpack.c.bf16 %v1057, %v1058
      %v1224 = vpack.c.bf16 %v1055, %v1056
      %v1225 = vpack.c.bf16 %v1053, %v1054
      %v1226 = vpack.c.bf16 %v1051, %v1052
      %v1227 = vpack.c.bf16 %v1049, %v1050
      %v1228 = vpack.c.bf16 %v1047, %v1048
      %v1229 = vpack.c.bf16 %v1045, %v1046
      %v1230 = vpack.c.bf16 %v1043, %v1044
      %v1231 = vpack.c.bf16 %v1041, %v1042
      %1232 = vst [vmem:[#allocation2] sm:$0xff] %v1205
      %1233 = vst [vmem:[#allocation2 + $0x18] sm:$0xff] %v1206
      %1234 = vst [vmem:[#allocation2 + $0x30] sm:$0xff] %v1207
      %1235 = vst [vmem:[#allocation2 + $0x48] sm:$0xff] %v1208
      %1236 = vst [vmem:[#allocation2 + $0x60] sm:$0xff] %v1209
      %1237 = vst [vmem:[#allocation2 + $0x78] sm:$0xff] %v1210
      %1238 = vst [vmem:[#allocation2 + $0x90] sm:$0xff] %v1211
      %1239 = vst [vmem:[#allocation2 + $0xa8] sm:$0xff] %v1212
      %1240 = vst [vmem:[#allocation2 + $0xc0] sm:$0xff] %v1213
      %1241 = vst [vmem:[#allocation2 + $0xd8] sm:$0xff] %v1214
      %1242 = vst [vmem:[#allocation2 + $0xf0] sm:$0xff] %v1215
      %1243 = vst [vmem:[#allocation2 + $0x108] sm:$0xff] %v1216
      %1244 = vst [vmem:[#allocation2 + $0x120] sm:$0xff] %v1217
      %1245 = vst [vmem:[#allocation2 + $0x138] sm:$0xff] %v1218
      %1246 = vst [vmem:[#allocation2 + $0x150] sm:$0xff] %v1219
      %1247 = vst [vmem:[#allocation2 + $0x168] sm:$0xff] %v1220
      %1248 = vst [vmem:[#allocation2 + $0x180] sm:$0xff] %v1221
      %1249 = vst [vmem:[#allocation2 + $0x198] sm:$0xff] %v1222
      %1250 = vst [vmem:[#allocation2 + $0x1b0] sm:$0xff] %v1223
      %1251 = vst [vmem:[#allocation2 + $0x1c8] sm:$0xff] %v1224
      %1252 = vst [vmem:[#allocation2 + $0x1e0] sm:$0xff] %v1225
      %1253 = vst [vmem:[#allocation2 + $0x1f8] sm:$0xff] %v1226
      %1254 = vst [vmem:[#allocation2 + $0x210] sm:$0xff] %v1227
      %1255 = vst [vmem:[#allocation2 + $0x228] sm:$0xff] %v1228
      %1256 = vst [vmem:[#allocation2 + $0x240] sm:$0xff] %v1229
      %1257 = vst [vmem:[#allocation2 + $0x258] sm:$0xff] %v1230
      %1258 = vst [vmem:[#allocation2 + $0x270] sm:$0xff] %v1231
      %v1259 = vpack.c.bf16 %v929, %v928
      %v1260 = vpack.c.bf16 %v931, %v930
      %v1261 = vpack.c.bf16 %v933, %v932
      %v1262 = vpack.c.bf16 %v935, %v934
      %v1263 = vpack.c.bf16 %v937, %v936
      %v1264 = vpack.c.bf16 %v939, %v938
      %v1265 = vpack.c.bf16 %v941, %v940
      %v1266 = vpack.c.bf16 %v943, %v942
      %v1267 = vpack.c.bf16 %v945, %v944
      %v1268 = vpack.c.bf16 %v947, %v946
      %v1269 = vpack.c.bf16 %v949, %v948
      %v1270 = vpack.c.bf16 %v951, %v950
      %v1271 = vpack.c.bf16 %v953, %v952
      %v1272 = vpack.c.bf16 %v955, %v954
      %v1273 = vpack.c.bf16 %v957, %v956
      %v1274 = vpack.c.bf16 %v959, %v958
      %v1275 = vpack.c.bf16 %v961, %v960
      %v1276 = vpack.c.bf16 %v963, %v962
      %v1277 = vpack.c.bf16 %v965, %v964
      %v1278 = vpack.c.bf16 %v967, %v966
      %v1279 = vpack.c.bf16 %v969, %v968
      %v1280 = vpack.c.bf16 %v971, %v970
      %v1281 = vpack.c.bf16 %v973, %v972
      %v1282 = vpack.c.bf16 %v975, %v974
      %v1283 = vpack.c.bf16 %v977, %v976
      %v1284 = vpack.c.bf16 %v979, %v978
      %v1285 = vpack.c.bf16 %v981, %v980
      %1286 = vst [vmem:[#allocation2 + $0x8] sm:$0xff] %v1259
      %1287 = vst [vmem:[#allocation2 + $0x20] sm:$0xff] %v1260
      %1288 = vst [vmem:[#allocation2 + $0x38] sm:$0xff] %v1261
      %1289 = vst [vmem:[#allocation2 + $0x50] sm:$0xff] %v1262
      %1290 = vst [vmem:[#allocation2 + $0x68] sm:$0xff] %v1263
      %1291 = vst [vmem:[#allocation2 + $0x80] sm:$0xff] %v1264
      %1292 = vst [vmem:[#allocation2 + $0x98] sm:$0xff] %v1265
      %1293 = vst [vmem:[#allocation2 + $0xb0] sm:$0xff] %v1266
      %1294 = vst [vmem:[#allocation2 + $0xc8] sm:$0xff] %v1267
      %1295 = vst [vmem:[#allocation2 + $0xe0] sm:$0xff] %v1268
      %1296 = vst [vmem:[#allocation2 + $0xf8] sm:$0xff] %v1269
      %1297 = vst [vmem:[#allocation2 + $0x110] sm:$0xff] %v1270
      %1298 = vst [vmem:[#allocation2 + $0x128] sm:$0xff] %v1271
      %1299 = vst [vmem:[#allocation2 + $0x140] sm:$0xff] %v1272
      %1300 = vst [vmem:[#allocation2 + $0x158] sm:$0xff] %v1273
      %1301 = vst [vmem:[#allocation2 + $0x170] sm:$0xff] %v1274
      %1302 = vst [vmem:[#allocation2 + $0x188] sm:$0xff] %v1275
      %1303 = vst [vmem:[#allocation2 + $0x1a0] sm:$0xff] %v1276
      %1304 = vst [vmem:[#allocation2 + $0x1b8] sm:$0xff] %v1277
      %1305 = vst [vmem:[#allocation2 + $0x1d0] sm:$0xff] %v1278
      %1306 = vst [vmem:[#allocation2 + $0x1e8] sm:$0xff] %v1279
      %1307 = vst [vmem:[#allocation2 + $0x200] sm:$0xff] %v1280
      %1308 = vst [vmem:[#allocation2 + $0x218] sm:$0xff] %v1281
      %1309 = vst [vmem:[#allocation2 + $0x230] sm:$0xff] %v1282
      %1310 = vst [vmem:[#allocation2 + $0x248] sm:$0xff] %v1283
      %1311 = vst [vmem:[#allocation2 + $0x260] sm:$0xff] %v1284
      %1312 = vst [vmem:[#allocation2 + $0x278] sm:$0xff] %v1285
      %v1313 = vpack.c.bf16 %v1203, %v1204
      %v1314 = vpack.c.bf16 %v1201, %v1202
      %v1315 = vpack.c.bf16 %v1199, %v1200
      %v1316 = vpack.c.bf16 %v1197, %v1198
      %v1317 = vpack.c.bf16 %v1195, %v1196
      %v1318 = vpack.c.bf16 %v1193, %v1194
      %v1319 = vpack.c.bf16 %v1191, %v1192
      %v1320 = vpack.c.bf16 %v1189, %v1190
      %v1321 = vpack.c.bf16 %v1187, %v1188
      %v1322 = vpack.c.bf16 %v1185, %v1186
      %v1323 = vpack.c.bf16 %v1183, %v1184
      %v1324 = vpack.c.bf16 %v1181, %v1182
      %v1325 = vpack.c.bf16 %v1179, %v1180
      %v1326 = vpack.c.bf16 %v1177, %v1178
      %v1327 = vpack.c.bf16 %v1175, %v1176
      %v1328 = vpack.c.bf16 %v1173, %v1174
      %v1329 = vpack.c.bf16 %v1171, %v1172
      %v1330 = vpack.c.bf16 %v1169, %v1170
      %v1331 = vpack.c.bf16 %v1167, %v1168
      %v1332 = vpack.c.bf16 %v1165, %v1166
      %v1333 = vpack.c.bf16 %v1163, %v1164
      %v1334 = vpack.c.bf16 %v1161, %v1162
      %v1335 = vpack.c.bf16 %v1159, %v1160
      %v1336 = vpack.c.bf16 %v1157, %v1158
      %v1337 = vpack.c.bf16 %v1155, %v1156
      %v1338 = vpack.c.bf16 %v1153, %v1154
      %v1339 = vpack.c.bf16 %v1151, %v1152
      %1340 = vst [vmem:[#allocation2 + $0x10] sm:$0xff] %v1313
      %1341 = vst [vmem:[#allocation2 + $0x28] sm:$0xff] %v1314
      %1342 = vst [vmem:[#allocation2 + $0x40] sm:$0xff] %v1315
      %1343 = vst [vmem:[#allocation2 + $0x58] sm:$0xff] %v1316
      %1344 = vst [vmem:[#allocation2 + $0x70] sm:$0xff] %v1317
      %1345 = vst [vmem:[#allocation2 + $0x88] sm:$0xff] %v1318
      %1346 = vst [vmem:[#allocation2 + $0xa0] sm:$0xff] %v1319
      %1347 = vst [vmem:[#allocation2 + $0xb8] sm:$0xff] %v1320
      %1348 = vst [vmem:[#allocation2 + $0xd0] sm:$0xff] %v1321
      %1349 = vst [vmem:[#allocation2 + $0xe8] sm:$0xff] %v1322
      %1350 = vst [vmem:[#allocation2 + $0x100] sm:$0xff] %v1323
      %1351 = vst [vmem:[#allocation2 + $0x118] sm:$0xff] %v1324
      %1352 = vst [vmem:[#allocation2 + $0x130] sm:$0xff] %v1325
      %1353 = vst [vmem:[#allocation2 + $0x148] sm:$0xff] %v1326
      %1354 = vst [vmem:[#allocation2 + $0x160] sm:$0xff] %v1327
      %1355 = vst [vmem:[#allocation2 + $0x178] sm:$0xff] %v1328
      %1356 = vst [vmem:[#allocation2 + $0x190] sm:$0xff] %v1329
      %1357 = vst [vmem:[#allocation2 + $0x1a8] sm:$0xff] %v1330
      %1358 = vst [vmem:[#allocation2 + $0x1c0] sm:$0xff] %v1331
      %1359 = vst [vmem:[#allocation2 + $0x1d8] sm:$0xff] %v1332
      %1360 = vst [vmem:[#allocation2 + $0x1f0] sm:$0xff] %v1333
      %1361 = vst [vmem:[#allocation2 + $0x208] sm:$0xff] %v1334
      %1362 = vst [vmem:[#allocation2 + $0x220] sm:$0xff] %v1335
      %1363 = vst [vmem:[#allocation2 + $0x238] sm:$0xff] %v1336
      %1364 = vst [vmem:[#allocation2 + $0x250] sm:$0xff] %v1337
      %1365 = vst [vmem:[#allocation2 + $0x268] sm:$0xff] %v1338
      %1366 = vst [vmem:[#allocation2 + $0x280] sm:$0xff] %v1339
      %v1367 = vld [vmem:[#allocation2] sm:$0xff]
      %v1368 = vld [vmem:[#allocation2 + $0x8] sm:$0xff]
      %v1369 = vld [vmem:[#allocation2 + $0x10] sm:$0xff]
      %v1370 = vld [vmem:[#allocation2 + $0x18] sm:$0xff]
      %v1371 = vld [vmem:[#allocation2 + $0x20] sm:$0xff]
      %v1372 = vld [vmem:[#allocation2 + $0x28] sm:$0xff]
      %v1373 = vld [vmem:[#allocation2 + $0x30] sm:$0xff]
      %v1374 = vld [vmem:[#allocation2 + $0x38] sm:$0xff]
      %v1375 = vld [vmem:[#allocation2 + $0x40] sm:$0xff]
      %v1376 = vld [vmem:[#allocation2 + $0x48] sm:$0xff]
      %v1377 = vld [vmem:[#allocation2 + $0x50] sm:$0xff]
      %v1378 = vld [vmem:[#allocation2 + $0x58] sm:$0xff]
      %v1379 = vld [vmem:[#allocation2 + $0x60] sm:$0xff]
      %v1380 = vld [vmem:[#allocation2 + $0x68] sm:$0xff]
      %v1381 = vld [vmem:[#allocation2 + $0x70] sm:$0xff]
      %v1382 = vld [vmem:[#allocation2 + $0x78] sm:$0xff]
      %v1383 = vld [vmem:[#allocation2 + $0x80] sm:$0xff]
      %v1384 = vld [vmem:[#allocation2 + $0x88] sm:$0xff]
      %v1385 = vld [vmem:[#allocation2 + $0x90] sm:$0xff]
      %v1386 = vld [vmem:[#allocation2 + $0x98] sm:$0xff]
      %v1387 = vld [vmem:[#allocation2 + $0xa0] sm:$0xff]
      %v1388 = vld [vmem:[#allocation2 + $0xa8] sm:$0xff]
      %v1389 = vld [vmem:[#allocation2 + $0xb0] sm:$0xff]
      %v1390 = vld [vmem:[#allocation2 + $0xb8] sm:$0xff]
      %v1391 = vld [vmem:[#allocation2 + $0xc0] sm:$0xff]
      %v1392 = vld [vmem:[#allocation2 + $0xc8] sm:$0xff]
      %v1393 = vld [vmem:[#allocation2 + $0xd0] sm:$0xff]
      %v1394 = vld [vmem:[#allocation2 + $0xd8] sm:$0xff]
      %v1395 = vld [vmem:[#allocation2 + $0xe0] sm:$0xff]
      %v1396 = vld [vmem:[#allocation2 + $0xe8] sm:$0xff]
      %v1397 = vld [vmem:[#allocation2 + $0xf0] sm:$0xff]
      %v1398 = vld [vmem:[#allocation2 + $0xf8] sm:$0xff]
      %v1399 = vld [vmem:[#allocation2 + $0x100] sm:$0xff]
      %v1400 = vld [vmem:[#allocation2 + $0x108] sm:$0xff]
      %v1401 = vld [vmem:[#allocation2 + $0x110] sm:$0xff]
      %v1402 = vld [vmem:[#allocation2 + $0x118] sm:$0xff]
      %v1403 = vld [vmem:[#allocation2 + $0x120] sm:$0xff]
      %v1404 = vld [vmem:[#allocation2 + $0x128] sm:$0xff]
      %v1405 = vld [vmem:[#allocation2 + $0x130] sm:$0xff]
      %v1406 = vld [vmem:[#allocation2 + $0x138] sm:$0xff]
      %v1407 = vld [vmem:[#allocation2 + $0x140] sm:$0xff]
      %v1408 = vld [vmem:[#allocation2 + $0x148] sm:$0xff]
      %v1409 = vld [vmem:[#allocation2 + $0x150] sm:$0xff]
      %v1410 = vld [vmem:[#allocation2 + $0x158] sm:$0xff]
      %v1411 = vld [vmem:[#allocation2 + $0x160] sm:$0xff]
      %v1412 = vld [vmem:[#allocation2 + $0x168] sm:$0xff]
      %v1413 = vld [vmem:[#allocation2 + $0x170] sm:$0xff]
      %v1414 = vld [vmem:[#allocation2 + $0x178] sm:$0xff]
      %v1415 = vld [vmem:[#allocation2 + $0x180] sm:$0xff]
      %v1416 = vld [vmem:[#allocation2 + $0x188] sm:$0xff]
      %v1417 = vld [vmem:[#allocation2 + $0x190] sm:$0xff]
      %v1418 = vld [vmem:[#allocation2 + $0x198] sm:$0xff]
      %v1419 = vld [vmem:[#allocation2 + $0x1a0] sm:$0xff]
      %v1420 = vld [vmem:[#allocation2 + $0x1a8] sm:$0xff]
      %v1421 = vld [vmem:[#allocation2 + $0x1b0] sm:$0xff]
      %v1422 = vld [vmem:[#allocation2 + $0x1b8] sm:$0xff]
      %v1423 = vld [vmem:[#allocation2 + $0x1c0] sm:$0xff]
      %v1424 = vld [vmem:[#allocation2 + $0x1c8] sm:$0xff]
      %v1425 = vld [vmem:[#allocation2 + $0x1d0] sm:$0xff]
      %v1426 = vld [vmem:[#allocation2 + $0x1d8] sm:$0xff]
      %v1427 = vld [vmem:[#allocation2 + $0x1e0] sm:$0xff]
      %v1428 = vld [vmem:[#allocation2 + $0x1e8] sm:$0xff]
      %v1429 = vld [vmem:[#allocation2 + $0x1f0] sm:$0xff]
      %v1430 = vld [vmem:[#allocation2 + $0x1f8] sm:$0xff]
      %v1431 = vld [vmem:[#allocation2 + $0x200] sm:$0xff]
      %v1432 = vld [vmem:[#allocation2 + $0x208] sm:$0xff]
      %v1433 = vld [vmem:[#allocation2 + $0x210] sm:$0xff]
      %v1434 = vld [vmem:[#allocation2 + $0x218] sm:$0xff]
      %v1435 = vld [vmem:[#allocation2 + $0x220] sm:$0xff]
      %v1436 = vld [vmem:[#allocation2 + $0x228] sm:$0xff]
      %v1437 = vld [vmem:[#allocation2 + $0x230] sm:$0xff]
      %v1438 = vld [vmem:[#allocation2 + $0x238] sm:$0xff]
      %v1439 = vld [vmem:[%s4] sm:$0xf]
      %v1440 = vld [vmem:[%s4 + $0x4] sm:$0xf]
      %v1441 = vld [vmem:[%s4 + $0x8] sm:$0xf]
      %v1442 = vld [vmem:[%s4 + $0xc] sm:$0xf]
      %v1443 = vld [vmem:[%s4 + $0x10] sm:$0xf]
      %v1444 = vld [vmem:[%s4 + $0x14] sm:$0xf]
      %v1445 = vld [vmem:[%s4 + $0x18] sm:$0xf]
      %v1446 = vld [vmem:[%s4 + $0x1c] sm:$0xf]
      %v1447 = vld [vmem:[%s4 + $0x20] sm:$0xf]
      %v1448 = vld [vmem:[%s4 + $0x24] sm:$0xf]
      %v1449 = vld [vmem:[%s4 + $0x28] sm:$0xf]
      %v1450 = vld [vmem:[%s4 + $0x2c] sm:$0xf]
      %v1451 = vld [vmem:[%s4 + $0x30] sm:$0xf]
      %v1452 = vld [vmem:[%s4 + $0x34] sm:$0xf]
      %v1453 = vld [vmem:[%s4 + $0x38] sm:$0xf]
      %v1454 = vld [vmem:[%s4 + $0x3c] sm:$0xf]
      %v1455 = vld [vmem:[%s4 + $0x40] sm:$0xf]
      %v1456 = vld [vmem:[%s4 + $0x44] sm:$0xf]
      %v1457 = vld [vmem:[%s4 + $0x48] sm:$0xf]
      %v1458 = vld [vmem:[%s4 + $0x4c] sm:$0xf]
      %v1459 = vld [vmem:[%s4 + $0x50] sm:$0xf]
      %v1460 = vld [vmem:[%s4 + $0x54] sm:$0xf]
      %v1461 = vld [vmem:[%s4 + $0x58] sm:$0xf]
      %v1462 = vld [vmem:[%s4 + $0x5c] sm:$0xf]
      %v1463 = vld [vmem:[%s4 + $0x60] sm:$0xf]
      %v1464 = vld [vmem:[%s4 + $0x64] sm:$0xf]
      %v1465 = vld [vmem:[%s4 + $0x68] sm:$0xf]
      %v1466 = vld [vmem:[%s4 + $0x6c] sm:$0xf]
      %v1467 = vld [vmem:[%s4 + $0x70] sm:$0xf]
      %v1468 = vld [vmem:[%s4 + $0x74] sm:$0xf]
      %v1469 = vld [vmem:[%s4 + $0x78] sm:$0xf]
      %v1470 = vld [vmem:[%s4 + $0x7c] sm:$0xf]
      %v1471 = vld [vmem:[%s4 + $0x80] sm:$0xf]
      %v1472 = vld [vmem:[%s4 + $0x84] sm:$0xf]
      %v1473 = vld [vmem:[%s4 + $0x88] sm:$0xf]
      %v1474 = vld [vmem:[%s4 + $0x8c] sm:$0xf]
      %v1475 = vld [vmem:[%s4 + $0x90] sm:$0xf]
      %v1476 = vld [vmem:[%s4 + $0x94] sm:$0xf]
      %v1477 = vld [vmem:[%s4 + $0x98] sm:$0xf]
      %v1478 = vld [vmem:[%s4 + $0x9c] sm:$0xf]
      %v1479 = vld [vmem:[%s4 + $0xa0] sm:$0xf]
      %v1480 = vld [vmem:[%s4 + $0xa4] sm:$0xf]
      %v1481 = vld [vmem:[%s4 + $0xa8] sm:$0xf]
      %v1482 = vld [vmem:[%s4 + $0xac] sm:$0xf]
      %v1483 = vld [vmem:[%s4 + $0xb0] sm:$0xf]
      %v1484 = vld [vmem:[%s4 + $0xb4] sm:$0xf]
      %v1485 = vld [vmem:[%s4 + $0xb8] sm:$0xf]
      %v1486 = vld [vmem:[%s4 + $0xbc] sm:$0xf]
      %v1535 = vunpack.c.l.b16 %v1439
      %v1536 = vunpack.c.l.b16 %v1440
      %v1537 = vunpack.c.l.b16 %v1441
      %v1538 = vunpack.c.l.b16 %v1442
      %v1539 = vunpack.c.l.b16 %v1443
      %v1540 = vunpack.c.l.b16 %v1444
      %v1541 = vunpack.c.l.b16 %v1445
      %v1542 = vunpack.c.l.b16 %v1446
      %v1543 = vunpack.c.l.b16 %v1447
      %v1544 = vunpack.c.l.b16 %v1448
      %v1545 = vunpack.c.l.b16 %v1449
      %v1546 = vunpack.c.l.b16 %v1450
      %v1547 = vunpack.c.l.b16 %v1451
      %v1548 = vunpack.c.l.b16 %v1452
      %v1549 = vunpack.c.l.b16 %v1453
      %v1550 = vunpack.c.l.b16 %v1454
      %v1551 = vunpack.c.l.b16 %v1455
      %v1552 = vunpack.c.l.b16 %v1456
      %v1553 = vunpack.c.l.b16 %v1457
      %v1554 = vunpack.c.l.b16 %v1458
      %v1555 = vunpack.c.l.b16 %v1459
      %v1556 = vunpack.c.l.b16 %v1460
      %v1557 = vunpack.c.l.b16 %v1461
      %v1558 = vunpack.c.l.b16 %v1462
      %v1559 = vunpack.c.l.b16 %v1463
      %v1560 = vunpack.c.l.b16 %v1464
      %v1561 = vunpack.c.l.b16 %v1465
      %v1562 = vunpack.c.l.b16 %v1466
      %v1563 = vunpack.c.l.b16 %v1467
      %v1564 = vunpack.c.l.b16 %v1468
      %v1565 = vunpack.c.l.b16 %v1469
      %v1566 = vunpack.c.l.b16 %v1470
      %v1567 = vunpack.c.l.b16 %v1471
      %v1568 = vunpack.c.l.b16 %v1472
      %v1569 = vunpack.c.l.b16 %v1473
      %v1570 = vunpack.c.l.b16 %v1474
      %v1571 = vunpack.c.l.b16 %v1475
      %v1572 = vunpack.c.l.b16 %v1476
      %v1573 = vunpack.c.l.b16 %v1477
      %v1574 = vunpack.c.l.b16 %v1478
      %v1575 = vunpack.c.l.b16 %v1479
      %v1576 = vunpack.c.l.b16 %v1480
      %v1577 = vunpack.c.l.b16 %v1481
      %v1578 = vunpack.c.l.b16 %v1482
      %v1579 = vunpack.c.l.b16 %v1483
      %v1580 = vunpack.c.l.b16 %v1484
      %v1581 = vunpack.c.l.b16 %v1485
      %v1582 = vunpack.c.l.b16 %v1486
      %v1583 = vpack.c.b16 %v1536, %v1535
      %v1584 = vpack.c.b16 %v1538, %v1537
      %v1585 = vpack.c.b16 %v1540, %v1539
      %v1586 = vpack.c.b16 %v1542, %v1541
      %v1587 = vpack.c.b16 %v1544, %v1543
      %v1588 = vpack.c.b16 %v1546, %v1545
      %v1589 = vpack.c.b16 %v1548, %v1547
      %v1590 = vpack.c.b16 %v1550, %v1549
      %v1591 = vpack.c.b16 %v1552, %v1551
      %v1592 = vpack.c.b16 %v1554, %v1553
      %v1593 = vpack.c.b16 %v1556, %v1555
      %v1594 = vpack.c.b16 %v1558, %v1557
      %v1595 = vpack.c.b16 %v1560, %v1559
      %v1596 = vpack.c.b16 %v1562, %v1561
      %v1597 = vpack.c.b16 %v1564, %v1563
      %v1598 = vpack.c.b16 %v1566, %v1565
      %v1599 = vpack.c.b16 %v1568, %v1567
      %v1600 = vpack.c.b16 %v1570, %v1569
      %v1601 = vpack.c.b16 %v1572, %v1571
      %v1602 = vpack.c.b16 %v1574, %v1573
      %v1603 = vpack.c.b16 %v1576, %v1575
      %v1604 = vpack.c.b16 %v1578, %v1577
      %v1605 = vpack.c.b16 %v1580, %v1579
      %v1606 = vpack.c.b16 %v1582, %v1581
      %1631 = vmatprep.subr.bf16.mxu0 0
      %1632 = vmatpush1.bf16.msra.mxu0 %v1583
      %1633 = vmatprep.subr.bf16.mxu0 0
      %1634 = vmatpush1.bf16.msra.mxu0 %v1584
      %1635 = vmatprep.subr.bf16.mxu0 0
      %1636 = vmatpush1.bf16.msra.mxu0 %v1585
      %1637 = vmatprep.subr.bf16.mxu0 0
      %1638 = vmatpush1.bf16.msra.mxu0 %v1586
      %1639 = vmatprep.subr.bf16.mxu0 0
      %1640 = vmatpush1.bf16.msra.mxu0 %v1587
      %1641 = vmatprep.subr.bf16.mxu0 0
      %1642 = vmatpush1.bf16.msra.mxu0 %v1588
      %1643 = vmatprep.subr.bf16.mxu0 0
      %1644 = vmatpush1.bf16.msra.mxu0 %v1589
      %1645 = vmatprep.subr.bf16.mxu0 0
      %1646 = vmatpush1.bf16.msra.mxu0 %v1590
      %1647 = vmatprep.subr.bf16.mxu0 0
      %1648 = vmatpush1.bf16.msra.mxu0 %v1591
      %1649 = vmatprep.subr.bf16.mxu0 0
      %1650 = vmatpush1.bf16.msra.mxu0 %v1592
      %1651 = vmatprep.subr.bf16.mxu0 0
      %1652 = vmatpush1.bf16.msra.mxu0 %v1593
      %1653 = vmatprep.subr.bf16.mxu0 0
      %1654 = vmatpush1.bf16.msra.mxu0 %v1594
      %1655 = vmatprep.subr.bf16.mxu0 0
      %1656 = vmatpush1.bf16.msra.mxu0 %v1595
      %1657 = vmatprep.subr.bf16.mxu0 0
      %1658 = vmatpush1.bf16.msra.mxu0 %v1596
      %1659 = vmatprep.subr.bf16.mxu0 0
      %1660 = vmatpush1.bf16.msra.mxu0 %v1597
      %1661 = vmatprep.subr.bf16.mxu0 0
      %1662 = vmatpush1.bf16.msra.mxu0 %v1598
      %1663 = vmatprep.mubr.bf16.mxu0 %v1368
      %1664 = vmatmul.mubr.bf16.gmra.mrb[0].mxu0 %v1367
      %v1665 = vpop.f32.mrb[0].mxu0
      %v1666 = vadd.f32 0.0, %v1665
      %v1667 = vpop.f32.mrb[0].mxu0
      %v1668 = vpop.f32.mrb[0].mxu0
      %v1669 = vadd.f32 0.0, %v1668
      %v1670 = vpop.f32.mrb[0].mxu0
      %1671 = vmatprep.mubr.bf16.mxu0 %v1371
      %1672 = vmatmul.mubr.bf16.gmra.mrb[0].mxu0 %v1370
      %v1673 = vpop.f32.mrb[0].mxu0
      %v1674 = vadd.f32 0.0, %v1673
      %v1675 = vpop.f32.mrb[0].mxu0
      %v1676 = vpop.f32.mrb[0].mxu0
      %v1677 = vadd.f32 0.0, %v1676
      %v1678 = vpop.f32.mrb[0].mxu0
      %1679 = vmatprep.mubr.bf16.mxu0 %v1374
      %1680 = vmatmul.mubr.bf16.gmra.mrb[0].mxu0 %v1373
      %v1681 = vpop.f32.mrb[0].mxu0
      %v1682 = vadd.f32 0.0, %v1681
      %v1683 = vpop.f32.mrb[0].mxu0
      %v1684 = vpop.f32.mrb[0].mxu0
      %v1685 = vadd.f32 0.0, %v1684
      %v1686 = vpop.f32.mrb[0].mxu0
      %1687 = vmatprep.mubr.bf16.mxu0 %v1377
      %1688 = vmatmul.mubr.bf16.gmra.mrb[0].mxu0 %v1376
      %v1689 = vpop.f32.mrb[0].mxu0
      %v1690 = vadd.f32 0.0, %v1689
      %v1691 = vpop.f32.mrb[0].mxu0
      %v1692 = vpop.f32.mrb[0].mxu0
      %v1693 = vadd.f32 0.0, %v1692
      %v1694 = vpop.f32.mrb[0].mxu0
      %1695 = vmatprep.mubr.bf16.mxu0 %v1380
      %1696 = vmatmul.mubr.bf16.gmra.mrb[0].mxu0 %v1379
      %v1697 = vpop.f32.mrb[0].mxu0
      %v1698 = vadd.f32 0.0, %v1697
      %v1699 = vpop.f32.mrb[0].mxu0
      %v1700 = vpop.f32.mrb[0].mxu0
      %v1701 = vadd.f32 0.0, %v1700
      %v1702 = vpop.f32.mrb[0].mxu0
      %1703 = vmatprep.mubr.bf16.mxu0 %v1383
      %1704 = vmatmul.mubr.bf16.gmra.mrb[0].mxu0 %v1382
      %v1705 = vpop.f32.mrb[0].mxu0
      %v1706 = vadd.f32 0.0, %v1705
      %v1707 = vpop.f32.mrb[0].mxu0
      %v1708 = vpop.f32.mrb[0].mxu0
      %v1709 = vadd.f32 0.0, %v1708
      %v1710 = vpop.f32.mrb[0].mxu0
      %1711 = vmatprep.mubr.bf16.mxu0 %v1386
      %1712 = vmatmul.mubr.bf16.gmra.mrb[0].mxu0 %v1385
      %v1713 = vpop.f32.mrb[0].mxu0
      %v1714 = vadd.f32 0.0, %v1713
      %v1715 = vpop.f32.mrb[0].mxu0
      %v1716 = vpop.f32.mrb[0].mxu0
      %v1717 = vadd.f32 0.0, %v1716
      %v1718 = vpop.f32.mrb[0].mxu0
      %1719 = vmatprep.mubr.bf16.mxu0 %v1389
      %1720 = vmatmul.mubr.bf16.gmra.mrb[0].mxu0 %v1388
      %v1721 = vpop.f32.mrb[0].mxu0
      %v1722 = vadd.f32 0.0, %v1721
      %v1723 = vpop.f32.mrb[0].mxu0
      %v1724 = vpop.f32.mrb[0].mxu0
      %v1725 = vadd.f32 0.0, %v1724
      %v1726 = vpop.f32.mrb[0].mxu0
      %1727 = vmatprep.mubr.bf16.mxu0 %v1392
      %1728 = vmatmul.mubr.bf16.gmra.mrb[0].mxu0 %v1391
      %v1729 = vpop.f32.mrb[0].mxu0
      %v1730 = vadd.f32 0.0, %v1729
      %v1731 = vpop.f32.mrb[0].mxu0
      %v1732 = vpop.f32.mrb[0].mxu0
      %v1733 = vadd.f32 0.0, %v1732
      %v1734 = vpop.f32.mrb[0].mxu0
      %1735 = vmatprep.mubr.bf16.mxu0 %v1395
      %1736 = vmatmul.mubr.bf16.gmra.mrb[0].mxu0 %v1394
      %v1737 = vpop.f32.mrb[0].mxu0
      %v1738 = vadd.f32 0.0, %v1737
      %v1739 = vpop.f32.mrb[0].mxu0
      %v1740 = vpop.f32.mrb[0].mxu0
      %v1741 = vadd.f32 0.0, %v1740
      %v1742 = vpop.f32.mrb[0].mxu0
      %1743 = vmatprep.mubr.bf16.mxu0 %v1398
      %1744 = vmatmul.mubr.bf16.gmra.mrb[0].mxu0 %v1397
      %v1745 = vpop.f32.mrb[0].mxu0
      %v1746 = vadd.f32 0.0, %v1745
      %v1747 = vpop.f32.mrb[0].mxu0
      %v1748 = vpop.f32.mrb[0].mxu0
      %v1749 = vadd.f32 0.0, %v1748
      %v1750 = vpop.f32.mrb[0].mxu0
      %1751 = vmatprep.mubr.bf16.mxu0 %v1401
      %1752 = vmatmul.mubr.bf16.gmra.mrb[0].mxu0 %v1400
      %v1753 = vpop.f32.mrb[0].mxu0
      %v1754 = vadd.f32 0.0, %v1753
      %v1755 = vpop.f32.mrb[0].mxu0
      %v1756 = vpop.f32.mrb[0].mxu0
      %v1757 = vadd.f32 0.0, %v1756
      %v1758 = vpop.f32.mrb[0].mxu0
      %1759 = vmatprep.mubr.bf16.mxu0 %v1404
      %1760 = vmatmul.mubr.bf16.gmra.mrb[0].mxu0 %v1403
      %v1761 = vpop.f32.mrb[0].mxu0
      %v1762 = vadd.f32 0.0, %v1761
      %v1763 = vpop.f32.mrb[0].mxu0
      %v1764 = vpop.f32.mrb[0].mxu0
      %v1765 = vadd.f32 0.0, %v1764
      %v1766 = vpop.f32.mrb[0].mxu0
      %1767 = vmatprep.mubr.bf16.mxu0 %v1407
      %1768 = vmatmul.mubr.bf16.gmra.mrb[0].mxu0 %v1406
      %v1769 = vpop.f32.mrb[0].mxu0
      %v1770 = vadd.f32 0.0, %v1769
      %v1771 = vpop.f32.mrb[0].mxu0
      %v1772 = vpop.f32.mrb[0].mxu0
      %v1773 = vadd.f32 0.0, %v1772
      %v1774 = vpop.f32.mrb[0].mxu0
      %1775 = vmatprep.mubr.bf16.mxu0 %v1410
      %1776 = vmatmul.mubr.bf16.gmra.mrb[0].mxu0 %v1409
      %v1777 = vpop.f32.mrb[0].mxu0
      %v1778 = vadd.f32 0.0, %v1777
      %v1779 = vpop.f32.mrb[0].mxu0
      %v1780 = vpop.f32.mrb[0].mxu0
      %v1781 = vadd.f32 0.0, %v1780
      %v1782 = vpop.f32.mrb[0].mxu0
      %1783 = vmatprep.mubr.bf16.mxu0 %v1413
      %1784 = vmatmul.mubr.bf16.gmra.mrb[0].mxu0 %v1412
      %v1785 = vpop.f32.mrb[0].mxu0
      %v1786 = vadd.f32 0.0, %v1785
      %v1787 = vpop.f32.mrb[0].mxu0
      %v1788 = vpop.f32.mrb[0].mxu0
      %v1789 = vadd.f32 0.0, %v1788
      %v1790 = vpop.f32.mrb[0].mxu0
      %1791 = vmatprep.mubr.bf16.mxu0 %v1416
      %1792 = vmatmul.mubr.bf16.gmra.mrb[0].mxu0 %v1415
      %v1793 = vpop.f32.mrb[0].mxu0
      %v1794 = vadd.f32 0.0, %v1793
      %v1795 = vpop.f32.mrb[0].mxu0
      %v1796 = vpop.f32.mrb[0].mxu0
      %v1797 = vadd.f32 0.0, %v1796
      %v1798 = vpop.f32.mrb[0].mxu0
      %1799 = vmatprep.mubr.bf16.mxu0 %v1419
      %1800 = vmatmul.mubr.bf16.gmra.mrb[0].mxu0 %v1418
      %v1801 = vpop.f32.mrb[0].mxu0
      %v1802 = vadd.f32 0.0, %v1801
      %v1803 = vpop.f32.mrb[0].mxu0
      %v1804 = vpop.f32.mrb[0].mxu0
      %v1805 = vadd.f32 0.0, %v1804
      %v1806 = vpop.f32.mrb[0].mxu0
      %1807 = vmatprep.mubr.bf16.mxu0 %v1422
      %1808 = vmatmul.mubr.bf16.gmra.mrb[0].mxu0 %v1421
      %v1809 = vpop.f32.mrb[0].mxu0
      %v1810 = vadd.f32 0.0, %v1809
      %v1811 = vpop.f32.mrb[0].mxu0
      %v1812 = vpop.f32.mrb[0].mxu0
      %v1813 = vadd.f32 0.0, %v1812
      %v1814 = vpop.f32.mrb[0].mxu0
      %1815 = vmatprep.mubr.bf16.mxu0 %v1425
      %1816 = vmatmul.mubr.bf16.gmra.mrb[0].mxu0 %v1424
      %v1817 = vpop.f32.mrb[0].mxu0
      %v1818 = vadd.f32 0.0, %v1817
      %v1819 = vpop.f32.mrb[0].mxu0
      %v1820 = vpop.f32.mrb[0].mxu0
      %v1821 = vadd.f32 0.0, %v1820
      %v1822 = vpop.f32.mrb[0].mxu0
      %1823 = vmatprep.mubr.bf16.mxu0 %v1428
      %1824 = vmatmul.mubr.bf16.gmra.mrb[0].mxu0 %v1427
      %v1825 = vpop.f32.mrb[0].mxu0
      %v1826 = vadd.f32 0.0, %v1825
      %v1827 = vpop.f32.mrb[0].mxu0
      %v1828 = vpop.f32.mrb[0].mxu0
      %v1829 = vadd.f32 0.0, %v1828
      %v1830 = vpop.f32.mrb[0].mxu0
      %1831 = vmatprep.mubr.bf16.mxu0 %v1431
      %1832 = vmatmul.mubr.bf16.gmra.mrb[0].mxu0 %v1430
      %v1833 = vpop.f32.mrb[0].mxu0
      %v1834 = vadd.f32 0.0, %v1833
      %v1835 = vpop.f32.mrb[0].mxu0
      %v1836 = vpop.f32.mrb[0].mxu0
      %v1837 = vadd.f32 0.0, %v1836
      %v1838 = vpop.f32.mrb[0].mxu0
      %1839 = vmatprep.mubr.bf16.mxu0 %v1434
      %1840 = vmatmul.mubr.bf16.gmra.mrb[0].mxu0 %v1433
      %v1841 = vpop.f32.mrb[0].mxu0
      %v1842 = vadd.f32 0.0, %v1841
      %v1843 = vpop.f32.mrb[0].mxu0
      %v1844 = vpop.f32.mrb[0].mxu0
      %v1845 = vadd.f32 0.0, %v1844
      %v1846 = vpop.f32.mrb[0].mxu0
      %1847 = vmatprep.mubr.bf16.mxu0 %v1437
      %1848 = vmatmul.mubr.bf16.gmra.mrb[0].mxu0 %v1436
      %v1849 = vpop.f32.mrb[0].mxu0
      %v1850 = vadd.f32 0.0, %v1849
      %v1851 = vpop.f32.mrb[0].mxu0
      %v1852 = vpop.f32.mrb[0].mxu0
      %v1853 = vadd.f32 0.0, %v1852
      %v1854 = vpop.f32.mrb[0].mxu0
      %1855 = vdwg.mxu0
      %1856 = vmatprep.subr.bf16.mxu0 0
      %1857 = vmatpush1.bf16.msra.mxu0 %v1599
      %1858 = vmatprep.subr.bf16.mxu0 0
      %1859 = vmatpush1.bf16.msra.mxu0 %v1600
      %1860 = vmatprep.subr.bf16.mxu0 0
      %1861 = vmatpush1.bf16.msra.mxu0 %v1601
      %1862 = vmatprep.subr.bf16.mxu0 0
      %1863 = vmatpush1.bf16.msra.mxu0 %v1602
      %1864 = vmatprep.subr.bf16.mxu0 0
      %1865 = vmatpush1.bf16.msra.mxu0 %v1603
      %1866 = vmatprep.subr.bf16.mxu0 0
      %1867 = vmatpush1.bf16.msra.mxu0 %v1604
      %1868 = vmatprep.subr.bf16.mxu0 0
      %1869 = vmatpush1.bf16.msra.mxu0 %v1605
      %1870 = vmatprep.subr.bf16.mxu0 0
      %1871 = vmatpush1.bf16.msra.mxu0 %v1606
      %1872 = vmatprep.subr.bf16.mxu0 0
      %1873 = vmatpush1.bf16.msra.mxu0 0
      %1874 = vmatprep.subr.bf16.mxu0 0
      %1875 = vmatpush1.bf16.msra.mxu0 0
      %1876 = vmatprep.subr.bf16.mxu0 0
      %1877 = vmatpush1.bf16.msra.mxu0 0
      %1878 = vmatprep.subr.bf16.mxu0 0
      %1879 = vmatpush1.bf16.msra.mxu0 0
      %1880 = vmatprep.subr.bf16.mxu0 0
      %1881 = vmatpush1.bf16.msra.mxu0 0
      %1882 = vmatprep.subr.bf16.mxu0 0
      %1883 = vmatpush1.bf16.msra.mxu0 0
      %1884 = vmatprep.subr.bf16.mxu0 0
      %1885 = vmatpush1.bf16.msra.mxu0 0
      %1886 = vmatprep.subr.bf16.mxu0 0
      %1887 = vmatpush1.bf16.msra.mxu0 0
      %1888 = vmatprep.mubr.bf16.mxu0 0
      %1889 = vmatmul.mubr.bf16.gmra.mrb[0].mxu0 %v1369
      %v1890 = vpop.f32.mrb[0].mxu0
      %v1891 = vadd.f32 %v1666, %v1890
      %v1892 = vpop.f32.mrb[0].mxu0
      %v1893 = vpop.f32.mrb[0].mxu0
      %v1894 = vadd.f32 %v1669, %v1893
      %v1895 = vpop.f32.mrb[0].mxu0
      %1896 = vmatprep.mubr.bf16.mxu0 0
      %1897 = vmatmul.mubr.bf16.gmra.mrb[0].mxu0 %v1372
      %v1898 = vpop.f32.mrb[0].mxu0
      %v1899 = vadd.f32 %v1674, %v1898
      %v1900 = vpop.f32.mrb[0].mxu0
      %v1901 = vpop.f32.mrb[0].mxu0
      %v1902 = vadd.f32 %v1677, %v1901
      %v1903 = vpop.f32.mrb[0].mxu0
      %1904 = vmatprep.mubr.bf16.mxu0 0
      %1905 = vmatmul.mubr.bf16.gmra.mrb[0].mxu0 %v1375
      %v1906 = vpop.f32.mrb[0].mxu0
      %v1907 = vadd.f32 %v1682, %v1906
      %v1908 = vpop.f32.mrb[0].mxu0
      %v1909 = vpop.f32.mrb[0].mxu0
      %v1910 = vadd.f32 %v1685, %v1909
      %v1911 = vpop.f32.mrb[0].mxu0
      %1912 = vmatprep.mubr.bf16.mxu0 0
      %1913 = vmatmul.mubr.bf16.gmra.mrb[0].mxu0 %v1378
      %v1914 = vpop.f32.mrb[0].mxu0
      %v1915 = vadd.f32 %v1690, %v1914
      %v1916 = vpop.f32.mrb[0].mxu0
      %v1917 = vpop.f32.mrb[0].mxu0
      %v1918 = vadd.f32 %v1693, %v1917
      %v1919 = vpop.f32.mrb[0].mxu0
      %1920 = vmatprep.mubr.bf16.mxu0 0
      %1921 = vmatmul.mubr.bf16.gmra.mrb[0].mxu0 %v1381
      %v1922 = vpop.f32.mrb[0].mxu0
      %v1923 = vadd.f32 %v1698, %v1922
      %v1924 = vpop.f32.mrb[0].mxu0
      %v1925 = vpop.f32.mrb[0].mxu0
      %v1926 = vadd.f32 %v1701, %v1925
      %v1927 = vpop.f32.mrb[0].mxu0
      %1928 = vmatprep.mubr.bf16.mxu0 0
      %1929 = vmatmul.mubr.bf16.gmra.mrb[0].mxu0 %v1384
      %v1930 = vpop.f32.mrb[0].mxu0
      %v1931 = vadd.f32 %v1706, %v1930
      %v1932 = vpop.f32.mrb[0].mxu0
      %v1933 = vpop.f32.mrb[0].mxu0
      %v1934 = vadd.f32 %v1709, %v1933
      %v1935 = vpop.f32.mrb[0].mxu0
      %1936 = vmatprep.mubr.bf16.mxu0 0
      %1937 = vmatmul.mubr.bf16.gmra.mrb[0].mxu0 %v1387
      %v1938 = vpop.f32.mrb[0].mxu0
      %v1939 = vadd.f32 %v1714, %v1938
      %v1940 = vpop.f32.mrb[0].mxu0
      %v1941 = vpop.f32.mrb[0].mxu0
      %v1942 = vadd.f32 %v1717, %v1941
      %v1943 = vpop.f32.mrb[0].mxu0
      %1944 = vmatprep.mubr.bf16.mxu0 0
      %1945 = vmatmul.mubr.bf16.gmra.mrb[0].mxu0 %v1390
      %v1946 = vpop.f32.mrb[0].mxu0
      %v1947 = vadd.f32 %v1722, %v1946
      %v1948 = vpop.f32.mrb[0].mxu0
      %v1949 = vpop.f32.mrb[0].mxu0
      %v1950 = vadd.f32 %v1725, %v1949
      %v1951 = vpop.f32.mrb[0].mxu0
      %1952 = vmatprep.mubr.bf16.mxu0 0
      %1953 = vmatmul.mubr.bf16.gmra.mrb[0].mxu0 %v1393
      %v1954 = vpop.f32.mrb[0].mxu0
      %v1955 = vadd.f32 %v1730, %v1954
      %v1956 = vpop.f32.mrb[0].mxu0
      %v1957 = vpop.f32.mrb[0].mxu0
      %v1958 = vadd.f32 %v1733, %v1957
      %v1959 = vpop.f32.mrb[0].mxu0
      %1960 = vmatprep.mubr.bf16.mxu0 0
      %1961 = vmatmul.mubr.bf16.gmra.mrb[0].mxu0 %v1396
      %v1962 = vpop.f32.mrb[0].mxu0
      %v1963 = vadd.f32 %v1738, %v1962
      %v1964 = vpop.f32.mrb[0].mxu0
      %v1965 = vpop.f32.mrb[0].mxu0
      %v1966 = vadd.f32 %v1741, %v1965
      %v1967 = vpop.f32.mrb[0].mxu0
      %1968 = vmatprep.mubr.bf16.mxu0 0
      %1969 = vmatmul.mubr.bf16.gmra.mrb[0].mxu0 %v1399
      %v1970 = vpop.f32.mrb[0].mxu0
      %v1971 = vadd.f32 %v1746, %v1970
      %v1972 = vpop.f32.mrb[0].mxu0
      %v1973 = vpop.f32.mrb[0].mxu0
      %v1974 = vadd.f32 %v1749, %v1973
      %v1975 = vpop.f32.mrb[0].mxu0
      %1976 = vmatprep.mubr.bf16.mxu0 0
      %1977 = vmatmul.mubr.bf16.gmra.mrb[0].mxu0 %v1402
      %v1978 = vpop.f32.mrb[0].mxu0
      %v1979 = vadd.f32 %v1754, %v1978
      %v1980 = vpop.f32.mrb[0].mxu0
      %v1981 = vpop.f32.mrb[0].mxu0
      %v1982 = vadd.f32 %v1757, %v1981
      %v1983 = vpop.f32.mrb[0].mxu0
      %1984 = vmatprep.mubr.bf16.mxu0 0
      %1985 = vmatmul.mubr.bf16.gmra.mrb[0].mxu0 %v1405
      %v1986 = vpop.f32.mrb[0].mxu0
      %v1987 = vadd.f32 %v1762, %v1986
      %v1988 = vpop.f32.mrb[0].mxu0
      %v1989 = vpop.f32.mrb[0].mxu0
      %v1990 = vadd.f32 %v1765, %v1989
      %v1991 = vpop.f32.mrb[0].mxu0
      %1992 = vmatprep.mubr.bf16.mxu0 0
      %1993 = vmatmul.mubr.bf16.gmra.mrb[0].mxu0 %v1408
      %v1994 = vpop.f32.mrb[0].mxu0
      %v1995 = vadd.f32 %v1770, %v1994
      %v1996 = vpop.f32.mrb[0].mxu0
      %v1997 = vpop.f32.mrb[0].mxu0
      %v1998 = vadd.f32 %v1773, %v1997
      %v1999 = vpop.f32.mrb[0].mxu0
      %2000 = vmatprep.mubr.bf16.mxu0 0
      %2001 = vmatmul.mubr.bf16.gmra.mrb[0].mxu0 %v1411
      %v2002 = vpop.f32.mrb[0].mxu0
      %v2003 = vadd.f32 %v1778, %v2002
      %v2004 = vpop.f32.mrb[0].mxu0
      %v2005 = vpop.f32.mrb[0].mxu0
      %v2006 = vadd.f32 %v1781, %v2005
      %v2007 = vpop.f32.mrb[0].mxu0
      %2008 = vmatprep.mubr.bf16.mxu0 0
      %2009 = vmatmul.mubr.bf16.gmra.mrb[0].mxu0 %v1414
      %v2010 = vpop.f32.mrb[0].mxu0
      %v2011 = vadd.f32 %v1786, %v2010
      %v2012 = vpop.f32.mrb[0].mxu0
      %v2013 = vpop.f32.mrb[0].mxu0
      %v2014 = vadd.f32 %v1789, %v2013
      %v2015 = vpop.f32.mrb[0].mxu0
      %2016 = vmatprep.mubr.bf16.mxu0 0
      %2017 = vmatmul.mubr.bf16.gmra.mrb[0].mxu0 %v1417
      %v2018 = vpop.f32.mrb[0].mxu0
      %v2019 = vadd.f32 %v1794, %v2018
      %v2020 = vpop.f32.mrb[0].mxu0
      %v2021 = vpop.f32.mrb[0].mxu0
      %v2022 = vadd.f32 %v1797, %v2021
      %v2023 = vpop.f32.mrb[0].mxu0
      %2024 = vmatprep.mubr.bf16.mxu0 0
      %2025 = vmatmul.mubr.bf16.gmra.mrb[0].mxu0 %v1420
      %v2026 = vpop.f32.mrb[0].mxu0
      %v2027 = vadd.f32 %v1802, %v2026
      %v2028 = vpop.f32.mrb[0].mxu0
      %v2029 = vpop.f32.mrb[0].mxu0
      %v2030 = vadd.f32 %v1805, %v2029
      %v2031 = vpop.f32.mrb[0].mxu0
      %2032 = vmatprep.mubr.bf16.mxu0 0
      %2033 = vmatmul.mubr.bf16.gmra.mrb[0].mxu0 %v1423
      %v2034 = vpop.f32.mrb[0].mxu0
      %v2035 = vadd.f32 %v1810, %v2034
      %v2036 = vpop.f32.mrb[0].mxu0
      %v2037 = vpop.f32.mrb[0].mxu0
      %v2038 = vadd.f32 %v1813, %v2037
      %v2039 = vpop.f32.mrb[0].mxu0
      %2040 = vmatprep.mubr.bf16.mxu0 0
      %2041 = vmatmul.mubr.bf16.gmra.mrb[0].mxu0 %v1426
      %v2042 = vpop.f32.mrb[0].mxu0
      %v2043 = vadd.f32 %v1818, %v2042
      %v2044 = vpop.f32.mrb[0].mxu0
      %v2045 = vpop.f32.mrb[0].mxu0
      %v2046 = vadd.f32 %v1821, %v2045
      %v2047 = vpop.f32.mrb[0].mxu0
      %2048 = vmatprep.mubr.bf16.mxu0 0
      %2049 = vmatmul.mubr.bf16.gmra.mrb[0].mxu0 %v1429
      %v2050 = vpop.f32.mrb[0].mxu0
      %v2051 = vadd.f32 %v1826, %v2050
      %v2052 = vpop.f32.mrb[0].mxu0
      %v2053 = vpop.f32.mrb[0].mxu0
      %v2054 = vadd.f32 %v1829, %v2053
      %v2055 = vpop.f32.mrb[0].mxu0
      %2056 = vmatprep.mubr.bf16.mxu0 0
      %2057 = vmatmul.mubr.bf16.gmra.mrb[0].mxu0 %v1432
      %v2058 = vpop.f32.mrb[0].mxu0
      %v2059 = vadd.f32 %v1834, %v2058
      %v2060 = vpop.f32.mrb[0].mxu0
      %v2061 = vpop.f32.mrb[0].mxu0
      %v2062 = vadd.f32 %v1837, %v2061
      %v2063 = vpop.f32.mrb[0].mxu0
      %2064 = vmatprep.mubr.bf16.mxu0 0
      %2065 = vmatmul.mubr.bf16.gmra.mrb[0].mxu0 %v1435
      %v2066 = vpop.f32.mrb[0].mxu0
      %v2067 = vadd.f32 %v1842, %v2066
      %v2068 = vpop.f32.mrb[0].mxu0
      %v2069 = vpop.f32.mrb[0].mxu0
      %v2070 = vadd.f32 %v1845, %v2069
      %v2071 = vpop.f32.mrb[0].mxu0
      %2072 = vmatprep.mubr.bf16.mxu0 0
      %2073 = vmatmul.mubr.bf16.gmra.mrb[0].mxu0 %v1438
      %v2074 = vpop.f32.mrb[0].mxu0
      %v2075 = vadd.f32 %v1850, %v2074
      %v2076 = vpop.f32.mrb[0].mxu0
      %v2077 = vpop.f32.mrb[0].mxu0
      %v2078 = vadd.f32 %v1853, %v2077
      %v2079 = vpop.f32.mrb[0].mxu0
      %2080 = vdwg.mxu0
      %2081 = vst [vmem:[%s289] sm:$0xff] %v1891
      %2082 = vst [vmem:[%s289 + $0x8] sm:$0xff] %v1894
      %2083 = vst [vmem:[%s289 + $0x10] sm:$0xff] %v1899
      %2084 = vst [vmem:[%s289 + $0x18] sm:$0xff] %v1902
      %2085 = vst [vmem:[%s289 + $0x20] sm:$0xff] %v1907
      %2086 = vst [vmem:[%s289 + $0x28] sm:$0xff] %v1910
      %2087 = vst [vmem:[%s289 + $0x30] sm:$0xff] %v1915
      %2088 = vst [vmem:[%s289 + $0x38] sm:$0xff] %v1918
      %2089 = vst [vmem:[%s289 + $0x40] sm:$0xff] %v1923
      %2090 = vst [vmem:[%s289 + $0x48] sm:$0xff] %v1926
      %2091 = vst [vmem:[%s289 + $0x50] sm:$0xff] %v1931
      %2092 = vst [vmem:[%s289 + $0x58] sm:$0xff] %v1934
      %2093 = vst [vmem:[%s289 + $0x60] sm:$0xff] %v1939
      %2094 = vst [vmem:[%s289 + $0x68] sm:$0xff] %v1942
      %2095 = vst [vmem:[%s289 + $0x70] sm:$0xff] %v1947
      %2096 = vst [vmem:[%s289 + $0x78] sm:$0xff] %v1950
      %2097 = vst [vmem:[%s289 + $0x80] sm:$0xff] %v1955
      %2098 = vst [vmem:[%s289 + $0x88] sm:$0xff] %v1958
      %2099 = vst [vmem:[%s289 + $0x90] sm:$0xff] %v1963
      %2100 = vst [vmem:[%s289 + $0x98] sm:$0xff] %v1966
      %2101 = vst [vmem:[%s289 + $0xa0] sm:$0xff] %v1971
      %2102 = vst [vmem:[%s289 + $0xa8] sm:$0xff] %v1974
      %2103 = vst [vmem:[%s289 + $0xb0] sm:$0xff] %v1979
      %2104 = vst [vmem:[%s289 + $0xb8] sm:$0xff] %v1982
      %2105 = vst [vmem:[%s289 + $0xc0] sm:$0xff] %v1987
      %2106 = vst [vmem:[%s289 + $0xc8] sm:$0xff] %v1990
      %2107 = vst [vmem:[%s289 + $0xd0] sm:$0xff] %v1995
      %2108 = vst [vmem:[%s289 + $0xd8] sm:$0xff] %v1998
      %2109 = vst [vmem:[%s289 + $0xe0] sm:$0xff] %v2003
      %2110 = vst [vmem:[%s289 + $0xe8] sm:$0xff] %v2006
      %2111 = vst [vmem:[%s289 + $0xf0] sm:$0xff] %v2011
      %2112 = vst [vmem:[%s289 + $0xf8] sm:$0xff] %v2014
      %2113 = vst [vmem:[%s289 + $0x100] sm:$0xff] %v2019
      %2114 = vst [vmem:[%s289 + $0x108] sm:$0xff] %v2022
      %2115 = vst [vmem:[%s289 + $0x110] sm:$0xff] %v2027
      %2116 = vst [vmem:[%s289 + $0x118] sm:$0xff] %v2030
      %2117 = vst [vmem:[%s289 + $0x120] sm:$0xff] %v2035
      %2118 = vst [vmem:[%s289 + $0x128] sm:$0xff] %v2038
      %2119 = vst [vmem:[%s289 + $0x130] sm:$0xff] %v2043
      %2120 = vst [vmem:[%s289 + $0x138] sm:$0xff] %v2046
      %2121 = vst [vmem:[%s289 + $0x140] sm:$0xff] %v2051
      %2122 = vst [vmem:[%s289 + $0x148] sm:$0xff] %v2054
      %2123 = vst [vmem:[%s289 + $0x150] sm:$0xff] %v2059
      %2124 = vst [vmem:[%s289 + $0x158] sm:$0xff] %v2062
      %2125 = vst [vmem:[%s289 + $0x160] sm:$0xff] %v2067
      %2126 = vst [vmem:[%s289 + $0x168] sm:$0xff] %v2070
      %2127 = vst [vmem:[%s289 + $0x170] sm:$0xff] %v2075
      %2128 = vst [vmem:[%s289 + $0x178] sm:$0xff] %v2078
      %v2129 = vld [vmem:[#allocation2 + $0x18] sm:$0xf0]
      %v2130 = vld [vmem:[#allocation2 + $0x20] sm:$0xf0]
      %v2131 = vld [vmem:[#allocation2 + $0x28] sm:$0xf0]
      %v2132 = vld [vmem:[#allocation2 + $0x30] sm:$0xff]
      %v2133 = vld [vmem:[#allocation2 + $0x38] sm:$0xff]
      %v2134 = vld [vmem:[#allocation2 + $0x40] sm:$0xff]
      %v2135 = vld [vmem:[#allocation2 + $0x48] sm:$0xff]
      %v2136 = vld [vmem:[#allocation2 + $0x50] sm:$0xff]
      %v2137 = vld [vmem:[#allocation2 + $0x58] sm:$0xff]
      %v2138 = vld [vmem:[#allocation2 + $0x60] sm:$0xff]
      %v2139 = vld [vmem:[#allocation2 + $0x68] sm:$0xff]
      %v2140 = vld [vmem:[#allocation2 + $0x70] sm:$0xff]
      %v2141 = vld [vmem:[#allocation2 + $0x78] sm:$0xff]
      %v2142 = vld [vmem:[#allocation2 + $0x80] sm:$0xff]
      %v2143 = vld [vmem:[#allocation2 + $0x88] sm:$0xff]
      %v2144 = vld [vmem:[#allocation2 + $0x90] sm:$0xff]
      %v2145 = vld [vmem:[#allocation2 + $0x98] sm:$0xff]
      %v2146 = vld [vmem:[#allocation2 + $0xa0] sm:$0xff]
      %v2147 = vld [vmem:[#allocation2 + $0xa8] sm:$0xff]
      %v2148 = vld [vmem:[#allocation2 + $0xb0] sm:$0xff]
      %v2149 = vld [vmem:[#allocation2 + $0xb8] sm:$0xff]
      %v2150 = vld [vmem:[#allocation2 + $0xc0] sm:$0xff]
      %v2151 = vld [vmem:[#allocation2 + $0xc8] sm:$0xff]
      %v2152 = vld [vmem:[#allocation2 + $0xd0] sm:$0xff]
      %v2153 = vld [vmem:[#allocation2 + $0xd8] sm:$0xff]
      %v2154 = vld [vmem:[#allocation2 + $0xe0] sm:$0xff]
      %v2155 = vld [vmem:[#allocation2 + $0xe8] sm:$0xff]
      %v2156 = vld [vmem:[#allocation2 + $0xf0] sm:$0xff]
      %v2157 = vld [vmem:[#allocation2 + $0xf8] sm:$0xff]
      %v2158 = vld [vmem:[#allocation2 + $0x100] sm:$0xff]
      %v2159 = vld [vmem:[#allocation2 + $0x108] sm:$0xff]
      %v2160 = vld [vmem:[#allocation2 + $0x110] sm:$0xff]
      %v2161 = vld [vmem:[#allocation2 + $0x118] sm:$0xff]
      %v2162 = vld [vmem:[#allocation2 + $0x120] sm:$0xff]
      %v2163 = vld [vmem:[#allocation2 + $0x128] sm:$0xff]
      %v2164 = vld [vmem:[#allocation2 + $0x130] sm:$0xff]
      %v2165 = vld [vmem:[#allocation2 + $0x138] sm:$0xff]
      %v2166 = vld [vmem:[#allocation2 + $0x140] sm:$0xff]
      %v2167 = vld [vmem:[#allocation2 + $0x148] sm:$0xff]
      %v2168 = vld [vmem:[#allocation2 + $0x150] sm:$0xff]
      %v2169 = vld [vmem:[#allocation2 + $0x158] sm:$0xff]
      %v2170 = vld [vmem:[#allocation2 + $0x160] sm:$0xff]
      %v2171 = vld [vmem:[#allocation2 + $0x168] sm:$0xff]
      %v2172 = vld [vmem:[#allocation2 + $0x170] sm:$0xff]
      %v2173 = vld [vmem:[#allocation2 + $0x178] sm:$0xff]
      %v2174 = vld [vmem:[#allocation2 + $0x180] sm:$0xff]
      %v2175 = vld [vmem:[#allocation2 + $0x188] sm:$0xff]
      %v2176 = vld [vmem:[#allocation2 + $0x190] sm:$0xff]
      %v2177 = vld [vmem:[#allocation2 + $0x198] sm:$0xff]
      %v2178 = vld [vmem:[#allocation2 + $0x1a0] sm:$0xff]
      %v2179 = vld [vmem:[#allocation2 + $0x1a8] sm:$0xff]
      %v2180 = vld [vmem:[#allocation2 + $0x1b0] sm:$0xff]
      %v2181 = vld [vmem:[#allocation2 + $0x1b8] sm:$0xff]
      %v2182 = vld [vmem:[#allocation2 + $0x1c0] sm:$0xff]
      %v2183 = vld [vmem:[#allocation2 + $0x1c8] sm:$0xff]
      %v2184 = vld [vmem:[#allocation2 + $0x1d0] sm:$0xff]
      %v2185 = vld [vmem:[#allocation2 + $0x1d8] sm:$0xff]
      %v2186 = vld [vmem:[#allocation2 + $0x1e0] sm:$0xff]
      %v2187 = vld [vmem:[#allocation2 + $0x1e8] sm:$0xff]
      %v2188 = vld [vmem:[#allocation2 + $0x1f0] sm:$0xff]
      %v2189 = vld [vmem:[#allocation2 + $0x1f8] sm:$0xff]
      %v2190 = vld [vmem:[#allocation2 + $0x200] sm:$0xff]
      %v2191 = vld [vmem:[#allocation2 + $0x208] sm:$0xff]
      %v2192 = vld [vmem:[#allocation2 + $0x210] sm:$0xff]
      %v2193 = vld [vmem:[#allocation2 + $0x218] sm:$0xff]
      %v2194 = vld [vmem:[#allocation2 + $0x220] sm:$0xff]
      %v2195 = vld [vmem:[#allocation2 + $0x228] sm:$0xff]
      %v2196 = vld [vmem:[#allocation2 + $0x230] sm:$0xff]
      %v2197 = vld [vmem:[#allocation2 + $0x238] sm:$0xff]
      %v2198 = vld [vmem:[#allocation2 + $0x240] sm:$0xff]
      %v2199 = vld [vmem:[#allocation2 + $0x248] sm:$0xff]
      %v2200 = vld [vmem:[#allocation2 + $0x250] sm:$0xff]
      %v2201 = vld [vmem:[#allocation2 + $0x258] sm:$0xf]
      %v2202 = vld [vmem:[#allocation2 + $0x260] sm:$0xf]
      %v2203 = vld [vmem:[#allocation2 + $0x268] sm:$0xf]
      %s2204 = scalar_lea.vmem %s4, 192
      %v2205 = vld [vmem:[%s2204] sm:$0xf]
      %v2206 = vld [vmem:[%s2204 + $0x4] sm:$0xf]
      %v2207 = vld [vmem:[%s2204 + $0x8] sm:$0xf]
      %v2208 = vld [vmem:[%s2204 + $0xc] sm:$0xf]
      %v2209 = vld [vmem:[%s2204 + $0x10] sm:$0xf]
      %v2210 = vld [vmem:[%s2204 + $0x14] sm:$0xf]
      %v2211 = vld [vmem:[%s2204 + $0x18] sm:$0xf]
      %v2212 = vld [vmem:[%s2204 + $0x1c] sm:$0xf]
      %v2213 = vld [vmem:[%s2204 + $0x20] sm:$0xf]
      %v2214 = vld [vmem:[%s2204 + $0x24] sm:$0xf]
      %v2215 = vld [vmem:[%s2204 + $0x28] sm:$0xf]
      %v2216 = vld [vmem:[%s2204 + $0x2c] sm:$0xf]
      %v2217 = vld [vmem:[%s2204 + $0x30] sm:$0xf]
      %v2218 = vld [vmem:[%s2204 + $0x34] sm:$0xf]
      %v2219 = vld [vmem:[%s2204 + $0x38] sm:$0xf]
      %v2220 = vld [vmem:[%s2204 + $0x3c] sm:$0xf]
      %v2221 = vld [vmem:[%s2204 + $0x40] sm:$0xf]
      %v2222 = vld [vmem:[%s2204 + $0x44] sm:$0xf]
      %v2223 = vld [vmem:[%s2204 + $0x48] sm:$0xf]
      %v2224 = vld [vmem:[%s2204 + $0x4c] sm:$0xf]
      %v2225 = vld [vmem:[%s2204 + $0x50] sm:$0xf]
      %v2226 = vld [vmem:[%s2204 + $0x54] sm:$0xf]
      %v2227 = vld [vmem:[%s2204 + $0x58] sm:$0xf]
      %v2228 = vld [vmem:[%s2204 + $0x5c] sm:$0xf]
      %v2229 = vld [vmem:[%s2204 + $0x60] sm:$0xf]
      %v2230 = vld [vmem:[%s2204 + $0x64] sm:$0xf]
      %v2231 = vld [vmem:[%s2204 + $0x68] sm:$0xf]
      %v2232 = vld [vmem:[%s2204 + $0x6c] sm:$0xf]
      %v2233 = vld [vmem:[%s2204 + $0x70] sm:$0xf]
      %v2234 = vld [vmem:[%s2204 + $0x74] sm:$0xf]
      %v2235 = vld [vmem:[%s2204 + $0x78] sm:$0xf]
      %v2236 = vld [vmem:[%s2204 + $0x7c] sm:$0xf]
      %v2237 = vld [vmem:[%s2204 + $0x80] sm:$0xf]
      %v2238 = vld [vmem:[%s2204 + $0x84] sm:$0xf]
      %v2239 = vld [vmem:[%s2204 + $0x88] sm:$0xf]
      %v2240 = vld [vmem:[%s2204 + $0x8c] sm:$0xf]
      %v2241 = vld [vmem:[%s2204 + $0x90] sm:$0xf]
      %v2242 = vld [vmem:[%s2204 + $0x94] sm:$0xf]
      %v2243 = vld [vmem:[%s2204 + $0x98] sm:$0xf]
      %v2244 = vld [vmem:[%s2204 + $0x9c] sm:$0xf]
      %v2245 = vld [vmem:[%s2204 + $0xa0] sm:$0xf]
      %v2246 = vld [vmem:[%s2204 + $0xa4] sm:$0xf]
      %v2247 = vld [vmem:[%s2204 + $0xa8] sm:$0xf]
      %v2248 = vld [vmem:[%s2204 + $0xac] sm:$0xf]
      %v2249 = vld [vmem:[%s2204 + $0xb0] sm:$0xf]
      %v2250 = vld [vmem:[%s2204 + $0xb4] sm:$0xf]
      %v2251 = vld [vmem:[%s2204 + $0xb8] sm:$0xf]
      %v2252 = vld [vmem:[%s2204 + $0xbc] sm:$0xf]
      %vm2328 = vcmask 1043456
      %v2329 = vrot.slane %v2129, 4
      %v2330 = vrot.slane %v2132, 4
      %v2331 = vsel %vm2328, %v2329, %v2330
      %v2332 = vrot.slane %v2130, 4
      %v2333 = vrot.slane %v2133, 4
      %v2334 = vsel %vm2328, %v2332, %v2333
      %v2335 = vrot.slane %v2131, 4
      %v2336 = vrot.slane %v2134, 4
      %v2337 = vsel %vm2328, %v2335, %v2336
      %v2338 = vrot.slane %v2135, 4
      %v2339 = vsel %vm2328, %v2330, %v2338
      %v2340 = vrot.slane %v2136, 4
      %v2341 = vsel %vm2328, %v2333, %v2340
      %v2342 = vrot.slane %v2137, 4
      %v2343 = vsel %vm2328, %v2336, %v2342
      %v2344 = vrot.slane %v2138, 4
      %v2345 = vsel %vm2328, %v2338, %v2344
      %v2346 = vrot.slane %v2139, 4
      %v2347 = vsel %vm2328, %v2340, %v2346
      %v2348 = vrot.slane %v2140, 4
      %v2349 = vsel %vm2328, %v2342, %v2348
      %v2350 = vrot.slane %v2141, 4
      %v2351 = vsel %vm2328, %v2344, %v2350
      %v2352 = vrot.slane %v2142, 4
      %v2353 = vsel %vm2328, %v2346, %v2352
      %v2354 = vrot.slane %v2143, 4
      %v2355 = vsel %vm2328, %v2348, %v2354
      %v2356 = vrot.slane %v2144, 4
      %v2357 = vsel %vm2328, %v2350, %v2356
      %v2358 = vrot.slane %v2145, 4
      %v2359 = vsel %vm2328, %v2352, %v2358
      %v2360 = vrot.slane %v2146, 4
      %v2361 = vsel %vm2328, %v2354, %v2360
      %v2362 = vrot.slane %v2147, 4
      %v2363 = vsel %vm2328, %v2356, %v2362
      %v2364 = vrot.slane %v2148, 4
      %v2365 = vsel %vm2328, %v2358, %v2364
      %v2366 = vrot.slane %v2149, 4
      %v2367 = vsel %vm2328, %v2360, %v2366
      %v2368 = vrot.slane %v2150, 4
      %v2369 = vsel %vm2328, %v2362, %v2368
      %v2370 = vrot.slane %v2151, 4
      %v2371 = vsel %vm2328, %v2364, %v2370
      %v2372 = vrot.slane %v2152, 4
      %v2373 = vsel %vm2328, %v2366, %v2372
      %v2374 = vrot.slane %v2153, 4
      %v2375 = vsel %vm2328, %v2368, %v2374
      %v2376 = vrot.slane %v2154, 4
      %v2377 = vsel %vm2328, %v2370, %v2376
      %v2378 = vrot.slane %v2155, 4
      %v2379 = vsel %vm2328, %v2372, %v2378
      %v2380 = vrot.slane %v2156, 4
      %v2381 = vsel %vm2328, %v2374, %v2380
      %v2382 = vrot.slane %v2157, 4
      %v2383 = vsel %vm2328, %v2376, %v2382
      %v2384 = vrot.slane %v2158, 4
      %v2385 = vsel %vm2328, %v2378, %v2384
      %v2386 = vrot.slane %v2159, 4
      %v2387 = vsel %vm2328, %v2380, %v2386
      %v2388 = vrot.slane %v2160, 4
      %v2389 = vsel %vm2328, %v2382, %v2388
      %v2390 = vrot.slane %v2161, 4
      %v2391 = vsel %vm2328, %v2384, %v2390
      %v2392 = vrot.slane %v2162, 4
      %v2393 = vsel %vm2328, %v2386, %v2392
      %v2394 = vrot.slane %v2163, 4
      %v2395 = vsel %vm2328, %v2388, %v2394
      %v2396 = vrot.slane %v2164, 4
      %v2397 = vsel %vm2328, %v2390, %v2396
      %v2398 = vrot.slane %v2165, 4
      %v2399 = vsel %vm2328, %v2392, %v2398
      %v2400 = vrot.slane %v2166, 4
      %v2401 = vsel %vm2328, %v2394, %v2400
      %v2402 = vrot.slane %v2167, 4
      %v2403 = vsel %vm2328, %v2396, %v2402
      %v2404 = vrot.slane %v2168, 4
      %v2405 = vsel %vm2328, %v2398, %v2404
      %v2406 = vrot.slane %v2169, 4
      %v2407 = vsel %vm2328, %v2400, %v2406
      %v2408 = vrot.slane %v2170, 4
      %v2409 = vsel %vm2328, %v2402, %v2408
      %v2410 = vrot.slane %v2171, 4
      %v2411 = vsel %vm2328, %v2404, %v2410
      %v2412 = vrot.slane %v2172, 4
      %v2413 = vsel %vm2328, %v2406, %v2412
      %v2414 = vrot.slane %v2173, 4
      %v2415 = vsel %vm2328, %v2408, %v2414
      %v2416 = vrot.slane %v2174, 4
      %v2417 = vsel %vm2328, %v2410, %v2416
      %v2418 = vrot.slane %v2175, 4
      %v2419 = vsel %vm2328, %v2412, %v2418
      %v2420 = vrot.slane %v2176, 4
      %v2421 = vsel %vm2328, %v2414, %v2420
      %v2422 = vrot.slane %v2177, 4
      %v2423 = vsel %vm2328, %v2416, %v2422
      %v2424 = vrot.slane %v2178, 4
      %v2425 = vsel %vm2328, %v2418, %v2424
      %v2426 = vrot.slane %v2179, 4
      %v2427 = vsel %vm2328, %v2420, %v2426
      %v2428 = vrot.slane %v2180, 4
      %v2429 = vsel %vm2328, %v2422, %v2428
      %v2430 = vrot.slane %v2181, 4
      %v2431 = vsel %vm2328, %v2424, %v2430
      %v2432 = vrot.slane %v2182, 4
      %v2433 = vsel %vm2328, %v2426, %v2432
      %v2434 = vrot.slane %v2183, 4
      %v2435 = vsel %vm2328, %v2428, %v2434
      %v2436 = vrot.slane %v2184, 4
      %v2437 = vsel %vm2328, %v2430, %v2436
      %v2438 = vrot.slane %v2185, 4
      %v2439 = vsel %vm2328, %v2432, %v2438
      %v2440 = vrot.slane %v2186, 4
      %v2441 = vsel %vm2328, %v2434, %v2440
      %v2442 = vrot.slane %v2187, 4
      %v2443 = vsel %vm2328, %v2436, %v2442
      %v2444 = vrot.slane %v2188, 4
      %v2445 = vsel %vm2328, %v2438, %v2444
      %v2446 = vrot.slane %v2189, 4
      %v2447 = vsel %vm2328, %v2440, %v2446
      %v2448 = vrot.slane %v2190, 4
      %v2449 = vsel %vm2328, %v2442, %v2448
      %v2450 = vrot.slane %v2191, 4
      %v2451 = vsel %vm2328, %v2444, %v2450
      %v2452 = vrot.slane %v2192, 4
      %v2453 = vsel %vm2328, %v2446, %v2452
      %v2454 = vrot.slane %v2193, 4
      %v2455 = vsel %vm2328, %v2448, %v2454
      %v2456 = vrot.slane %v2194, 4
      %v2457 = vsel %vm2328, %v2450, %v2456
      %v2458 = vrot.slane %v2195, 4
      %v2459 = vsel %vm2328, %v2452, %v2458
      %v2460 = vrot.slane %v2196, 4
      %v2461 = vsel %vm2328, %v2454, %v2460
      %v2462 = vrot.slane %v2197, 4
      %v2463 = vsel %vm2328, %v2456, %v2462
      %v2464 = vrot.slane %v2198, 4
      %v2465 = vsel %vm2328, %v2458, %v2464
      %v2466 = vrot.slane %v2199, 4
      %v2467 = vsel %vm2328, %v2460, %v2466
      %v2468 = vrot.slane %v2200, 4
      %v2469 = vsel %vm2328, %v2462, %v2468
      %v2470 = vrot.slane %v2201, 4
      %v2471 = vsel %vm2328, %v2464, %v2470
      %v2472 = vrot.slane %v2202, 4
      %v2473 = vsel %vm2328, %v2466, %v2472
      %v2474 = vrot.slane %v2203, 4
      %v2475 = vsel %vm2328, %v2468, %v2474
      %v2596 = vunpack.c.l.b16 %v2205
      %v2597 = vunpack.c.l.b16 %v2206
      %v2598 = vunpack.c.l.b16 %v2207
      %v2599 = vunpack.c.l.b16 %v2208
      %v2600 = vunpack.c.l.b16 %v2209
      %v2601 = vunpack.c.l.b16 %v2210
      %v2602 = vunpack.c.l.b16 %v2211
      %v2603 = vunpack.c.l.b16 %v2212
      %v2604 = vunpack.c.l.b16 %v2213
      %v2605 = vunpack.c.l.b16 %v2214
      %v2606 = vunpack.c.l.b16 %v2215
      %v2607 = vunpack.c.l.b16 %v2216
      %v2608 = vunpack.c.l.b16 %v2217
      %v2609 = vunpack.c.l.b16 %v2218
      %v2610 = vunpack.c.l.b16 %v2219
      %v2611 = vunpack.c.l.b16 %v2220
      %v2612 = vunpack.c.l.b16 %v2221
      %v2613 = vunpack.c.l.b16 %v2222
      %v2614 = vunpack.c.l.b16 %v2223
      %v2615 = vunpack.c.l.b16 %v2224
      %v2616 = vunpack.c.l.b16 %v2225
      %v2617 = vunpack.c.l.b16 %v2226
      %v2618 = vunpack.c.l.b16 %v2227
      %v2619 = vunpack.c.l.b16 %v2228
      %v2620 = vunpack.c.l.b16 %v2229
      %v2621 = vunpack.c.l.b16 %v2230
      %v2622 = vunpack.c.l.b16 %v2231
      %v2623 = vunpack.c.l.b16 %v2232
      %v2624 = vunpack.c.l.b16 %v2233
      %v2625 = vunpack.c.l.b16 %v2234
      %v2626 = vunpack.c.l.b16 %v2235
      %v2627 = vunpack.c.l.b16 %v2236
      %v2628 = vunpack.c.l.b16 %v2237
      %v2629 = vunpack.c.l.b16 %v2238
      %v2630 = vunpack.c.l.b16 %v2239
      %v2631 = vunpack.c.l.b16 %v2240
      %v2632 = vunpack.c.l.b16 %v2241
      %v2633 = vunpack.c.l.b16 %v2242
      %v2634 = vunpack.c.l.b16 %v2243
      %v2635 = vunpack.c.l.b16 %v2244
      %v2636 = vunpack.c.l.b16 %v2245
      %v2637 = vunpack.c.l.b16 %v2246
      %v2638 = vunpack.c.l.b16 %v2247
      %v2639 = vunpack.c.l.b16 %v2248
      %v2640 = vunpack.c.l.b16 %v2249
      %v2641 = vunpack.c.l.b16 %v2250
      %v2642 = vunpack.c.l.b16 %v2251
      %v2643 = vunpack.c.l.b16 %v2252
      %v2644 = vpack.c.b16 %v2597, %v2596
      %v2645 = vpack.c.b16 %v2599, %v2598
      %v2646 = vpack.c.b16 %v2601, %v2600
      %v2647 = vpack.c.b16 %v2603, %v2602
      %v2648 = vpack.c.b16 %v2605, %v2604
      %v2649 = vpack.c.b16 %v2607, %v2606
      %v2650 = vpack.c.b16 %v2609, %v2608
      %v2651 = vpack.c.b16 %v2611, %v2610
      %v2652 = vpack.c.b16 %v2613, %v2612
      %v2653 = vpack.c.b16 %v2615, %v2614
      %v2654 = vpack.c.b16 %v2617, %v2616
      %v2655 = vpack.c.b16 %v2619, %v2618
      %v2656 = vpack.c.b16 %v2621, %v2620
      %v2657 = vpack.c.b16 %v2623, %v2622
      %v2658 = vpack.c.b16 %v2625, %v2624
      %v2659 = vpack.c.b16 %v2627, %v2626
      %v2660 = vpack.c.b16 %v2629, %v2628
      %v2661 = vpack.c.b16 %v2631, %v2630
      %v2662 = vpack.c.b16 %v2633, %v2632
      %v2663 = vpack.c.b16 %v2635, %v2634
      %v2664 = vpack.c.b16 %v2637, %v2636
      %v2665 = vpack.c.b16 %v2639, %v2638
      %v2666 = vpack.c.b16 %v2641, %v2640
      %v2667 = vpack.c.b16 %v2643, %v2642
      %2692 = vmatprep.subr.bf16.mxu0 0
      %2693 = vmatpush1.bf16.msra.mxu0 %v2644
      %2694 = vmatprep.subr.bf16.mxu0 0
      %2695 = vmatpush1.bf16.msra.mxu0 %v2645
      %2696 = vmatprep.subr.bf16.mxu0 0
      %2697 = vmatpush1.bf16.msra.mxu0 %v2646
      %2698 = vmatprep.subr.bf16.mxu0 0
      %2699 = vmatpush1.bf16.msra.mxu0 %v2647
      %2700 = vmatprep.subr.bf16.mxu0 0
      %2701 = vmatpush1.bf16.msra.mxu0 %v2648
      %2702 = vmatprep.subr.bf16.mxu0 0
      %2703 = vmatpush1.bf16.msra.mxu0 %v2649
      %2704 = vmatprep.subr.bf16.mxu0 0
      %2705 = vmatpush1.bf16.msra.mxu0 %v2650
      %2706 = vmatprep.subr.bf16.mxu0 0
      %2707 = vmatpush1.bf16.msra.mxu0 %v2651
      %2708 = vmatprep.subr.bf16.mxu0 0
      %2709 = vmatpush1.bf16.msra.mxu0 %v2652
      %2710 = vmatprep.subr.bf16.mxu0 0
      %2711 = vmatpush1.bf16.msra.mxu0 %v2653
      %2712 = vmatprep.subr.bf16.mxu0 0
      %2713 = vmatpush1.bf16.msra.mxu0 %v2654
      %2714 = vmatprep.subr.bf16.mxu0 0
      %2715 = vmatpush1.bf16.msra.mxu0 %v2655
      %2716 = vmatprep.subr.bf16.mxu0 0
      %2717 = vmatpush1.bf16.msra.mxu0 %v2656
      %2718 = vmatprep.subr.bf16.mxu0 0
      %2719 = vmatpush1.bf16.msra.mxu0 %v2657
      %2720 = vmatprep.subr.bf16.mxu0 0
      %2721 = vmatpush1.bf16.msra.mxu0 %v2658
      %2722 = vmatprep.subr.bf16.mxu0 0
      %2723 = vmatpush1.bf16.msra.mxu0 %v2659
      %2724 = vmatprep.mubr.bf16.mxu0 %v2334
      %2725 = vmatmul.mubr.bf16.gmra.mrb[0].mxu0 %v2331
      %v2726 = vpop.f32.mrb[0].mxu0
      %v2727 = vadd.f32 0.0, %v2726
      %v2728 = vpop.f32.mrb[0].mxu0
      %v2729 = vpop.f32.mrb[0].mxu0
      %v2730 = vadd.f32 0.0, %v2729
      %v2731 = vpop.f32.mrb[0].mxu0
      %2732 = vmatprep.mubr.bf16.mxu0 %v2341
      %2733 = vmatmul.mubr.bf16.gmra.mrb[0].mxu0 %v2339
      %v2734 = vpop.f32.mrb[0].mxu0
      %v2735 = vadd.f32 0.0, %v2734
      %v2736 = vpop.f32.mrb[0].mxu0
      %v2737 = vpop.f32.mrb[0].mxu0
      %v2738 = vadd.f32 0.0, %v2737
      %v2739 = vpop.f32.mrb[0].mxu0
      %2740 = vmatprep.mubr.bf16.mxu0 %v2347
      %2741 = vmatmul.mubr.bf16.gmra.mrb[0].mxu0 %v2345
      %v2742 = vpop.f32.mrb[0].mxu0
      %v2743 = vadd.f32 0.0, %v2742
      %v2744 = vpop.f32.mrb[0].mxu0
      %v2745 = vpop.f32.mrb[0].mxu0
      %v2746 = vadd.f32 0.0, %v2745
      %v2747 = vpop.f32.mrb[0].mxu0
      %2748 = vmatprep.mubr.bf16.mxu0 %v2353
      %2749 = vmatmul.mubr.bf16.gmra.mrb[0].mxu0 %v2351
      %v2750 = vpop.f32.mrb[0].mxu0
      %v2751 = vadd.f32 0.0, %v2750
      %v2752 = vpop.f32.mrb[0].mxu0
      %v2753 = vpop.f32.mrb[0].mxu0
      %v2754 = vadd.f32 0.0, %v2753
      %v2755 = vpop.f32.mrb[0].mxu0
      %2756 = vmatprep.mubr.bf16.mxu0 %v2359
      %2757 = vmatmul.mubr.bf16.gmra.mrb[0].mxu0 %v2357
      %v2758 = vpop.f32.mrb[0].mxu0
      %v2759 = vadd.f32 0.0, %v2758
      %v2760 = vpop.f32.mrb[0].mxu0
      %v2761 = vpop.f32.mrb[0].mxu0
      %v2762 = vadd.f32 0.0, %v2761
      %v2763 = vpop.f32.mrb[0].mxu0
      %2764 = vmatprep.mubr.bf16.mxu0 %v2365
      %2765 = vmatmul.mubr.bf16.gmra.mrb[0].mxu0 %v2363
      %v2766 = vpop.f32.mrb[0].mxu0
      %v2767 = vadd.f32 0.0, %v2766
      %v2768 = vpop.f32.mrb[0].mxu0
      %v2769 = vpop.f32.mrb[0].mxu0
      %v2770 = vadd.f32 0.0, %v2769
      %v2771 = vpop.f32.mrb[0].mxu0
      %2772 = vmatprep.mubr.bf16.mxu0 %v2371
      %2773 = vmatmul.mubr.bf16.gmra.mrb[0].mxu0 %v2369
      %v2774 = vpop.f32.mrb[0].mxu0
      %v2775 = vadd.f32 0.0, %v2774
      %v2776 = vpop.f32.mrb[0].mxu0
      %v2777 = vpop.f32.mrb[0].mxu0
      %v2778 = vadd.f32 0.0, %v2777
      %v2779 = vpop.f32.mrb[0].mxu0
      %2780 = vmatprep.mubr.bf16.mxu0 %v2377
      %2781 = vmatmul.mubr.bf16.gmra.mrb[0].mxu0 %v2375
      %v2782 = vpop.f32.mrb[0].mxu0
      %v2783 = vadd.f32 0.0, %v2782
      %v2784 = vpop.f32.mrb[0].mxu0
      %v2785 = vpop.f32.mrb[0].mxu0
      %v2786 = vadd.f32 0.0, %v2785
      %v2787 = vpop.f32.mrb[0].mxu0
      %2788 = vmatprep.mubr.bf16.mxu0 %v2383
      %2789 = vmatmul.mubr.bf16.gmra.mrb[0].mxu0 %v2381
      %v2790 = vpop.f32.mrb[0].mxu0
      %v2791 = vadd.f32 0.0, %v2790
      %v2792 = vpop.f32.mrb[0].mxu0
      %v2793 = vpop.f32.mrb[0].mxu0
      %v2794 = vadd.f32 0.0, %v2793
      %v2795 = vpop.f32.mrb[0].mxu0
      %2796 = vmatprep.mubr.bf16.mxu0 %v2389
      %2797 = vmatmul.mubr.bf16.gmra.mrb[0].mxu0 %v2387
      %v2798 = vpop.f32.mrb[0].mxu0
      %v2799 = vadd.f32 0.0, %v2798
      %v2800 = vpop.f32.mrb[0].mxu0
      %v2801 = vpop.f32.mrb[0].mxu0
      %v2802 = vadd.f32 0.0, %v2801
      %v2803 = vpop.f32.mrb[0].mxu0
      %2804 = vmatprep.mubr.bf16.mxu0 %v2395
      %2805 = vmatmul.mubr.bf16.gmra.mrb[0].mxu0 %v2393
      %v2806 = vpop.f32.mrb[0].mxu0
      %v2807 = vadd.f32 0.0, %v2806
      %v2808 = vpop.f32.mrb[0].mxu0
      %v2809 = vpop.f32.mrb[0].mxu0
      %v2810 = vadd.f32 0.0, %v2809
      %v2811 = vpop.f32.mrb[0].mxu0
      %2812 = vmatprep.mubr.bf16.mxu0 %v2401
      %2813 = vmatmul.mubr.bf16.gmra.mrb[0].mxu0 %v2399
      %v2814 = vpop.f32.mrb[0].mxu0
      %v2815 = vadd.f32 0.0, %v2814
      %v2816 = vpop.f32.mrb[0].mxu0
      %v2817 = vpop.f32.mrb[0].mxu0
      %v2818 = vadd.f32 0.0, %v2817
      %v2819 = vpop.f32.mrb[0].mxu0
      %2820 = vmatprep.mubr.bf16.mxu0 %v2407
      %2821 = vmatmul.mubr.bf16.gmra.mrb[0].mxu0 %v2405
      %v2822 = vpop.f32.mrb[0].mxu0
      %v2823 = vadd.f32 0.0, %v2822
      %v2824 = vpop.f32.mrb[0].mxu0
      %v2825 = vpop.f32.mrb[0].mxu0
      %v2826 = vadd.f32 0.0, %v2825
      %v2827 = vpop.f32.mrb[0].mxu0
      %2828 = vmatprep.mubr.bf16.mxu0 %v2413
      %2829 = vmatmul.mubr.bf16.gmra.mrb[0].mxu0 %v2411
      %v2830 = vpop.f32.mrb[0].mxu0
      %v2831 = vadd.f32 0.0, %v2830
      %v2832 = vpop.f32.mrb[0].mxu0
      %v2833 = vpop.f32.mrb[0].mxu0
      %v2834 = vadd.f32 0.0, %v2833
      %v2835 = vpop.f32.mrb[0].mxu0
      %2836 = vmatprep.mubr.bf16.mxu0 %v2419
      %2837 = vmatmul.mubr.bf16.gmra.mrb[0].mxu0 %v2417
      %v2838 = vpop.f32.mrb[0].mxu0
      %v2839 = vadd.f32 0.0, %v2838
      %v2840 = vpop.f32.mrb[0].mxu0
      %v2841 = vpop.f32.mrb[0].mxu0
      %v2842 = vadd.f32 0.0, %v2841
      %v2843 = vpop.f32.mrb[0].mxu0
      %2844 = vmatprep.mubr.bf16.mxu0 %v2425
      %2845 = vmatmul.mubr.bf16.gmra.mrb[0].mxu0 %v2423
      %v2846 = vpop.f32.mrb[0].mxu0
      %v2847 = vadd.f32 0.0, %v2846
      %v2848 = vpop.f32.mrb[0].mxu0
      %v2849 = vpop.f32.mrb[0].mxu0
      %v2850 = vadd.f32 0.0, %v2849
      %v2851 = vpop.f32.mrb[0].mxu0
      %2852 = vmatprep.mubr.bf16.mxu0 %v2431
      %2853 = vmatmul.mubr.bf16.gmra.mrb[0].mxu0 %v2429
      %v2854 = vpop.f32.mrb[0].mxu0
      %v2855 = vadd.f32 0.0, %v2854
      %v2856 = vpop.f32.mrb[0].mxu0
      %v2857 = vpop.f32.mrb[0].mxu0
      %v2858 = vadd.f32 0.0, %v2857
      %v2859 = vpop.f32.mrb[0].mxu0
      %2860 = vmatprep.mubr.bf16.mxu0 %v2437
      %2861 = vmatmul.mubr.bf16.gmra.mrb[0].mxu0 %v2435
      %v2862 = vpop.f32.mrb[0].mxu0
      %v2863 = vadd.f32 0.0, %v2862
      %v2864 = vpop.f32.mrb[0].mxu0
      %v2865 = vpop.f32.mrb[0].mxu0
      %v2866 = vadd.f32 0.0, %v2865
      %v2867 = vpop.f32.mrb[0].mxu0
      %2868 = vmatprep.mubr.bf16.mxu0 %v2443
      %2869 = vmatmul.mubr.bf16.gmra.mrb[0].mxu0 %v2441
      %v2870 = vpop.f32.mrb[0].mxu0
      %v2871 = vadd.f32 0.0, %v2870
      %v2872 = vpop.f32.mrb[0].mxu0
      %v2873 = vpop.f32.mrb[0].mxu0
      %v2874 = vadd.f32 0.0, %v2873
      %v2875 = vpop.f32.mrb[0].mxu0
      %2876 = vmatprep.mubr.bf16.mxu0 %v2449
      %2877 = vmatmul.mubr.bf16.gmra.mrb[0].mxu0 %v2447
      %v2878 = vpop.f32.mrb[0].mxu0
      %v2879 = vadd.f32 0.0, %v2878
      %v2880 = vpop.f32.mrb[0].mxu0
      %v2881 = vpop.f32.mrb[0].mxu0
      %v2882 = vadd.f32 0.0, %v2881
      %v2883 = vpop.f32.mrb[0].mxu0
      %2884 = vmatprep.mubr.bf16.mxu0 %v2455
      %2885 = vmatmul.mubr.bf16.gmra.mrb[0].mxu0 %v2453
      %v2886 = vpop.f32.mrb[0].mxu0
      %v2887 = vadd.f32 0.0, %v2886
      %v2888 = vpop.f32.mrb[0].mxu0
      %v2889 = vpop.f32.mrb[0].mxu0
      %v2890 = vadd.f32 0.0, %v2889
      %v2891 = vpop.f32.mrb[0].mxu0
      %2892 = vmatprep.mubr.bf16.mxu0 %v2461
      %2893 = vmatmul.mubr.bf16.gmra.mrb[0].mxu0 %v2459
      %v2894 = vpop.f32.mrb[0].mxu0
      %v2895 = vadd.f32 0.0, %v2894
      %v2896 = vpop.f32.mrb[0].mxu0
      %v2897 = vpop.f32.mrb[0].mxu0
      %v2898 = vadd.f32 0.0, %v2897
      %v2899 = vpop.f32.mrb[0].mxu0
      %2900 = vmatprep.mubr.bf16.mxu0 %v2467
      %2901 = vmatmul.mubr.bf16.gmra.mrb[0].mxu0 %v2465
      %v2902 = vpop.f32.mrb[0].mxu0
      %v2903 = vadd.f32 0.0, %v2902
      %v2904 = vpop.f32.mrb[0].mxu0
      %v2905 = vpop.f32.mrb[0].mxu0
      %v2906 = vadd.f32 0.0, %v2905
      %v2907 = vpop.f32.mrb[0].mxu0
      %2908 = vmatprep.mubr.bf16.mxu0 %v2473
      %2909 = vmatmul.mubr.bf16.gmra.mrb[0].mxu0 %v2471
      %v2910 = vpop.f32.mrb[0].mxu0
      %v2911 = vadd.f32 0.0, %v2910
      %v2912 = vpop.f32.mrb[0].mxu0
      %v2913 = vpop.f32.mrb[0].mxu0
      %v2914 = vadd.f32 0.0, %v2913
      %v2915 = vpop.f32.mrb[0].mxu0
      %2916 = vdwg.mxu0
      %2917 = vmatprep.subr.bf16.mxu0 0
      %2918 = vmatpush1.bf16.msra.mxu0 %v2660
      %2919 = vmatprep.subr.bf16.mxu0 0
      %2920 = vmatpush1.bf16.msra.mxu0 %v2661
      %2921 = vmatprep.subr.bf16.mxu0 0
      %2922 = vmatpush1.bf16.msra.mxu0 %v2662
      %2923 = vmatprep.subr.bf16.mxu0 0
      %2924 = vmatpush1.bf16.msra.mxu0 %v2663
      %2925 = vmatprep.subr.bf16.mxu0 0
      %2926 = vmatpush1.bf16.msra.mxu0 %v2664
      %2927 = vmatprep.subr.bf16.mxu0 0
      %2928 = vmatpush1.bf16.msra.mxu0 %v2665
      %2929 = vmatprep.subr.bf16.mxu0 0
      %2930 = vmatpush1.bf16.msra.mxu0 %v2666
      %2931 = vmatprep.subr.bf16.mxu0 0
      %2932 = vmatpush1.bf16.msra.mxu0 %v2667
      %2933 = vmatprep.subr.bf16.mxu0 0
      %2934 = vmatpush1.bf16.msra.mxu0 0
      %2935 = vmatprep.subr.bf16.mxu0 0
      %2936 = vmatpush1.bf16.msra.mxu0 0
      %2937 = vmatprep.subr.bf16.mxu0 0
      %2938 = vmatpush1.bf16.msra.mxu0 0
      %2939 = vmatprep.subr.bf16.mxu0 0
      %2940 = vmatpush1.bf16.msra.mxu0 0
      %2941 = vmatprep.subr.bf16.mxu0 0
      %2942 = vmatpush1.bf16.msra.mxu0 0
      %2943 = vmatprep.subr.bf16.mxu0 0
      %2944 = vmatpush1.bf16.msra.mxu0 0
      %2945 = vmatprep.subr.bf16.mxu0 0
      %2946 = vmatpush1.bf16.msra.mxu0 0
      %2947 = vmatprep.subr.bf16.mxu0 0
      %2948 = vmatpush1.bf16.msra.mxu0 0
      %2949 = vmatprep.mubr.bf16.mxu0 0
      %2950 = vmatmul.mubr.bf16.gmra.mrb[0].mxu0 %v2337
      %v2951 = vpop.f32.mrb[0].mxu0
      %v2952 = vadd.f32 %v2727, %v2951
      %v2953 = vpop.f32.mrb[0].mxu0
      %v2954 = vpop.f32.mrb[0].mxu0
      %v2955 = vadd.f32 %v2730, %v2954
      %v2956 = vpop.f32.mrb[0].mxu0
      %2957 = vmatprep.mubr.bf16.mxu0 0
      %2958 = vmatmul.mubr.bf16.gmra.mrb[0].mxu0 %v2343
      %v2959 = vpop.f32.mrb[0].mxu0
      %v2960 = vadd.f32 %v2735, %v2959
      %v2961 = vpop.f32.mrb[0].mxu0
      %v2962 = vpop.f32.mrb[0].mxu0
      %v2963 = vadd.f32 %v2738, %v2962
      %v2964 = vpop.f32.mrb[0].mxu0
      %2965 = vmatprep.mubr.bf16.mxu0 0
      %2966 = vmatmul.mubr.bf16.gmra.mrb[0].mxu0 %v2349
      %v2967 = vpop.f32.mrb[0].mxu0
      %v2968 = vadd.f32 %v2743, %v2967
      %v2969 = vpop.f32.mrb[0].mxu0
      %v2970 = vpop.f32.mrb[0].mxu0
      %v2971 = vadd.f32 %v2746, %v2970
      %v2972 = vpop.f32.mrb[0].mxu0
      %2973 = vmatprep.mubr.bf16.mxu0 0
      %2974 = vmatmul.mubr.bf16.gmra.mrb[0].mxu0 %v2355
      %v2975 = vpop.f32.mrb[0].mxu0
      %v2976 = vadd.f32 %v2751, %v2975
      %v2977 = vpop.f32.mrb[0].mxu0
      %v2978 = vpop.f32.mrb[0].mxu0
      %v2979 = vadd.f32 %v2754, %v2978
      %v2980 = vpop.f32.mrb[0].mxu0
      %2981 = vmatprep.mubr.bf16.mxu0 0
      %2982 = vmatmul.mubr.bf16.gmra.mrb[0].mxu0 %v2361
      %v2983 = vpop.f32.mrb[0].mxu0
      %v2984 = vadd.f32 %v2759, %v2983
      %v2985 = vpop.f32.mrb[0].mxu0
      %v2986 = vpop.f32.mrb[0].mxu0
      %v2987 = vadd.f32 %v2762, %v2986
      %v2988 = vpop.f32.mrb[0].mxu0
      %2989 = vmatprep.mubr.bf16.mxu0 0
      %2990 = vmatmul.mubr.bf16.gmra.mrb[0].mxu0 %v2367
      %v2991 = vpop.f32.mrb[0].mxu0
      %v2992 = vadd.f32 %v2767, %v2991
      %v2993 = vpop.f32.mrb[0].mxu0
      %v2994 = vpop.f32.mrb[0].mxu0
      %v2995 = vadd.f32 %v2770, %v2994
      %v2996 = vpop.f32.mrb[0].mxu0
      %2997 = vmatprep.mubr.bf16.mxu0 0
      %2998 = vmatmul.mubr.bf16.gmra.mrb[0].mxu0 %v2373
      %v2999 = vpop.f32.mrb[0].mxu0
      %v3000 = vadd.f32 %v2775, %v2999
      %v3001 = vpop.f32.mrb[0].mxu0
      %v3002 = vpop.f32.mrb[0].mxu0
      %v3003 = vadd.f32 %v2778, %v3002
      %v3004 = vpop.f32.mrb[0].mxu0
      %3005 = vmatprep.mubr.bf16.mxu0 0
      %3006 = vmatmul.mubr.bf16.gmra.mrb[0].mxu0 %v2379
      %v3007 = vpop.f32.mrb[0].mxu0
      %v3008 = vadd.f32 %v2783, %v3007
      %v3009 = vpop.f32.mrb[0].mxu0
      %v3010 = vpop.f32.mrb[0].mxu0
      %v3011 = vadd.f32 %v2786, %v3010
      %v3012 = vpop.f32.mrb[0].mxu0
      %3013 = vmatprep.mubr.bf16.mxu0 0
      %3014 = vmatmul.mubr.bf16.gmra.mrb[0].mxu0 %v2385
      %v3015 = vpop.f32.mrb[0].mxu0
      %v3016 = vadd.f32 %v2791, %v3015
      %v3017 = vpop.f32.mrb[0].mxu0
      %v3018 = vpop.f32.mrb[0].mxu0
      %v3019 = vadd.f32 %v2794, %v3018
      %v3020 = vpop.f32.mrb[0].mxu0
      %3021 = vmatprep.mubr.bf16.mxu0 0
      %3022 = vmatmul.mubr.bf16.gmra.mrb[0].mxu0 %v2391
      %v3023 = vpop.f32.mrb[0].mxu0
      %v3024 = vadd.f32 %v2799, %v3023
      %v3025 = vpop.f32.mrb[0].mxu0
      %v3026 = vpop.f32.mrb[0].mxu0
      %v3027 = vadd.f32 %v2802, %v3026
      %v3028 = vpop.f32.mrb[0].mxu0
      %3029 = vmatprep.mubr.bf16.mxu0 0
      %3030 = vmatmul.mubr.bf16.gmra.mrb[0].mxu0 %v2397
      %v3031 = vpop.f32.mrb[0].mxu0
      %v3032 = vadd.f32 %v2807, %v3031
      %v3033 = vpop.f32.mrb[0].mxu0
      %v3034 = vpop.f32.mrb[0].mxu0
      %v3035 = vadd.f32 %v2810, %v3034
      %v3036 = vpop.f32.mrb[0].mxu0
      %3037 = vmatprep.mubr.bf16.mxu0 0
      %3038 = vmatmul.mubr.bf16.gmra.mrb[0].mxu0 %v2403
      %v3039 = vpop.f32.mrb[0].mxu0
      %v3040 = vadd.f32 %v2815, %v3039
      %v3041 = vpop.f32.mrb[0].mxu0
      %v3042 = vpop.f32.mrb[0].mxu0
      %v3043 = vadd.f32 %v2818, %v3042
      %v3044 = vpop.f32.mrb[0].mxu0
      %3045 = vmatprep.mubr.bf16.mxu0 0
      %3046 = vmatmul.mubr.bf16.gmra.mrb[0].mxu0 %v2409
      %v3047 = vpop.f32.mrb[0].mxu0
      %v3048 = vadd.f32 %v2823, %v3047
      %v3049 = vpop.f32.mrb[0].mxu0
      %v3050 = vpop.f32.mrb[0].mxu0
      %v3051 = vadd.f32 %v2826, %v3050
      %v3052 = vpop.f32.mrb[0].mxu0
      %3053 = vmatprep.mubr.bf16.mxu0 0
      %3054 = vmatmul.mubr.bf16.gmra.mrb[0].mxu0 %v2415
      %v3055 = vpop.f32.mrb[0].mxu0
      %v3056 = vadd.f32 %v2831, %v3055
      %v3057 = vpop.f32.mrb[0].mxu0
      %v3058 = vpop.f32.mrb[0].mxu0
      %v3059 = vadd.f32 %v2834, %v3058
      %v3060 = vpop.f32.mrb[0].mxu0
      %3061 = vmatprep.mubr.bf16.mxu0 0
      %3062 = vmatmul.mubr.bf16.gmra.mrb[0].mxu0 %v2421
      %v3063 = vpop.f32.mrb[0].mxu0
      %v3064 = vadd.f32 %v2839, %v3063
      %v3065 = vpop.f32.mrb[0].mxu0
      %v3066 = vpop.f32.mrb[0].mxu0
      %v3067 = vadd.f32 %v2842, %v3066
      %v3068 = vpop.f32.mrb[0].mxu0
      %3069 = vmatprep.mubr.bf16.mxu0 0
      %3070 = vmatmul.mubr.bf16.gmra.mrb[0].mxu0 %v2427
      %v3071 = vpop.f32.mrb[0].mxu0
      %v3072 = vadd.f32 %v2847, %v3071
      %v3073 = vpop.f32.mrb[0].mxu0
      %v3074 = vpop.f32.mrb[0].mxu0
      %v3075 = vadd.f32 %v2850, %v3074
      %v3076 = vpop.f32.mrb[0].mxu0
      %3077 = vmatprep.mubr.bf16.mxu0 0
      %3078 = vmatmul.mubr.bf16.gmra.mrb[0].mxu0 %v2433
      %v3079 = vpop.f32.mrb[0].mxu0
      %v3080 = vadd.f32 %v2855, %v3079
      %v3081 = vpop.f32.mrb[0].mxu0
      %v3082 = vpop.f32.mrb[0].mxu0
      %v3083 = vadd.f32 %v2858, %v3082
      %v3084 = vpop.f32.mrb[0].mxu0
      %3085 = vmatprep.mubr.bf16.mxu0 0
      %3086 = vmatmul.mubr.bf16.gmra.mrb[0].mxu0 %v2439
      %v3087 = vpop.f32.mrb[0].mxu0
      %v3088 = vadd.f32 %v2863, %v3087
      %v3089 = vpop.f32.mrb[0].mxu0
      %v3090 = vpop.f32.mrb[0].mxu0
      %v3091 = vadd.f32 %v2866, %v3090
      %v3092 = vpop.f32.mrb[0].mxu0
      %3093 = vmatprep.mubr.bf16.mxu0 0
      %3094 = vmatmul.mubr.bf16.gmra.mrb[0].mxu0 %v2445
      %v3095 = vpop.f32.mrb[0].mxu0
      %v3096 = vadd.f32 %v2871, %v3095
      %v3097 = vpop.f32.mrb[0].mxu0
      %v3098 = vpop.f32.mrb[0].mxu0
      %v3099 = vadd.f32 %v2874, %v3098
      %v3100 = vpop.f32.mrb[0].mxu0
      %3101 = vmatprep.mubr.bf16.mxu0 0
      %3102 = vmatmul.mubr.bf16.gmra.mrb[0].mxu0 %v2451
      %v3103 = vpop.f32.mrb[0].mxu0
      %v3104 = vadd.f32 %v2879, %v3103
      %v3105 = vpop.f32.mrb[0].mxu0
      %v3106 = vpop.f32.mrb[0].mxu0
      %v3107 = vadd.f32 %v2882, %v3106
      %v3108 = vpop.f32.mrb[0].mxu0
      %3109 = vmatprep.mubr.bf16.mxu0 0
      %3110 = vmatmul.mubr.bf16.gmra.mrb[0].mxu0 %v2457
      %v3111 = vpop.f32.mrb[0].mxu0
      %v3112 = vadd.f32 %v2887, %v3111
      %v3113 = vpop.f32.mrb[0].mxu0
      %v3114 = vpop.f32.mrb[0].mxu0
      %v3115 = vadd.f32 %v2890, %v3114
      %v3116 = vpop.f32.mrb[0].mxu0
      %3117 = vmatprep.mubr.bf16.mxu0 0
      %3118 = vmatmul.mubr.bf16.gmra.mrb[0].mxu0 %v2463
      %v3119 = vpop.f32.mrb[0].mxu0
      %v3120 = vadd.f32 %v2895, %v3119
      %v3121 = vpop.f32.mrb[0].mxu0
      %v3122 = vpop.f32.mrb[0].mxu0
      %v3123 = vadd.f32 %v2898, %v3122
      %v3124 = vpop.f32.mrb[0].mxu0
      %3125 = vmatprep.mubr.bf16.mxu0 0
      %3126 = vmatmul.mubr.bf16.gmra.mrb[0].mxu0 %v2469
      %v3127 = vpop.f32.mrb[0].mxu0
      %v3128 = vadd.f32 %v2903, %v3127
      %v3129 = vpop.f32.mrb[0].mxu0
      %v3130 = vpop.f32.mrb[0].mxu0
      %v3131 = vadd.f32 %v2906, %v3130
      %v3132 = vpop.f32.mrb[0].mxu0
      %3133 = vmatprep.mubr.bf16.mxu0 0
      %3134 = vmatmul.mubr.bf16.gmra.mrb[0].mxu0 %v2475
      %v3135 = vpop.f32.mrb[0].mxu0
      %v3136 = vadd.f32 %v2911, %v3135
      %v3137 = vpop.f32.mrb[0].mxu0
      %v3138 = vpop.f32.mrb[0].mxu0
      %v3139 = vadd.f32 %v2914, %v3138
      %v3140 = vpop.f32.mrb[0].mxu0
      %3141 = vdwg.mxu0
      %v3142 = vld [vmem:[%s289] sm:$0xff]
      %v3143 = vld [vmem:[%s289 + $0x8] sm:$0xff]
      %v3144 = vld [vmem:[%s289 + $0x10] sm:$0xff]
      %v3145 = vld [vmem:[%s289 + $0x18] sm:$0xff]
      %v3146 = vld [vmem:[%s289 + $0x20] sm:$0xff]
      %v3147 = vld [vmem:[%s289 + $0x28] sm:$0xff]
      %v3148 = vld [vmem:[%s289 + $0x30] sm:$0xff]
      %v3149 = vld [vmem:[%s289 + $0x38] sm:$0xff]
      %v3150 = vld [vmem:[%s289 + $0x40] sm:$0xff]
      %v3151 = vld [vmem:[%s289 + $0x48] sm:$0xff]
      %v3152 = vld [vmem:[%s289 + $0x50] sm:$0xff]
      %v3153 = vld [vmem:[%s289 + $0x58] sm:$0xff]
      %v3154 = vld [vmem:[%s289 + $0x60] sm:$0xff]
      %v3155 = vld [vmem:[%s289 + $0x68] sm:$0xff]
      %v3156 = vld [vmem:[%s289 + $0x70] sm:$0xff]
      %v3157 = vld [vmem:[%s289 + $0x78] sm:$0xff]
      %v3158 = vld [vmem:[%s289 + $0x80] sm:$0xff]
      %v3159 = vld [vmem:[%s289 + $0x88] sm:$0xff]
      %v3160 = vld [vmem:[%s289 + $0x90] sm:$0xff]
      %v3161 = vld [vmem:[%s289 + $0x98] sm:$0xff]
      %v3162 = vld [vmem:[%s289 + $0xa0] sm:$0xff]
      %v3163 = vld [vmem:[%s289 + $0xa8] sm:$0xff]
      %v3164 = vld [vmem:[%s289 + $0xb0] sm:$0xff]
      %v3165 = vld [vmem:[%s289 + $0xb8] sm:$0xff]
      %v3166 = vld [vmem:[%s289 + $0xc0] sm:$0xff]
      %v3167 = vld [vmem:[%s289 + $0xc8] sm:$0xff]
      %v3168 = vld [vmem:[%s289 + $0xd0] sm:$0xff]
      %v3169 = vld [vmem:[%s289 + $0xd8] sm:$0xff]
      %v3170 = vld [vmem:[%s289 + $0xe0] sm:$0xff]
      %v3171 = vld [vmem:[%s289 + $0xe8] sm:$0xff]
      %v3172 = vld [vmem:[%s289 + $0xf0] sm:$0xff]
      %v3173 = vld [vmem:[%s289 + $0xf8] sm:$0xff]
      %v3174 = vld [vmem:[%s289 + $0x100] sm:$0xff]
      %v3175 = vld [vmem:[%s289 + $0x108] sm:$0xff]
      %v3176 = vld [vmem:[%s289 + $0x110] sm:$0xff]
      %v3177 = vld [vmem:[%s289 + $0x118] sm:$0xff]
      %v3178 = vld [vmem:[%s289 + $0x120] sm:$0xff]
      %v3179 = vld [vmem:[%s289 + $0x128] sm:$0xff]
      %v3180 = vld [vmem:[%s289 + $0x130] sm:$0xff]
      %v3181 = vld [vmem:[%s289 + $0x138] sm:$0xff]
      %v3182 = vld [vmem:[%s289 + $0x140] sm:$0xff]
      %v3183 = vld [vmem:[%s289 + $0x148] sm:$0xff]
      %v3184 = vld [vmem:[%s289 + $0x150] sm:$0xff]
      %v3185 = vld [vmem:[%s289 + $0x158] sm:$0xff]
      %v3186 = vld [vmem:[%s289 + $0x160] sm:$0xff]
      %v3187 = vld [vmem:[%s289 + $0x168] sm:$0xff]
      %v3188 = vld [vmem:[%s289 + $0x170] sm:$0xff]
      %v3189 = vld [vmem:[%s289 + $0x178] sm:$0xff]
      %v3190 = vadd.f32 %v3142, %v2952
      %v3191 = vadd.f32 %v3143, %v2955
      %v3192 = vadd.f32 %v3144, %v2960
      %v3193 = vadd.f32 %v3145, %v2963
      %v3194 = vadd.f32 %v3146, %v2968
      %v3195 = vadd.f32 %v3147, %v2971
      %v3196 = vadd.f32 %v3148, %v2976
      %v3197 = vadd.f32 %v3149, %v2979
      %v3198 = vadd.f32 %v3150, %v2984
      %v3199 = vadd.f32 %v3151, %v2987
      %v3200 = vadd.f32 %v3152, %v2992
      %v3201 = vadd.f32 %v3153, %v2995
      %v3202 = vadd.f32 %v3154, %v3000
      %v3203 = vadd.f32 %v3155, %v3003
      %v3204 = vadd.f32 %v3156, %v3008
      %v3205 = vadd.f32 %v3157, %v3011
      %v3206 = vadd.f32 %v3158, %v3016
      %v3207 = vadd.f32 %v3159, %v3019
      %v3208 = vadd.f32 %v3160, %v3024
      %v3209 = vadd.f32 %v3161, %v3027
      %v3210 = vadd.f32 %v3162, %v3032
      %v3211 = vadd.f32 %v3163, %v3035
      %v3212 = vadd.f32 %v3164, %v3040
      %v3213 = vadd.f32 %v3165, %v3043
      %v3214 = vadd.f32 %v3166, %v3048
      %v3215 = vadd.f32 %v3167, %v3051
      %v3216 = vadd.f32 %v3168, %v3056
      %v3217 = vadd.f32 %v3169, %v3059
      %v3218 = vadd.f32 %v3170, %v3064
      %v3219 = vadd.f32 %v3171, %v3067
      %v3220 = vadd.f32 %v3172, %v3072
      %v3221 = vadd.f32 %v3173, %v3075
      %v3222 = vadd.f32 %v3174, %v3080
      %v3223 = vadd.f32 %v3175, %v3083
      %v3224 = vadd.f32 %v3176, %v3088
      %v3225 = vadd.f32 %v3177, %v3091
      %v3226 = vadd.f32 %v3178, %v3096
      %v3227 = vadd.f32 %v3179, %v3099
      %v3228 = vadd.f32 %v3180, %v3104
      %v3229 = vadd.f32 %v3181, %v3107
      %v3230 = vadd.f32 %v3182, %v3112
      %v3231 = vadd.f32 %v3183, %v3115
      %v3232 = vadd.f32 %v3184, %v3120
      %v3233 = vadd.f32 %v3185, %v3123
      %v3234 = vadd.f32 %v3186, %v3128
      %v3235 = vadd.f32 %v3187, %v3131
      %v3236 = vadd.f32 %v3188, %v3136
      %v3237 = vadd.f32 %v3189, %v3139
      %3238 = vst [vmem:[%s289] sm:$0xff] %v3190
      %3239 = vst [vmem:[%s289 + $0x8] sm:$0xff] %v3191
      %3240 = vst [vmem:[%s289 + $0x10] sm:$0xff] %v3192
      %3241 = vst [vmem:[%s289 + $0x18] sm:$0xff] %v3193
      %3242 = vst [vmem:[%s289 + $0x20] sm:$0xff] %v3194
      %3243 = vst [vmem:[%s289 + $0x28] sm:$0xff] %v3195
      %3244 = vst [vmem:[%s289 + $0x30] sm:$0xff] %v3196
      %3245 = vst [vmem:[%s289 + $0x38] sm:$0xff] %v3197
      %3246 = vst [vmem:[%s289 + $0x40] sm:$0xff] %v3198
      %3247 = vst [vmem:[%s289 + $0x48] sm:$0xff] %v3199
      %3248 = vst [vmem:[%s289 + $0x50] sm:$0xff] %v3200
      %3249 = vst [vmem:[%s289 + $0x58] sm:$0xff] %v3201
      %3250 = vst [vmem:[%s289 + $0x60] sm:$0xff] %v3202
      %3251 = vst [vmem:[%s289 + $0x68] sm:$0xff] %v3203
      %3252 = vst [vmem:[%s289 + $0x70] sm:$0xff] %v3204
      %3253 = vst [vmem:[%s289 + $0x78] sm:$0xff] %v3205
      %3254 = vst [vmem:[%s289 + $0x80] sm:$0xff] %v3206
      %3255 = vst [vmem:[%s289 + $0x88] sm:$0xff] %v3207
      %3256 = vst [vmem:[%s289 + $0x90] sm:$0xff] %v3208
      %3257 = vst [vmem:[%s289 + $0x98] sm:$0xff] %v3209
      %3258 = vst [vmem:[%s289 + $0xa0] sm:$0xff] %v3210
      %3259 = vst [vmem:[%s289 + $0xa8] sm:$0xff] %v3211
      %3260 = vst [vmem:[%s289 + $0xb0] sm:$0xff] %v3212
      %3261 = vst [vmem:[%s289 + $0xb8] sm:$0xff] %v3213
      %3262 = vst [vmem:[%s289 + $0xc0] sm:$0xff] %v3214
      %3263 = vst [vmem:[%s289 + $0xc8] sm:$0xff] %v3215
      %3264 = vst [vmem:[%s289 + $0xd0] sm:$0xff] %v3216
      %3265 = vst [vmem:[%s289 + $0xd8] sm:$0xff] %v3217
      %3266 = vst [vmem:[%s289 + $0xe0] sm:$0xff] %v3218
      %3267 = vst [vmem:[%s289 + $0xe8] sm:$0xff] %v3219
      %3268 = vst [vmem:[%s289 + $0xf0] sm:$0xff] %v3220
      %3269 = vst [vmem:[%s289 + $0xf8] sm:$0xff] %v3221
      %3270 = vst [vmem:[%s289 + $0x100] sm:$0xff] %v3222
      %3271 = vst [vmem:[%s289 + $0x108] sm:$0xff] %v3223
      %3272 = vst [vmem:[%s289 + $0x110] sm:$0xff] %v3224
      %3273 = vst [vmem:[%s289 + $0x118] sm:$0xff] %v3225
      %3274 = vst [vmem:[%s289 + $0x120] sm:$0xff] %v3226
      %3275 = vst [vmem:[%s289 + $0x128] sm:$0xff] %v3227
      %3276 = vst [vmem:[%s289 + $0x130] sm:$0xff] %v3228
      %3277 = vst [vmem:[%s289 + $0x138] sm:$0xff] %v3229
      %3278 = vst [vmem:[%s289 + $0x140] sm:$0xff] %v3230
      %3279 = vst [vmem:[%s289 + $0x148] sm:$0xff] %v3231
      %3280 = vst [vmem:[%s289 + $0x150] sm:$0xff] %v3232
      %3281 = vst [vmem:[%s289 + $0x158] sm:$0xff] %v3233
      %3282 = vst [vmem:[%s289 + $0x160] sm:$0xff] %v3234
      %3283 = vst [vmem:[%s289 + $0x168] sm:$0xff] %v3235
      %3284 = vst [vmem:[%s289 + $0x170] sm:$0xff] %v3236
      %3285 = vst [vmem:[%s289 + $0x178] sm:$0xff] %v3237
      %v3286 = vld [vmem:[#allocation2 + $0x48] sm:$0xff]
      %v3287 = vld [vmem:[#allocation2 + $0x50] sm:$0xff]
      %v3288 = vld [vmem:[#allocation2 + $0x58] sm:$0xff]
      %v3289 = vld [vmem:[#allocation2 + $0x60] sm:$0xff]
      %v3290 = vld [vmem:[#allocation2 + $0x68] sm:$0xff]
      %v3291 = vld [vmem:[#allocation2 + $0x70] sm:$0xff]
      %v3292 = vld [vmem:[#allocation2 + $0x78] sm:$0xff]
      %v3293 = vld [vmem:[#allocation2 + $0x80] sm:$0xff]
      %v3294 = vld [vmem:[#allocation2 + $0x88] sm:$0xff]
      %v3295 = vld [vmem:[#allocation2 + $0x90] sm:$0xff]
      %v3296 = vld [vmem:[#allocation2 + $0x98] sm:$0xff]
      %v3297 = vld [vmem:[#allocation2 + $0xa0] sm:$0xff]
      %v3298 = vld [vmem:[#allocation2 + $0xa8] sm:$0xff]
      %v3299 = vld [vmem:[#allocation2 + $0xb0] sm:$0xff]
      %v3300 = vld [vmem:[#allocation2 + $0xb8] sm:$0xff]
      %v3301 = vld [vmem:[#allocation2 + $0xc0] sm:$0xff]
      %v3302 = vld [vmem:[#allocation2 + $0xc8] sm:$0xff]
      %v3303 = vld [vmem:[#allocation2 + $0xd0] sm:$0xff]
      %v3304 = vld [vmem:[#allocation2 + $0xd8] sm:$0xff]
      %v3305 = vld [vmem:[#allocation2 + $0xe0] sm:$0xff]
      %v3306 = vld [vmem:[#allocation2 + $0xe8] sm:$0xff]
      %v3307 = vld [vmem:[#allocation2 + $0xf0] sm:$0xff]
      %v3308 = vld [vmem:[#allocation2 + $0xf8] sm:$0xff]
      %v3309 = vld [vmem:[#allocation2 + $0x100] sm:$0xff]
      %v3310 = vld [vmem:[#allocation2 + $0x108] sm:$0xff]
      %v3311 = vld [vmem:[#allocation2 + $0x110] sm:$0xff]
      %v3312 = vld [vmem:[#allocation2 + $0x118] sm:$0xff]
      %v3313 = vld [vmem:[#allocation2 + $0x120] sm:$0xff]
      %v3314 = vld [vmem:[#allocation2 + $0x128] sm:$0xff]
      %v3315 = vld [vmem:[#allocation2 + $0x130] sm:$0xff]
      %v3316 = vld [vmem:[#allocation2 + $0x138] sm:$0xff]
      %v3317 = vld [vmem:[#allocation2 + $0x140] sm:$0xff]
      %v3318 = vld [vmem:[#allocation2 + $0x148] sm:$0xff]
      %v3319 = vld [vmem:[#allocation2 + $0x150] sm:$0xff]
      %v3320 = vld [vmem:[#allocation2 + $0x158] sm:$0xff]
      %v3321 = vld [vmem:[#allocation2 + $0x160] sm:$0xff]
      %v3322 = vld [vmem:[#allocation2 + $0x168] sm:$0xff]
      %v3323 = vld [vmem:[#allocation2 + $0x170] sm:$0xff]
      %v3324 = vld [vmem:[#allocation2 + $0x178] sm:$0xff]
      %v3325 = vld [vmem:[#allocation2 + $0x180] sm:$0xff]
      %v3326 = vld [vmem:[#allocation2 + $0x188] sm:$0xff]
      %v3327 = vld [vmem:[#allocation2 + $0x190] sm:$0xff]
      %v3328 = vld [vmem:[#allocation2 + $0x198] sm:$0xff]
      %v3329 = vld [vmem:[#allocation2 + $0x1a0] sm:$0xff]
      %v3330 = vld [vmem:[#allocation2 + $0x1a8] sm:$0xff]
      %v3331 = vld [vmem:[#allocation2 + $0x1b0] sm:$0xff]
      %v3332 = vld [vmem:[#allocation2 + $0x1b8] sm:$0xff]
      %v3333 = vld [vmem:[#allocation2 + $0x1c0] sm:$0xff]
      %v3334 = vld [vmem:[#allocation2 + $0x1c8] sm:$0xff]
      %v3335 = vld [vmem:[#allocation2 + $0x1d0] sm:$0xff]
      %v3336 = vld [vmem:[#allocation2 + $0x1d8] sm:$0xff]
      %v3337 = vld [vmem:[#allocation2 + $0x1e0] sm:$0xff]
      %v3338 = vld [vmem:[#allocation2 + $0x1e8] sm:$0xff]
      %v3339 = vld [vmem:[#allocation2 + $0x1f0] sm:$0xff]
      %v3340 = vld [vmem:[#allocation2 + $0x1f8] sm:$0xff]
      %v3341 = vld [vmem:[#allocation2 + $0x200] sm:$0xff]
      %v3342 = vld [vmem:[#allocation2 + $0x208] sm:$0xff]
      %v3343 = vld [vmem:[#allocation2 + $0x210] sm:$0xff]
      %v3344 = vld [vmem:[#allocation2 + $0x218] sm:$0xff]
      %v3345 = vld [vmem:[#allocation2 + $0x220] sm:$0xff]
      %v3346 = vld [vmem:[#allocation2 + $0x228] sm:$0xff]
      %v3347 = vld [vmem:[#allocation2 + $0x230] sm:$0xff]
      %v3348 = vld [vmem:[#allocation2 + $0x238] sm:$0xff]
      %v3349 = vld [vmem:[#allocation2 + $0x240] sm:$0xff]
      %v3350 = vld [vmem:[#allocation2 + $0x248] sm:$0xff]
      %v3351 = vld [vmem:[#allocation2 + $0x250] sm:$0xff]
      %v3352 = vld [vmem:[#allocation2 + $0x258] sm:$0xff]
      %v3353 = vld [vmem:[#allocation2 + $0x260] sm:$0xff]
      %v3354 = vld [vmem:[#allocation2 + $0x268] sm:$0xff]
      %v3355 = vld [vmem:[#allocation2 + $0x270] sm:$0xff]
      %v3356 = vld [vmem:[#allocation2 + $0x278] sm:$0xff]
      %v3357 = vld [vmem:[#allocation2 + $0x280] sm:$0xff]
      %s3358 = scalar_lea.vmem %s4, 384
      %v3359 = vld [vmem:[%s3358] sm:$0xf]
      %v3360 = vld [vmem:[%s3358 + $0x4] sm:$0xf]
      %v3361 = vld [vmem:[%s3358 + $0x8] sm:$0xf]
      %v3362 = vld [vmem:[%s3358 + $0xc] sm:$0xf]
      %v3363 = vld [vmem:[%s3358 + $0x10] sm:$0xf]
      %v3364 = vld [vmem:[%s3358 + $0x14] sm:$0xf]
      %v3365 = vld [vmem:[%s3358 + $0x18] sm:$0xf]
      %v3366 = vld [vmem:[%s3358 + $0x1c] sm:$0xf]
      %v3367 = vld [vmem:[%s3358 + $0x20] sm:$0xf]
      %v3368 = vld [vmem:[%s3358 + $0x24] sm:$0xf]
      %v3369 = vld [vmem:[%s3358 + $0x28] sm:$0xf]
      %v3370 = vld [vmem:[%s3358 + $0x2c] sm:$0xf]
      %v3371 = vld [vmem:[%s3358 + $0x30] sm:$0xf]
      %v3372 = vld [vmem:[%s3358 + $0x34] sm:$0xf]
      %v3373 = vld [vmem:[%s3358 + $0x38] sm:$0xf]
      %v3374 = vld [vmem:[%s3358 + $0x3c] sm:$0xf]
      %v3375 = vld [vmem:[%s3358 + $0x40] sm:$0xf]
      %v3376 = vld [vmem:[%s3358 + $0x44] sm:$0xf]
      %v3377 = vld [vmem:[%s3358 + $0x48] sm:$0xf]
      %v3378 = vld [vmem:[%s3358 + $0x4c] sm:$0xf]
      %v3379 = vld [vmem:[%s3358 + $0x50] sm:$0xf]
      %v3380 = vld [vmem:[%s3358 + $0x54] sm:$0xf]
      %v3381 = vld [vmem:[%s3358 + $0x58] sm:$0xf]
      %v3382 = vld [vmem:[%s3358 + $0x5c] sm:$0xf]
      %v3383 = vld [vmem:[%s3358 + $0x60] sm:$0xf]
      %v3384 = vld [vmem:[%s3358 + $0x64] sm:$0xf]
      %v3385 = vld [vmem:[%s3358 + $0x68] sm:$0xf]
      %v3386 = vld [vmem:[%s3358 + $0x6c] sm:$0xf]
      %v3387 = vld [vmem:[%s3358 + $0x70] sm:$0xf]
      %v3388 = vld [vmem:[%s3358 + $0x74] sm:$0xf]
      %v3389 = vld [vmem:[%s3358 + $0x78] sm:$0xf]
      %v3390 = vld [vmem:[%s3358 + $0x7c] sm:$0xf]
      %v3391 = vld [vmem:[%s3358 + $0x80] sm:$0xf]
      %v3392 = vld [vmem:[%s3358 + $0x84] sm:$0xf]
      %v3393 = vld [vmem:[%s3358 + $0x88] sm:$0xf]
      %v3394 = vld [vmem:[%s3358 + $0x8c] sm:$0xf]
      %v3395 = vld [vmem:[%s3358 + $0x90] sm:$0xf]
      %v3396 = vld [vmem:[%s3358 + $0x94] sm:$0xf]
      %v3397 = vld [vmem:[%s3358 + $0x98] sm:$0xf]
      %v3398 = vld [vmem:[%s3358 + $0x9c] sm:$0xf]
      %v3399 = vld [vmem:[%s3358 + $0xa0] sm:$0xf]
      %v3400 = vld [vmem:[%s3358 + $0xa4] sm:$0xf]
      %v3401 = vld [vmem:[%s3358 + $0xa8] sm:$0xf]
      %v3402 = vld [vmem:[%s3358 + $0xac] sm:$0xf]
      %v3403 = vld [vmem:[%s3358 + $0xb0] sm:$0xf]
      %v3404 = vld [vmem:[%s3358 + $0xb4] sm:$0xf]
      %v3405 = vld [vmem:[%s3358 + $0xb8] sm:$0xf]
      %v3406 = vld [vmem:[%s3358 + $0xbc] sm:$0xf]
      %v3455 = vunpack.c.l.b16 %v3359
      %v3456 = vunpack.c.l.b16 %v3360
      %v3457 = vunpack.c.l.b16 %v3361
      %v3458 = vunpack.c.l.b16 %v3362
      %v3459 = vunpack.c.l.b16 %v3363
      %v3460 = vunpack.c.l.b16 %v3364
      %v3461 = vunpack.c.l.b16 %v3365
      %v3462 = vunpack.c.l.b16 %v3366
      %v3463 = vunpack.c.l.b16 %v3367
      %v3464 = vunpack.c.l.b16 %v3368
      %v3465 = vunpack.c.l.b16 %v3369
      %v3466 = vunpack.c.l.b16 %v3370
      %v3467 = vunpack.c.l.b16 %v3371
      %v3468 = vunpack.c.l.b16 %v3372
      %v3469 = vunpack.c.l.b16 %v3373
      %v3470 = vunpack.c.l.b16 %v3374
      %v3471 = vunpack.c.l.b16 %v3375
      %v3472 = vunpack.c.l.b16 %v3376
      %v3473 = vunpack.c.l.b16 %v3377
      %v3474 = vunpack.c.l.b16 %v3378
      %v3475 = vunpack.c.l.b16 %v3379
      %v3476 = vunpack.c.l.b16 %v3380
      %v3477 = vunpack.c.l.b16 %v3381
      %v3478 = vunpack.c.l.b16 %v3382
      %v3479 = vunpack.c.l.b16 %v3383
      %v3480 = vunpack.c.l.b16 %v3384
      %v3481 = vunpack.c.l.b16 %v3385
      %v3482 = vunpack.c.l.b16 %v3386
      %v3483 = vunpack.c.l.b16 %v3387
      %v3484 = vunpack.c.l.b16 %v3388
      %v3485 = vunpack.c.l.b16 %v3389
      %v3486 = vunpack.c.l.b16 %v3390
      %v3487 = vunpack.c.l.b16 %v3391
      %v3488 = vunpack.c.l.b16 %v3392
      %v3489 = vunpack.c.l.b16 %v3393
      %v3490 = vunpack.c.l.b16 %v3394
      %v3491 = vunpack.c.l.b16 %v3395
      %v3492 = vunpack.c.l.b16 %v3396
      %v3493 = vunpack.c.l.b16 %v3397
      %v3494 = vunpack.c.l.b16 %v3398
      %v3495 = vunpack.c.l.b16 %v3399
      %v3496 = vunpack.c.l.b16 %v3400
      %v3497 = vunpack.c.l.b16 %v3401
      %v3498 = vunpack.c.l.b16 %v3402
      %v3499 = vunpack.c.l.b16 %v3403
      %v3500 = vunpack.c.l.b16 %v3404
      %v3501 = vunpack.c.l.b16 %v3405
      %v3502 = vunpack.c.l.b16 %v3406
      %v3503 = vpack.c.b16 %v3456, %v3455
      %v3504 = vpack.c.b16 %v3458, %v3457
      %v3505 = vpack.c.b16 %v3460, %v3459
      %v3506 = vpack.c.b16 %v3462, %v3461
      %v3507 = vpack.c.b16 %v3464, %v3463
      %v3508 = vpack.c.b16 %v3466, %v3465
      %v3509 = vpack.c.b16 %v3468, %v3467
      %v3510 = vpack.c.b16 %v3470, %v3469
      %v3511 = vpack.c.b16 %v3472, %v3471
      %v3512 = vpack.c.b16 %v3474, %v3473
      %v3513 = vpack.c.b16 %v3476, %v3475
      %v3514 = vpack.c.b16 %v3478, %v3477
      %v3515 = vpack.c.b16 %v3480, %v3479
      %v3516 = vpack.c.b16 %v3482, %v3481
      %v3517 = vpack.c.b16 %v3484, %v3483
      %v3518 = vpack.c.b16 %v3486, %v3485
      %v3519 = vpack.c.b16 %v3488, %v3487
      %v3520 = vpack.c.b16 %v3490, %v3489
      %v3521 = vpack.c.b16 %v3492, %v3491
      %v3522 = vpack.c.b16 %v3494, %v3493
      %v3523 = vpack.c.b16 %v3496, %v3495
      %v3524 = vpack.c.b16 %v3498, %v3497
      %v3525 = vpack.c.b16 %v3500, %v3499
      %v3526 = vpack.c.b16 %v3502, %v3501
      %3551 = vmatprep.subr.bf16.mxu0 0
      %3552 = vmatpush1.bf16.msra.mxu0 %v3503
      %3553 = vmatprep.subr.bf16.mxu0 0
      %3554 = vmatpush1.bf16.msra.mxu0 %v3504
      %3555 = vmatprep.subr.bf16.mxu0 0
      %3556 = vmatpush1.bf16.msra.mxu0 %v3505
      %3557 = vmatprep.subr.bf16.mxu0 0
      %3558 = vmatpush1.bf16.msra.mxu0 %v3506
      %3559 = vmatprep.subr.bf16.mxu0 0
      %3560 = vmatpush1.bf16.msra.mxu0 %v3507
      %3561 = vmatprep.subr.bf16.mxu0 0
      %3562 = vmatpush1.bf16.msra.mxu0 %v3508
      %3563 = vmatprep.subr.bf16.mxu0 0
      %3564 = vmatpush1.bf16.msra.mxu0 %v3509
      %3565 = vmatprep.subr.bf16.mxu0 0
      %3566 = vmatpush1.bf16.msra.mxu0 %v3510
      %3567 = vmatprep.subr.bf16.mxu0 0
      %3568 = vmatpush1.bf16.msra.mxu0 %v3511
      %3569 = vmatprep.subr.bf16.mxu0 0
      %3570 = vmatpush1.bf16.msra.mxu0 %v3512
      %3571 = vmatprep.subr.bf16.mxu0 0
      %3572 = vmatpush1.bf16.msra.mxu0 %v3513
      %3573 = vmatprep.subr.bf16.mxu0 0
      %3574 = vmatpush1.bf16.msra.mxu0 %v3514
      %3575 = vmatprep.subr.bf16.mxu0 0
      %3576 = vmatpush1.bf16.msra.mxu0 %v3515
      %3577 = vmatprep.subr.bf16.mxu0 0
      %3578 = vmatpush1.bf16.msra.mxu0 %v3516
      %3579 = vmatprep.subr.bf16.mxu0 0
      %3580 = vmatpush1.bf16.msra.mxu0 %v3517
      %3581 = vmatprep.subr.bf16.mxu0 0
      %3582 = vmatpush1.bf16.msra.mxu0 %v3518
      %3583 = vmatprep.mubr.bf16.mxu0 %v3287
      %3584 = vmatmul.mubr.bf16.gmra.mrb[0].mxu0 %v3286
      %v3585 = vpop.f32.mrb[0].mxu0
      %v3586 = vadd.f32 0.0, %v3585
      %v3587 = vpop.f32.mrb[0].mxu0
      %v3588 = vpop.f32.mrb[0].mxu0
      %v3589 = vadd.f32 0.0, %v3588
      %v3590 = vpop.f32.mrb[0].mxu0
      %3591 = vmatprep.mubr.bf16.mxu0 %v3290
      %3592 = vmatmul.mubr.bf16.gmra.mrb[0].mxu0 %v3289
      %v3593 = vpop.f32.mrb[0].mxu0
      %v3594 = vadd.f32 0.0, %v3593
      %v3595 = vpop.f32.mrb[0].mxu0
      %v3596 = vpop.f32.mrb[0].mxu0
      %v3597 = vadd.f32 0.0, %v3596
      %v3598 = vpop.f32.mrb[0].mxu0
      %3599 = vmatprep.mubr.bf16.mxu0 %v3293
      %3600 = vmatmul.mubr.bf16.gmra.mrb[0].mxu0 %v3292
      %v3601 = vpop.f32.mrb[0].mxu0
      %v3602 = vadd.f32 0.0, %v3601
      %v3603 = vpop.f32.mrb[0].mxu0
      %v3604 = vpop.f32.mrb[0].mxu0
      %v3605 = vadd.f32 0.0, %v3604
      %v3606 = vpop.f32.mrb[0].mxu0
      %3607 = vmatprep.mubr.bf16.mxu0 %v3296
      %3608 = vmatmul.mubr.bf16.gmra.mrb[0].mxu0 %v3295
      %v3609 = vpop.f32.mrb[0].mxu0
      %v3610 = vadd.f32 0.0, %v3609
      %v3611 = vpop.f32.mrb[0].mxu0
      %v3612 = vpop.f32.mrb[0].mxu0
      %v3613 = vadd.f32 0.0, %v3612
      %v3614 = vpop.f32.mrb[0].mxu0
      %3615 = vmatprep.mubr.bf16.mxu0 %v3299
      %3616 = vmatmul.mubr.bf16.gmra.mrb[0].mxu0 %v3298
      %v3617 = vpop.f32.mrb[0].mxu0
      %v3618 = vadd.f32 0.0, %v3617
      %v3619 = vpop.f32.mrb[0].mxu0
      %v3620 = vpop.f32.mrb[0].mxu0
      %v3621 = vadd.f32 0.0, %v3620
      %v3622 = vpop.f32.mrb[0].mxu0
      %3623 = vmatprep.mubr.bf16.mxu0 %v3302
      %3624 = vmatmul.mubr.bf16.gmra.mrb[0].mxu0 %v3301
      %v3625 = vpop.f32.mrb[0].mxu0
      %v3626 = vadd.f32 0.0, %v3625
      %v3627 = vpop.f32.mrb[0].mxu0
      %v3628 = vpop.f32.mrb[0].mxu0
      %v3629 = vadd.f32 0.0, %v3628
      %v3630 = vpop.f32.mrb[0].mxu0
      %3631 = vmatprep.mubr.bf16.mxu0 %v3305
      %3632 = vmatmul.mubr.bf16.gmra.mrb[0].mxu0 %v3304
      %v3633 = vpop.f32.mrb[0].mxu0
      %v3634 = vadd.f32 0.0, %v3633
      %v3635 = vpop.f32.mrb[0].mxu0
      %v3636 = vpop.f32.mrb[0].mxu0
      %v3637 = vadd.f32 0.0, %v3636
      %v3638 = vpop.f32.mrb[0].mxu0
      %3639 = vmatprep.mubr.bf16.mxu0 %v3308
      %3640 = vmatmul.mubr.bf16.gmra.mrb[0].mxu0 %v3307
      %v3641 = vpop.f32.mrb[0].mxu0
      %v3642 = vadd.f32 0.0, %v3641
      %v3643 = vpop.f32.mrb[0].mxu0
      %v3644 = vpop.f32.mrb[0].mxu0
      %v3645 = vadd.f32 0.0, %v3644
      %v3646 = vpop.f32.mrb[0].mxu0
      %3647 = vmatprep.mubr.bf16.mxu0 %v3311
      %3648 = vmatmul.mubr.bf16.gmra.mrb[0].mxu0 %v3310
      %v3649 = vpop.f32.mrb[0].mxu0
      %v3650 = vadd.f32 0.0, %v3649
      %v3651 = vpop.f32.mrb[0].mxu0
      %v3652 = vpop.f32.mrb[0].mxu0
      %v3653 = vadd.f32 0.0, %v3652
      %v3654 = vpop.f32.mrb[0].mxu0
      %3655 = vmatprep.mubr.bf16.mxu0 %v3314
      %3656 = vmatmul.mubr.bf16.gmra.mrb[0].mxu0 %v3313
      %v3657 = vpop.f32.mrb[0].mxu0
      %v3658 = vadd.f32 0.0, %v3657
      %v3659 = vpop.f32.mrb[0].mxu0
      %v3660 = vpop.f32.mrb[0].mxu0
      %v3661 = vadd.f32 0.0, %v3660
      %v3662 = vpop.f32.mrb[0].mxu0
      %3663 = vmatprep.mubr.bf16.mxu0 %v3317
      %3664 = vmatmul.mubr.bf16.gmra.mrb[0].mxu0 %v3316
      %v3665 = vpop.f32.mrb[0].mxu0
      %v3666 = vadd.f32 0.0, %v3665
      %v3667 = vpop.f32.mrb[0].mxu0
      %v3668 = vpop.f32.mrb[0].mxu0
      %v3669 = vadd.f32 0.0, %v3668
      %v3670 = vpop.f32.mrb[0].mxu0
      %3671 = vmatprep.mubr.bf16.mxu0 %v3320
      %3672 = vmatmul.mubr.bf16.gmra.mrb[0].mxu0 %v3319
      %v3673 = vpop.f32.mrb[0].mxu0
      %v3674 = vadd.f32 0.0, %v3673
      %v3675 = vpop.f32.mrb[0].mxu0
      %v3676 = vpop.f32.mrb[0].mxu0
      %v3677 = vadd.f32 0.0, %v3676
      %v3678 = vpop.f32.mrb[0].mxu0
      %3679 = vmatprep.mubr.bf16.mxu0 %v3323
      %3680 = vmatmul.mubr.bf16.gmra.mrb[0].mxu0 %v3322
      %v3681 = vpop.f32.mrb[0].mxu0
      %v3682 = vadd.f32 0.0, %v3681
      %v3683 = vpop.f32.mrb[0].mxu0
      %v3684 = vpop.f32.mrb[0].mxu0
      %v3685 = vadd.f32 0.0, %v3684
      %v3686 = vpop.f32.mrb[0].mxu0
      %3687 = vmatprep.mubr.bf16.mxu0 %v3326
      %3688 = vmatmul.mubr.bf16.gmra.mrb[0].mxu0 %v3325
      %v3689 = vpop.f32.mrb[0].mxu0
      %v3690 = vadd.f32 0.0, %v3689
      %v3691 = vpop.f32.mrb[0].mxu0
      %v3692 = vpop.f32.mrb[0].mxu0
      %v3693 = vadd.f32 0.0, %v3692
      %v3694 = vpop.f32.mrb[0].mxu0
      %3695 = vmatprep.mubr.bf16.mxu0 %v3329
      %3696 = vmatmul.mubr.bf16.gmra.mrb[0].mxu0 %v3328
      %v3697 = vpop.f32.mrb[0].mxu0
      %v3698 = vadd.f32 0.0, %v3697
      %v3699 = vpop.f32.mrb[0].mxu0
      %v3700 = vpop.f32.mrb[0].mxu0
      %v3701 = vadd.f32 0.0, %v3700
      %v3702 = vpop.f32.mrb[0].mxu0
      %3703 = vmatprep.mubr.bf16.mxu0 %v3332
      %3704 = vmatmul.mubr.bf16.gmra.mrb[0].mxu0 %v3331
      %v3705 = vpop.f32.mrb[0].mxu0
      %v3706 = vadd.f32 0.0, %v3705
      %v3707 = vpop.f32.mrb[0].mxu0
      %v3708 = vpop.f32.mrb[0].mxu0
      %v3709 = vadd.f32 0.0, %v3708
      %v3710 = vpop.f32.mrb[0].mxu0
      %3711 = vmatprep.mubr.bf16.mxu0 %v3335
      %3712 = vmatmul.mubr.bf16.gmra.mrb[0].mxu0 %v3334
      %v3713 = vpop.f32.mrb[0].mxu0
      %v3714 = vadd.f32 0.0, %v3713
      %v3715 = vpop.f32.mrb[0].mxu0
      %v3716 = vpop.f32.mrb[0].mxu0
      %v3717 = vadd.f32 0.0, %v3716
      %v3718 = vpop.f32.mrb[0].mxu0
      %3719 = vmatprep.mubr.bf16.mxu0 %v3338
      %3720 = vmatmul.mubr.bf16.gmra.mrb[0].mxu0 %v3337
      %v3721 = vpop.f32.mrb[0].mxu0
      %v3722 = vadd.f32 0.0, %v3721
      %v3723 = vpop.f32.mrb[0].mxu0
      %v3724 = vpop.f32.mrb[0].mxu0
      %v3725 = vadd.f32 0.0, %v3724
      %v3726 = vpop.f32.mrb[0].mxu0
      %3727 = vmatprep.mubr.bf16.mxu0 %v3341
      %3728 = vmatmul.mubr.bf16.gmra.mrb[0].mxu0 %v3340
      %v3729 = vpop.f32.mrb[0].mxu0
      %v3730 = vadd.f32 0.0, %v3729
      %v3731 = vpop.f32.mrb[0].mxu0
      %v3732 = vpop.f32.mrb[0].mxu0
      %v3733 = vadd.f32 0.0, %v3732
      %v3734 = vpop.f32.mrb[0].mxu0
      %3735 = vmatprep.mubr.bf16.mxu0 %v3344
      %3736 = vmatmul.mubr.bf16.gmra.mrb[0].mxu0 %v3343
      %v3737 = vpop.f32.mrb[0].mxu0
      %v3738 = vadd.f32 0.0, %v3737
      %v3739 = vpop.f32.mrb[0].mxu0
      %v3740 = vpop.f32.mrb[0].mxu0
      %v3741 = vadd.f32 0.0, %v3740
      %v3742 = vpop.f32.mrb[0].mxu0
      %3743 = vmatprep.mubr.bf16.mxu0 %v3347
      %3744 = vmatmul.mubr.bf16.gmra.mrb[0].mxu0 %v3346
      %v3745 = vpop.f32.mrb[0].mxu0
      %v3746 = vadd.f32 0.0, %v3745
      %v3747 = vpop.f32.mrb[0].mxu0
      %v3748 = vpop.f32.mrb[0].mxu0
      %v3749 = vadd.f32 0.0, %v3748
      %v3750 = vpop.f32.mrb[0].mxu0
      %3751 = vmatprep.mubr.bf16.mxu0 %v3350
      %3752 = vmatmul.mubr.bf16.gmra.mrb[0].mxu0 %v3349
      %v3753 = vpop.f32.mrb[0].mxu0
      %v3754 = vadd.f32 0.0, %v3753
      %v3755 = vpop.f32.mrb[0].mxu0
      %v3756 = vpop.f32.mrb[0].mxu0
      %v3757 = vadd.f32 0.0, %v3756
      %v3758 = vpop.f32.mrb[0].mxu0
      %3759 = vmatprep.mubr.bf16.mxu0 %v3353
      %3760 = vmatmul.mubr.bf16.gmra.mrb[0].mxu0 %v3352
      %v3761 = vpop.f32.mrb[0].mxu0
      %v3762 = vadd.f32 0.0, %v3761
      %v3763 = vpop.f32.mrb[0].mxu0
      %v3764 = vpop.f32.mrb[0].mxu0
      %v3765 = vadd.f32 0.0, %v3764
      %v3766 = vpop.f32.mrb[0].mxu0
      %3767 = vmatprep.mubr.bf16.mxu0 %v3356
      %3768 = vmatmul.mubr.bf16.gmra.mrb[0].mxu0 %v3355
      %v3769 = vpop.f32.mrb[0].mxu0
      %v3770 = vadd.f32 0.0, %v3769
      %v3771 = vpop.f32.mrb[0].mxu0
      %v3772 = vpop.f32.mrb[0].mxu0
      %v3773 = vadd.f32 0.0, %v3772
      %v3774 = vpop.f32.mrb[0].mxu0
      %3775 = vdwg.mxu0
      %3776 = vmatprep.subr.bf16.mxu0 0
      %3777 = vmatpush1.bf16.msra.mxu0 %v3519
      %3778 = vmatprep.subr.bf16.mxu0 0
      %3779 = vmatpush1.bf16.msra.mxu0 %v3520
      %3780 = vmatprep.subr.bf16.mxu0 0
      %3781 = vmatpush1.bf16.msra.mxu0 %v3521
      %3782 = vmatprep.subr.bf16.mxu0 0
      %3783 = vmatpush1.bf16.msra.mxu0 %v3522
      %3784 = vmatprep.subr.bf16.mxu0 0
      %3785 = vmatpush1.bf16.msra.mxu0 %v3523
      %3786 = vmatprep.subr.bf16.mxu0 0
      %3787 = vmatpush1.bf16.msra.mxu0 %v3524
      %3788 = vmatprep.subr.bf16.mxu0 0
      %3789 = vmatpush1.bf16.msra.mxu0 %v3525
      %3790 = vmatprep.subr.bf16.mxu0 0
      %3791 = vmatpush1.bf16.msra.mxu0 %v3526
      %3792 = vmatprep.subr.bf16.mxu0 0
      %3793 = vmatpush1.bf16.msra.mxu0 0
      %3794 = vmatprep.subr.bf16.mxu0 0
      %3795 = vmatpush1.bf16.msra.mxu0 0
      %3796 = vmatprep.subr.bf16.mxu0 0
      %3797 = vmatpush1.bf16.msra.mxu0 0
      %3798 = vmatprep.subr.bf16.mxu0 0
      %3799 = vmatpush1.bf16.msra.mxu0 0
      %3800 = vmatprep.subr.bf16.mxu0 0
      %3801 = vmatpush1.bf16.msra.mxu0 0
      %3802 = vmatprep.subr.bf16.mxu0 0
      %3803 = vmatpush1.bf16.msra.mxu0 0
      %3804 = vmatprep.subr.bf16.mxu0 0
      %3805 = vmatpush1.bf16.msra.mxu0 0
      %3806 = vmatprep.subr.bf16.mxu0 0
      %3807 = vmatpush1.bf16.msra.mxu0 0
      %3808 = vmatprep.mubr.bf16.mxu0 0
      %3809 = vmatmul.mubr.bf16.gmra.mrb[0].mxu0 %v3288
      %v3810 = vpop.f32.mrb[0].mxu0
      %v3811 = vadd.f32 %v3586, %v3810
      %v3812 = vpop.f32.mrb[0].mxu0
      %v3813 = vpop.f32.mrb[0].mxu0
      %v3814 = vadd.f32 %v3589, %v3813
      %v3815 = vpop.f32.mrb[0].mxu0
      %3816 = vmatprep.mubr.bf16.mxu0 0
      %3817 = vmatmul.mubr.bf16.gmra.mrb[0].mxu0 %v3291
      %v3818 = vpop.f32.mrb[0].mxu0
      %v3819 = vadd.f32 %v3594, %v3818
      %v3820 = vpop.f32.mrb[0].mxu0
      %v3821 = vpop.f32.mrb[0].mxu0
      %v3822 = vadd.f32 %v3597, %v3821
      %v3823 = vpop.f32.mrb[0].mxu0
      %3824 = vmatprep.mubr.bf16.mxu0 0
      %3825 = vmatmul.mubr.bf16.gmra.mrb[0].mxu0 %v3294
      %v3826 = vpop.f32.mrb[0].mxu0
      %v3827 = vadd.f32 %v3602, %v3826
      %v3828 = vpop.f32.mrb[0].mxu0
      %v3829 = vpop.f32.mrb[0].mxu0
      %v3830 = vadd.f32 %v3605, %v3829
      %v3831 = vpop.f32.mrb[0].mxu0
      %3832 = vmatprep.mubr.bf16.mxu0 0
      %3833 = vmatmul.mubr.bf16.gmra.mrb[0].mxu0 %v3297
      %v3834 = vpop.f32.mrb[0].mxu0
      %v3835 = vadd.f32 %v3610, %v3834
      %v3836 = vpop.f32.mrb[0].mxu0
      %v3837 = vpop.f32.mrb[0].mxu0
      %v3838 = vadd.f32 %v3613, %v3837
      %v3839 = vpop.f32.mrb[0].mxu0
      %3840 = vmatprep.mubr.bf16.mxu0 0
      %3841 = vmatmul.mubr.bf16.gmra.mrb[0].mxu0 %v3300
      %v3842 = vpop.f32.mrb[0].mxu0
      %v3843 = vadd.f32 %v3618, %v3842
      %v3844 = vpop.f32.mrb[0].mxu0
      %v3845 = vpop.f32.mrb[0].mxu0
      %v3846 = vadd.f32 %v3621, %v3845
      %v3847 = vpop.f32.mrb[0].mxu0
      %3848 = vmatprep.mubr.bf16.mxu0 0
      %3849 = vmatmul.mubr.bf16.gmra.mrb[0].mxu0 %v3303
      %v3850 = vpop.f32.mrb[0].mxu0
      %v3851 = vadd.f32 %v3626, %v3850
      %v3852 = vpop.f32.mrb[0].mxu0
      %v3853 = vpop.f32.mrb[0].mxu0
      %v3854 = vadd.f32 %v3629, %v3853
      %v3855 = vpop.f32.mrb[0].mxu0
      %3856 = vmatprep.mubr.bf16.mxu0 0
      %3857 = vmatmul.mubr.bf16.gmra.mrb[0].mxu0 %v3306
      %v3858 = vpop.f32.mrb[0].mxu0
      %v3859 = vadd.f32 %v3634, %v3858
      %v3860 = vpop.f32.mrb[0].mxu0
      %v3861 = vpop.f32.mrb[0].mxu0
      %v3862 = vadd.f32 %v3637, %v3861
      %v3863 = vpop.f32.mrb[0].mxu0
      %3864 = vmatprep.mubr.bf16.mxu0 0
      %3865 = vmatmul.mubr.bf16.gmra.mrb[0].mxu0 %v3309
      %v3866 = vpop.f32.mrb[0].mxu0
      %v3867 = vadd.f32 %v3642, %v3866
      %v3868 = vpop.f32.mrb[0].mxu0
      %v3869 = vpop.f32.mrb[0].mxu0
      %v3870 = vadd.f32 %v3645, %v3869
      %v3871 = vpop.f32.mrb[0].mxu0
      %3872 = vmatprep.mubr.bf16.mxu0 0
      %3873 = vmatmul.mubr.bf16.gmra.mrb[0].mxu0 %v3312
      %v3874 = vpop.f32.mrb[0].mxu0
      %v3875 = vadd.f32 %v3650, %v3874
      %v3876 = vpop.f32.mrb[0].mxu0
      %v3877 = vpop.f32.mrb[0].mxu0
      %v3878 = vadd.f32 %v3653, %v3877
      %v3879 = vpop.f32.mrb[0].mxu0
      %3880 = vmatprep.mubr.bf16.mxu0 0
      %3881 = vmatmul.mubr.bf16.gmra.mrb[0].mxu0 %v3315
      %v3882 = vpop.f32.mrb[0].mxu0
      %v3883 = vadd.f32 %v3658, %v3882
      %v3884 = vpop.f32.mrb[0].mxu0
      %v3885 = vpop.f32.mrb[0].mxu0
      %v3886 = vadd.f32 %v3661, %v3885
      %v3887 = vpop.f32.mrb[0].mxu0
      %3888 = vmatprep.mubr.bf16.mxu0 0
      %3889 = vmatmul.mubr.bf16.gmra.mrb[0].mxu0 %v3318
      %v3890 = vpop.f32.mrb[0].mxu0
      %v3891 = vadd.f32 %v3666, %v3890
      %v3892 = vpop.f32.mrb[0].mxu0
      %v3893 = vpop.f32.mrb[0].mxu0
      %v3894 = vadd.f32 %v3669, %v3893
      %v3895 = vpop.f32.mrb[0].mxu0
      %3896 = vmatprep.mubr.bf16.mxu0 0
      %3897 = vmatmul.mubr.bf16.gmra.mrb[0].mxu0 %v3321
      %v3898 = vpop.f32.mrb[0].mxu0
      %v3899 = vadd.f32 %v3674, %v3898
      %v3900 = vpop.f32.mrb[0].mxu0
      %v3901 = vpop.f32.mrb[0].mxu0
      %v3902 = vadd.f32 %v3677, %v3901
      %v3903 = vpop.f32.mrb[0].mxu0
      %3904 = vmatprep.mubr.bf16.mxu0 0
      %3905 = vmatmul.mubr.bf16.gmra.mrb[0].mxu0 %v3324
      %v3906 = vpop.f32.mrb[0].mxu0
      %v3907 = vadd.f32 %v3682, %v3906
      %v3908 = vpop.f32.mrb[0].mxu0
      %v3909 = vpop.f32.mrb[0].mxu0
      %v3910 = vadd.f32 %v3685, %v3909
      %v3911 = vpop.f32.mrb[0].mxu0
      %3912 = vmatprep.mubr.bf16.mxu0 0
      %3913 = vmatmul.mubr.bf16.gmra.mrb[0].mxu0 %v3327
      %v3914 = vpop.f32.mrb[0].mxu0
      %v3915 = vadd.f32 %v3690, %v3914
      %v3916 = vpop.f32.mrb[0].mxu0
      %v3917 = vpop.f32.mrb[0].mxu0
      %v3918 = vadd.f32 %v3693, %v3917
      %v3919 = vpop.f32.mrb[0].mxu0
      %3920 = vmatprep.mubr.bf16.mxu0 0
      %3921 = vmatmul.mubr.bf16.gmra.mrb[0].mxu0 %v3330
      %v3922 = vpop.f32.mrb[0].mxu0
      %v3923 = vadd.f32 %v3698, %v3922
      %v3924 = vpop.f32.mrb[0].mxu0
      %v3925 = vpop.f32.mrb[0].mxu0
      %v3926 = vadd.f32 %v3701, %v3925
      %v3927 = vpop.f32.mrb[0].mxu0
      %3928 = vmatprep.mubr.bf16.mxu0 0
      %3929 = vmatmul.mubr.bf16.gmra.mrb[0].mxu0 %v3333
      %v3930 = vpop.f32.mrb[0].mxu0
      %v3931 = vadd.f32 %v3706, %v3930
      %v3932 = vpop.f32.mrb[0].mxu0
      %v3933 = vpop.f32.mrb[0].mxu0
      %v3934 = vadd.f32 %v3709, %v3933
      %v3935 = vpop.f32.mrb[0].mxu0
      %3936 = vmatprep.mubr.bf16.mxu0 0
      %3937 = vmatmul.mubr.bf16.gmra.mrb[0].mxu0 %v3336
      %v3938 = vpop.f32.mrb[0].mxu0
      %v3939 = vadd.f32 %v3714, %v3938
      %v3940 = vpop.f32.mrb[0].mxu0
      %v3941 = vpop.f32.mrb[0].mxu0
      %v3942 = vadd.f32 %v3717, %v3941
      %v3943 = vpop.f32.mrb[0].mxu0
      %3944 = vmatprep.mubr.bf16.mxu0 0
      %3945 = vmatmul.mubr.bf16.gmra.mrb[0].mxu0 %v3339
      %v3946 = vpop.f32.mrb[0].mxu0
      %v3947 = vadd.f32 %v3722, %v3946
      %v3948 = vpop.f32.mrb[0].mxu0
      %v3949 = vpop.f32.mrb[0].mxu0
      %v3950 = vadd.f32 %v3725, %v3949
      %v3951 = vpop.f32.mrb[0].mxu0
      %3952 = vmatprep.mubr.bf16.mxu0 0
      %3953 = vmatmul.mubr.bf16.gmra.mrb[0].mxu0 %v3342
      %v3954 = vpop.f32.mrb[0].mxu0
      %v3955 = vadd.f32 %v3730, %v3954
      %v3956 = vpop.f32.mrb[0].mxu0
      %v3957 = vpop.f32.mrb[0].mxu0
      %v3958 = vadd.f32 %v3733, %v3957
      %v3959 = vpop.f32.mrb[0].mxu0
      %3960 = vmatprep.mubr.bf16.mxu0 0
      %3961 = vmatmul.mubr.bf16.gmra.mrb[0].mxu0 %v3345
      %v3962 = vpop.f32.mrb[0].mxu0
      %v3963 = vadd.f32 %v3738, %v3962
      %v3964 = vpop.f32.mrb[0].mxu0
      %v3965 = vpop.f32.mrb[0].mxu0
      %v3966 = vadd.f32 %v3741, %v3965
      %v3967 = vpop.f32.mrb[0].mxu0
      %3968 = vmatprep.mubr.bf16.mxu0 0
      %3969 = vmatmul.mubr.bf16.gmra.mrb[0].mxu0 %v3348
      %v3970 = vpop.f32.mrb[0].mxu0
      %v3971 = vadd.f32 %v3746, %v3970
      %v3972 = vpop.f32.mrb[0].mxu0
      %v3973 = vpop.f32.mrb[0].mxu0
      %v3974 = vadd.f32 %v3749, %v3973
      %v3975 = vpop.f32.mrb[0].mxu0
      %3976 = vmatprep.mubr.bf16.mxu0 0
      %3977 = vmatmul.mubr.bf16.gmra.mrb[0].mxu0 %v3351
      %v3978 = vpop.f32.mrb[0].mxu0
      %v3979 = vadd.f32 %v3754, %v3978
      %v3980 = vpop.f32.mrb[0].mxu0
      %v3981 = vpop.f32.mrb[0].mxu0
      %v3982 = vadd.f32 %v3757, %v3981
      %v3983 = vpop.f32.mrb[0].mxu0
      %3984 = vmatprep.mubr.bf16.mxu0 0
      %3985 = vmatmul.mubr.bf16.gmra.mrb[0].mxu0 %v3354
      %v3986 = vpop.f32.mrb[0].mxu0
      %v3987 = vadd.f32 %v3762, %v3986
      %v3988 = vpop.f32.mrb[0].mxu0
      %v3989 = vpop.f32.mrb[0].mxu0
      %v3990 = vadd.f32 %v3765, %v3989
      %v3991 = vpop.f32.mrb[0].mxu0
      %3992 = vmatprep.mubr.bf16.mxu0 0
      %3993 = vmatmul.mubr.bf16.gmra.mrb[0].mxu0 %v3357
      %v3994 = vpop.f32.mrb[0].mxu0
      %v3995 = vadd.f32 %v3770, %v3994
      %v3996 = vpop.f32.mrb[0].mxu0
      %v3997 = vpop.f32.mrb[0].mxu0
      %v3998 = vadd.f32 %v3773, %v3997
      %v3999 = vpop.f32.mrb[0].mxu0
      %4000 = vdwg.mxu0
      %v4001 = vld [vmem:[%s289] sm:$0xff]
      %v4002 = vld [vmem:[%s289 + $0x8] sm:$0xff]
      %v4003 = vld [vmem:[%s289 + $0x10] sm:$0xff]
      %v4004 = vld [vmem:[%s289 + $0x18] sm:$0xff]
      %v4005 = vld [vmem:[%s289 + $0x20] sm:$0xff]
      %v4006 = vld [vmem:[%s289 + $0x28] sm:$0xff]
      %v4007 = vld [vmem:[%s289 + $0x30] sm:$0xff]
      %v4008 = vld [vmem:[%s289 + $0x38] sm:$0xff]
      %v4009 = vld [vmem:[%s289 + $0x40] sm:$0xff]
      %v4010 = vld [vmem:[%s289 + $0x48] sm:$0xff]
      %v4011 = vld [vmem:[%s289 + $0x50] sm:$0xff]
      %v4012 = vld [vmem:[%s289 + $0x58] sm:$0xff]
      %v4013 = vld [vmem:[%s289 + $0x60] sm:$0xff]
      %v4014 = vld [vmem:[%s289 + $0x68] sm:$0xff]
      %v4015 = vld [vmem:[%s289 + $0x70] sm:$0xff]
      %v4016 = vld [vmem:[%s289 + $0x78] sm:$0xff]
      %v4017 = vld [vmem:[%s289 + $0x80] sm:$0xff]
      %v4018 = vld [vmem:[%s289 + $0x88] sm:$0xff]
      %v4019 = vld [vmem:[%s289 + $0x90] sm:$0xff]
      %v4020 = vld [vmem:[%s289 + $0x98] sm:$0xff]
      %v4021 = vld [vmem:[%s289 + $0xa0] sm:$0xff]
      %v4022 = vld [vmem:[%s289 + $0xa8] sm:$0xff]
      %v4023 = vld [vmem:[%s289 + $0xb0] sm:$0xff]
      %v4024 = vld [vmem:[%s289 + $0xb8] sm:$0xff]
      %v4025 = vld [vmem:[%s289 + $0xc0] sm:$0xff]
      %v4026 = vld [vmem:[%s289 + $0xc8] sm:$0xff]
      %v4027 = vld [vmem:[%s289 + $0xd0] sm:$0xff]
      %v4028 = vld [vmem:[%s289 + $0xd8] sm:$0xff]
      %v4029 = vld [vmem:[%s289 + $0xe0] sm:$0xff]
      %v4030 = vld [vmem:[%s289 + $0xe8] sm:$0xff]
      %v4031 = vld [vmem:[%s289 + $0xf0] sm:$0xff]
      %v4032 = vld [vmem:[%s289 + $0xf8] sm:$0xff]
      %v4033 = vld [vmem:[%s289 + $0x100] sm:$0xff]
      %v4034 = vld [vmem:[%s289 + $0x108] sm:$0xff]
      %v4035 = vld [vmem:[%s289 + $0x110] sm:$0xff]
      %v4036 = vld [vmem:[%s289 + $0x118] sm:$0xff]
      %v4037 = vld [vmem:[%s289 + $0x120] sm:$0xff]
      %v4038 = vld [vmem:[%s289 + $0x128] sm:$0xff]
      %v4039 = vld [vmem:[%s289 + $0x130] sm:$0xff]
      %v4040 = vld [vmem:[%s289 + $0x138] sm:$0xff]
      %v4041 = vld [vmem:[%s289 + $0x140] sm:$0xff]
      %v4042 = vld [vmem:[%s289 + $0x148] sm:$0xff]
      %v4043 = vld [vmem:[%s289 + $0x150] sm:$0xff]
      %v4044 = vld [vmem:[%s289 + $0x158] sm:$0xff]
      %v4045 = vld [vmem:[%s289 + $0x160] sm:$0xff]
      %v4046 = vld [vmem:[%s289 + $0x168] sm:$0xff]
      %v4047 = vld [vmem:[%s289 + $0x170] sm:$0xff]
      %v4048 = vld [vmem:[%s289 + $0x178] sm:$0xff]
      %v4049 = vadd.f32 %v4001, %v3811
      %v4050 = vadd.f32 %v4002, %v3814
      %v4051 = vadd.f32 %v4003, %v3819
      %v4052 = vadd.f32 %v4004, %v3822
      %v4053 = vadd.f32 %v4005, %v3827
      %v4054 = vadd.f32 %v4006, %v3830
      %v4055 = vadd.f32 %v4007, %v3835
      %v4056 = vadd.f32 %v4008, %v3838
      %v4057 = vadd.f32 %v4009, %v3843
      %v4058 = vadd.f32 %v4010, %v3846
      %v4059 = vadd.f32 %v4011, %v3851
      %v4060 = vadd.f32 %v4012, %v3854
      %v4061 = vadd.f32 %v4013, %v3859
      %v4062 = vadd.f32 %v4014, %v3862
      %v4063 = vadd.f32 %v4015, %v3867
      %v4064 = vadd.f32 %v4016, %v3870
      %v4065 = vadd.f32 %v4017, %v3875
      %v4066 = vadd.f32 %v4018, %v3878
      %v4067 = vadd.f32 %v4019, %v3883
      %v4068 = vadd.f32 %v4020, %v3886
      %v4069 = vadd.f32 %v4021, %v3891
      %v4070 = vadd.f32 %v4022, %v3894
      %v4071 = vadd.f32 %v4023, %v3899
      %v4072 = vadd.f32 %v4024, %v3902
      %v4073 = vadd.f32 %v4025, %v3907
      %v4074 = vadd.f32 %v4026, %v3910
      %v4075 = vadd.f32 %v4027, %v3915
      %v4076 = vadd.f32 %v4028, %v3918
      %v4077 = vadd.f32 %v4029, %v3923
      %v4078 = vadd.f32 %v4030, %v3926
      %v4079 = vadd.f32 %v4031, %v3931
      %v4080 = vadd.f32 %v4032, %v3934
      %v4081 = vadd.f32 %v4033, %v3939
      %v4082 = vadd.f32 %v4034, %v3942
      %v4083 = vadd.f32 %v4035, %v3947
      %v4084 = vadd.f32 %v4036, %v3950
      %v4085 = vadd.f32 %v4037, %v3955
      %v4086 = vadd.f32 %v4038, %v3958
      %v4087 = vadd.f32 %v4039, %v3963
      %v4088 = vadd.f32 %v4040, %v3966
      %v4089 = vadd.f32 %v4041, %v3971
      %v4090 = vadd.f32 %v4042, %v3974
      %v4091 = vadd.f32 %v4043, %v3979
      %v4092 = vadd.f32 %v4044, %v3982
      %v4093 = vadd.f32 %v4045, %v3987
      %v4094 = vadd.f32 %v4046, %v3990
      %v4095 = vadd.f32 %v4047, %v3995
      %v4096 = vadd.f32 %v4048, %v3998
      %4097 = vst [vmem:[%s289] sm:$0xff] %v4049
      %4098 = vst [vmem:[%s289 + $0x8] sm:$0xff] %v4050
      %4099 = vst [vmem:[%s289 + $0x10] sm:$0xff] %v4051
      %4100 = vst [vmem:[%s289 + $0x18] sm:$0xff] %v4052
      %4101 = vst [vmem:[%s289 + $0x20] sm:$0xff] %v4053
      %4102 = vst [vmem:[%s289 + $0x28] sm:$0xff] %v4054
      %4103 = vst [vmem:[%s289 + $0x30] sm:$0xff] %v4055
      %4104 = vst [vmem:[%s289 + $0x38] sm:$0xff] %v4056
      %4105 = vst [vmem:[%s289 + $0x40] sm:$0xff] %v4057
      %4106 = vst [vmem:[%s289 + $0x48] sm:$0xff] %v4058
      %4107 = vst [vmem:[%s289 + $0x50] sm:$0xff] %v4059
      %4108 = vst [vmem:[%s289 + $0x58] sm:$0xff] %v4060
      %4109 = vst [vmem:[%s289 + $0x60] sm:$0xff] %v4061
      %4110 = vst [vmem:[%s289 + $0x68] sm:$0xff] %v4062
      %4111 = vst [vmem:[%s289 + $0x70] sm:$0xff] %v4063
      %4112 = vst [vmem:[%s289 + $0x78] sm:$0xff] %v4064
      %4113 = vst [vmem:[%s289 + $0x80] sm:$0xff] %v4065
      %4114 = vst [vmem:[%s289 + $0x88] sm:$0xff] %v4066
      %4115 = vst [vmem:[%s289 + $0x90] sm:$0xff] %v4067
      %4116 = vst [vmem:[%s289 + $0x98] sm:$0xff] %v4068
      %4117 = vst [vmem:[%s289 + $0xa0] sm:$0xff] %v4069
      %4118 = vst [vmem:[%s289 + $0xa8] sm:$0xff] %v4070
      %4119 = vst [vmem:[%s289 + $0xb0] sm:$0xff] %v4071
      %4120 = vst [vmem:[%s289 + $0xb8] sm:$0xff] %v4072
      %4121 = vst [vmem:[%s289 + $0xc0] sm:$0xff] %v4073
      %4122 = vst [vmem:[%s289 + $0xc8] sm:$0xff] %v4074
      %4123 = vst [vmem:[%s289 + $0xd0] sm:$0xff] %v4075
      %4124 = vst [vmem:[%s289 + $0xd8] sm:$0xff] %v4076
      %4125 = vst [vmem:[%s289 + $0xe0] sm:$0xff] %v4077
      %4126 = vst [vmem:[%s289 + $0xe8] sm:$0xff] %v4078
      %4127 = vst [vmem:[%s289 + $0xf0] sm:$0xff] %v4079
      %4128 = vst [vmem:[%s289 + $0xf8] sm:$0xff] %v4080
      %4129 = vst [vmem:[%s289 + $0x100] sm:$0xff] %v4081
      %4130 = vst [vmem:[%s289 + $0x108] sm:$0xff] %v4082
      %4131 = vst [vmem:[%s289 + $0x110] sm:$0xff] %v4083
      %4132 = vst [vmem:[%s289 + $0x118] sm:$0xff] %v4084
      %4133 = vst [vmem:[%s289 + $0x120] sm:$0xff] %v4085
      %4134 = vst [vmem:[%s289 + $0x128] sm:$0xff] %v4086
      %4135 = vst [vmem:[%s289 + $0x130] sm:$0xff] %v4087
      %4136 = vst [vmem:[%s289 + $0x138] sm:$0xff] %v4088
      %4137 = vst [vmem:[%s289 + $0x140] sm:$0xff] %v4089
      %4138 = vst [vmem:[%s289 + $0x148] sm:$0xff] %v4090
      %4139 = vst [vmem:[%s289 + $0x150] sm:$0xff] %v4091
      %4140 = vst [vmem:[%s289 + $0x158] sm:$0xff] %v4092
      %4141 = vst [vmem:[%s289 + $0x160] sm:$0xff] %v4093
      %4142 = vst [vmem:[%s289 + $0x168] sm:$0xff] %v4094
      %4143 = vst [vmem:[%s289 + $0x170] sm:$0xff] %v4095
      %4144 = vst [vmem:[%s289 + $0x178] sm:$0xff] %v4096
      %v4145 = vld [vmem:[%s0 + $0x30] sm:$0xff]
      %v4146 = vld [vmem:[%s0 + $0x38] sm:$0xff]
      %v4147 = vld [vmem:[%s0 + $0x40] sm:$0xff]
      %v4148 = vld [vmem:[%s0 + $0x48] sm:$0xff]
      %v4149 = vld [vmem:[%s0 + $0x50] sm:$0xff]
      %v4150 = vld [vmem:[%s0 + $0x58] sm:$0xff]
      %v4151 = vld [vmem:[%s0 + $0x60] sm:$0xff]
      %v4152 = vld [vmem:[%s0 + $0x68] sm:$0xff]
      %v4153 = vld [vmem:[%s0 + $0x70] sm:$0xff]
      %v4154 = vld [vmem:[%s0 + $0x78] sm:$0xff]
      %v4155 = vld [vmem:[%s0 + $0x80] sm:$0xff]
      %v4156 = vld [vmem:[%s0 + $0x88] sm:$0xff]
      %v4157 = vld [vmem:[%s0 + $0x90] sm:$0xff]
      %v4158 = vld [vmem:[%s0 + $0x98] sm:$0xff]
      %v4159 = vld [vmem:[%s0 + $0xa0] sm:$0xff]
      %v4160 = vld [vmem:[%s0 + $0xa8] sm:$0xff]
      %v4161 = vld [vmem:[%s0 + $0xb0] sm:$0xff]
      %v4162 = vld [vmem:[%s0 + $0xb8] sm:$0xff]
      %v4163 = vld [vmem:[%s0 + $0xc0] sm:$0xff]
      %v4164 = vld [vmem:[%s0 + $0xc8] sm:$0xff]
      %v4165 = vld [vmem:[%s0 + $0xd0] sm:$0xff]
      %v4166 = vld [vmem:[%s0 + $0xd8] sm:$0xff]
      %v4167 = vld [vmem:[%s0 + $0xe0] sm:$0xff]
      %v4168 = vld [vmem:[%s0 + $0xe8] sm:$0xff]
      %v4169 = vld [vmem:[%s0 + $0xf0] sm:$0xff]
      %v4170 = vld [vmem:[%s0 + $0xf8] sm:$0xff]
      %v4171 = vld [vmem:[%s0 + $0x100] sm:$0xff]
      %v4172 = vld [vmem:[%s0 + $0x108] sm:$0xff]
      %v4173 = vld [vmem:[%s0 + $0x110] sm:$0xff]
      %v4174 = vld [vmem:[%s0 + $0x118] sm:$0xff]
      %v4175 = vld [vmem:[%s0 + $0x120] sm:$0xff]
      %v4176 = vld [vmem:[%s0 + $0x128] sm:$0xff]
      %v4177 = vld [vmem:[%s0 + $0x130] sm:$0xff]
      %v4178 = vld [vmem:[%s0 + $0x138] sm:$0xff]
      %v4179 = vld [vmem:[%s0 + $0x140] sm:$0xff]
      %v4180 = vld [vmem:[%s0 + $0x148] sm:$0xff]
      %v4181 = vld [vmem:[%s0 + $0x150] sm:$0xff]
      %v4182 = vld [vmem:[%s0 + $0x158] sm:$0xff]
      %v4183 = vld [vmem:[%s0 + $0x160] sm:$0xff]
      %v4184 = vld [vmem:[%s0 + $0x168] sm:$0xff]
      %v4185 = vld [vmem:[%s0 + $0x170] sm:$0xff]
      %v4186 = vld [vmem:[%s0 + $0x178] sm:$0xff]
      %v4187 = vld [vmem:[%s0 + $0x180] sm:$0xff]
      %v4188 = vld [vmem:[%s0 + $0x188] sm:$0xff]
      %v4189 = vld [vmem:[%s0 + $0x190] sm:$0xff]
      %v4190 = vld [vmem:[%s0 + $0x198] sm:$0xff]
      %v4191 = vld [vmem:[%s0 + $0x1a0] sm:$0xff]
      %v4192 = vld [vmem:[%s0 + $0x1a8] sm:$0xff]
      %v4193 = vld [vmem:[%s289] sm:$0xff]
      %v4194 = vld [vmem:[%s289 + $0x8] sm:$0xff]
      %v4195 = vld [vmem:[%s289 + $0x10] sm:$0xff]
      %v4196 = vld [vmem:[%s289 + $0x18] sm:$0xff]
      %v4197 = vld [vmem:[%s289 + $0x20] sm:$0xff]
      %v4198 = vld [vmem:[%s289 + $0x28] sm:$0xff]
      %v4199 = vld [vmem:[%s289 + $0x30] sm:$0xff]
      %v4200 = vld [vmem:[%s289 + $0x38] sm:$0xff]
      %v4201 = vld [vmem:[%s289 + $0x40] sm:$0xff]
      %v4202 = vld [vmem:[%s289 + $0x48] sm:$0xff]
      %v4203 = vld [vmem:[%s289 + $0x50] sm:$0xff]
      %v4204 = vld [vmem:[%s289 + $0x58] sm:$0xff]
      %v4205 = vld [vmem:[%s289 + $0x60] sm:$0xff]
      %v4206 = vld [vmem:[%s289 + $0x68] sm:$0xff]
      %v4207 = vld [vmem:[%s289 + $0x70] sm:$0xff]
      %v4208 = vld [vmem:[%s289 + $0x78] sm:$0xff]
      %v4209 = vld [vmem:[%s289 + $0x80] sm:$0xff]
      %v4210 = vld [vmem:[%s289 + $0x88] sm:$0xff]
      %v4211 = vld [vmem:[%s289 + $0x90] sm:$0xff]
      %v4212 = vld [vmem:[%s289 + $0x98] sm:$0xff]
      %v4213 = vld [vmem:[%s289 + $0xa0] sm:$0xff]
      %v4214 = vld [vmem:[%s289 + $0xa8] sm:$0xff]
      %v4215 = vld [vmem:[%s289 + $0xb0] sm:$0xff]
      %v4216 = vld [vmem:[%s289 + $0xb8] sm:$0xff]
      %v4217 = vld [vmem:[%s289 + $0xc0] sm:$0xff]
      %v4218 = vld [vmem:[%s289 + $0xc8] sm:$0xff]
      %v4219 = vld [vmem:[%s289 + $0xd0] sm:$0xff]
      %v4220 = vld [vmem:[%s289 + $0xd8] sm:$0xff]
      %v4221 = vld [vmem:[%s289 + $0xe0] sm:$0xff]
      %v4222 = vld [vmem:[%s289 + $0xe8] sm:$0xff]
      %v4223 = vld [vmem:[%s289 + $0xf0] sm:$0xff]
      %v4224 = vld [vmem:[%s289 + $0xf8] sm:$0xff]
      %v4225 = vld [vmem:[%s289 + $0x100] sm:$0xff]
      %v4226 = vld [vmem:[%s289 + $0x108] sm:$0xff]
      %v4227 = vld [vmem:[%s289 + $0x110] sm:$0xff]
      %v4228 = vld [vmem:[%s289 + $0x118] sm:$0xff]
      %v4229 = vld [vmem:[%s289 + $0x120] sm:$0xff]
      %v4230 = vld [vmem:[%s289 + $0x128] sm:$0xff]
      %v4231 = vld [vmem:[%s289 + $0x130] sm:$0xff]
      %v4232 = vld [vmem:[%s289 + $0x138] sm:$0xff]
      %v4233 = vld [vmem:[%s289 + $0x140] sm:$0xff]
      %v4234 = vld [vmem:[%s289 + $0x148] sm:$0xff]
      %v4235 = vld [vmem:[%s289 + $0x150] sm:$0xff]
      %v4236 = vld [vmem:[%s289 + $0x158] sm:$0xff]
      %v4237 = vld [vmem:[%s289 + $0x160] sm:$0xff]
      %v4238 = vld [vmem:[%s289 + $0x168] sm:$0xff]
      %v4239 = vld [vmem:[%s289 + $0x170] sm:$0xff]
      %v4240 = vld [vmem:[%s289 + $0x178] sm:$0xff]
      %vm4241 = vcmp.gt.f32.partialorder %v4145, 0.0
      %vm4242 = vcmp.gt.f32.partialorder %v4146, 0.0
      %vm4243 = vcmp.gt.f32.partialorder %v4147, 0.0
      %vm4244 = vcmp.gt.f32.partialorder %v4148, 0.0
      %vm4245 = vcmp.gt.f32.partialorder %v4149, 0.0
      %vm4246 = vcmp.gt.f32.partialorder %v4150, 0.0
      %vm4247 = vcmp.gt.f32.partialorder %v4151, 0.0
      %vm4248 = vcmp.gt.f32.partialorder %v4152, 0.0
      %vm4249 = vcmp.gt.f32.partialorder %v4153, 0.0
      %vm4250 = vcmp.gt.f32.partialorder %v4154, 0.0
      %vm4251 = vcmp.gt.f32.partialorder %v4155, 0.0
      %vm4252 = vcmp.gt.f32.partialorder %v4156, 0.0
      %vm4253 = vcmp.gt.f32.partialorder %v4157, 0.0
      %vm4254 = vcmp.gt.f32.partialorder %v4158, 0.0
      %vm4255 = vcmp.gt.f32.partialorder %v4159, 0.0
      %vm4256 = vcmp.gt.f32.partialorder %v4160, 0.0
      %vm4257 = vcmp.gt.f32.partialorder %v4161, 0.0
      %vm4258 = vcmp.gt.f32.partialorder %v4162, 0.0
      %vm4259 = vcmp.gt.f32.partialorder %v4163, 0.0
      %vm4260 = vcmp.gt.f32.partialorder %v4164, 0.0
      %vm4261 = vcmp.gt.f32.partialorder %v4165, 0.0
      %vm4262 = vcmp.gt.f32.partialorder %v4166, 0.0
      %vm4263 = vcmp.gt.f32.partialorder %v4167, 0.0
      %vm4264 = vcmp.gt.f32.partialorder %v4168, 0.0
      %vm4265 = vcmp.gt.f32.partialorder %v4169, 0.0
      %vm4266 = vcmp.gt.f32.partialorder %v4170, 0.0
      %vm4267 = vcmp.gt.f32.partialorder %v4171, 0.0
      %vm4268 = vcmp.gt.f32.partialorder %v4172, 0.0
      %vm4269 = vcmp.gt.f32.partialorder %v4173, 0.0
      %vm4270 = vcmp.gt.f32.partialorder %v4174, 0.0
      %vm4271 = vcmp.gt.f32.partialorder %v4175, 0.0
      %vm4272 = vcmp.gt.f32.partialorder %v4176, 0.0
      %vm4273 = vcmp.gt.f32.partialorder %v4177, 0.0
      %vm4274 = vcmp.gt.f32.partialorder %v4178, 0.0
      %vm4275 = vcmp.gt.f32.partialorder %v4179, 0.0
      %vm4276 = vcmp.gt.f32.partialorder %v4180, 0.0
      %vm4277 = vcmp.gt.f32.partialorder %v4181, 0.0
      %vm4278 = vcmp.gt.f32.partialorder %v4182, 0.0
      %vm4279 = vcmp.gt.f32.partialorder %v4183, 0.0
      %vm4280 = vcmp.gt.f32.partialorder %v4184, 0.0
      %vm4281 = vcmp.gt.f32.partialorder %v4185, 0.0
      %vm4282 = vcmp.gt.f32.partialorder %v4186, 0.0
      %vm4283 = vcmp.gt.f32.partialorder %v4187, 0.0
      %vm4284 = vcmp.gt.f32.partialorder %v4188, 0.0
      %vm4285 = vcmp.gt.f32.partialorder %v4189, 0.0
      %vm4286 = vcmp.gt.f32.partialorder %v4190, 0.0
      %vm4287 = vcmp.gt.f32.partialorder %v4191, 0.0
      %vm4288 = vcmp.gt.f32.partialorder %v4192, 0.0
      %v4289 = vsel %vm4241, 1, 0
      %v4290 = vsel %vm4242, 1, 0
      %v4291 = vsel %vm4243, 1, 0
      %v4292 = vsel %vm4244, 1, 0
      %v4293 = vsel %vm4245, 1, 0
      %v4294 = vsel %vm4246, 1, 0
      %v4295 = vsel %vm4247, 1, 0
      %v4296 = vsel %vm4248, 1, 0
      %v4297 = vsel %vm4249, 1, 0
      %v4298 = vsel %vm4250, 1, 0
      %v4299 = vsel %vm4251, 1, 0
      %v4300 = vsel %vm4252, 1, 0
      %v4301 = vsel %vm4253, 1, 0
      %v4302 = vsel %vm4254, 1, 0
      %v4303 = vsel %vm4255, 1, 0
      %v4304 = vsel %vm4256, 1, 0
      %v4305 = vsel %vm4257, 1, 0
      %v4306 = vsel %vm4258, 1, 0
      %v4307 = vsel %vm4259, 1, 0
      %v4308 = vsel %vm4260, 1, 0
      %v4309 = vsel %vm4261, 1, 0
      %v4310 = vsel %vm4262, 1, 0
      %v4311 = vsel %vm4263, 1, 0
      %v4312 = vsel %vm4264, 1, 0
      %v4313 = vsel %vm4265, 1, 0
      %v4314 = vsel %vm4266, 1, 0
      %v4315 = vsel %vm4267, 1, 0
      %v4316 = vsel %vm4268, 1, 0
      %v4317 = vsel %vm4269, 1, 0
      %v4318 = vsel %vm4270, 1, 0
      %v4319 = vsel %vm4271, 1, 0
      %v4320 = vsel %vm4272, 1, 0
      %v4321 = vsel %vm4273, 1, 0
      %v4322 = vsel %vm4274, 1, 0
      %v4323 = vsel %vm4275, 1, 0
      %v4324 = vsel %vm4276, 1, 0
      %v4325 = vsel %vm4277, 1, 0
      %v4326 = vsel %vm4278, 1, 0
      %v4327 = vsel %vm4279, 1, 0
      %v4328 = vsel %vm4280, 1, 0
      %v4329 = vsel %vm4281, 1, 0
      %v4330 = vsel %vm4282, 1, 0
      %v4331 = vsel %vm4283, 1, 0
      %v4332 = vsel %vm4284, 1, 0
      %v4333 = vsel %vm4285, 1, 0
      %v4334 = vsel %vm4286, 1, 0
      %v4335 = vsel %vm4287, 1, 0
      %v4336 = vsel %vm4288, 1, 0
      %4337 = vset.pattern.permute.xlu0 0
      %4338 = vperm.xlu0 %4337, %v4289
      %v4339 = vpop.permute.xlu0 %4338
      %4340 = vset.pattern.permute.xlu0 0
      %4341 = vperm.xlu0 %4340, %v4290
      %v4342 = vpop.permute.xlu0 %4341
      %4343 = vset.pattern.permute.xlu0 0
      %4344 = vperm.xlu0 %4343, %v4291
      %v4345 = vpop.permute.xlu0 %4344
      %4346 = vset.pattern.permute.xlu0 0
      %4347 = vperm.xlu0 %4346, %v4292
      %v4348 = vpop.permute.xlu0 %4347
      %4349 = vset.pattern.permute.xlu0 0
      %4350 = vperm.xlu0 %4349, %v4293
      %v4351 = vpop.permute.xlu0 %4350
      %4352 = vset.pattern.permute.xlu0 0
      %4353 = vperm.xlu0 %4352, %v4294
      %v4354 = vpop.permute.xlu0 %4353
      %4355 = vset.pattern.permute.xlu0 0
      %4356 = vperm.xlu0 %4355, %v4295
      %v4357 = vpop.permute.xlu0 %4356
      %4358 = vset.pattern.permute.xlu0 0
      %4359 = vperm.xlu0 %4358, %v4296
      %v4360 = vpop.permute.xlu0 %4359
      %4361 = vset.pattern.permute.xlu0 0
      %4362 = vperm.xlu0 %4361, %v4297
      %v4363 = vpop.permute.xlu0 %4362
      %4364 = vset.pattern.permute.xlu0 0
      %4365 = vperm.xlu0 %4364, %v4298
      %v4366 = vpop.permute.xlu0 %4365
      %4367 = vset.pattern.permute.xlu0 0
      %4368 = vperm.xlu0 %4367, %v4299
      %v4369 = vpop.permute.xlu0 %4368
      %4370 = vset.pattern.permute.xlu0 0
      %4371 = vperm.xlu0 %4370, %v4300
      %v4372 = vpop.permute.xlu0 %4371
      %4373 = vset.pattern.permute.xlu0 0
      %4374 = vperm.xlu0 %4373, %v4301
      %v4375 = vpop.permute.xlu0 %4374
      %4376 = vset.pattern.permute.xlu0 0
      %4377 = vperm.xlu0 %4376, %v4302
      %v4378 = vpop.permute.xlu0 %4377
      %4379 = vset.pattern.permute.xlu0 0
      %4380 = vperm.xlu0 %4379, %v4303
      %v4381 = vpop.permute.xlu0 %4380
      %4382 = vset.pattern.permute.xlu0 0
      %4383 = vperm.xlu0 %4382, %v4304
      %v4384 = vpop.permute.xlu0 %4383
      %4385 = vset.pattern.permute.xlu0 0
      %4386 = vperm.xlu0 %4385, %v4305
      %v4387 = vpop.permute.xlu0 %4386
      %4388 = vset.pattern.permute.xlu0 0
      %4389 = vperm.xlu0 %4388, %v4306
      %v4390 = vpop.permute.xlu0 %4389
      %4391 = vset.pattern.permute.xlu0 0
      %4392 = vperm.xlu0 %4391, %v4307
      %v4393 = vpop.permute.xlu0 %4392
      %4394 = vset.pattern.permute.xlu0 0
      %4395 = vperm.xlu0 %4394, %v4308
      %v4396 = vpop.permute.xlu0 %4395
      %4397 = vset.pattern.permute.xlu0 0
      %4398 = vperm.xlu0 %4397, %v4309
      %v4399 = vpop.permute.xlu0 %4398
      %4400 = vset.pattern.permute.xlu0 0
      %4401 = vperm.xlu0 %4400, %v4310
      %v4402 = vpop.permute.xlu0 %4401
      %4403 = vset.pattern.permute.xlu0 0
      %4404 = vperm.xlu0 %4403, %v4311
      %v4405 = vpop.permute.xlu0 %4404
      %4406 = vset.pattern.permute.xlu0 0
      %4407 = vperm.xlu0 %4406, %v4312
      %v4408 = vpop.permute.xlu0 %4407
      %4409 = vset.pattern.permute.xlu0 0
      %4410 = vperm.xlu0 %4409, %v4313
      %v4411 = vpop.permute.xlu0 %4410
      %4412 = vset.pattern.permute.xlu0 0
      %4413 = vperm.xlu0 %4412, %v4314
      %v4414 = vpop.permute.xlu0 %4413
      %4415 = vset.pattern.permute.xlu0 0
      %4416 = vperm.xlu0 %4415, %v4315
      %v4417 = vpop.permute.xlu0 %4416
      %4418 = vset.pattern.permute.xlu0 0
      %4419 = vperm.xlu0 %4418, %v4316
      %v4420 = vpop.permute.xlu0 %4419
      %4421 = vset.pattern.permute.xlu0 0
      %4422 = vperm.xlu0 %4421, %v4317
      %v4423 = vpop.permute.xlu0 %4422
      %4424 = vset.pattern.permute.xlu0 0
      %4425 = vperm.xlu0 %4424, %v4318
      %v4426 = vpop.permute.xlu0 %4425
      %4427 = vset.pattern.permute.xlu0 0
      %4428 = vperm.xlu0 %4427, %v4319
      %v4429 = vpop.permute.xlu0 %4428
      %4430 = vset.pattern.permute.xlu0 0
      %4431 = vperm.xlu0 %4430, %v4320
      %v4432 = vpop.permute.xlu0 %4431
      %4433 = vset.pattern.permute.xlu0 0
      %4434 = vperm.xlu0 %4433, %v4321
      %v4435 = vpop.permute.xlu0 %4434
      %4436 = vset.pattern.permute.xlu0 0
      %4437 = vperm.xlu0 %4436, %v4322
      %v4438 = vpop.permute.xlu0 %4437
      %4439 = vset.pattern.permute.xlu0 0
      %4440 = vperm.xlu0 %4439, %v4323
      %v4441 = vpop.permute.xlu0 %4440
      %4442 = vset.pattern.permute.xlu0 0
      %4443 = vperm.xlu0 %4442, %v4324
      %v4444 = vpop.permute.xlu0 %4443
      %4445 = vset.pattern.permute.xlu0 0
      %4446 = vperm.xlu0 %4445, %v4325
      %v4447 = vpop.permute.xlu0 %4446
      %4448 = vset.pattern.permute.xlu0 0
      %4449 = vperm.xlu0 %4448, %v4326
      %v4450 = vpop.permute.xlu0 %4449
      %4451 = vset.pattern.permute.xlu0 0
      %4452 = vperm.xlu0 %4451, %v4327
      %v4453 = vpop.permute.xlu0 %4452
      %4454 = vset.pattern.permute.xlu0 0
      %4455 = vperm.xlu0 %4454, %v4328
      %v4456 = vpop.permute.xlu0 %4455
      %4457 = vset.pattern.permute.xlu0 0
      %4458 = vperm.xlu0 %4457, %v4329
      %v4459 = vpop.permute.xlu0 %4458
      %4460 = vset.pattern.permute.xlu0 0
      %4461 = vperm.xlu0 %4460, %v4330
      %v4462 = vpop.permute.xlu0 %4461
      %4463 = vset.pattern.permute.xlu0 0
      %4464 = vperm.xlu0 %4463, %v4331
      %v4465 = vpop.permute.xlu0 %4464
      %4466 = vset.pattern.permute.xlu0 0
      %4467 = vperm.xlu0 %4466, %v4332
      %v4468 = vpop.permute.xlu0 %4467
      %4469 = vset.pattern.permute.xlu0 0
      %4470 = vperm.xlu0 %4469, %v4333
      %v4471 = vpop.permute.xlu0 %4470
      %4472 = vset.pattern.permute.xlu0 0
      %4473 = vperm.xlu0 %4472, %v4334
      %v4474 = vpop.permute.xlu0 %4473
      %4475 = vset.pattern.permute.xlu0 0
      %4476 = vperm.xlu0 %4475, %v4335
      %v4477 = vpop.permute.xlu0 %4476
      %4478 = vset.pattern.permute.xlu0 0
      %4479 = vperm.xlu0 %4478, %v4336
      %v4480 = vpop.permute.xlu0 %4479
      %vm4481 = vcmp.eq.s32.totalorder %v4339, 1
      %vm4482 = vcmp.eq.s32.totalorder %v4342, 1
      %vm4483 = vcmp.eq.s32.totalorder %v4345, 1
      %vm4484 = vcmp.eq.s32.totalorder %v4348, 1
      %vm4485 = vcmp.eq.s32.totalorder %v4351, 1
      %vm4486 = vcmp.eq.s32.totalorder %v4354, 1
      %vm4487 = vcmp.eq.s32.totalorder %v4357, 1
      %vm4488 = vcmp.eq.s32.totalorder %v4360, 1
      %vm4489 = vcmp.eq.s32.totalorder %v4363, 1
      %vm4490 = vcmp.eq.s32.totalorder %v4366, 1
      %vm4491 = vcmp.eq.s32.totalorder %v4369, 1
      %vm4492 = vcmp.eq.s32.totalorder %v4372, 1
      %vm4493 = vcmp.eq.s32.totalorder %v4375, 1
      %vm4494 = vcmp.eq.s32.totalorder %v4378, 1
      %vm4495 = vcmp.eq.s32.totalorder %v4381, 1
      %vm4496 = vcmp.eq.s32.totalorder %v4384, 1
      %vm4497 = vcmp.eq.s32.totalorder %v4387, 1
      %vm4498 = vcmp.eq.s32.totalorder %v4390, 1
      %vm4499 = vcmp.eq.s32.totalorder %v4393, 1
      %vm4500 = vcmp.eq.s32.totalorder %v4396, 1
      %vm4501 = vcmp.eq.s32.totalorder %v4399, 1
      %vm4502 = vcmp.eq.s32.totalorder %v4402, 1
      %vm4503 = vcmp.eq.s32.totalorder %v4405, 1
      %vm4504 = vcmp.eq.s32.totalorder %v4408, 1
      %vm4505 = vcmp.eq.s32.totalorder %v4411, 1
      %vm4506 = vcmp.eq.s32.totalorder %v4414, 1
      %vm4507 = vcmp.eq.s32.totalorder %v4417, 1
      %vm4508 = vcmp.eq.s32.totalorder %v4420, 1
      %vm4509 = vcmp.eq.s32.totalorder %v4423, 1
      %vm4510 = vcmp.eq.s32.totalorder %v4426, 1
      %vm4511 = vcmp.eq.s32.totalorder %v4429, 1
      %vm4512 = vcmp.eq.s32.totalorder %v4432, 1
      %vm4513 = vcmp.eq.s32.totalorder %v4435, 1
      %vm4514 = vcmp.eq.s32.totalorder %v4438, 1
      %vm4515 = vcmp.eq.s32.totalorder %v4441, 1
      %vm4516 = vcmp.eq.s32.totalorder %v4444, 1
      %vm4517 = vcmp.eq.s32.totalorder %v4447, 1
      %vm4518 = vcmp.eq.s32.totalorder %v4450, 1
      %vm4519 = vcmp.eq.s32.totalorder %v4453, 1
      %vm4520 = vcmp.eq.s32.totalorder %v4456, 1
      %vm4521 = vcmp.eq.s32.totalorder %v4459, 1
      %vm4522 = vcmp.eq.s32.totalorder %v4462, 1
      %vm4523 = vcmp.eq.s32.totalorder %v4465, 1
      %vm4524 = vcmp.eq.s32.totalorder %v4468, 1
      %vm4525 = vcmp.eq.s32.totalorder %v4471, 1
      %vm4526 = vcmp.eq.s32.totalorder %v4474, 1
      %vm4527 = vcmp.eq.s32.totalorder %v4477, 1
      %vm4528 = vcmp.eq.s32.totalorder %v4480, 1
      %v4529 = vsel %vm4481, %v4193, 0.0
      %v4530 = vsel %vm4482, %v4194, 0.0
      %v4531 = vsel %vm4483, %v4195, 0.0
      %v4532 = vsel %vm4484, %v4196, 0.0
      %v4533 = vsel %vm4485, %v4197, 0.0
      %v4534 = vsel %vm4486, %v4198, 0.0
      %v4535 = vsel %vm4487, %v4199, 0.0
      %v4536 = vsel %vm4488, %v4200, 0.0
      %v4537 = vsel %vm4489, %v4201, 0.0
      %v4538 = vsel %vm4490, %v4202, 0.0
      %v4539 = vsel %vm4491, %v4203, 0.0
      %v4540 = vsel %vm4492, %v4204, 0.0
      %v4541 = vsel %vm4493, %v4205, 0.0
      %v4542 = vsel %vm4494, %v4206, 0.0
      %v4543 = vsel %vm4495, %v4207, 0.0
      %v4544 = vsel %vm4496, %v4208, 0.0
      %v4545 = vsel %vm4497, %v4209, 0.0
      %v4546 = vsel %vm4498, %v4210, 0.0
      %v4547 = vsel %vm4499, %v4211, 0.0
      %v4548 = vsel %vm4500, %v4212, 0.0
      %v4549 = vsel %vm4501, %v4213, 0.0
      %v4550 = vsel %vm4502, %v4214, 0.0
      %v4551 = vsel %vm4503, %v4215, 0.0
      %v4552 = vsel %vm4504, %v4216, 0.0
      %v4553 = vsel %vm4505, %v4217, 0.0
      %v4554 = vsel %vm4506, %v4218, 0.0
      %v4555 = vsel %vm4507, %v4219, 0.0
      %v4556 = vsel %vm4508, %v4220, 0.0
      %v4557 = vsel %vm4509, %v4221, 0.0
      %v4558 = vsel %vm4510, %v4222, 0.0
      %v4559 = vsel %vm4511, %v4223, 0.0
      %v4560 = vsel %vm4512, %v4224, 0.0
      %v4561 = vsel %vm4513, %v4225, 0.0
      %v4562 = vsel %vm4514, %v4226, 0.0
      %v4563 = vsel %vm4515, %v4227, 0.0
      %v4564 = vsel %vm4516, %v4228, 0.0
      %v4565 = vsel %vm4517, %v4229, 0.0
      %v4566 = vsel %vm4518, %v4230, 0.0
      %v4567 = vsel %vm4519, %v4231, 0.0
      %v4568 = vsel %vm4520, %v4232, 0.0
      %v4569 = vsel %vm4521, %v4233, 0.0
      %v4570 = vsel %vm4522, %v4234, 0.0
      %v4571 = vsel %vm4523, %v4235, 0.0
      %v4572 = vsel %vm4524, %v4236, 0.0
      %v4573 = vsel %vm4525, %v4237, 0.0
      %v4574 = vsel %vm4526, %v4238, 0.0
      %v4575 = vsel %vm4527, %v4239, 0.0
      %v4576 = vsel %vm4528, %v4240, 0.0
      %v4577 = vadd.f32 %v4529, %v4530
      %v4578 = vadd.f32 %v4577, %v4531
      %v4579 = vadd.f32 %v4578, %v4532
      %v4580 = vadd.f32 %v4579, %v4533
      %v4581 = vadd.f32 %v4580, %v4534
      %v4582 = vadd.f32 %v4581, %v4535
      %v4583 = vadd.f32 %v4582, %v4536
      %v4584 = vadd.f32 %v4583, %v4537
      %v4585 = vadd.f32 %v4584, %v4538
      %v4586 = vadd.f32 %v4585, %v4539
      %v4587 = vadd.f32 %v4586, %v4540
      %v4588 = vadd.f32 %v4587, %v4541
      %v4589 = vadd.f32 %v4588, %v4542
      %v4590 = vadd.f32 %v4589, %v4543
      %v4591 = vadd.f32 %v4590, %v4544
      %v4592 = vadd.f32 %v4591, %v4545
      %v4593 = vadd.f32 %v4592, %v4546
      %v4594 = vadd.f32 %v4593, %v4547
      %v4595 = vadd.f32 %v4594, %v4548
      %v4596 = vadd.f32 %v4595, %v4549
      %v4597 = vadd.f32 %v4596, %v4550
      %v4598 = vadd.f32 %v4597, %v4551
      %v4599 = vadd.f32 %v4598, %v4552
      %v4600 = vadd.f32 %v4599, %v4553
      %v4601 = vadd.f32 %v4600, %v4554
      %v4602 = vadd.f32 %v4601, %v4555
      %v4603 = vadd.f32 %v4602, %v4556
      %v4604 = vadd.f32 %v4603, %v4557
      %v4605 = vadd.f32 %v4604, %v4558
      %v4606 = vadd.f32 %v4605, %v4559
      %v4607 = vadd.f32 %v4606, %v4560
      %v4608 = vadd.f32 %v4607, %v4561
      %v4609 = vadd.f32 %v4608, %v4562
      %v4610 = vadd.f32 %v4609, %v4563
      %v4611 = vadd.f32 %v4610, %v4564
      %v4612 = vadd.f32 %v4611, %v4565
      %v4613 = vadd.f32 %v4612, %v4566
      %v4614 = vadd.f32 %v4613, %v4567
      %v4615 = vadd.f32 %v4614, %v4568
      %v4616 = vadd.f32 %v4615, %v4569
      %v4617 = vadd.f32 %v4616, %v4570
      %v4618 = vadd.f32 %v4617, %v4571
      %v4619 = vadd.f32 %v4618, %v4572
      %v4620 = vadd.f32 %v4619, %v4573
      %v4621 = vadd.f32 %v4620, %v4574
      %v4622 = vadd.f32 %v4621, %v4575
      %v4623 = vadd.f32 %v4622, %v4576
      %v4624 = vrot.slane %v4623, 4
      %v4625 = vadd.f32 %v4623, %v4624
      %v4626 = vrot.slane %v4625, 2
      %v4627 = vadd.f32 %v4625, %v4626
      %v4628 = vrot.slane %v4627, 1
      %v4629 = vadd.f32 %v4627, %v4628
      %4630 = vst [vmem:[%s292] sm:$0x1] %v4629
      %v4631 = vmul.f32 %v4529, %v4529
      %v4632 = vmul.f32 %v4530, %v4530
      %v4633 = vmul.f32 %v4531, %v4531
      %v4634 = vmul.f32 %v4532, %v4532
      %v4635 = vmul.f32 %v4533, %v4533
      %v4636 = vmul.f32 %v4534, %v4534
      %v4637 = vmul.f32 %v4535, %v4535
      %v4638 = vmul.f32 %v4536, %v4536
      %v4639 = vmul.f32 %v4537, %v4537
      %v4640 = vmul.f32 %v4538, %v4538
      %v4641 = vmul.f32 %v4539, %v4539
      %v4642 = vmul.f32 %v4540, %v4540
      %v4643 = vmul.f32 %v4541, %v4541
      %v4644 = vmul.f32 %v4542, %v4542
      %v4645 = vmul.f32 %v4543, %v4543
      %v4646 = vmul.f32 %v4544, %v4544
      %v4647 = vmul.f32 %v4545, %v4545
      %v4648 = vmul.f32 %v4546, %v4546
      %v4649 = vmul.f32 %v4547, %v4547
      %v4650 = vmul.f32 %v4548, %v4548
      %v4651 = vmul.f32 %v4549, %v4549
      %v4652 = vmul.f32 %v4550, %v4550
      %v4653 = vmul.f32 %v4551, %v4551
      %v4654 = vmul.f32 %v4552, %v4552
      %v4655 = vmul.f32 %v4553, %v4553
      %v4656 = vmul.f32 %v4554, %v4554
      %v4657 = vmul.f32 %v4555, %v4555
      %v4658 = vmul.f32 %v4556, %v4556
      %v4659 = vmul.f32 %v4557, %v4557
      %v4660 = vmul.f32 %v4558, %v4558
      %v4661 = vmul.f32 %v4559, %v4559
      %v4662 = vmul.f32 %v4560, %v4560
      %v4663 = vmul.f32 %v4561, %v4561
      %v4664 = vmul.f32 %v4562, %v4562
      %v4665 = vmul.f32 %v4563, %v4563
      %v4666 = vmul.f32 %v4564, %v4564
      %v4667 = vmul.f32 %v4565, %v4565
      %v4668 = vmul.f32 %v4566, %v4566
      %v4669 = vmul.f32 %v4567, %v4567
      %v4670 = vmul.f32 %v4568, %v4568
      %v4671 = vmul.f32 %v4569, %v4569
      %v4672 = vmul.f32 %v4570, %v4570
      %v4673 = vmul.f32 %v4571, %v4571
      %v4674 = vmul.f32 %v4572, %v4572
      %v4675 = vmul.f32 %v4573, %v4573
      %v4676 = vmul.f32 %v4574, %v4574
      %v4677 = vmul.f32 %v4575, %v4575
      %v4678 = vmul.f32 %v4576, %v4576
      %v4679 = vadd.f32 %v4631, %v4632
      %v4680 = vadd.f32 %v4679, %v4633
      %v4681 = vadd.f32 %v4680, %v4634
      %v4682 = vadd.f32 %v4681, %v4635
      %v4683 = vadd.f32 %v4682, %v4636
      %v4684 = vadd.f32 %v4683, %v4637
      %v4685 = vadd.f32 %v4684, %v4638
      %v4686 = vadd.f32 %v4685, %v4639
      %v4687 = vadd.f32 %v4686, %v4640
      %v4688 = vadd.f32 %v4687, %v4641
      %v4689 = vadd.f32 %v4688, %v4642
      %v4690 = vadd.f32 %v4689, %v4643
      %v4691 = vadd.f32 %v4690, %v4644
      %v4692 = vadd.f32 %v4691, %v4645
      %v4693 = vadd.f32 %v4692, %v4646
      %v4694 = vadd.f32 %v4693, %v4647
      %v4695 = vadd.f32 %v4694, %v4648
      %v4696 = vadd.f32 %v4695, %v4649
      %v4697 = vadd.f32 %v4696, %v4650
      %v4698 = vadd.f32 %v4697, %v4651
      %v4699 = vadd.f32 %v4698, %v4652
      %v4700 = vadd.f32 %v4699, %v4653
      %v4701 = vadd.f32 %v4700, %v4654
      %v4702 = vadd.f32 %v4701, %v4655
      %v4703 = vadd.f32 %v4702, %v4656
      %v4704 = vadd.f32 %v4703, %v4657
      %v4705 = vadd.f32 %v4704, %v4658
      %v4706 = vadd.f32 %v4705, %v4659
      %v4707 = vadd.f32 %v4706, %v4660
      %v4708 = vadd.f32 %v4707, %v4661
      %v4709 = vadd.f32 %v4708, %v4662
      %v4710 = vadd.f32 %v4709, %v4663
      %v4711 = vadd.f32 %v4710, %v4664
      %v4712 = vadd.f32 %v4711, %v4665
      %v4713 = vadd.f32 %v4712, %v4666
      %v4714 = vadd.f32 %v4713, %v4667
      %v4715 = vadd.f32 %v4714, %v4668
      %v4716 = vadd.f32 %v4715, %v4669
      %v4717 = vadd.f32 %v4716, %v4670
      %v4718 = vadd.f32 %v4717, %v4671
      %v4719 = vadd.f32 %v4718, %v4672
      %v4720 = vadd.f32 %v4719, %v4673
      %v4721 = vadd.f32 %v4720, %v4674
      %v4722 = vadd.f32 %v4721, %v4675
      %v4723 = vadd.f32 %v4722, %v4676
      %v4724 = vadd.f32 %v4723, %v4677
      %v4725 = vadd.f32 %v4724, %v4678
      %v4726 = vrot.slane %v4725, 4
      %v4727 = vadd.f32 %v4725, %v4726
      %v4728 = vrot.slane %v4727, 2
      %v4729 = vadd.f32 %v4727, %v4728
      %v4730 = vrot.slane %v4729, 1
      %v4731 = vadd.f32 %v4729, %v4730
      %4732 = vst [vmem:[%s295] sm:$0x1] %v4731
      %p4733 = scmp.lt.s32.totalorder %s19, 1
      %s4734 = scalar_select %p4733, %s19, 1
      %s4735 = smul.addr %s4734, 48
      %s4736 = smul.addr %s4735, 8
      %s4737 = scalar_lea.vmem %s5, %s4736
      %p4738 = scmp.lt.s32.totalorder %s19, 1
      %s4739 = scalar_select %p4738, %s19, 1
      %s4740 = scalar_lea.vmem %s6, %s4739
      %p4741 = scmp.lt.s32.totalorder %s19, 1
      %s4742 = scalar_select %p4741, %s19, 1
      %s4743 = scalar_lea.vmem %s7, %s4742
      // Predicated region
      $region41: #{double_conv.4} parent=39 // pred_check
        %p4744 = pneg %p147
      $region42: #{double_conv.4} parent=39 // pred_check_branch
        %4746 = sbr.rel (%p4744) target = $region44
      $region43: #{double_conv.4} parent=39 // pred_region
        _
      $region44: #{double_conv.4} parent=39 // pred_fallthru
        _
      // Predicated region
      $region45: #{double_conv.4} parent=39 // pred_check
        %p4747 = pneg %p173
      $region46: #{double_conv.4} parent=39 // pred_check_branch
        %4749 = sbr.rel (%p4747) target = $region48
      $region47: #{double_conv.4} parent=39 // pred_region
        _
      $region48: #{double_conv.4} parent=39 // pred_fallthru
        _
      // Predicated region
      $region49: #{double_conv.4} parent=39 // pred_check
        %p4750 = pneg %p199
      $region50: #{double_conv.4} parent=39 // pred_check_branch
        %4752 = sbr.rel (%p4750) target = $region52
      $region51: #{double_conv.4} parent=39 // pred_region
        _
      $region52: #{double_conv.4} parent=39 // pred_fallthru
        _
    $region40: #{double_conv.4} parent=5 // pred_fallthru
      _
    %p4753 = scmp.le.s32.totalorder 2, %s14
    // Predicated region
    $region53: #{double_conv.4} parent=5 // pred_check
      %p4754 = pneg %p4753
    $region54: #{double_conv.4} parent=5 // pred_check_branch
      %4756 = sbr.rel (%p4754) target = $region56
    $region55: #{double_conv.4} parent=5 // pred_region
      %s4757 = ssub.s32 %s14, 2
      // Predicated region
      $region57: #{double_conv.4} parent=55 // pred_check
        %p4758 = pneg %p153
      $region58: #{double_conv.4} parent=55 // pred_check_branch
        %4760 = sbr.rel (%p4758) target = $region60
      $region59: #{double_conv.4} parent=55 // pred_region
        %p4761 = scmp.lt.s32.totalorder %s20, 1
        %s4762 = scalar_select %p4761, %s20, 1
        %s4763 = smul.addr %s4762, 48
        %s4764 = smul.addr %s4763, 8
        %s4765 = scalar_lea.vmem %s5, %s4764
      $region60: #{double_conv.4} parent=55 // pred_fallthru
        _
      // Predicated region
      $region61: #{double_conv.4} parent=55 // pred_check
        %p4766 = pneg %p179
      $region62: #{double_conv.4} parent=55 // pred_check_branch
        %4768 = sbr.rel (%p4766) target = $region64
      $region63: #{double_conv.4} parent=55 // pred_region
        %p4769 = scmp.lt.s32.totalorder %s20, 1
        %s4770 = scalar_select %p4769, %s20, 1
        %s4771 = scalar_lea.vmem %s6, %s4770
      $region64: #{double_conv.4} parent=55 // pred_fallthru
        _
      // Predicated region
      $region65: #{double_conv.4} parent=55 // pred_check
        %p4772 = pneg %p205
      $region66: #{double_conv.4} parent=55 // pred_check_branch
        %4774 = sbr.rel (%p4772) target = $region68
      $region67: #{double_conv.4} parent=55 // pred_region
        %p4775 = scmp.lt.s32.totalorder %s20, 1
        %s4776 = scalar_select %p4775, %s20, 1
        %s4777 = scalar_lea.vmem %s7, %s4776
      $region68: #{double_conv.4} parent=55 // pred_fallthru
        _
    $region56: #{double_conv.4} parent=5 // pred_fallthru
      _
  $region6: #{double_conv.4} parent=0 // loop_footer
    %s18 = sadd.s32 1, %s14
  $region7: #{double_conv.4} parent=0 // loop_footer_branch
    %13 = sbr.rel target = $region3
  $region8: #{double_conv.4} parent=0 // loop_exit
    _

</llo_original>
